<compile_context>
chip_gen: v6e
topology: v6e:2x2x1
jax: 0.10.0
libtpu: 0.0.40
codegen_flags: <defaults>
</compile_context>

<pallas_src>
import numpy as np
import jax
import jax.numpy as jnp
from jax.experimental import pallas as pl
from jax.experimental.pallas import tpu as pltpu

NUM_CLASSES = 10  # num_classes for LeNetClassifier1


# --------------------------------------------------------------------------
# Fused kernel: (conv1+pool1) + ReLU + (conv2+pool2) + ReLU + fc1..fc3.
# Every layer is a (TB, K) @ (K, N) matmul on the MXU with f32 accumulation.
# --------------------------------------------------------------------------
def lenet_fused_kernel(x_ref,                # (TB, 784)   bf16 flattened image
                       m1_ref, b1_ref,       # (784, 1176) bf16, (1, 1176) f32
                       m2_ref, b2_ref,       # (1176, 400) bf16, (1, 400)  f32
                       fc1w_ref, fc1b_ref,   # (400, 120)  bf16, (1, 120)  f32
                       fc2w_ref, fc2b_ref,   # (120, 84)   bf16, (1, 84)   f32
                       fc3w_ref, fc3b_ref,   # (84, NCP)   bf16, (1, NCP)  f32
                       out_ref):             # (TB, NCP)   f32
    f32, bf16 = jnp.float32, jnp.bfloat16
    # conv1 + avgpool1 (folded into m1) + bias + ReLU -> (TB, 1176)
    h1 = jnp.maximum(
        jnp.dot(x_ref[...], m1_ref[...], preferred_element_type=f32)
        + b1_ref[...], 0.0).astype(bf16)
    # conv2 + avgpool2 (folded into m2) + bias + ReLU -> (TB, 400)
    h2 = jnp.maximum(
        jnp.dot(h1, m2_ref[...], preferred_element_type=f32)
        + b2_ref[...], 0.0).astype(bf16)
    # fc1 + ReLU -> (TB, 120)
    h3 = jnp.maximum(
        jnp.dot(h2, fc1w_ref[...], preferred_element_type=f32)
        + fc1b_ref[...], 0.0).astype(bf16)
    # fc2 + ReLU -> (TB, 84)
    h4 = jnp.maximum(
        jnp.dot(h3, fc2w_ref[...], preferred_element_type=f32)
        + fc2b_ref[...], 0.0).astype(bf16)
    # fc3 -> lane-dense padded logits (TB, NCP)
    out_ref[...] = (jnp.dot(h4, fc3w_ref[...], preferred_element_type=f32)
                    + fc3b_ref[...])


# --------------------------------------------------------------------------
# Host-side constant gather tensors (built once with numpy).
# --------------------------------------------------------------------------
def _make_conv1_pool_gather():
    # A[pixel, o, k] = 0.25 * (#2x2-pool offsets for which pooled conv1 output
    # position o reads input pixel `pixel` through 5x5 kernel offset k).
    # conv1 uses 'same' padding (pad=2); zero padding contributes nothing.
    A = np.zeros((784, 196, 25), np.float32)
    for poh in range(14):
        for pow_ in range(14):
            o = poh * 14 + pow_
            for kh in range(5):
                for kw in range(5):
                    k = kh * 5 + kw
                    for dh in range(2):
                        for dw in range(2):
                            ih = 2 * poh + dh + kh - 2
                            iw = 2 * pow_ + dw + kw - 2
                            if 0 <= ih < 28 and 0 <= iw < 28:
                                A[ih * 28 + iw, o, k] += 0.25
    return A


def _make_conv2_pool_gather():
    # A[o, k, s] = 0.25 where pooled conv2 output position o (5x5) reads the
    # 14x14 conv1 map at flattened position s through kernel offset k.
    A = np.zeros((25, 25, 196), np.float32)
    for poh in range(5):
        for pow_ in range(5):
            o = poh * 5 + pow_
            for kh in range(5):
                for kw in range(5):
                    k = kh * 5 + kw
                    for dh in range(2):
                        for dw in range(2):
                            sh = 2 * poh + dh + kh
                            sw = 2 * pow_ + dw + kw
                            A[o, k, sh * 14 + sw] += 0.25
    return A


PG1 = jnp.asarray(_make_conv1_pool_gather())   # (784, 196, 25)
PG2 = jnp.asarray(_make_conv2_pool_gather())   # (25, 25, 196)


def _round_up(a, m):
    return ((a + m - 1) // m) * m


def _choose_tb(batch, block_b):
    """Batch block: multiple of 16 (bf16 sublanes), capped at block_b, and
    giving >= 2 grid steps when the batch allows (v7x megacore sharding)."""
    bp = _round_up(batch, 16)
    if bp <= 16:
        return 16
    return max(16, min(int(block_b), _round_up((bp + 1) // 2, 16)))


# --------------------------------------------------------------------------
# Wrapper: constant folding of conv layers (plain JAX) + one pallas_call.
# --------------------------------------------------------------------------
def lenet_forward(x, params, block_b=256):
    """x: (B, 1, 28, 28) NCHW float32 -> logits (B, num_classes)."""
    (c1w, c1b, c2w, c2b, f1w, f1b, f2w, f2b, f3w, f3b) = params
    B = x.shape[0]
    nc = f3w.shape[0]
    NCP = _round_up(nc, 128)                       # lane-dense padded logits

    TB = _choose_tb(B, block_b)
    assert TB % 16 == 0                            # bf16 sublane tile = 16 rows
    Bp = _round_up(B, TB)
    nb = Bp // TB

    # ---- input: flatten + cast only (no host-side im2col) ------------------
    x2d = x.reshape(B, 784).astype(jnp.bfloat16)
    if Bp != B:
        x2d = jnp.concatenate(
            [x2d, jnp.zeros((Bp - B, 784), jnp.bfloat16)], axis=0)

    # ---- conv1 + avgpool1 folded into one (784, 1176) matrix ---------------
    # column index = s*6 + f  (s: pooled 14x14 position, f: conv1 channel)
    w1k = c1w.reshape(6, 25).T.astype(jnp.float32)                 # (25, 6)
    m1 = jnp.einsum('pok,kf->pof', PG1, w1k).reshape(784, 1176)
    m1 = m1.astype(jnp.bfloat16)
    b1big = jnp.tile(c1b.astype(jnp.float32), 196).reshape(1, 1176)

    # ---- conv2 + avgpool2 folded into one (1176, 400) matrix ---------------
    # rows: s*6 + c (matches m1 column order); cols: o*16 + f
    w2k = jnp.transpose(c2w, (2, 3, 1, 0)).reshape(25, 6, 16).astype(jnp.float32)
    m2 = jnp.einsum('oks,kcf->scof', PG2, w2k).reshape(1176, 400)
    m2 = m2.astype(jnp.bfloat16)
    b2big = jnp.tile(c2b.astype(jnp.float32), 25).reshape(1, 400)

    # ---- fc weights (match the (o, f) flatten order of our conv2 output) ---
    fc1w_p = jnp.transpose(f1w.reshape(120, 16, 25),
                           (2, 1, 0)).reshape(400, 120).astype(jnp.bfloat16)
    fc1b_p = f1b.reshape(1, 120).astype(jnp.float32)
    fc2w_p = f2w.T.astype(jnp.bfloat16)                            # (120, 84)
    fc2b_p = f2b.reshape(1, 84).astype(jnp.float32)
    fc3w_p = jnp.zeros((84, NCP), jnp.float32).at[:, :nc].set(
        f3w.T).astype(jnp.bfloat16)                                # (84, NCP)
    fc3b_p = jnp.zeros((1, NCP), jnp.float32).at[:, :nc].set(f3b[None, :])

    # Advisory cost estimate so XLA can overlap wrapper prep with the kernel.
    k_sizes = (784 * 1176 + 1176 * 400 + 400 * 120 + 120 * 84 + 84 * NCP)
    flops = 2 * Bp * (784 * 1176 + 1176 * 400 + 400 * 120 + 120 * 84 + 84 * NCP)
    bytes_accessed = (Bp * 784 * 2 + Bp * NCP * 4 + k_sizes * 2
                      + (1176 + 400 + 120 + 84 + NCP) * 4)

    out = pl.pallas_call(
        lenet_fused_kernel,
        out_shape=jax.ShapeDtypeStruct((Bp, NCP), jnp.float32),
        grid=(nb,),
        in_specs=[
            pl.BlockSpec((TB, 784), lambda i: (i, 0)),
            pl.BlockSpec((784, 1176), lambda i: (0, 0)),
            pl.BlockSpec((1, 1176), lambda i: (0, 0)),
            pl.BlockSpec((1176, 400), lambda i: (0, 0)),
            pl.BlockSpec((1, 400), lambda i: (0, 0)),
            pl.BlockSpec((400, 120), lambda i: (0, 0)),
            pl.BlockSpec((1, 120), lambda i: (0, 0)),
            pl.BlockSpec((120, 84), lambda i: (0, 0)),
            pl.BlockSpec((1, 84), lambda i: (0, 0)),
            pl.BlockSpec((84, NCP), lambda i: (0, 0)),
            pl.BlockSpec((1, NCP), lambda i: (0, 0)),
        ],
        out_specs=pl.BlockSpec((TB, NCP), lambda i: (i, 0)),
        compiler_params=pltpu.CompilerParams(
            dimension_semantics=("parallel",),
            vmem_limit_bytes=48 * 1024 * 1024),
        cost_estimate=pl.CostEstimate(flops=int(flops), transcendentals=0,
                                      bytes_accessed=int(bytes_accessed)),
    )(x2d, m1, b1big, m2, b2big, fc1w_p, fc1b_p, fc2w_p, fc2b_p,
      fc3w_p, fc3b_p)

    return out[:B, :nc]


# --------------------------------------------------------------------------
# Pure-JAX reference (mirrors the PyTorch forward exactly)
# --------------------------------------------------------------------------
def reference_forward(x, params):
    (c1w, c1b, c2w, c2b, f1w, f1b, f2w, f2b, f3w, f3b) = params
    hi = jax.lax.Precision.HIGHEST
    y = jax.lax.conv_general_dilated(
        x, c1w, (1, 1), ((2, 2), (2, 2)),
        dimension_numbers=('NCHW', 'OIHW', 'NCHW'),
        precision=hi) + c1b[None, :, None, None]
    B, C, H, W = y.shape
    y = y.reshape(B, C, H // 2, 2, W // 2, 2).mean(axis=(3, 5))
    y = jnp.maximum(y, 0.0)
    y = jax.lax.conv_general_dilated(
        y, c2w, (1, 1), 'VALID',
        dimension_numbers=('NCHW', 'OIHW', 'NCHW'),
        precision=hi) + c2b[None, :, None, None]
    B, C, H, W = y.shape
    y = y.reshape(B, C, H // 2, 2, W // 2, 2).mean(axis=(3, 5))
    y = jnp.maximum(y, 0.0)
    y = y.reshape(B, -1)                     # PyTorch flatten order (C, H, W)
    y = jnp.maximum(jnp.matmul(y, f1w.T, precision=hi) + f1b, 0.0)
    y = jnp.maximum(jnp.matmul(y, f2w.T, precision=hi) + f2b, 0.0)
    return jnp.matmul(y, f3w.T, precision=hi) + f3b


if __name__ == "__main__":
    B = 50                                   # exercises padding + 2 grid steps
    key = jax.random.PRNGKey(0)
    ks = jax.random.split(key, 11)
    x = jax.random.normal(ks[0], (B, 1, 28, 28), jnp.float32)

    # Deterministic synthetic parameters (PyTorch shape conventions)
    conv1_w = jax.random.normal(ks[1], (6, 1, 5, 5), jnp.float32) * 0.2
    conv1_b = jax.random.normal(ks[2], (6,), jnp.float32) * 0.1
    conv2_w = jax.random.normal(ks[3], (16, 6, 5, 5), jnp.float32) * 0.1
    conv2_b = jax.random.normal(ks[4], (16,), jnp.float32) * 0.1
    fc1_w = jax.random.normal(ks[5], (120, 400), jnp.float32) * 0.05
    fc1_b = jax.random.normal(ks[6], (120,), jnp.float32) * 0.05
    fc2_w = jax.random.normal(ks[7], (84, 120), jnp.float32) * 0.05
    fc2_b = jax.random.normal(ks[8], (84,), jnp.float32) * 0.05
    fc3_w = jax.random.normal(ks[9], (NUM_CLASSES, 84), jnp.float32) * 0.05
    fc3_b = jax.random.normal(ks[10], (NUM_CLASSES,), jnp.float32) * 0.05
    params = (conv1_w, conv1_b, conv2_w, conv2_b,
              fc1_w, fc1_b, fc2_w, fc2_b, fc3_w, fc3_b)

    fwd = jax.jit(lambda xx, pp: lenet_forward(xx, pp, block_b=256))
    out = jax.block_until_ready(fwd(x, params))

    ref = jax.block_until_ready(reference_forward(x, params))
    np.testing.assert_allclose(np.asarray(out), np.asarray(ref),
                               rtol=3e-2, atol=3e-2)
    print("KERNEL_OK")
</pallas_src>

<mosaic_0001>
module attributes {stable_mosaic.version = 11 : i64} {
  func.func @lenet_fused_kernel(%arg0: i32, %arg1: memref<32x784xbf16, #tpu.memory_space<vmem>>, %arg2: memref<784x1176xbf16, #tpu.memory_space<vmem>>, %arg3: memref<1x1176xf32, #tpu.memory_space<vmem>>, %arg4: memref<1176x400xbf16, #tpu.memory_space<vmem>>, %arg5: memref<1x400xf32, #tpu.memory_space<vmem>>, %arg6: memref<400x120xbf16, #tpu.memory_space<vmem>>, %arg7: memref<1x120xf32, #tpu.memory_space<vmem>>, %arg8: memref<120x84xbf16, #tpu.memory_space<vmem>>, %arg9: memref<1x84xf32, #tpu.memory_space<vmem>>, %arg10: memref<84x128xbf16, #tpu.memory_space<vmem>>, %arg11: memref<1x128xf32, #tpu.memory_space<vmem>>, %arg12: memref<32x128xf32, #tpu.memory_space<vmem>>) attributes {dimension_semantics = [#tpu.dimension_semantics<parallel>], iteration_bounds = array<i64: 2>, scalar_prefetch = 0 : i64, scratch_operands = 0 : i64, tpu.core_type = #tpu.core_type<tc>, window_params = [{transform_indices = @transform_0, window_bounds = array<i64: 32, 784>}, {pipeline_mode = #tpu.pipeline_mode<synchronous>, transform_indices = @transform_1, window_bounds = array<i64: 784, 1176>}, {pipeline_mode = #tpu.pipeline_mode<synchronous>, transform_indices = @transform_2, window_bounds = array<i64: 1, 1176>}, {pipeline_mode = #tpu.pipeline_mode<synchronous>, transform_indices = @transform_3, window_bounds = array<i64: 1176, 400>}, {pipeline_mode = #tpu.pipeline_mode<synchronous>, transform_indices = @transform_4, window_bounds = array<i64: 1, 400>}, {pipeline_mode = #tpu.pipeline_mode<synchronous>, transform_indices = @transform_5, window_bounds = array<i64: 400, 120>}, {pipeline_mode = #tpu.pipeline_mode<synchronous>, transform_indices = @transform_6, window_bounds = array<i64: 1, 120>}, {pipeline_mode = #tpu.pipeline_mode<synchronous>, transform_indices = @transform_7, window_bounds = array<i64: 120, 84>}, {pipeline_mode = #tpu.pipeline_mode<synchronous>, transform_indices = @transform_8, window_bounds = array<i64: 1, 84>}, {pipeline_mode = #tpu.pipeline_mode<synchronous>, transform_indices = @transform_9, window_bounds = array<i64: 84, 128>}, {pipeline_mode = #tpu.pipeline_mode<synchronous>, transform_indices = @transform_10, window_bounds = array<i64: 1, 128>}, {transform_indices = @transform_11, window_bounds = array<i64: 32, 128>}]} {
    %c0 = arith.constant 0 : index
    %c0_0 = arith.constant 0 : index
    %0 = vector.load %arg1[%c0, %c0_0] : memref<32x784xbf16, #tpu.memory_space<vmem>>, vector<32x784xbf16>
    %c0_1 = arith.constant 0 : index
    %c0_2 = arith.constant 0 : index
    %1 = vector.load %arg2[%c0_1, %c0_2] : memref<784x1176xbf16, #tpu.memory_space<vmem>>, vector<784x1176xbf16>
    %cst = arith.constant dense<0.000000e+00> : vector<32x1176xf32>
    %2 = tpu.matmul %0, %1, %cst {dimension_numbers = #tpu.dot_dimension_numbers<[1], [0], [0], [1], [0, 0, 1, 1], [], []>} : vector<32x784xbf16>, vector<784x1176xbf16>, vector<32x1176xf32> -> vector<32x1176xf32>
    %c0_3 = arith.constant 0 : index
    %c0_4 = arith.constant 0 : index
    %3 = vector.load %arg3[%c0_3, %c0_4] : memref<1x1176xf32, #tpu.memory_space<vmem>>, vector<1x1176xf32>
    %4 = vector.broadcast %3 : vector<1x1176xf32> to vector<32x1176xf32>
    %5 = arith.addf %2, %4 : vector<32x1176xf32>
    %cst_5 = arith.constant 0.000000e+00 : f32
    %6 = vector.broadcast %cst_5 : f32 to vector<32x1176xf32>
    %7 = arith.maximumf %5, %6 : vector<32x1176xf32>
    %8 = arith.truncf %7 : vector<32x1176xf32> to vector<32x1176xbf16>
    %c0_6 = arith.constant 0 : index
    %c0_7 = arith.constant 0 : index
    %9 = vector.load %arg4[%c0_6, %c0_7] : memref<1176x400xbf16, #tpu.memory_space<vmem>>, vector<1176x400xbf16>
    %cst_8 = arith.constant dense<0.000000e+00> : vector<32x400xf32>
    %10 = tpu.matmul %8, %9, %cst_8 {dimension_numbers = #tpu.dot_dimension_numbers<[1], [0], [0], [1], [0, 0, 1, 1], [], []>} : vector<32x1176xbf16>, vector<1176x400xbf16>, vector<32x400xf32> -> vector<32x400xf32>
    %c0_9 = arith.constant 0 : index
    %c0_10 = arith.constant 0 : index
    %11 = vector.load %arg5[%c0_9, %c0_10] : memref<1x400xf32, #tpu.memory_space<vmem>>, vector<1x400xf32>
    %12 = vector.broadcast %11 : vector<1x400xf32> to vector<32x400xf32>
    %13 = arith.addf %10, %12 : vector<32x400xf32>
    %cst_11 = arith.constant 0.000000e+00 : f32
    %14 = vector.broadcast %cst_11 : f32 to vector<32x400xf32>
    %15 = arith.maximumf %13, %14 : vector<32x400xf32>
    %16 = arith.truncf %15 : vector<32x400xf32> to vector<32x400xbf16>
    %c0_12 = arith.constant 0 : index
    %c0_13 = arith.constant 0 : index
    %17 = vector.load %arg6[%c0_12, %c0_13] : memref<400x120xbf16, #tpu.memory_space<vmem>>, vector<400x120xbf16>
    %cst_14 = arith.constant dense<0.000000e+00> : vector<32x120xf32>
    %18 = tpu.matmul %16, %17, %cst_14 {dimension_numbers = #tpu.dot_dimension_numbers<[1], [0], [0], [1], [0, 0, 1, 1], [], []>} : vector<32x400xbf16>, vector<400x120xbf16>, vector<32x120xf32> -> vector<32x120xf32>
    %c0_15 = arith.constant 0 : index
    %c0_16 = arith.constant 0 : index
    %19 = vector.load %arg7[%c0_15, %c0_16] : memref<1x120xf32, #tpu.memory_space<vmem>>, vector<1x120xf32>
    %20 = vector.broadcast %19 : vector<1x120xf32> to vector<32x120xf32>
    %21 = arith.addf %18, %20 : vector<32x120xf32>
    %cst_17 = arith.constant 0.000000e+00 : f32
    %22 = vector.broadcast %cst_17 : f32 to vector<32x120xf32>
    %23 = arith.maximumf %21, %22 : vector<32x120xf32>
    %24 = arith.truncf %23 : vector<32x120xf32> to vector<32x120xbf16>
    %c0_18 = arith.constant 0 : index
    %c0_19 = arith.constant 0 : index
    %25 = vector.load %arg8[%c0_18, %c0_19] : memref<120x84xbf16, #tpu.memory_space<vmem>>, vector<120x84xbf16>
    %cst_20 = arith.constant dense<0.000000e+00> : vector<32x84xf32>
    %26 = tpu.matmul %24, %25, %cst_20 {dimension_numbers = #tpu.dot_dimension_numbers<[1], [0], [0], [1], [0, 0, 1, 1], [], []>} : vector<32x120xbf16>, vector<120x84xbf16>, vector<32x84xf32> -> vector<32x84xf32>
    %c0_21 = arith.constant 0 : index
    %c0_22 = arith.constant 0 : index
    %27 = vector.load %arg9[%c0_21, %c0_22] : memref<1x84xf32, #tpu.memory_space<vmem>>, vector<1x84xf32>
    %28 = vector.broadcast %27 : vector<1x84xf32> to vector<32x84xf32>
    %29 = arith.addf %26, %28 : vector<32x84xf32>
    %cst_23 = arith.constant 0.000000e+00 : f32
    %30 = vector.broadcast %cst_23 : f32 to vector<32x84xf32>
    %31 = arith.maximumf %29, %30 : vector<32x84xf32>
    %32 = arith.truncf %31 : vector<32x84xf32> to vector<32x84xbf16>
    %c0_24 = arith.constant 0 : index
    %c0_25 = arith.constant 0 : index
    %33 = vector.load %arg10[%c0_24, %c0_25] : memref<84x128xbf16, #tpu.memory_space<vmem>>, vector<84x128xbf16>
    %cst_26 = arith.constant dense<0.000000e+00> : vector<32x128xf32>
    %34 = tpu.matmul %32, %33, %cst_26 {dimension_numbers = #tpu.dot_dimension_numbers<[1], [0], [0], [1], [0, 0, 1, 1], [], []>} : vector<32x84xbf16>, vector<84x128xbf16>, vector<32x128xf32> -> vector<32x128xf32>
    %c0_27 = arith.constant 0 : index
    %c0_28 = arith.constant 0 : index
    %35 = vector.load %arg11[%c0_27, %c0_28] : memref<1x128xf32, #tpu.memory_space<vmem>>, vector<1x128xf32>
    %36 = vector.broadcast %35 : vector<1x128xf32> to vector<32x128xf32>
    %37 = arith.addf %34, %36 : vector<32x128xf32>
    %c0_29 = arith.constant 0 : index
    %c0_30 = arith.constant 0 : index
    %38 = vector.load %arg12[%c0_29, %c0_30] : memref<32x128xf32, #tpu.memory_space<vmem>>, vector<32x128xf32>
    tpu.vector_store %arg12[%c0_29, %c0_30], %37 {strides = array<i32>} : memref<32x128xf32, #tpu.memory_space<vmem>>, vector<32x128xf32>,
    return
  }
  func.func @transform_0(%arg0: i32) -> (i32, i32) {
    %c0_i32 = arith.constant 0 : i32
    %c0_i32_0 = arith.constant 0 : i32
    return %arg0, %c0_i32 : i32, i32
  }
  func.func @transform_1(%arg0: i32) -> (i32, i32) {
    %c0_i32 = arith.constant 0 : i32
    %c0_i32_0 = arith.constant 0 : i32
    %c0_i32_1 = arith.constant 0 : i32
    return %c0_i32, %c0_i32_0 : i32, i32
  }
  func.func @transform_2(%arg0: i32) -> (i32, i32) {
    %c0_i32 = arith.constant 0 : i32
    %c0_i32_0 = arith.constant 0 : i32
    %c0_i32_1 = arith.constant 0 : i32
    return %c0_i32, %c0_i32_0 : i32, i32
  }
  func.func @transform_3(%arg0: i32) -> (i32, i32) {
    %c0_i32 = arith.constant 0 : i32
    %c0_i32_0 = arith.constant 0 : i32
    %c0_i32_1 = arith.constant 0 : i32
    return %c0_i32, %c0_i32_0 : i32, i32
  }
  func.func @transform_4(%arg0: i32) -> (i32, i32) {
    %c0_i32 = arith.constant 0 : i32
    %c0_i32_0 = arith.constant 0 : i32
    %c0_i32_1 = arith.constant 0 : i32
    return %c0_i32, %c0_i32_0 : i32, i32
  }
  func.func @transform_5(%arg0: i32) -> (i32, i32) {
    %c0_i32 = arith.constant 0 : i32
    %c0_i32_0 = arith.constant 0 : i32
    %c0_i32_1 = arith.constant 0 : i32
    return %c0_i32, %c0_i32_0 : i32, i32
  }
  func.func @transform_6(%arg0: i32) -> (i32, i32) {
    %c0_i32 = arith.constant 0 : i32
    %c0_i32_0 = arith.constant 0 : i32
    %c0_i32_1 = arith.constant 0 : i32
    return %c0_i32, %c0_i32_0 : i32, i32
  }
  func.func @transform_7(%arg0: i32) -> (i32, i32) {
    %c0_i32 = arith.constant 0 : i32
    %c0_i32_0 = arith.constant 0 : i32
    %c0_i32_1 = arith.constant 0 : i32
    return %c0_i32, %c0_i32_0 : i32, i32
  }
  func.func @transform_8(%arg0: i32) -> (i32, i32) {
    %c0_i32 = arith.constant 0 : i32
    %c0_i32_0 = arith.constant 0 : i32
    %c0_i32_1 = arith.constant 0 : i32
    return %c0_i32, %c0_i32_0 : i32, i32
  }
  func.func @transform_9(%arg0: i32) -> (i32, i32) {
    %c0_i32 = arith.constant 0 : i32
    %c0_i32_0 = arith.constant 0 : i32
    %c0_i32_1 = arith.constant 0 : i32
    return %c0_i32, %c0_i32_0 : i32, i32
  }
  func.func @transform_10(%arg0: i32) -> (i32, i32) {
    %c0_i32 = arith.constant 0 : i32
    %c0_i32_0 = arith.constant 0 : i32
    %c0_i32_1 = arith.constant 0 : i32
    return %c0_i32, %c0_i32_0 : i32, i32
  }
  func.func @transform_11(%arg0: i32) -> (i32, i32) {
    %c0_i32 = arith.constant 0 : i32
    %c0_i32_0 = arith.constant 0 : i32
    return %arg0, %c0_i32 : i32, i32
  }
}

</mosaic_0001>

<llo_original>
// kernel: tile.13
$region0: #{tile.13}
  #allocation0 [shape = 's32[1]{0}', space=sflag, size = 0x4, scoped, tag = 'scoped memory for tile.13']
  %s0 = inlined_call_operand.vmem [shape: f32[6], index: 0, kind: input, shape index: {}]
  %s1 = inlined_call_operand.vmem [shape: f32[196,6], index: 1, kind: output, shape index: {}]
  // Predicated region
  $region2: #{tile.13} parent=0 // pred_check
    _
  $region3: #{tile.13} parent=0 // pred_check_branch
    %3 = sbr.rel (0) target = $region5
  $region4: #{tile.13} parent=0 // pred_region
    _
  $region5: #{tile.13} parent=0 // pred_fallthru
    _
  %v4 = vld [vmem:[%s0] ss:$0 sm:$0xff]
  %5 = vst [vmem:[%s1] sm:$0xff] %v4
  %s6 = scalar_lea.vmem %s1, 8
  %7 = vst [vmem:[%s6] sm:$0xff] %v4
  %s8 = scalar_lea.vmem %s1, 16
  %9 = vst [vmem:[%s8] sm:$0xff] %v4
  %s10 = scalar_lea.vmem %s1, 24
  %11 = vst [vmem:[%s10] sm:$0xff] %v4
  %s12 = scalar_lea.vmem %s1, 32
  %13 = vst [vmem:[%s12] sm:$0xff] %v4
  %s14 = scalar_lea.vmem %s1, 40
  %15 = vst [vmem:[%s14] sm:$0xff] %v4
  %s16 = scalar_lea.vmem %s1, 48
  %17 = vst [vmem:[%s16] sm:$0xff] %v4
  %s18 = scalar_lea.vmem %s1, 56
  %19 = vst [vmem:[%s18] sm:$0xff] %v4
  %s20 = scalar_lea.vmem %s1, 64
  %21 = vst [vmem:[%s20] sm:$0xff] %v4
  %s22 = scalar_lea.vmem %s1, 72
  %23 = vst [vmem:[%s22] sm:$0xff] %v4
  %s24 = scalar_lea.vmem %s1, 80
  %25 = vst [vmem:[%s24] sm:$0xff] %v4
  %s26 = scalar_lea.vmem %s1, 88
  %27 = vst [vmem:[%s26] sm:$0xff] %v4
  %s28 = scalar_lea.vmem %s1, 96
  %29 = vst [vmem:[%s28] sm:$0xff] %v4
  %s30 = scalar_lea.vmem %s1, 104
  %31 = vst [vmem:[%s30] sm:$0xff] %v4
  %s32 = scalar_lea.vmem %s1, 112
  %33 = vst [vmem:[%s32] sm:$0xff] %v4
  %s34 = scalar_lea.vmem %s1, 120
  %35 = vst [vmem:[%s34] sm:$0xff] %v4
  %s36 = scalar_lea.vmem %s1, 128
  %37 = vst [vmem:[%s36] sm:$0xff] %v4
  %s38 = scalar_lea.vmem %s1, 136
  %39 = vst [vmem:[%s38] sm:$0xff] %v4
  %s40 = scalar_lea.vmem %s1, 144
  %41 = vst [vmem:[%s40] sm:$0xff] %v4
  %s42 = scalar_lea.vmem %s1, 152
  %43 = vst [vmem:[%s42] sm:$0xff] %v4
  %s44 = scalar_lea.vmem %s1, 160
  %45 = vst [vmem:[%s44] sm:$0xff] %v4
  %s46 = scalar_lea.vmem %s1, 168
  %47 = vst [vmem:[%s46] sm:$0xff] %v4
  %s48 = scalar_lea.vmem %s1, 176
  %49 = vst [vmem:[%s48] sm:$0xff] %v4
  %s50 = scalar_lea.vmem %s1, 184
  %51 = vst [vmem:[%s50] sm:$0xff] %v4
  %s52 = scalar_lea.vmem %s1, 192
  %53 = vst [vmem:[%s52] sm:$0xff] %v4

// kernel: tile.14
$region0: #{tile.14}
  %s0 = inlined_call_operand.vmem [shape: f32[196,6], index: 0, kind: input, shape index: {}]
  %s1 = inlined_call_operand.vmem [shape: f32[1,1176], index: 1, kind: output, shape index: {}]
  $region1: #{tile.14} parent=0
    #allocation0 [shape = 'u8[40960]{0}', space=vmem, size = 0xa000, scoped, tag = 'scoped mem for output reshape']
    %v2 = vld [vmem:[%s0] sm:$0x1]
    %s3 = scalar_lea.vmem %s0, 63
    %v4 = vld [vmem:[%s3] sm:$0x2]
    %vm5 = vcmask 1041409
    %v6 = vsel %vm5, %v4, %v2
    %s7 = scalar_lea.vmem %s0, 126
    %v8 = vld [vmem:[%s7] sm:$0x4]
    %vm9 = vcmask 1042434
    %v10 = vsel %vm9, %v8, %v6
    %s11 = scalar_lea.vmem %s0, 189
    %v12 = vld [vmem:[%s11] sm:$0x8]
    %vm13 = vcmask 1043459
    %v14 = vsel %vm13, %v12, %v10
    %vm15 = vcmask 48128
    %16 = vst.msk [vmem:[#allocation0] ss:$24 sm:$0xf] %vm15, %v14
    %s17 = scalar_lea.vmem %s0, 85
    %v18 = vld [vmem:[%s17] sm:$0x1]
    %s19 = scalar_lea.vmem %s0, 20
    %v20 = vld [vmem:[%s19] sm:$0x2]
    %vm21 = vcmask 1041409
    %v22 = vsel %vm21, %v20, %v18
    %s23 = scalar_lea.vmem %s0, 147
    %v24 = vld [vmem:[%s23] sm:$0x4]
    %vm25 = vcmask 1042434
    %v26 = vsel %vm25, %v24, %v22
    %s27 = scalar_lea.vmem %s0, 21
    %v28 = vld [vmem:[%s27] sm:$0x1]
    %s29 = scalar_lea.vmem %s0, 148
    %v30 = vld [vmem:[%s29] sm:$0x2]
    %vm31 = vcmask 1041409
    %v32 = vsel %vm31, %v30, %v28
    %s33 = scalar_lea.vmem %s0, 83
    %v34 = vld [vmem:[%s33] sm:$0x4]
    %vm35 = vcmask 1042434
    %v36 = vsel %vm35, %v34, %v32
    %vm37 = vcmask 15360
    %v38 = vsel %vm37, %v36, %v26
    %39 = vrot.lane.b32.xlu0 %v38, 126
    %v40 = vpop.permute.xlu0 %39
    %vm41 = vcmask 31744
    %s42 = scalar_lea.vmem [#allocation0], 32
    %43 = vst.msk [vmem:[%s42] ss:$-24 sm:$0x3] %vm41, %v40
    %s44 = scalar_lea.vmem [#allocation0], 54
    %45 = vst.msk [vmem:[%s44] sm:$0x4] %vm41, %v40
    %vm46 = vcmask 1048560
    %47 = vst.msk [vmem:[#allocation0] ss:$48 sm:$0x3] %vm46, %v40
    %s48 = scalar_lea.vmem [#allocation0], 22
    %49 = vst.msk [vmem:[%s48] sm:$0x4] %vm46, %v40
    %s50 = scalar_lea.vmem %s0, 170
    %v51 = vld [vmem:[%s50] sm:$0x1]
    %s52 = scalar_lea.vmem %s0, 105
    %v53 = vld [vmem:[%s52] sm:$0x2]
    %vm54 = vcmask 1041409
    %v55 = vsel %vm54, %v53, %v51
    %s56 = scalar_lea.vmem %s0, 40
    %v57 = vld [vmem:[%s56] sm:$0x4]
    %vm58 = vcmask 1042434
    %v59 = vsel %vm58, %v57, %v55
    %s60 = scalar_lea.vmem %s0, 106
    %v61 = vld [vmem:[%s60] sm:$0x1]
    %s62 = scalar_lea.vmem %s0, 41
    %v63 = vld [vmem:[%s62] sm:$0x2]
    %vm64 = vcmask 1041409
    %v65 = vsel %vm64, %v63, %v61
    %s66 = scalar_lea.vmem %s0, 168
    %v67 = vld [vmem:[%s66] sm:$0x4]
    %vm68 = vcmask 1042434
    %v69 = vsel %vm68, %v67, %v65
    %vm70 = vcmask 31744
    %v71 = vsel %vm70, %v69, %v59
    %72 = vrot.lane.b32.xlu0 %v71, 124
    %v73 = vpop.permute.xlu0 %72
    %vm74 = vcmask 15360
    %s75 = scalar_lea.vmem [#allocation0], 64
    %76 = vst.msk [vmem:[%s75] ss:$-24 sm:$0x7] %vm74, %v73
    %vm77 = vcmask 1048544
    %s78 = scalar_lea.vmem [#allocation0], 32
    %79 = vst.msk [vmem:[%s78] ss:$-24 sm:$0x3] %vm77, %v73
    %s80 = scalar_lea.vmem [#allocation0], 54
    %81 = vst.msk [vmem:[%s80] sm:$0x4] %vm77, %v73
    %s82 = scalar_lea.vmem %s0, 191
    %v83 = vld [vmem:[%s82] sm:$0x1]
    %s84 = scalar_lea.vmem %s0, 126
    %v85 = vld [vmem:[%s84] sm:$0x2]
    %vm86 = vcmask 1041409
    %v87 = vsel %vm86, %v85, %v83
    %s88 = scalar_lea.vmem %s0, 61
    %v89 = vld [vmem:[%s88] sm:$0x4]
    %vm90 = vcmask 1042434
    %v91 = vsel %vm90, %v89, %v87
    %92 = vrot.lane.b32.xlu0 %v91, 122
    %v93 = vpop.permute.xlu0 %92
    %vm94 = vcmask 1048528
    %s95 = scalar_lea.vmem [#allocation0], 64
    %96 = vst.msk [vmem:[%s95] ss:$-24 sm:$0x7] %vm94, %v93
    %s97 = scalar_lea.vmem %s0, 20
    %v98 = vld [vmem:[%s97] sm:$0x1]
    %s99 = scalar_lea.vmem %s0, 147
    %v100 = vld [vmem:[%s99] sm:$0x2]
    %vm101 = vcmask 1041409
    %v102 = vsel %vm101, %v100, %v98
    %s103 = scalar_lea.vmem %s0, 82
    %v104 = vld [vmem:[%s103] sm:$0x4]
    %vm105 = vcmask 1042434
    %v106 = vsel %vm105, %v104, %v102
    %107 = vrot.lane.b32.xlu0 %v106, 120
    %v108 = vpop.permute.xlu0 %107
    %vm109 = vcmask 1032128
    %110 = vst.msk [vmem:[#allocation0] ss:$48 sm:$0x3] %vm109, %v108
    %s111 = scalar_lea.vmem [#allocation0], 22
    %112 = vst.msk [vmem:[%s111] sm:$0x4] %vm109, %v108
    %s113 = scalar_lea.vmem %s0, 105
    %v114 = vld [vmem:[%s113] sm:$0x1]
    %s115 = scalar_lea.vmem %s0, 40
    %v116 = vld [vmem:[%s115] sm:$0x2]
    %vm117 = vcmask 1041409
    %v118 = vsel %vm117, %v116, %v114
    %s119 = scalar_lea.vmem %s0, 167
    %v120 = vld [vmem:[%s119] sm:$0x4]
    %vm121 = vcmask 1042434
    %v122 = vsel %vm121, %v120, %v118
    %123 = vrot.lane.b32.xlu0 %v122, 118
    %v124 = vpop.permute.xlu0 %123
    %vm125 = vcmask 1015728
    %s126 = scalar_lea.vmem [#allocation0], 32
    %127 = vst.msk [vmem:[%s126] ss:$-24 sm:$0x3] %vm125, %v124
    %s128 = scalar_lea.vmem [#allocation0], 54
    %129 = vst.msk [vmem:[%s128] sm:$0x4] %vm125, %v124
    %s130 = scalar_lea.vmem %s0, 190
    %v131 = vld [vmem:[%s130] sm:$0x1]
    %s132 = scalar_lea.vmem %s0, 125
    %v133 = vld [vmem:[%s132] sm:$0x2]
    %vm134 = vcmask 1041409
    %v135 = vsel %vm134, %v133, %v131
    %s136 = scalar_lea.vmem %s0, 60
    %v137 = vld [vmem:[%s136] sm:$0x4]
    %vm138 = vcmask 1042434
    %v139 = vsel %vm138, %v137, %v135
    %140 = vrot.lane.b32.xlu0 %v139, 116
    %v141 = vpop.permute.xlu0 %140
    %vm142 = vcmask 999328
    %s143 = scalar_lea.vmem [#allocation0], 64
    %144 = vst.msk [vmem:[%s143] ss:$-24 sm:$0x7] %vm142, %v141
    %s145 = scalar_lea.vmem %s0, 19
    %v146 = vld [vmem:[%s145] sm:$0x1]
    %s147 = scalar_lea.vmem %s0, 146
    %v148 = vld [vmem:[%s147] sm:$0x2]
    %vm149 = vcmask 1041409
    %v150 = vsel %vm149, %v148, %v146
    %s151 = scalar_lea.vmem %s0, 81
    %v152 = vld [vmem:[%s151] sm:$0x4]
    %vm153 = vcmask 1042434
    %v154 = vsel %vm153, %v152, %v150
    %155 = vrot.lane.b32.xlu0 %v154, 114
    %v156 = vpop.permute.xlu0 %155
    %vm157 = vcmask 982928
    %158 = vst.msk [vmem:[#allocation0] ss:$48 sm:$0x3] %vm157, %v156
    %s159 = scalar_lea.vmem [#allocation0], 22
    %160 = vst.msk [vmem:[%s159] sm:$0x4] %vm157, %v156
    %s161 = scalar_lea.vmem %s0, 104
    %v162 = vld [vmem:[%s161] sm:$0x1]
    %s163 = scalar_lea.vmem %s0, 39
    %v164 = vld [vmem:[%s163] sm:$0x2]
    %vm165 = vcmask 1041409
    %v166 = vsel %vm165, %v164, %v162
    %s167 = scalar_lea.vmem %s0, 166
    %v168 = vld [vmem:[%s167] sm:$0x4]
    %vm169 = vcmask 1042434
    %v170 = vsel %vm169, %v168, %v166
    %171 = vrot.lane.b32.xlu0 %v170, 112
    %v172 = vpop.permute.xlu0 %171
    %vm173 = vcmask 966528
    %s174 = scalar_lea.vmem [#allocation0], 32
    %175 = vst.msk [vmem:[%s174] ss:$-24 sm:$0x3] %vm173, %v172
    %s176 = scalar_lea.vmem [#allocation0], 54
    %177 = vst.msk [vmem:[%s176] sm:$0x4] %vm173, %v172
    %s178 = scalar_lea.vmem %s0, 189
    %v179 = vld [vmem:[%s178] sm:$0x1]
    %s180 = scalar_lea.vmem %s0, 124
    %v181 = vld [vmem:[%s180] sm:$0x2]
    %vm182 = vcmask 1041409
    %v183 = vsel %vm182, %v181, %v179
    %s184 = scalar_lea.vmem %s0, 59
    %v185 = vld [vmem:[%s184] sm:$0x4]
    %vm186 = vcmask 1042434
    %v187 = vsel %vm186, %v185, %v183
    %188 = vrot.lane.b32.xlu0 %v187, 110
    %v189 = vpop.permute.xlu0 %188
    %vm190 = vcmask 950128
    %s191 = scalar_lea.vmem [#allocation0], 64
    %192 = vst.msk [vmem:[%s191] ss:$-24 sm:$0x7] %vm190, %v189
    %s193 = scalar_lea.vmem %s0, 18
    %v194 = vld [vmem:[%s193] sm:$0x1]
    %s195 = scalar_lea.vmem %s0, 145
    %v196 = vld [vmem:[%s195] sm:$0x2]
    %vm197 = vcmask 1041409
    %v198 = vsel %vm197, %v196, %v194
    %s199 = scalar_lea.vmem %s0, 80
    %v200 = vld [vmem:[%s199] sm:$0x4]
    %vm201 = vcmask 1042434
    %v202 = vsel %vm201, %v200, %v198
    %203 = vrot.lane.b32.xlu0 %v202, 108
    %v204 = vpop.permute.xlu0 %203
    %vm205 = vcmask 933728
    %206 = vst.msk [vmem:[#allocation0] ss:$48 sm:$0x3] %vm205, %v204
    %s207 = scalar_lea.vmem [#allocation0], 22
    %208 = vst.msk [vmem:[%s207] sm:$0x4] %vm205, %v204
    %s209 = scalar_lea.vmem %s0, 103
    %v210 = vld [vmem:[%s209] sm:$0x1]
    %s211 = scalar_lea.vmem %s0, 38
    %v212 = vld [vmem:[%s211] sm:$0x2]
    %vm213 = vcmask 1041409
    %v214 = vsel %vm213, %v212, %v210
    %s215 = scalar_lea.vmem %s0, 165
    %v216 = vld [vmem:[%s215] sm:$0x4]
    %vm217 = vcmask 1042434
    %v218 = vsel %vm217, %v216, %v214
    %219 = vrot.lane.b32.xlu0 %v218, 106
    %v220 = vpop.permute.xlu0 %219
    %vm221 = vcmask 917328
    %s222 = scalar_lea.vmem [#allocation0], 32
    %223 = vst.msk [vmem:[%s222] ss:$-24 sm:$0x3] %vm221, %v220
    %s224 = scalar_lea.vmem [#allocation0], 54
    %225 = vst.msk [vmem:[%s224] sm:$0x4] %vm221, %v220
    %s226 = scalar_lea.vmem %s0, 188
    %v227 = vld [vmem:[%s226] sm:$0x1]
    %s228 = scalar_lea.vmem %s0, 123
    %v229 = vld [vmem:[%s228] sm:$0x2]
    %vm230 = vcmask 1041409
    %v231 = vsel %vm230, %v229, %v227
    %s232 = scalar_lea.vmem %s0, 58
    %v233 = vld [vmem:[%s232] sm:$0x4]
    %vm234 = vcmask 1042434
    %v235 = vsel %vm234, %v233, %v231
    %236 = vrot.lane.b32.xlu0 %v235, 104
    %v237 = vpop.permute.xlu0 %236
    %vm238 = vcmask 900928
    %s239 = scalar_lea.vmem [#allocation0], 64
    %240 = vst.msk [vmem:[%s239] ss:$-24 sm:$0x7] %vm238, %v237
    %s241 = scalar_lea.vmem %s0, 17
    %v242 = vld [vmem:[%s241] sm:$0x1]
    %s243 = scalar_lea.vmem %s0, 144
    %v244 = vld [vmem:[%s243] sm:$0x2]
    %vm245 = vcmask 1041409
    %v246 = vsel %vm245, %v244, %v242
    %s247 = scalar_lea.vmem %s0, 79
    %v248 = vld [vmem:[%s247] sm:$0x4]
    %vm249 = vcmask 1042434
    %v250 = vsel %vm249, %v248, %v246
    %251 = vrot.lane.b32.xlu0 %v250, 102
    %v252 = vpop.permute.xlu0 %251
    %vm253 = vcmask 884528
    %254 = vst.msk [vmem:[#allocation0] ss:$48 sm:$0x3] %vm253, %v252
    %s255 = scalar_lea.vmem [#allocation0], 22
    %256 = vst.msk [vmem:[%s255] sm:$0x4] %vm253, %v252
    %s257 = scalar_lea.vmem %s0, 102
    %v258 = vld [vmem:[%s257] sm:$0x1]
    %s259 = scalar_lea.vmem %s0, 37
    %v260 = vld [vmem:[%s259] sm:$0x2]
    %vm261 = vcmask 1041409
    %v262 = vsel %vm261, %v260, %v258
    %s263 = scalar_lea.vmem %s0, 164
    %v264 = vld [vmem:[%s263] sm:$0x4]
    %vm265 = vcmask 1042434
    %v266 = vsel %vm265, %v264, %v262
    %267 = vrot.lane.b32.xlu0 %v266, 100
    %v268 = vpop.permute.xlu0 %267
    %vm269 = vcmask 868128
    %s270 = scalar_lea.vmem [#allocation0], 32
    %271 = vst.msk [vmem:[%s270] ss:$-24 sm:$0x3] %vm269, %v268
    %s272 = scalar_lea.vmem [#allocation0], 54
    %273 = vst.msk [vmem:[%s272] sm:$0x4] %vm269, %v268
    %s274 = scalar_lea.vmem %s0, 187
    %v275 = vld [vmem:[%s274] sm:$0x1]
    %s276 = scalar_lea.vmem %s0, 122
    %v277 = vld [vmem:[%s276] sm:$0x2]
    %vm278 = vcmask 1041409
    %v279 = vsel %vm278, %v277, %v275
    %s280 = scalar_lea.vmem %s0, 57
    %v281 = vld [vmem:[%s280] sm:$0x4]
    %vm282 = vcmask 1042434
    %v283 = vsel %vm282, %v281, %v279
    %284 = vrot.lane.b32.xlu0 %v283, 98
    %v285 = vpop.permute.xlu0 %284
    %vm286 = vcmask 851728
    %s287 = scalar_lea.vmem [#allocation0], 64
    %288 = vst.msk [vmem:[%s287] ss:$-24 sm:$0x7] %vm286, %v285
    %s289 = scalar_lea.vmem %s0, 16
    %v290 = vld [vmem:[%s289] sm:$0x1]
    %s291 = scalar_lea.vmem %s0, 143
    %v292 = vld [vmem:[%s291] sm:$0x2]
    %vm293 = vcmask 1041409
    %v294 = vsel %vm293, %v292, %v290
    %s295 = scalar_lea.vmem %s0, 78
    %v296 = vld [vmem:[%s295] sm:$0x4]
    %vm297 = vcmask 1042434
    %v298 = vsel %vm297, %v296, %v294
    %299 = vrot.lane.b32.xlu0 %v298, 96
    %v300 = vpop.permute.xlu0 %299
    %vm301 = vcmask 835328
    %302 = vst.msk [vmem:[#allocation0] ss:$48 sm:$0x3] %vm301, %v300
    %s303 = scalar_lea.vmem [#allocation0], 22
    %304 = vst.msk [vmem:[%s303] sm:$0x4] %vm301, %v300
    %s305 = scalar_lea.vmem %s0, 101
    %v306 = vld [vmem:[%s305] sm:$0x1]
    %s307 = scalar_lea.vmem %s0, 36
    %v308 = vld [vmem:[%s307] sm:$0x2]
    %vm309 = vcmask 1041409
    %v310 = vsel %vm309, %v308, %v306
    %s311 = scalar_lea.vmem %s0, 163
    %v312 = vld [vmem:[%s311] sm:$0x4]
    %vm313 = vcmask 1042434
    %v314 = vsel %vm313, %v312, %v310
    %315 = vrot.lane.b32.xlu0 %v314, 94
    %v316 = vpop.permute.xlu0 %315
    %vm317 = vcmask 818928
    %s318 = scalar_lea.vmem [#allocation0], 32
    %319 = vst.msk [vmem:[%s318] ss:$-24 sm:$0x3] %vm317, %v316
    %s320 = scalar_lea.vmem [#allocation0], 54
    %321 = vst.msk [vmem:[%s320] sm:$0x4] %vm317, %v316
    %s322 = scalar_lea.vmem %s0, 186
    %v323 = vld [vmem:[%s322] sm:$0x1]
    %s324 = scalar_lea.vmem %s0, 121
    %v325 = vld [vmem:[%s324] sm:$0x2]
    %vm326 = vcmask 1041409
    %v327 = vsel %vm326, %v325, %v323
    %s328 = scalar_lea.vmem %s0, 56
    %v329 = vld [vmem:[%s328] sm:$0x4]
    %vm330 = vcmask 1042434
    %v331 = vsel %vm330, %v329, %v327
    %332 = vrot.lane.b32.xlu0 %v331, 92
    %v333 = vpop.permute.xlu0 %332
    %vm334 = vcmask 802528
    %s335 = scalar_lea.vmem [#allocation0], 64
    %336 = vst.msk [vmem:[%s335] ss:$-24 sm:$0x7] %vm334, %v333
    %s337 = scalar_lea.vmem %s0, 15
    %v338 = vld [vmem:[%s337] sm:$0x1]
    %s339 = scalar_lea.vmem %s0, 142
    %v340 = vld [vmem:[%s339] sm:$0x2]
    %vm341 = vcmask 1041409
    %v342 = vsel %vm341, %v340, %v338
    %s343 = scalar_lea.vmem %s0, 77
    %v344 = vld [vmem:[%s343] sm:$0x4]
    %vm345 = vcmask 1042434
    %v346 = vsel %vm345, %v344, %v342
    %347 = vrot.lane.b32.xlu0 %v346, 90
    %v348 = vpop.permute.xlu0 %347
    %vm349 = vcmask 786128
    %350 = vst.msk [vmem:[#allocation0] ss:$48 sm:$0x3] %vm349, %v348
    %s351 = scalar_lea.vmem [#allocation0], 22
    %352 = vst.msk [vmem:[%s351] sm:$0x4] %vm349, %v348
    %s353 = scalar_lea.vmem %s0, 100
    %v354 = vld [vmem:[%s353] sm:$0x1]
    %s355 = scalar_lea.vmem %s0, 35
    %v356 = vld [vmem:[%s355] sm:$0x2]
    %vm357 = vcmask 1041409
    %v358 = vsel %vm357, %v356, %v354
    %s359 = scalar_lea.vmem %s0, 162
    %v360 = vld [vmem:[%s359] sm:$0x4]
    %vm361 = vcmask 1042434
    %v362 = vsel %vm361, %v360, %v358
    %363 = vrot.lane.b32.xlu0 %v362, 88
    %v364 = vpop.permute.xlu0 %363
    %vm365 = vcmask 769728
    %s366 = scalar_lea.vmem [#allocation0], 32
    %367 = vst.msk [vmem:[%s366] ss:$-24 sm:$0x3] %vm365, %v364
    %s368 = scalar_lea.vmem [#allocation0], 54
    %369 = vst.msk [vmem:[%s368] sm:$0x4] %vm365, %v364
    %s370 = scalar_lea.vmem %s0, 185
    %v371 = vld [vmem:[%s370] sm:$0x1]
    %s372 = scalar_lea.vmem %s0, 120
    %v373 = vld [vmem:[%s372] sm:$0x2]
    %vm374 = vcmask 1041409
    %v375 = vsel %vm374, %v373, %v371
    %s376 = scalar_lea.vmem %s0, 55
    %v377 = vld [vmem:[%s376] sm:$0x4]
    %vm378 = vcmask 1042434
    %v379 = vsel %vm378, %v377, %v375
    %380 = vrot.lane.b32.xlu0 %v379, 86
    %v381 = vpop.permute.xlu0 %380
    %vm382 = vcmask 753328
    %s383 = scalar_lea.vmem [#allocation0], 64
    %384 = vst.msk [vmem:[%s383] ss:$-24 sm:$0x7] %vm382, %v381
    %s385 = scalar_lea.vmem %s0, 14
    %v386 = vld [vmem:[%s385] sm:$0x1]
    %s387 = scalar_lea.vmem %s0, 141
    %v388 = vld [vmem:[%s387] sm:$0x2]
    %vm389 = vcmask 1041409
    %v390 = vsel %vm389, %v388, %v386
    %s391 = scalar_lea.vmem %s0, 76
    %v392 = vld [vmem:[%s391] sm:$0x4]
    %vm393 = vcmask 1042434
    %v394 = vsel %vm393, %v392, %v390
    %395 = vrot.lane.b32.xlu0 %v394, 84
    %v396 = vpop.permute.xlu0 %395
    %vm397 = vcmask 736928
    %398 = vst.msk [vmem:[#allocation0] ss:$48 sm:$0x3] %vm397, %v396
    %s399 = scalar_lea.vmem [#allocation0], 22
    %400 = vst.msk [vmem:[%s399] sm:$0x4] %vm397, %v396
    %s401 = scalar_lea.vmem %s0, 99
    %v402 = vld [vmem:[%s401] sm:$0x1]
    %s403 = scalar_lea.vmem %s0, 34
    %v404 = vld [vmem:[%s403] sm:$0x2]
    %vm405 = vcmask 1041409
    %v406 = vsel %vm405, %v404, %v402
    %s407 = scalar_lea.vmem %s0, 161
    %v408 = vld [vmem:[%s407] sm:$0x4]
    %vm409 = vcmask 1042434
    %v410 = vsel %vm409, %v408, %v406
    %411 = vrot.lane.b32.xlu0 %v410, 82
    %v412 = vpop.permute.xlu0 %411
    %vm413 = vcmask 720528
    %s414 = scalar_lea.vmem [#allocation0], 32
    %415 = vst.msk [vmem:[%s414] ss:$-24 sm:$0x3] %vm413, %v412
    %s416 = scalar_lea.vmem [#allocation0], 54
    %417 = vst.msk [vmem:[%s416] sm:$0x4] %vm413, %v412
    %s418 = scalar_lea.vmem %s0, 184
    %v419 = vld [vmem:[%s418] sm:$0x1]
    %s420 = scalar_lea.vmem %s0, 119
    %v421 = vld [vmem:[%s420] sm:$0x2]
    %vm422 = vcmask 1041409
    %v423 = vsel %vm422, %v421, %v419
    %s424 = scalar_lea.vmem %s0, 54
    %v425 = vld [vmem:[%s424] sm:$0x4]
    %vm426 = vcmask 1042434
    %v427 = vsel %vm426, %v425, %v423
    %428 = vrot.lane.b32.xlu0 %v427, 80
    %v429 = vpop.permute.xlu0 %428
    %vm430 = vcmask 704128
    %s431 = scalar_lea.vmem [#allocation0], 64
    %432 = vst.msk [vmem:[%s431] ss:$-24 sm:$0x7] %vm430, %v429
    %s433 = scalar_lea.vmem %s0, 13
    %v434 = vld [vmem:[%s433] sm:$0x1]
    %s435 = scalar_lea.vmem %s0, 140
    %v436 = vld [vmem:[%s435] sm:$0x2]
    %vm437 = vcmask 1041409
    %v438 = vsel %vm437, %v436, %v434
    %s439 = scalar_lea.vmem %s0, 75
    %v440 = vld [vmem:[%s439] sm:$0x4]
    %vm441 = vcmask 1042434
    %v442 = vsel %vm441, %v440, %v438
    %443 = vrot.lane.b32.xlu0 %v442, 78
    %v444 = vpop.permute.xlu0 %443
    %vm445 = vcmask 687728
    %446 = vst.msk [vmem:[#allocation0] ss:$48 sm:$0x3] %vm445, %v444
    %s447 = scalar_lea.vmem [#allocation0], 22
    %448 = vst.msk [vmem:[%s447] sm:$0x4] %vm445, %v444
    %s449 = scalar_lea.vmem %s0, 98
    %v450 = vld [vmem:[%s449] sm:$0x1]
    %s451 = scalar_lea.vmem %s0, 33
    %v452 = vld [vmem:[%s451] sm:$0x2]
    %vm453 = vcmask 1041409
    %v454 = vsel %vm453, %v452, %v450
    %s455 = scalar_lea.vmem %s0, 160
    %v456 = vld [vmem:[%s455] sm:$0x4]
    %vm457 = vcmask 1042434
    %v458 = vsel %vm457, %v456, %v454
    %459 = vrot.lane.b32.xlu0 %v458, 76
    %v460 = vpop.permute.xlu0 %459
    %vm461 = vcmask 671328
    %s462 = scalar_lea.vmem [#allocation0], 32
    %463 = vst.msk [vmem:[%s462] ss:$-24 sm:$0x3] %vm461, %v460
    %s464 = scalar_lea.vmem [#allocation0], 54
    %465 = vst.msk [vmem:[%s464] sm:$0x4] %vm461, %v460
    %s466 = scalar_lea.vmem %s0, 183
    %v467 = vld [vmem:[%s466] sm:$0x1]
    %s468 = scalar_lea.vmem %s0, 118
    %v469 = vld [vmem:[%s468] sm:$0x2]
    %vm470 = vcmask 1041409
    %v471 = vsel %vm470, %v469, %v467
    %s472 = scalar_lea.vmem %s0, 53
    %v473 = vld [vmem:[%s472] sm:$0x4]
    %vm474 = vcmask 1042434
    %v475 = vsel %vm474, %v473, %v471
    %476 = vrot.lane.b32.xlu0 %v475, 74
    %v477 = vpop.permute.xlu0 %476
    %vm478 = vcmask 654928
    %s479 = scalar_lea.vmem [#allocation0], 64
    %480 = vst.msk [vmem:[%s479] ss:$-24 sm:$0x7] %vm478, %v477
    %s481 = scalar_lea.vmem %s0, 12
    %v482 = vld [vmem:[%s481] sm:$0x1]
    %s483 = scalar_lea.vmem %s0, 139
    %v484 = vld [vmem:[%s483] sm:$0x2]
    %vm485 = vcmask 1041409
    %v486 = vsel %vm485, %v484, %v482
    %s487 = scalar_lea.vmem %s0, 74
    %v488 = vld [vmem:[%s487] sm:$0x4]
    %vm489 = vcmask 1042434
    %v490 = vsel %vm489, %v488, %v486
    %491 = vrot.lane.b32.xlu0 %v490, 72
    %v492 = vpop.permute.xlu0 %491
    %vm493 = vcmask 638528
    %494 = vst.msk [vmem:[#allocation0] ss:$48 sm:$0x3] %vm493, %v492
    %s495 = scalar_lea.vmem [#allocation0], 22
    %496 = vst.msk [vmem:[%s495] sm:$0x4] %vm493, %v492
    %s497 = scalar_lea.vmem %s0, 97
    %v498 = vld [vmem:[%s497] sm:$0x1]
    %s499 = scalar_lea.vmem %s0, 32
    %v500 = vld [vmem:[%s499] sm:$0x2]
    %vm501 = vcmask 1041409
    %v502 = vsel %vm501, %v500, %v498
    %s503 = scalar_lea.vmem %s0, 159
    %v504 = vld [vmem:[%s503] sm:$0x4]
    %vm505 = vcmask 1042434
    %v506 = vsel %vm505, %v504, %v502
    %507 = vrot.lane.b32.xlu0 %v506, 70
    %v508 = vpop.permute.xlu0 %507
    %vm509 = vcmask 622128
    %s510 = scalar_lea.vmem [#allocation0], 32
    %511 = vst.msk [vmem:[%s510] ss:$-24 sm:$0x3] %vm509, %v508
    %s512 = scalar_lea.vmem [#allocation0], 54
    %513 = vst.msk [vmem:[%s512] sm:$0x4] %vm509, %v508
    %s514 = scalar_lea.vmem %s0, 182
    %v515 = vld [vmem:[%s514] sm:$0x1]
    %s516 = scalar_lea.vmem %s0, 117
    %v517 = vld [vmem:[%s516] sm:$0x2]
    %vm518 = vcmask 1041409
    %v519 = vsel %vm518, %v517, %v515
    %s520 = scalar_lea.vmem %s0, 52
    %v521 = vld [vmem:[%s520] sm:$0x4]
    %vm522 = vcmask 1042434
    %v523 = vsel %vm522, %v521, %v519
    %524 = vrot.lane.b32.xlu0 %v523, 68
    %v525 = vpop.permute.xlu0 %524
    %vm526 = vcmask 605728
    %s527 = scalar_lea.vmem [#allocation0], 64
    %528 = vst.msk [vmem:[%s527] ss:$-24 sm:$0x7] %vm526, %v525
    %s529 = scalar_lea.vmem %s0, 11
    %v530 = vld [vmem:[%s529] sm:$0x1]
    %s531 = scalar_lea.vmem %s0, 138
    %v532 = vld [vmem:[%s531] sm:$0x2]
    %vm533 = vcmask 1041409
    %v534 = vsel %vm533, %v532, %v530
    %s535 = scalar_lea.vmem %s0, 73
    %v536 = vld [vmem:[%s535] sm:$0x4]
    %vm537 = vcmask 1042434
    %v538 = vsel %vm537, %v536, %v534
    %539 = vrot.lane.b32.xlu0 %v538, 66
    %v540 = vpop.permute.xlu0 %539
    %vm541 = vcmask 589328
    %542 = vst.msk [vmem:[#allocation0] ss:$48 sm:$0x3] %vm541, %v540
    %s543 = scalar_lea.vmem [#allocation0], 22
    %544 = vst.msk [vmem:[%s543] sm:$0x4] %vm541, %v540
    %s545 = scalar_lea.vmem %s0, 96
    %v546 = vld [vmem:[%s545] sm:$0x1]
    %s547 = scalar_lea.vmem %s0, 31
    %v548 = vld [vmem:[%s547] sm:$0x2]
    %vm549 = vcmask 1041409
    %v550 = vsel %vm549, %v548, %v546
    %s551 = scalar_lea.vmem %s0, 158
    %v552 = vld [vmem:[%s551] sm:$0x4]
    %vm553 = vcmask 1042434
    %v554 = vsel %vm553, %v552, %v550
    %555 = vrot.lane.b32.xlu0 %v554, 64
    %v556 = vpop.permute.xlu0 %555
    %vm557 = vcmask 572928
    %s558 = scalar_lea.vmem [#allocation0], 32
    %559 = vst.msk [vmem:[%s558] ss:$-24 sm:$0x3] %vm557, %v556
    %s560 = scalar_lea.vmem [#allocation0], 54
    %561 = vst.msk [vmem:[%s560] sm:$0x4] %vm557, %v556
    %s562 = scalar_lea.vmem %s0, 181
    %v563 = vld [vmem:[%s562] sm:$0x1]
    %s564 = scalar_lea.vmem %s0, 116
    %v565 = vld [vmem:[%s564] sm:$0x2]
    %vm566 = vcmask 1041409
    %v567 = vsel %vm566, %v565, %v563
    %s568 = scalar_lea.vmem %s0, 51
    %v569 = vld [vmem:[%s568] sm:$0x4]
    %vm570 = vcmask 1042434
    %v571 = vsel %vm570, %v569, %v567
    %572 = vrot.lane.b32.xlu0 %v571, 62
    %v573 = vpop.permute.xlu0 %572
    %vm574 = vcmask 556528
    %s575 = scalar_lea.vmem [#allocation0], 64
    %576 = vst.msk [vmem:[%s575] ss:$-24 sm:$0x7] %vm574, %v573
    %s577 = scalar_lea.vmem %s0, 10
    %v578 = vld [vmem:[%s577] sm:$0x1]
    %s579 = scalar_lea.vmem %s0, 137
    %v580 = vld [vmem:[%s579] sm:$0x2]
    %vm581 = vcmask 1041409
    %v582 = vsel %vm581, %v580, %v578
    %s583 = scalar_lea.vmem %s0, 72
    %v584 = vld [vmem:[%s583] sm:$0x4]
    %vm585 = vcmask 1042434
    %v586 = vsel %vm585, %v584, %v582
    %587 = vrot.lane.b32.xlu0 %v586, 60
    %v588 = vpop.permute.xlu0 %587
    %vm589 = vcmask 540128
    %590 = vst.msk [vmem:[#allocation0] ss:$48 sm:$0x3] %vm589, %v588
    %s591 = scalar_lea.vmem [#allocation0], 22
    %592 = vst.msk [vmem:[%s591] sm:$0x4] %vm589, %v588
    %s593 = scalar_lea.vmem %s0, 95
    %v594 = vld [vmem:[%s593] sm:$0x1]
    %s595 = scalar_lea.vmem %s0, 30
    %v596 = vld [vmem:[%s595] sm:$0x2]
    %vm597 = vcmask 1041409
    %v598 = vsel %vm597, %v596, %v594
    %s599 = scalar_lea.vmem %s0, 157
    %v600 = vld [vmem:[%s599] sm:$0x4]
    %vm601 = vcmask 1042434
    %v602 = vsel %vm601, %v600, %v598
    %603 = vrot.lane.b32.xlu0 %v602, 58
    %v604 = vpop.permute.xlu0 %603
    %vm605 = vcmask 523728
    %s606 = scalar_lea.vmem [#allocation0], 32
    %607 = vst.msk [vmem:[%s606] ss:$-24 sm:$0x3] %vm605, %v604
    %s608 = scalar_lea.vmem [#allocation0], 54
    %609 = vst.msk [vmem:[%s608] sm:$0x4] %vm605, %v604
    %s610 = scalar_lea.vmem %s0, 180
    %v611 = vld [vmem:[%s610] sm:$0x1]
    %s612 = scalar_lea.vmem %s0, 115
    %v613 = vld [vmem:[%s612] sm:$0x2]
    %vm614 = vcmask 1041409
    %v615 = vsel %vm614, %v613, %v611
    %s616 = scalar_lea.vmem %s0, 50
    %v617 = vld [vmem:[%s616] sm:$0x4]
    %vm618 = vcmask 1042434
    %v619 = vsel %vm618, %v617, %v615
    %620 = vrot.lane.b32.xlu0 %v619, 56
    %v621 = vpop.permute.xlu0 %620
    %vm622 = vcmask 507328
    %s623 = scalar_lea.vmem [#allocation0], 64
    %624 = vst.msk [vmem:[%s623] ss:$-24 sm:$0x7] %vm622, %v621
    %s625 = scalar_lea.vmem %s0, 9
    %v626 = vld [vmem:[%s625] sm:$0x1]
    %s627 = scalar_lea.vmem %s0, 136
    %v628 = vld [vmem:[%s627] sm:$0x2]
    %vm629 = vcmask 1041409
    %v630 = vsel %vm629, %v628, %v626
    %s631 = scalar_lea.vmem %s0, 71
    %v632 = vld [vmem:[%s631] sm:$0x4]
    %vm633 = vcmask 1042434
    %v634 = vsel %vm633, %v632, %v630
    %635 = vrot.lane.b32.xlu0 %v634, 54
    %v636 = vpop.permute.xlu0 %635
    %vm637 = vcmask 490928
    %638 = vst.msk [vmem:[#allocation0] ss:$48 sm:$0x3] %vm637, %v636
    %s639 = scalar_lea.vmem [#allocation0], 22
    %640 = vst.msk [vmem:[%s639] sm:$0x4] %vm637, %v636
    %s641 = scalar_lea.vmem %s0, 94
    %v642 = vld [vmem:[%s641] sm:$0x1]
    %s643 = scalar_lea.vmem %s0, 29
    %v644 = vld [vmem:[%s643] sm:$0x2]
    %vm645 = vcmask 1041409
    %v646 = vsel %vm645, %v644, %v642
    %s647 = scalar_lea.vmem %s0, 156
    %v648 = vld [vmem:[%s647] sm:$0x4]
    %vm649 = vcmask 1042434
    %v650 = vsel %vm649, %v648, %v646
    %651 = vrot.lane.b32.xlu0 %v650, 52
    %v652 = vpop.permute.xlu0 %651
    %vm653 = vcmask 474528
    %s654 = scalar_lea.vmem [#allocation0], 32
    %655 = vst.msk [vmem:[%s654] ss:$-24 sm:$0x3] %vm653, %v652
    %s656 = scalar_lea.vmem [#allocation0], 54
    %657 = vst.msk [vmem:[%s656] sm:$0x4] %vm653, %v652
    %s658 = scalar_lea.vmem %s0, 179
    %v659 = vld [vmem:[%s658] sm:$0x1]
    %s660 = scalar_lea.vmem %s0, 114
    %v661 = vld [vmem:[%s660] sm:$0x2]
    %vm662 = vcmask 1041409
    %v663 = vsel %vm662, %v661, %v659
    %s664 = scalar_lea.vmem %s0, 49
    %v665 = vld [vmem:[%s664] sm:$0x4]
    %vm666 = vcmask 1042434
    %v667 = vsel %vm666, %v665, %v663
    %668 = vrot.lane.b32.xlu0 %v667, 50
    %v669 = vpop.permute.xlu0 %668
    %vm670 = vcmask 458128
    %s671 = scalar_lea.vmem [#allocation0], 64
    %672 = vst.msk [vmem:[%s671] ss:$-24 sm:$0x7] %vm670, %v669
    %s673 = scalar_lea.vmem %s0, 8
    %v674 = vld [vmem:[%s673] sm:$0x1]
    %s675 = scalar_lea.vmem %s0, 135
    %v676 = vld [vmem:[%s675] sm:$0x2]
    %vm677 = vcmask 1041409
    %v678 = vsel %vm677, %v676, %v674
    %s679 = scalar_lea.vmem %s0, 70
    %v680 = vld [vmem:[%s679] sm:$0x4]
    %vm681 = vcmask 1042434
    %v682 = vsel %vm681, %v680, %v678
    %683 = vrot.lane.b32.xlu0 %v682, 48
    %v684 = vpop.permute.xlu0 %683
    %vm685 = vcmask 441728
    %686 = vst.msk [vmem:[#allocation0] ss:$48 sm:$0x3] %vm685, %v684
    %s687 = scalar_lea.vmem [#allocation0], 22
    %688 = vst.msk [vmem:[%s687] sm:$0x4] %vm685, %v684
    %s689 = scalar_lea.vmem %s0, 93
    %v690 = vld [vmem:[%s689] sm:$0x1]
    %s691 = scalar_lea.vmem %s0, 28
    %v692 = vld [vmem:[%s691] sm:$0x2]
    %vm693 = vcmask 1041409
    %v694 = vsel %vm693, %v692, %v690
    %s695 = scalar_lea.vmem %s0, 155
    %v696 = vld [vmem:[%s695] sm:$0x4]
    %vm697 = vcmask 1042434
    %v698 = vsel %vm697, %v696, %v694
    %699 = vrot.lane.b32.xlu0 %v698, 46
    %v700 = vpop.permute.xlu0 %699
    %vm701 = vcmask 425328
    %s702 = scalar_lea.vmem [#allocation0], 32
    %703 = vst.msk [vmem:[%s702] ss:$-24 sm:$0x3] %vm701, %v700
    %s704 = scalar_lea.vmem [#allocation0], 54
    %705 = vst.msk [vmem:[%s704] sm:$0x4] %vm701, %v700
    %s706 = scalar_lea.vmem %s0, 178
    %v707 = vld [vmem:[%s706] sm:$0x1]
    %s708 = scalar_lea.vmem %s0, 113
    %v709 = vld [vmem:[%s708] sm:$0x2]
    %vm710 = vcmask 1041409
    %v711 = vsel %vm710, %v709, %v707
    %s712 = scalar_lea.vmem %s0, 48
    %v713 = vld [vmem:[%s712] sm:$0x4]
    %vm714 = vcmask 1042434
    %v715 = vsel %vm714, %v713, %v711
    %716 = vrot.lane.b32.xlu0 %v715, 44
    %v717 = vpop.permute.xlu0 %716
    %vm718 = vcmask 408928
    %s719 = scalar_lea.vmem [#allocation0], 64
    %720 = vst.msk [vmem:[%s719] ss:$-24 sm:$0x7] %vm718, %v717
    %s721 = scalar_lea.vmem %s0, 7
    %v722 = vld [vmem:[%s721] sm:$0x1]
    %s723 = scalar_lea.vmem %s0, 134
    %v724 = vld [vmem:[%s723] sm:$0x2]
    %vm725 = vcmask 1041409
    %v726 = vsel %vm725, %v724, %v722
    %s727 = scalar_lea.vmem %s0, 69
    %v728 = vld [vmem:[%s727] sm:$0x4]
    %vm729 = vcmask 1042434
    %v730 = vsel %vm729, %v728, %v726
    %731 = vrot.lane.b32.xlu0 %v730, 42
    %v732 = vpop.permute.xlu0 %731
    %vm733 = vcmask 392528
    %734 = vst.msk [vmem:[#allocation0] ss:$48 sm:$0x3] %vm733, %v732
    %s735 = scalar_lea.vmem [#allocation0], 22
    %736 = vst.msk [vmem:[%s735] sm:$0x4] %vm733, %v732
    %s737 = scalar_lea.vmem %s0, 92
    %v738 = vld [vmem:[%s737] sm:$0x1]
    %s739 = scalar_lea.vmem %s0, 27
    %v740 = vld [vmem:[%s739] sm:$0x2]
    %vm741 = vcmask 1041409
    %v742 = vsel %vm741, %v740, %v738
    %s743 = scalar_lea.vmem %s0, 154
    %v744 = vld [vmem:[%s743] sm:$0x4]
    %vm745 = vcmask 1042434
    %v746 = vsel %vm745, %v744, %v742
    %747 = vrot.lane.b32.xlu0 %v746, 40
    %v748 = vpop.permute.xlu0 %747
    %vm749 = vcmask 376128
    %s750 = scalar_lea.vmem [#allocation0], 32
    %751 = vst.msk [vmem:[%s750] ss:$-24 sm:$0x3] %vm749, %v748
    %s752 = scalar_lea.vmem [#allocation0], 54
    %753 = vst.msk [vmem:[%s752] sm:$0x4] %vm749, %v748
    %s754 = scalar_lea.vmem %s0, 177
    %v755 = vld [vmem:[%s754] sm:$0x1]
    %s756 = scalar_lea.vmem %s0, 112
    %v757 = vld [vmem:[%s756] sm:$0x2]
    %vm758 = vcmask 1041409
    %v759 = vsel %vm758, %v757, %v755
    %s760 = scalar_lea.vmem %s0, 47
    %v761 = vld [vmem:[%s760] sm:$0x4]
    %vm762 = vcmask 1042434
    %v763 = vsel %vm762, %v761, %v759
    %764 = vrot.lane.b32.xlu0 %v763, 38
    %v765 = vpop.permute.xlu0 %764
    %vm766 = vcmask 359728
    %s767 = scalar_lea.vmem [#allocation0], 64
    %768 = vst.msk [vmem:[%s767] ss:$-24 sm:$0x7] %vm766, %v765
    %s769 = scalar_lea.vmem %s0, 6
    %v770 = vld [vmem:[%s769] sm:$0x1]
    %s771 = scalar_lea.vmem %s0, 133
    %v772 = vld [vmem:[%s771] sm:$0x2]
    %vm773 = vcmask 1041409
    %v774 = vsel %vm773, %v772, %v770
    %s775 = scalar_lea.vmem %s0, 68
    %v776 = vld [vmem:[%s775] sm:$0x4]
    %vm777 = vcmask 1042434
    %v778 = vsel %vm777, %v776, %v774
    %779 = vrot.lane.b32.xlu0 %v778, 36
    %v780 = vpop.permute.xlu0 %779
    %vm781 = vcmask 343328
    %782 = vst.msk [vmem:[#allocation0] ss:$48 sm:$0x3] %vm781, %v780
    %s783 = scalar_lea.vmem [#allocation0], 22
    %784 = vst.msk [vmem:[%s783] sm:$0x4] %vm781, %v780
    %s785 = scalar_lea.vmem %s0, 91
    %v786 = vld [vmem:[%s785] sm:$0x1]
    %s787 = scalar_lea.vmem %s0, 26
    %v788 = vld [vmem:[%s787] sm:$0x2]
    %vm789 = vcmask 1041409
    %v790 = vsel %vm789, %v788, %v786
    %s791 = scalar_lea.vmem %s0, 153
    %v792 = vld [vmem:[%s791] sm:$0x4]
    %vm793 = vcmask 1042434
    %v794 = vsel %vm793, %v792, %v790
    %795 = vrot.lane.b32.xlu0 %v794, 34
    %v796 = vpop.permute.xlu0 %795
    %vm797 = vcmask 326928
    %s798 = scalar_lea.vmem [#allocation0], 32
    %799 = vst.msk [vmem:[%s798] ss:$-24 sm:$0x3] %vm797, %v796
    %s800 = scalar_lea.vmem [#allocation0], 54
    %801 = vst.msk [vmem:[%s800] sm:$0x4] %vm797, %v796
    %s802 = scalar_lea.vmem %s0, 176
    %v803 = vld [vmem:[%s802] sm:$0x1]
    %s804 = scalar_lea.vmem %s0, 111
    %v805 = vld [vmem:[%s804] sm:$0x2]
    %vm806 = vcmask 1041409
    %v807 = vsel %vm806, %v805, %v803
    %s808 = scalar_lea.vmem %s0, 46
    %v809 = vld [vmem:[%s808] sm:$0x4]
    %vm810 = vcmask 1042434
    %v811 = vsel %vm810, %v809, %v807
    %812 = vrot.lane.b32.xlu0 %v811, 32
    %v813 = vpop.permute.xlu0 %812
    %vm814 = vcmask 310528
    %s815 = scalar_lea.vmem [#allocation0], 64
    %816 = vst.msk [vmem:[%s815] ss:$-24 sm:$0x7] %vm814, %v813
    %s817 = scalar_lea.vmem %s0, 5
    %v818 = vld [vmem:[%s817] sm:$0x1]
    %s819 = scalar_lea.vmem %s0, 132
    %v820 = vld [vmem:[%s819] sm:$0x2]
    %vm821 = vcmask 1041409
    %v822 = vsel %vm821, %v820, %v818
    %s823 = scalar_lea.vmem %s0, 67
    %v824 = vld [vmem:[%s823] sm:$0x4]
    %vm825 = vcmask 1042434
    %v826 = vsel %vm825, %v824, %v822
    %827 = vrot.lane.b32.xlu0 %v826, 30
    %v828 = vpop.permute.xlu0 %827
    %vm829 = vcmask 294128
    %830 = vst.msk [vmem:[#allocation0] ss:$48 sm:$0x3] %vm829, %v828
    %s831 = scalar_lea.vmem [#allocation0], 22
    %832 = vst.msk [vmem:[%s831] sm:$0x4] %vm829, %v828
    %s833 = scalar_lea.vmem %s0, 90
    %v834 = vld [vmem:[%s833] sm:$0x1]
    %s835 = scalar_lea.vmem %s0, 25
    %v836 = vld [vmem:[%s835] sm:$0x2]
    %vm837 = vcmask 1041409
    %v838 = vsel %vm837, %v836, %v834
    %s839 = scalar_lea.vmem %s0, 152
    %v840 = vld [vmem:[%s839] sm:$0x4]
    %vm841 = vcmask 1042434
    %v842 = vsel %vm841, %v840, %v838
    %843 = vrot.lane.b32.xlu0 %v842, 28
    %v844 = vpop.permute.xlu0 %843
    %vm845 = vcmask 277728
    %s846 = scalar_lea.vmem [#allocation0], 32
    %847 = vst.msk [vmem:[%s846] ss:$-24 sm:$0x3] %vm845, %v844
    %s848 = scalar_lea.vmem [#allocation0], 54
    %849 = vst.msk [vmem:[%s848] sm:$0x4] %vm845, %v844
    %s850 = scalar_lea.vmem %s0, 175
    %v851 = vld [vmem:[%s850] sm:$0x1]
    %s852 = scalar_lea.vmem %s0, 110
    %v853 = vld [vmem:[%s852] sm:$0x2]
    %vm854 = vcmask 1041409
    %v855 = vsel %vm854, %v853, %v851
    %s856 = scalar_lea.vmem %s0, 45
    %v857 = vld [vmem:[%s856] sm:$0x4]
    %vm858 = vcmask 1042434
    %v859 = vsel %vm858, %v857, %v855
    %860 = vrot.lane.b32.xlu0 %v859, 26
    %v861 = vpop.permute.xlu0 %860
    %vm862 = vcmask 261328
    %s863 = scalar_lea.vmem [#allocation0], 64
    %864 = vst.msk [vmem:[%s863] ss:$-24 sm:$0x7] %vm862, %v861
    %s865 = scalar_lea.vmem %s0, 4
    %v866 = vld [vmem:[%s865] sm:$0x1]
    %s867 = scalar_lea.vmem %s0, 131
    %v868 = vld [vmem:[%s867] sm:$0x2]
    %vm869 = vcmask 1041409
    %v870 = vsel %vm869, %v868, %v866
    %s871 = scalar_lea.vmem %s0, 66
    %v872 = vld [vmem:[%s871] sm:$0x4]
    %vm873 = vcmask 1042434
    %v874 = vsel %vm873, %v872, %v870
    %875 = vrot.lane.b32.xlu0 %v874, 24
    %v876 = vpop.permute.xlu0 %875
    %vm877 = vcmask 244928
    %878 = vst.msk [vmem:[#allocation0] ss:$48 sm:$0x3] %vm877, %v876
    %s879 = scalar_lea.vmem [#allocation0], 22
    %880 = vst.msk [vmem:[%s879] sm:$0x4] %vm877, %v876
    %s881 = scalar_lea.vmem %s0, 89
    %v882 = vld [vmem:[%s881] sm:$0x1]
    %s883 = scalar_lea.vmem %s0, 24
    %v884 = vld [vmem:[%s883] sm:$0x2]
    %vm885 = vcmask 1041409
    %v886 = vsel %vm885, %v884, %v882
    %s887 = scalar_lea.vmem %s0, 151
    %v888 = vld [vmem:[%s887] sm:$0x4]
    %vm889 = vcmask 1042434
    %v890 = vsel %vm889, %v888, %v886
    %891 = vrot.lane.b32.xlu0 %v890, 22
    %v892 = vpop.permute.xlu0 %891
    %vm893 = vcmask 228528
    %s894 = scalar_lea.vmem [#allocation0], 32
    %895 = vst.msk [vmem:[%s894] ss:$-24 sm:$0x3] %vm893, %v892
    %s896 = scalar_lea.vmem [#allocation0], 54
    %897 = vst.msk [vmem:[%s896] sm:$0x4] %vm893, %v892
    %s898 = scalar_lea.vmem %s0, 174
    %v899 = vld [vmem:[%s898] sm:$0x1]
    %s900 = scalar_lea.vmem %s0, 109
    %v901 = vld [vmem:[%s900] sm:$0x2]
    %vm902 = vcmask 1041409
    %v903 = vsel %vm902, %v901, %v899
    %s904 = scalar_lea.vmem %s0, 44
    %v905 = vld [vmem:[%s904] sm:$0x4]
    %vm906 = vcmask 1042434
    %v907 = vsel %vm906, %v905, %v903
    %908 = vrot.lane.b32.xlu0 %v907, 20
    %v909 = vpop.permute.xlu0 %908
    %vm910 = vcmask 212128
    %s911 = scalar_lea.vmem [#allocation0], 64
    %912 = vst.msk [vmem:[%s911] ss:$-24 sm:$0x7] %vm910, %v909
    %s913 = scalar_lea.vmem %s0, 3
    %v914 = vld [vmem:[%s913] sm:$0x1]
    %s915 = scalar_lea.vmem %s0, 194
    %v916 = vld [vmem:[%s915] sm:$0x2]
    %vm917 = vcmask 1041409
    %v918 = vsel %vm917, %v916, %v914
    %s919 = scalar_lea.vmem %s0, 129
    %v920 = vld [vmem:[%s919] sm:$0x4]
    %vm921 = vcmask 1042434
    %v922 = vsel %vm921, %v920, %v918
    %s923 = scalar_lea.vmem %s0, 64
    %v924 = vld [vmem:[%s923] sm:$0x8]
    %vm925 = vcmask 1043459
    %v926 = vsel %vm925, %v924, %v922
    %927 = vrot.lane.b32.xlu0 %v926, 18
    %v928 = vpop.permute.xlu0 %927
    %vm929 = vcmask 195728
    %930 = vst.msk [vmem:[#allocation0] ss:$72 sm:$0x3] %vm929, %v928
    %s931 = scalar_lea.vmem [#allocation0], 96
    %932 = vst.msk [vmem:[%s931] ss:$-24 sm:$0xc] %vm929, %v928
    %s933 = scalar_lea.vmem %s0, 88
    %v934 = vld [vmem:[%s933] sm:$0x1]
    %s935 = scalar_lea.vmem %s0, 23
    %v936 = vld [vmem:[%s935] sm:$0x2]
    %vm937 = vcmask 1041409
    %v938 = vsel %vm937, %v936, %v934
    %s939 = scalar_lea.vmem %s0, 150
    %v940 = vld [vmem:[%s939] sm:$0x4]
    %vm941 = vcmask 1042434
    %v942 = vsel %vm941, %v940, %v938
    %943 = vrot.lane.b32.xlu0 %v942, 16
    %v944 = vpop.permute.xlu0 %943
    %vm945 = vcmask 179328
    %s946 = scalar_lea.vmem [#allocation0], 32
    %947 = vst.msk [vmem:[%s946] ss:$-24 sm:$0x3] %vm945, %v944
    %s948 = scalar_lea.vmem [#allocation0], 54
    %949 = vst.msk [vmem:[%s948] sm:$0x4] %vm945, %v944
    %s950 = scalar_lea.vmem %s0, 173
    %v951 = vld [vmem:[%s950] sm:$0x1]
    %s952 = scalar_lea.vmem %s0, 108
    %v953 = vld [vmem:[%s952] sm:$0x2]
    %vm954 = vcmask 1041409
    %v955 = vsel %vm954, %v953, %v951
    %s956 = scalar_lea.vmem %s0, 43
    %v957 = vld [vmem:[%s956] sm:$0x4]
    %vm958 = vcmask 1042434
    %v959 = vsel %vm958, %v957, %v955
    %960 = vrot.lane.b32.xlu0 %v959, 14
    %v961 = vpop.permute.xlu0 %960
    %vm962 = vcmask 162928
    %s963 = scalar_lea.vmem [#allocation0], 64
    %964 = vst.msk [vmem:[%s963] ss:$-24 sm:$0x7] %vm962, %v961
    %s965 = scalar_lea.vmem %s0, 2
    %v966 = vld [vmem:[%s965] sm:$0x1]
    %s967 = scalar_lea.vmem %s0, 193
    %v968 = vld [vmem:[%s967] sm:$0x2]
    %vm969 = vcmask 1041409
    %v970 = vsel %vm969, %v968, %v966
    %s971 = scalar_lea.vmem %s0, 128
    %v972 = vld [vmem:[%s971] sm:$0x4]
    %vm973 = vcmask 1042434
    %v974 = vsel %vm973, %v972, %v970
    %s975 = scalar_lea.vmem %s0, 63
    %v976 = vld [vmem:[%s975] sm:$0x8]
    %vm977 = vcmask 1043459
    %v978 = vsel %vm977, %v976, %v974
    %979 = vrot.lane.b32.xlu0 %v978, 12
    %v980 = vpop.permute.xlu0 %979
    %vm981 = vcmask 146528
    %982 = vst.msk [vmem:[#allocation0] ss:$72 sm:$0x3] %vm981, %v980
    %s983 = scalar_lea.vmem [#allocation0], 96
    %984 = vst.msk [vmem:[%s983] ss:$-24 sm:$0xc] %vm981, %v980
    %s985 = scalar_lea.vmem %s0, 87
    %v986 = vld [vmem:[%s985] sm:$0x1]
    %s987 = scalar_lea.vmem %s0, 22
    %v988 = vld [vmem:[%s987] sm:$0x2]
    %vm989 = vcmask 1041409
    %v990 = vsel %vm989, %v988, %v986
    %s991 = scalar_lea.vmem %s0, 149
    %v992 = vld [vmem:[%s991] sm:$0x4]
    %vm993 = vcmask 1042434
    %v994 = vsel %vm993, %v992, %v990
    %995 = vrot.lane.b32.xlu0 %v994, 10
    %v996 = vpop.permute.xlu0 %995
    %vm997 = vcmask 130128
    %s998 = scalar_lea.vmem [#allocation0], 32
    %999 = vst.msk [vmem:[%s998] ss:$-24 sm:$0x3] %vm997, %v996
    %s1000 = scalar_lea.vmem [#allocation0], 54
    %1001 = vst.msk [vmem:[%s1000] sm:$0x4] %vm997, %v996
    %s1002 = scalar_lea.vmem %s0, 172
    %v1003 = vld [vmem:[%s1002] sm:$0x1]
    %s1004 = scalar_lea.vmem %s0, 107
    %v1005 = vld [vmem:[%s1004] sm:$0x2]
    %vm1006 = vcmask 1041409
    %v1007 = vsel %vm1006, %v1005, %v1003
    %s1008 = scalar_lea.vmem %s0, 42
    %v1009 = vld [vmem:[%s1008] sm:$0x4]
    %vm1010 = vcmask 1042434
    %v1011 = vsel %vm1010, %v1009, %v1007
    %1012 = vrot.lane.b32.xlu0 %v1011, 8
    %v1013 = vpop.permute.xlu0 %1012
    %vm1014 = vcmask 113728
    %s1015 = scalar_lea.vmem [#allocation0], 64
    %1016 = vst.msk [vmem:[%s1015] ss:$-24 sm:$0x7] %vm1014, %v1013
    %s1017 = scalar_lea.vmem %s0, 1
    %v1018 = vld [vmem:[%s1017] sm:$0x1]
    %s1019 = scalar_lea.vmem %s0, 192
    %v1020 = vld [vmem:[%s1019] sm:$0x2]
    %vm1021 = vcmask 1041409
    %v1022 = vsel %vm1021, %v1020, %v1018
    %s1023 = scalar_lea.vmem %s0, 127
    %v1024 = vld [vmem:[%s1023] sm:$0x4]
    %vm1025 = vcmask 1042434
    %v1026 = vsel %vm1025, %v1024, %v1022
    %s1027 = scalar_lea.vmem %s0, 62
    %v1028 = vld [vmem:[%s1027] sm:$0x8]
    %vm1029 = vcmask 1043459
    %v1030 = vsel %vm1029, %v1028, %v1026
    %1031 = vrot.lane.b32.xlu0 %v1030, 6
    %v1032 = vpop.permute.xlu0 %1031
    %vm1033 = vcmask 97328
    %1034 = vst.msk [vmem:[#allocation0] ss:$72 sm:$0x3] %vm1033, %v1032
    %s1035 = scalar_lea.vmem [#allocation0], 96
    %1036 = vst.msk [vmem:[%s1035] ss:$-24 sm:$0xc] %vm1033, %v1032
    %s1037 = scalar_lea.vmem %s0, 86
    %v1038 = vld [vmem:[%s1037] sm:$0x1]
    %s1039 = scalar_lea.vmem %s0, 21
    %v1040 = vld [vmem:[%s1039] sm:$0x2]
    %vm1041 = vcmask 1041409
    %v1042 = vsel %vm1041, %v1040, %v1038
    %s1043 = scalar_lea.vmem %s0, 148
    %v1044 = vld [vmem:[%s1043] sm:$0x4]
    %vm1045 = vcmask 1042434
    %v1046 = vsel %vm1045, %v1044, %v1042
    %1047 = vrot.lane.b32.xlu0 %v1046, 4
    %v1048 = vpop.permute.xlu0 %1047
    %vm1049 = vcmask 80928
    %s1050 = scalar_lea.vmem [#allocation0], 32
    %1051 = vst.msk [vmem:[%s1050] ss:$-24 sm:$0x3] %vm1049, %v1048
    %s1052 = scalar_lea.vmem [#allocation0], 54
    %1053 = vst.msk [vmem:[%s1052] sm:$0x4] %vm1049, %v1048
    %s1054 = scalar_lea.vmem %s0, 171
    %v1055 = vld [vmem:[%s1054] sm:$0x1]
    %s1056 = scalar_lea.vmem %s0, 106
    %v1057 = vld [vmem:[%s1056] sm:$0x2]
    %vm1058 = vcmask 1041409
    %v1059 = vsel %vm1058, %v1057, %v1055
    %s1060 = scalar_lea.vmem %s0, 41
    %v1061 = vld [vmem:[%s1060] sm:$0x4]
    %vm1062 = vcmask 1042434
    %v1063 = vsel %vm1062, %v1061, %v1059
    %1064 = vrot.lane.b32.xlu0 %v1063, 2
    %v1065 = vpop.permute.xlu0 %1064
    %vm1066 = vcmask 64528
    %s1067 = scalar_lea.vmem [#allocation0], 64
    %1068 = vst.msk [vmem:[%s1067] ss:$-24 sm:$0x7] %vm1066, %v1065
    %s1070 = sshll.u32 1, 1
    %s1071 = ssub.s32 %s1070, 1
    %v1073 = vld [vmem:[#allocation0] sm:%s1071]
    %s1074 = sshll.u32 1, 1
    %s1075 = ssub.s32 %s1074, 1
    %1076 = vst [vmem:[%s1] sm:%s1075] %v1073
    %s1077 = scalar_lea.vmem [#allocation0], 8
    %v1078 = vld [vmem:[%s1077] sm:%s1071]
    %s1079 = sshll.u32 1, 1
    %s1080 = ssub.s32 %s1079, 1
    %s1081 = scalar_lea.vmem %s1, 1
    %1082 = vst [vmem:[%s1081] sm:%s1080] %v1078
    %s1083 = scalar_lea.vmem [#allocation0], 16
    %v1084 = vld [vmem:[%s1083] sm:%s1071]
    %s1085 = sshll.u32 1, 1
    %s1086 = ssub.s32 %s1085, 1
    %s1087 = smul.addr 1, 2
    %s1088 = scalar_lea.vmem %s1, %s1087
    %1089 = vst [vmem:[%s1088] sm:%s1086] %v1084
    %s1090 = scalar_lea.vmem [#allocation0], 24
    %v1091 = vld [vmem:[%s1090] sm:%s1071]
    %s1092 = sshll.u32 1, 1
    %s1093 = ssub.s32 %s1092, 1
    %s1094 = smul.addr 1, 3
    %s1095 = scalar_lea.vmem %s1, %s1094
    %1096 = vst [vmem:[%s1095] sm:%s1093] %v1091
    %s1097 = scalar_lea.vmem [#allocation0], 32
    %v1098 = vld [vmem:[%s1097] sm:%s1071]
    %s1099 = sshll.u32 1, 1
    %s1100 = ssub.s32 %s1099, 1
    %s1101 = smul.addr 1, 4
    %s1102 = scalar_lea.vmem %s1, %s1101
    %1103 = vst [vmem:[%s1102] sm:%s1100] %v1098
    %s1104 = scalar_lea.vmem [#allocation0], 40
    %v1105 = vld [vmem:[%s1104] sm:%s1071]
    %s1106 = sshll.u32 1, 1
    %s1107 = ssub.s32 %s1106, 1
    %s1108 = smul.addr 1, 5
    %s1109 = scalar_lea.vmem %s1, %s1108
    %1110 = vst [vmem:[%s1109] sm:%s1107] %v1105
    %s1111 = scalar_lea.vmem [#allocation0], 48
    %v1112 = vld [vmem:[%s1111] sm:%s1071]
    %s1113 = sshll.u32 1, 1
    %s1114 = ssub.s32 %s1113, 1
    %s1115 = smul.addr 1, 6
    %s1116 = scalar_lea.vmem %s1, %s1115
    %1117 = vst [vmem:[%s1116] sm:%s1114] %v1112
    %s1118 = scalar_lea.vmem [#allocation0], 56
    %v1119 = vld [vmem:[%s1118] sm:%s1071]
    %s1120 = sshll.u32 1, 1
    %s1121 = ssub.s32 %s1120, 1
    %s1122 = smul.addr 1, 7
    %s1123 = scalar_lea.vmem %s1, %s1122
    %1124 = vst [vmem:[%s1123] sm:%s1121] %v1119
    %s1125 = scalar_lea.vmem [#allocation0], 64
    %v1126 = vld [vmem:[%s1125] sm:%s1071]
    %s1127 = sshll.u32 1, 1
    %s1128 = ssub.s32 %s1127, 1
    %s1129 = smul.addr 1, 8
    %s1130 = scalar_lea.vmem %s1, %s1129
    %1131 = vst [vmem:[%s1130] sm:%s1128] %v1126
    %s1132 = scalar_lea.vmem [#allocation0], 72
    %v1133 = vld [vmem:[%s1132] sm:%s1071]
    %s1134 = sshll.u32 1, 1
    %s1135 = ssub.s32 %s1134, 1
    %s1136 = smul.addr 1, 9
    %s1137 = scalar_lea.vmem %s1, %s1136
    %1138 = vst [vmem:[%s1137] sm:%s1135] %v1133

// kernel: tile.18
$region0: #{tile.18}
  #allocation0 [shape = 's32[1]{0}', space=sflag, size = 0x4, scoped, tag = 'scoped memory for tile.18']
  %s0 = inlined_call_operand.vmem [shape: f32[16], index: 0, kind: input, shape index: {}]
  %s1 = inlined_call_operand.vmem [shape: f32[25,16], index: 1, kind: output, shape index: {}]
  // Predicated region
  $region2: #{tile.18} parent=0 // pred_check
    _
  $region3: #{tile.18} parent=0 // pred_check_branch
    %3 = sbr.rel (0) target = $region5
  $region4: #{tile.18} parent=0 // pred_region
    _
  $region5: #{tile.18} parent=0 // pred_fallthru
    _
  %v4 = vld [vmem:[%s0] ss:$0 sm:$0xff]
  %5 = vst [vmem:[%s1] sm:$0xff] %v4
  %s6 = scalar_lea.vmem %s1, 8
  %7 = vst [vmem:[%s6] sm:$0xff] %v4
  %s8 = scalar_lea.vmem %s1, 16
  %9 = vst [vmem:[%s8] sm:$0xff] %v4
  %s10 = scalar_lea.vmem %s1, 24
  %11 = vst [vmem:[%s10] sm:$0xff] %v4

// kernel: tile.19
$region0: #{tile.19}
  %s0 = inlined_call_operand.vmem [shape: f32[25,16], index: 0, kind: input, shape index: {}]
  %s1 = inlined_call_operand.vmem [shape: f32[1,400], index: 1, kind: output, shape index: {}]
  $region1: #{tile.19} parent=0
    #allocation0 [shape = 'u8[16384]{0}', space=vmem, size = 0x4000, scoped, tag = 'scoped mem for output reshape']
    %v2 = vld [vmem:[%s0] ss:$8 sm:$0xf]
    %vm3 = vcmask 130048
    %4 = vst.msk [vmem:[#allocation0] ss:$8 sm:$0xf] %vm3, %v2
    %s5 = scalar_lea.vmem %s0, 7
    %v6 = vld [vmem:[%s5] ss:$8 sm:$0x7]
    %7 = vrot.lane.b32.xlu0 %v6, 112
    %v8 = vpop.permute.xlu0 %7
    %vm9 = vcmask 1048448
    %10 = vst.msk [vmem:[#allocation0] ss:$8 sm:$0x7] %vm9, %v8
    %s11 = scalar_lea.vmem %s0, 6
    %v12 = vld [vmem:[%s11] ss:$8 sm:$0x7]
    %13 = vrot.lane.b32.xlu0 %v12, 96
    %v14 = vpop.permute.xlu0 %13
    %vm15 = vcmask 917248
    %16 = vst.msk [vmem:[#allocation0] ss:$8 sm:$0x7] %vm15, %v14
    %s17 = scalar_lea.vmem %s0, 5
    %v18 = vld [vmem:[%s17] ss:$8 sm:$0x7]
    %19 = vrot.lane.b32.xlu0 %v18, 80
    %v20 = vpop.permute.xlu0 %19
    %vm21 = vcmask 786048
    %22 = vst.msk [vmem:[#allocation0] ss:$8 sm:$0x7] %vm21, %v20
    %s23 = scalar_lea.vmem %s0, 4
    %v24 = vld [vmem:[%s23] ss:$8 sm:$0x7]
    %25 = vrot.lane.b32.xlu0 %v24, 64
    %v26 = vpop.permute.xlu0 %25
    %vm27 = vcmask 654848
    %28 = vst.msk [vmem:[#allocation0] ss:$8 sm:$0x7] %vm27, %v26
    %s29 = scalar_lea.vmem %s0, 3
    %v30 = vld [vmem:[%s29] ss:$8 sm:$0x7]
    %31 = vrot.lane.b32.xlu0 %v30, 48
    %v32 = vpop.permute.xlu0 %31
    %vm33 = vcmask 523648
    %34 = vst.msk [vmem:[#allocation0] ss:$8 sm:$0x7] %vm33, %v32
    %s35 = scalar_lea.vmem %s0, 2
    %v36 = vld [vmem:[%s35] ss:$8 sm:$0x7]
    %37 = vrot.lane.b32.xlu0 %v36, 32
    %v38 = vpop.permute.xlu0 %37
    %vm39 = vcmask 392448
    %40 = vst.msk [vmem:[#allocation0] ss:$8 sm:$0x7] %vm39, %v38
    %s41 = scalar_lea.vmem %s0, 1
    %v42 = vld [vmem:[%s41] ss:$8 sm:$0x7]
    %43 = vrot.lane.b32.xlu0 %v42, 16
    %v44 = vpop.permute.xlu0 %43
    %vm45 = vcmask 261248
    %46 = vst.msk [vmem:[#allocation0] ss:$8 sm:$0x7] %vm45, %v44
    %s48 = sshll.u32 1, 1
    %s49 = ssub.s32 %s48, 1
    %v51 = vld [vmem:[#allocation0] sm:%s49]
    %s52 = sshll.u32 1, 1
    %s53 = ssub.s32 %s52, 1
    %54 = vst [vmem:[%s1] sm:%s53] %v51
    %s55 = scalar_lea.vmem [#allocation0], 8
    %v56 = vld [vmem:[%s55] sm:%s49]
    %s57 = sshll.u32 1, 1
    %s58 = ssub.s32 %s57, 1
    %s59 = scalar_lea.vmem %s1, 1
    %60 = vst [vmem:[%s59] sm:%s58] %v56
    %s61 = scalar_lea.vmem [#allocation0], 16
    %v62 = vld [vmem:[%s61] sm:%s49]
    %s63 = sshll.u32 1, 1
    %s64 = ssub.s32 %s63, 1
    %s65 = smul.addr 1, 2
    %s66 = scalar_lea.vmem %s1, %s65
    %67 = vst [vmem:[%s66] sm:%s64] %v62
    %s68 = scalar_lea.vmem [#allocation0], 24
    %v69 = vld [vmem:[%s68] sm:%s49]
    %s70 = sshll.u32 1, 1
    %s71 = ssub.s32 %s70, 1
    %s72 = smul.addr 1, 3
    %s73 = scalar_lea.vmem %s1, %s72
    %74 = vst [vmem:[%s73] sm:%s71] %v69

// kernel: _lambda_.1
$region0: #{_lambda_.1}
  #allocation0 [shape = 'u32[]', space=smem, size = 0x4, offset = 0x4, fixed_abs, tag = 'smem constant byte address 0x4 - core index']
  #allocation1 [shape = 'u32[144,128]{1,0:T(1,128)}', space=vmem, size = 0x12000, scoped, tag = 'internal scratch']
  %s0 = inlined_call_operand.vmem [shape: bf16[64,784], index: 0, kind: input, shape index: {}]
  %s1 = inlined_call_operand.vmem [shape: bf16[784,1176], index: 1, kind: input, shape index: {}]
  %s2 = inlined_call_operand.vmem [shape: f32[1,1176], index: 2, kind: input, shape index: {}]
  %s3 = inlined_call_operand.vmem [shape: bf16[1176,400], index: 3, kind: input, shape index: {}]
  %s4 = inlined_call_operand.vmem [shape: f32[1,400], index: 4, kind: input, shape index: {}]
  %s5 = inlined_call_operand.vmem [shape: bf16[400,120], index: 5, kind: input, shape index: {}]
  %s6 = inlined_call_operand.vmem [shape: f32[1,120], index: 6, kind: input, shape index: {}]
  %s7 = inlined_call_operand.vmem [shape: bf16[120,84], index: 7, kind: input, shape index: {}]
  %s8 = inlined_call_operand.vmem [shape: f32[1,84], index: 8, kind: input, shape index: {}]
  %s9 = inlined_call_operand.vmem [shape: bf16[84,128], index: 9, kind: input, shape index: {}]
  %s10 = inlined_call_operand.vmem [shape: f32[1,128], index: 10, kind: input, shape index: {}]
  %s11 = inlined_call_operand.vmem [shape: f32[64,128], index: 11, kind: output, shape index: {}]
  %s12 = sld [smem:[#allocation0]]
  $region77: #{_lambda_.1} parent=0
    _
  %s14 = ssub.s32 1, %s12
  %s15 = scalar_select 0, %s14, %s12
  loop: start=0, step=1, limit=4
  $region2: #{_lambda_.1} parent=0 // loop_pre_header
    _
  $region3: #{_lambda_.1} parent=0 // loop_header
    %s17 = sphi 0, %s21
    %p18 = scmp.ge.s32.totalorder %s17, 4
    %s27 = sphi 0, %s29
    %s30 = sphi 0, %s27
    %s31 = sphi 0, %s30
    %s47 = sphi 0, %s31
    %s51 = sphi 0, %s51
    %s53 = sphi 0, %s51
    %s54 = sphi 0, %s53
    %s68 = sphi 0, %s54
    %s72 = sphi 0, %s72
    %s74 = sphi 0, %s72
    %s75 = sphi 0, %s74
    %s89 = sphi 0, %s75
    %s93 = sphi 0, %s93
    %s95 = sphi 0, %s93
    %s96 = sphi 0, %s95
    %s110 = sphi 0, %s96
    %s114 = sphi 0, %s114
    %s116 = sphi 0, %s114
    %s117 = sphi 0, %s116
    %s131 = sphi 0, %s117
    %s135 = sphi 0, %s135
    %s137 = sphi 0, %s135
    %s138 = sphi 0, %s137
    %s152 = sphi 0, %s138
    %s156 = sphi 0, %s156
    %s158 = sphi 0, %s156
    %s159 = sphi 0, %s158
    %s173 = sphi 0, %s159
    %s177 = sphi 0, %s177
    %s179 = sphi 0, %s177
    %s180 = sphi 0, %s179
    %s194 = sphi 0, %s180
    %s198 = sphi 0, %s198
    %s200 = sphi 0, %s198
    %s201 = sphi 0, %s200
    %s215 = sphi 0, %s201
    %s219 = sphi 0, %s219
    %s221 = sphi 0, %s219
    %s222 = sphi 0, %s221
    %s236 = sphi 0, %s222
    %s240 = sphi 0, %s240
    %s242 = sphi 0, %s240
    %s243 = sphi 0, %s242
    %s257 = sphi 0, %s243
    %s263 = sphi 0, %s265
    %s266 = sphi 0, %s263
    %s267 = sphi 0, %s266
    %s283 = sphi 0, %s267
  $region4: #{_lambda_.1} parent=0 // loop_header_branch
    %20 = sbr.rel (%p18) target = $region8
  $region5: #{_lambda_.1} parent=0 // loop_body
    %s22 = ssub.s32 %s17, 1
    %s23 = ssub.s32 %s17, 2
    %s24 = sadd.s32 %s17, 1
    %s25 = ssub.s32 %s17, %s24
    %p26 = scmp.eq.s32.totalorder %s25, 0
    %s28 = sadd.s32 %s27, 1
    %s29 = scalar_select %p26, %s27, %s28
    %p32 = pneg %p26
    %p33 = scmp.eq.s32.totalorder %s17, 1
    %p34 = por %p32, %p33
    %p35 = scmp.ne.s32.totalorder %s27, %s30
    %p36 = scmp.eq.s32.totalorder %s17, 0
    %p37 = por %p35, %p36
    %p38 = scmp.ne.s32.totalorder %s27, %s30
    %p39 = scmp.eq.s32.totalorder %s22, 1
    %p40 = por %p38, %p39
    %p41 = scmp.ne.s32.totalorder %s30, %s31
    %p42 = scmp.eq.s32.totalorder %s22, 0
    %p43 = por %p41, %p42
    %p44 = scmp.ne.s32.totalorder %s30, %s31
    %p45 = scmp.eq.s32.totalorder %s23, 1
    %p46 = por %p44, %p45
    %p48 = scmp.ne.s32.totalorder %s31, %s47
    %p49 = scmp.eq.s32.totalorder %s23, 0
    %p50 = por %p48, %p49
    %s52 = sadd.s32 %s51, 1
    %p55 = scmp.eq.s32.totalorder %s17, 1
    %p56 = scmp.ne.s32.totalorder %s51, %s53
    %p57 = scmp.eq.s32.totalorder %s17, 0
    %p58 = por %p56, %p57
    %p59 = scmp.ne.s32.totalorder %s51, %s53
    %p60 = scmp.eq.s32.totalorder %s22, 1
    %p61 = por %p59, %p60
    %p62 = scmp.ne.s32.totalorder %s53, %s54
    %p63 = scmp.eq.s32.totalorder %s22, 0
    %p64 = por %p62, %p63
    %p65 = scmp.ne.s32.totalorder %s53, %s54
    %p66 = scmp.eq.s32.totalorder %s23, 1
    %p67 = por %p65, %p66
    %p69 = scmp.ne.s32.totalorder %s54, %s68
    %p70 = scmp.eq.s32.totalorder %s23, 0
    %p71 = por %p69, %p70
    %s73 = sadd.s32 %s72, 1
    %p76 = scmp.eq.s32.totalorder %s17, 1
    %p77 = scmp.ne.s32.totalorder %s72, %s74
    %p78 = scmp.eq.s32.totalorder %s17, 0
    %p79 = por %p77, %p78
    %p80 = scmp.ne.s32.totalorder %s72, %s74
    %p81 = scmp.eq.s32.totalorder %s22, 1
    %p82 = por %p80, %p81
    %p83 = scmp.ne.s32.totalorder %s74, %s75
    %p84 = scmp.eq.s32.totalorder %s22, 0
    %p85 = por %p83, %p84
    %p86 = scmp.ne.s32.totalorder %s74, %s75
    %p87 = scmp.eq.s32.totalorder %s23, 1
    %p88 = por %p86, %p87
    %p90 = scmp.ne.s32.totalorder %s75, %s89
    %p91 = scmp.eq.s32.totalorder %s23, 0
    %p92 = por %p90, %p91
    %s94 = sadd.s32 %s93, 1
    %p97 = scmp.eq.s32.totalorder %s17, 1
    %p98 = scmp.ne.s32.totalorder %s93, %s95
    %p99 = scmp.eq.s32.totalorder %s17, 0
    %p100 = por %p98, %p99
    %p101 = scmp.ne.s32.totalorder %s93, %s95
    %p102 = scmp.eq.s32.totalorder %s22, 1
    %p103 = por %p101, %p102
    %p104 = scmp.ne.s32.totalorder %s95, %s96
    %p105 = scmp.eq.s32.totalorder %s22, 0
    %p106 = por %p104, %p105
    %p107 = scmp.ne.s32.totalorder %s95, %s96
    %p108 = scmp.eq.s32.totalorder %s23, 1
    %p109 = por %p107, %p108
    %p111 = scmp.ne.s32.totalorder %s96, %s110
    %p112 = scmp.eq.s32.totalorder %s23, 0
    %p113 = por %p111, %p112
    %s115 = sadd.s32 %s114, 1
    %p118 = scmp.eq.s32.totalorder %s17, 1
    %p119 = scmp.ne.s32.totalorder %s114, %s116
    %p120 = scmp.eq.s32.totalorder %s17, 0
    %p121 = por %p119, %p120
    %p122 = scmp.ne.s32.totalorder %s114, %s116
    %p123 = scmp.eq.s32.totalorder %s22, 1
    %p124 = por %p122, %p123
    %p125 = scmp.ne.s32.totalorder %s116, %s117
    %p126 = scmp.eq.s32.totalorder %s22, 0
    %p127 = por %p125, %p126
    %p128 = scmp.ne.s32.totalorder %s116, %s117
    %p129 = scmp.eq.s32.totalorder %s23, 1
    %p130 = por %p128, %p129
    %p132 = scmp.ne.s32.totalorder %s117, %s131
    %p133 = scmp.eq.s32.totalorder %s23, 0
    %p134 = por %p132, %p133
    %s136 = sadd.s32 %s135, 1
    %p139 = scmp.eq.s32.totalorder %s17, 1
    %p140 = scmp.ne.s32.totalorder %s135, %s137
    %p141 = scmp.eq.s32.totalorder %s17, 0
    %p142 = por %p140, %p141
    %p143 = scmp.ne.s32.totalorder %s135, %s137
    %p144 = scmp.eq.s32.totalorder %s22, 1
    %p145 = por %p143, %p144
    %p146 = scmp.ne.s32.totalorder %s137, %s138
    %p147 = scmp.eq.s32.totalorder %s22, 0
    %p148 = por %p146, %p147
    %p149 = scmp.ne.s32.totalorder %s137, %s138
    %p150 = scmp.eq.s32.totalorder %s23, 1
    %p151 = por %p149, %p150
    %p153 = scmp.ne.s32.totalorder %s138, %s152
    %p154 = scmp.eq.s32.totalorder %s23, 0
    %p155 = por %p153, %p154
    %s157 = sadd.s32 %s156, 1
    %p160 = scmp.eq.s32.totalorder %s17, 1
    %p161 = scmp.ne.s32.totalorder %s156, %s158
    %p162 = scmp.eq.s32.totalorder %s17, 0
    %p163 = por %p161, %p162
    %p164 = scmp.ne.s32.totalorder %s156, %s158
    %p165 = scmp.eq.s32.totalorder %s22, 1
    %p166 = por %p164, %p165
    %p167 = scmp.ne.s32.totalorder %s158, %s159
    %p168 = scmp.eq.s32.totalorder %s22, 0
    %p169 = por %p167, %p168
    %p170 = scmp.ne.s32.totalorder %s158, %s159
    %p171 = scmp.eq.s32.totalorder %s23, 1
    %p172 = por %p170, %p171
    %p174 = scmp.ne.s32.totalorder %s159, %s173
    %p175 = scmp.eq.s32.totalorder %s23, 0
    %p176 = por %p174, %p175
    %s178 = sadd.s32 %s177, 1
    %p181 = scmp.eq.s32.totalorder %s17, 1
    %p182 = scmp.ne.s32.totalorder %s177, %s179
    %p183 = scmp.eq.s32.totalorder %s17, 0
    %p184 = por %p182, %p183
    %p185 = scmp.ne.s32.totalorder %s177, %s179
    %p186 = scmp.eq.s32.totalorder %s22, 1
    %p187 = por %p185, %p186
    %p188 = scmp.ne.s32.totalorder %s179, %s180
    %p189 = scmp.eq.s32.totalorder %s22, 0
    %p190 = por %p188, %p189
    %p191 = scmp.ne.s32.totalorder %s179, %s180
    %p192 = scmp.eq.s32.totalorder %s23, 1
    %p193 = por %p191, %p192
    %p195 = scmp.ne.s32.totalorder %s180, %s194
    %p196 = scmp.eq.s32.totalorder %s23, 0
    %p197 = por %p195, %p196
    %s199 = sadd.s32 %s198, 1
    %p202 = scmp.eq.s32.totalorder %s17, 1
    %p203 = scmp.ne.s32.totalorder %s198, %s200
    %p204 = scmp.eq.s32.totalorder %s17, 0
    %p205 = por %p203, %p204
    %p206 = scmp.ne.s32.totalorder %s198, %s200
    %p207 = scmp.eq.s32.totalorder %s22, 1
    %p208 = por %p206, %p207
    %p209 = scmp.ne.s32.totalorder %s200, %s201
    %p210 = scmp.eq.s32.totalorder %s22, 0
    %p211 = por %p209, %p210
    %p212 = scmp.ne.s32.totalorder %s200, %s201
    %p213 = scmp.eq.s32.totalorder %s23, 1
    %p214 = por %p212, %p213
    %p216 = scmp.ne.s32.totalorder %s201, %s215
    %p217 = scmp.eq.s32.totalorder %s23, 0
    %p218 = por %p216, %p217
    %s220 = sadd.s32 %s219, 1
    %p223 = scmp.eq.s32.totalorder %s17, 1
    %p224 = scmp.ne.s32.totalorder %s219, %s221
    %p225 = scmp.eq.s32.totalorder %s17, 0
    %p226 = por %p224, %p225
    %p227 = scmp.ne.s32.totalorder %s219, %s221
    %p228 = scmp.eq.s32.totalorder %s22, 1
    %p229 = por %p227, %p228
    %p230 = scmp.ne.s32.totalorder %s221, %s222
    %p231 = scmp.eq.s32.totalorder %s22, 0
    %p232 = por %p230, %p231
    %p233 = scmp.ne.s32.totalorder %s221, %s222
    %p234 = scmp.eq.s32.totalorder %s23, 1
    %p235 = por %p233, %p234
    %p237 = scmp.ne.s32.totalorder %s222, %s236
    %p238 = scmp.eq.s32.totalorder %s23, 0
    %p239 = por %p237, %p238
    %s241 = sadd.s32 %s240, 1
    %p244 = scmp.eq.s32.totalorder %s17, 1
    %p245 = scmp.ne.s32.totalorder %s240, %s242
    %p246 = scmp.eq.s32.totalorder %s17, 0
    %p247 = por %p245, %p246
    %p248 = scmp.ne.s32.totalorder %s240, %s242
    %p249 = scmp.eq.s32.totalorder %s22, 1
    %p250 = por %p248, %p249
    %p251 = scmp.ne.s32.totalorder %s242, %s243
    %p252 = scmp.eq.s32.totalorder %s22, 0
    %p253 = por %p251, %p252
    %p254 = scmp.ne.s32.totalorder %s242, %s243
    %p255 = scmp.eq.s32.totalorder %s23, 1
    %p256 = por %p254, %p255
    %p258 = scmp.ne.s32.totalorder %s243, %s257
    %p259 = scmp.eq.s32.totalorder %s23, 0
    %p260 = por %p258, %p259
    %s261 = ssub.s32 %s17, %s24
    %p262 = scmp.eq.s32.totalorder %s261, 0
    %s264 = sadd.s32 %s263, 1
    %s265 = scalar_select %p262, %s263, %s264
    %p268 = pneg %p262
    %p269 = scmp.eq.s32.totalorder %s17, 1
    %p270 = por %p268, %p269
    %p271 = scmp.ne.s32.totalorder %s263, %s266
    %p272 = scmp.eq.s32.totalorder %s17, 0
    %p273 = por %p271, %p272
    %p274 = scmp.ne.s32.totalorder %s263, %s266
    %p275 = scmp.eq.s32.totalorder %s22, 1
    %p276 = por %p274, %p275
    %p277 = scmp.ne.s32.totalorder %s266, %s267
    %p278 = scmp.eq.s32.totalorder %s22, 0
    %p279 = por %p277, %p278
    %p280 = scmp.ne.s32.totalorder %s266, %s267
    %p281 = scmp.eq.s32.totalorder %s23, 1
    %p282 = por %p280, %p281
    %p284 = scmp.ne.s32.totalorder %s267, %s283
    %p285 = scmp.eq.s32.totalorder %s23, 0
    %p286 = por %p284, %p285
    %p287 = scmp.le.s32.totalorder 1, %s17
    %p288 = scmp.lt.s32.totalorder %s17, 3
    %p289 = pnand %p287, %p288
    %p290 = pneg %p289
    // Predicated region
    $region9: #{_lambda_.1} parent=5 // pred_check
      _
    $region10: #{_lambda_.1} parent=5 // pred_check_branch
      %292 = sbr.rel (%p289) target = $region12
    $region11: #{_lambda_.1} parent=5 // pred_region
      %s293 = ssub.s32 %s17, 1
      // Predicated region
      $region13: #{_lambda_.1} parent=11 // pred_check
        %p294 = pneg %p64
      $region14: #{_lambda_.1} parent=11 // pred_check_branch
        %296 = sbr.rel (%p294) target = $region16
      $region15: #{_lambda_.1} parent=11 // pred_region
        _
      $region16: #{_lambda_.1} parent=11 // pred_fallthru
        _
      // Predicated region
      $region17: #{_lambda_.1} parent=11 // pred_check
        %p297 = pneg %p85
      $region18: #{_lambda_.1} parent=11 // pred_check_branch
        %299 = sbr.rel (%p297) target = $region20
      $region19: #{_lambda_.1} parent=11 // pred_region
        _
      $region20: #{_lambda_.1} parent=11 // pred_fallthru
        _
      // Predicated region
      $region21: #{_lambda_.1} parent=11 // pred_check
        %p300 = pneg %p106
      $region22: #{_lambda_.1} parent=11 // pred_check_branch
        %302 = sbr.rel (%p300) target = $region24
      $region23: #{_lambda_.1} parent=11 // pred_region
        _
      $region24: #{_lambda_.1} parent=11 // pred_fallthru
        _
      // Predicated region
      $region25: #{_lambda_.1} parent=11 // pred_check
        %p303 = pneg %p127
      $region26: #{_lambda_.1} parent=11 // pred_check_branch
        %305 = sbr.rel (%p303) target = $region28
      $region27: #{_lambda_.1} parent=11 // pred_region
        _
      $region28: #{_lambda_.1} parent=11 // pred_fallthru
        _
      // Predicated region
      $region29: #{_lambda_.1} parent=11 // pred_check
        %p306 = pneg %p148
      $region30: #{_lambda_.1} parent=11 // pred_check_branch
        %308 = sbr.rel (%p306) target = $region32
      $region31: #{_lambda_.1} parent=11 // pred_region
        _
      $region32: #{_lambda_.1} parent=11 // pred_fallthru
        _
      // Predicated region
      $region33: #{_lambda_.1} parent=11 // pred_check
        %p309 = pneg %p169
      $region34: #{_lambda_.1} parent=11 // pred_check_branch
        %311 = sbr.rel (%p309) target = $region36
      $region35: #{_lambda_.1} parent=11 // pred_region
        _
      $region36: #{_lambda_.1} parent=11 // pred_fallthru
        _
      // Predicated region
      $region37: #{_lambda_.1} parent=11 // pred_check
        %p312 = pneg %p190
      $region38: #{_lambda_.1} parent=11 // pred_check_branch
        %314 = sbr.rel (%p312) target = $region40
      $region39: #{_lambda_.1} parent=11 // pred_region
        _
      $region40: #{_lambda_.1} parent=11 // pred_fallthru
        _
      // Predicated region
      $region41: #{_lambda_.1} parent=11 // pred_check
        %p315 = pneg %p211
      $region42: #{_lambda_.1} parent=11 // pred_check_branch
        %317 = sbr.rel (%p315) target = $region44
      $region43: #{_lambda_.1} parent=11 // pred_region
        _
      $region44: #{_lambda_.1} parent=11 // pred_fallthru
        _
      // Predicated region
      $region45: #{_lambda_.1} parent=11 // pred_check
        %p318 = pneg %p232
      $region46: #{_lambda_.1} parent=11 // pred_check_branch
        %320 = sbr.rel (%p318) target = $region48
      $region47: #{_lambda_.1} parent=11 // pred_region
        _
      $region48: #{_lambda_.1} parent=11 // pred_fallthru
        _
      // Predicated region
      $region49: #{_lambda_.1} parent=11 // pred_check
        %p321 = pneg %p253
      $region50: #{_lambda_.1} parent=11 // pred_check_branch
        %323 = sbr.rel (%p321) target = $region52
      $region51: #{_lambda_.1} parent=11 // pred_region
        _
      $region52: #{_lambda_.1} parent=11 // pred_fallthru
        _
    $region12: #{_lambda_.1} parent=5 // pred_fallthru
      _
    %p324 = scmp.lt.s32.totalorder %s17, 2
    // Predicated region
    $region53: #{_lambda_.1} parent=5 // pred_check
      %p325 = pneg %p324
    $region54: #{_lambda_.1} parent=5 // pred_check_branch
      %327 = sbr.rel (%p325) target = $region56
    $region55: #{_lambda_.1} parent=5 // pred_region
      // Predicated region
      $region57: #{_lambda_.1} parent=55 // pred_check
        %p328 = pneg %p37
      $region58: #{_lambda_.1} parent=55 // pred_check_branch
        %330 = sbr.rel (%p328) target = $region60
      $region59: #{_lambda_.1} parent=55 // pred_region
        %s331 = smul.u32 4, %s17
        %p332 = scmp.lt.s32.totalorder %s331, 7
        %s333 = scalar_select %p332, %s331, 7
        %s334 = smul.addr %s333, 7
        %s335 = smul.addr %s334, 4
        %s336 = scalar_lea.vmem %s0, %s335
        %s337 = smul.u32 4, %s17
      $region60: #{_lambda_.1} parent=55 // pred_fallthru
        _
    $region56: #{_lambda_.1} parent=5 // pred_fallthru
      _
    %p338 = scmp.le.s32.totalorder 1, %s17
    %p339 = scmp.lt.s32.totalorder %s17, 3
    %p340 = pnand %p338, %p339
    %p341 = pneg %p340
    // Predicated region
    $region61: #{_lambda_.1} parent=5 // pred_check
      _
    $region62: #{_lambda_.1} parent=5 // pred_check_branch
      %343 = sbr.rel (%p340) target = $region64
    $region63: #{_lambda_.1} parent=5 // pred_region
      %s344 = ssub.s32 %s17, 1
      %s345 = smul.u32 4, %s22
      %p346 = scmp.lt.s32.totalorder %s345, 7
      %s347 = scalar_select %p346, %s345, 7
      %s348 = smul.addr %s347, 7
      %s349 = smul.addr %s348, 4
      %s350 = scalar_lea.vmem %s0, %s349
      %p351 = pneg %p43
      %p352 = pneg %p40
      %p353 = pneg %p64
      %p354 = pneg %p61
      %p355 = pneg %p85
      %p356 = pneg %p82
      %p357 = pneg %p106
      %p358 = pneg %p103
      %p359 = pneg %p127
      %p360 = pneg %p124
      %p361 = pneg %p148
      %p362 = pneg %p145
      %p363 = pneg %p169
      %p364 = pneg %p166
      %p365 = pneg %p190
      %p366 = pneg %p187
      %p367 = pneg %p211
      %p368 = pneg %p208
      %p369 = pneg %p232
      %p370 = pneg %p229
      %p371 = pneg %p253
      %p372 = pneg %p250
      %p373 = pneg %p279
      %p374 = pneg %p276
      %s375 = smul.u32 4, %s22
      %p376 = scmp.lt.s32.totalorder %s375, 7
      %s377 = scalar_select %p376, %s375, 7
      %s378 = smul.addr %s377, 8
      %s379 = scalar_lea.vmem %s11, %s378
      %s380 = smul.u32 4, %s22
      %p381 = scmp.lt.s32.totalorder %s380, 7
      %s382 = scalar_select %p381, %s380, 7
      %s383 = smul.addr %s382, 7
      %s384 = smul.addr %s383, 4
      %s385 = scalar_lea.vmem %s0, %s384
      %s386 = smul.u32 4, %s22
      %s387 = smul.u32 4, %s22
      %p388 = scmp.lt.s32.totalorder %s387, 7
      %s389 = scalar_select %p388, %s387, 7
      %s390 = smul.addr %s389, 8
      %s391 = scalar_lea.vmem %s11, %s390
      %s392 = smul.u32 4, %s22
      %v394 = vld [vmem:[%s385] sm:$0xff]
      %v395 = vld [vmem:[%s385 + $0x8] sm:$0xff]
      %v396 = vld [vmem:[%s385 + $0x10] sm:$0xff]
      %v397 = vld [vmem:[%s385 + $0x18] sm:$0xf]
      %v398 = vld [vmem:[%s385 + $0x1c] sm:$0xff]
      %v399 = vld [vmem:[%s385 + $0x24] sm:$0xff]
      %v400 = vld [vmem:[%s385 + $0x2c] sm:$0xff]
      %v401 = vld [vmem:[%s385 + $0x34] sm:$0xf]
      %v402 = vld [vmem:[%s385 + $0x38] sm:$0xff]
      %v403 = vld [vmem:[%s385 + $0x40] sm:$0xff]
      %v404 = vld [vmem:[%s385 + $0x48] sm:$0xff]
      %v405 = vld [vmem:[%s385 + $0x50] sm:$0xf]
      %v406 = vld [vmem:[%s385 + $0x54] sm:$0xff]
      %v407 = vld [vmem:[%s385 + $0x5c] sm:$0xff]
      %v408 = vld [vmem:[%s385 + $0x64] sm:$0xff]
      %v409 = vld [vmem:[%s385 + $0x6c] sm:$0xf]
      %v410 = vld [vmem:[%s1] sm:$0xff]
      %v411 = vld [vmem:[%s1 + $0x8] sm:$0xff]
      %v412 = vld [vmem:[%s1 + $0x10] sm:$0xff]
      %v413 = vld [vmem:[%s1 + $0x18] sm:$0xff]
      %v414 = vld [vmem:[%s1 + $0x20] sm:$0xff]
      %v415 = vld [vmem:[%s1 + $0x28] sm:$0xff]
      %v416 = vld [vmem:[%s1 + $0x30] sm:$0xff]
      %v417 = vld [vmem:[%s1 + $0x38] sm:$0xff]
      %v418 = vld [vmem:[%s1 + $0x40] sm:$0xff]
      %v419 = vld [vmem:[%s1 + $0x48] sm:$0xff]
      %v420 = vld [vmem:[%s1 + $0x50] sm:$0xff]
      %v421 = vld [vmem:[%s1 + $0x58] sm:$0xff]
      %v422 = vld [vmem:[%s1 + $0x60] sm:$0xff]
      %v423 = vld [vmem:[%s1 + $0x68] sm:$0xff]
      %v424 = vld [vmem:[%s1 + $0x70] sm:$0xff]
      %v425 = vld [vmem:[%s1 + $0x78] sm:$0xff]
      %v426 = vld [vmem:[%s1 + $0x80] sm:$0xff]
      %v427 = vld [vmem:[%s1 + $0x88] sm:$0xff]
      %v428 = vld [vmem:[%s1 + $0x90] sm:$0xff]
      %v429 = vld [vmem:[%s1 + $0x98] sm:$0xff]
      %v430 = vld [vmem:[%s1 + $0xa0] sm:$0xff]
      %v431 = vld [vmem:[%s1 + $0xa8] sm:$0xff]
      %v432 = vld [vmem:[%s1 + $0xb0] sm:$0xff]
      %v433 = vld [vmem:[%s1 + $0xb8] sm:$0xff]
      %v434 = vld [vmem:[%s1 + $0xc0] sm:$0xff]
      %v435 = vld [vmem:[%s1 + $0xc8] sm:$0xff]
      %v436 = vld [vmem:[%s1 + $0xd0] sm:$0xff]
      %v437 = vld [vmem:[%s1 + $0xd8] sm:$0xff]
      %v438 = vld [vmem:[%s1 + $0xe0] sm:$0xff]
      %v439 = vld [vmem:[%s1 + $0xe8] sm:$0xff]
      %v440 = vld [vmem:[%s1 + $0xf0] sm:$0xff]
      %v441 = vld [vmem:[%s1 + $0xf8] sm:$0xff]
      %v442 = vld [vmem:[%s1 + $0x100] sm:$0xff]
      %v443 = vld [vmem:[%s1 + $0x108] sm:$0xff]
      %v444 = vld [vmem:[%s1 + $0x110] sm:$0xff]
      %v445 = vld [vmem:[%s1 + $0x118] sm:$0xff]
      %v446 = vld [vmem:[%s1 + $0x120] sm:$0xff]
      %v447 = vld [vmem:[%s1 + $0x128] sm:$0xff]
      %v448 = vld [vmem:[%s1 + $0x130] sm:$0xff]
      %v449 = vld [vmem:[%s1 + $0x138] sm:$0xff]
      %v450 = vld [vmem:[%s1 + $0x140] sm:$0xff]
      %v451 = vld [vmem:[%s1 + $0x148] sm:$0xff]
      %v452 = vld [vmem:[%s1 + $0x150] sm:$0xff]
      %v453 = vld [vmem:[%s1 + $0x158] sm:$0xff]
      %v454 = vld [vmem:[%s1 + $0x160] sm:$0xff]
      %v455 = vld [vmem:[%s1 + $0x168] sm:$0xff]
      %v456 = vld [vmem:[%s1 + $0x170] sm:$0xff]
      %v457 = vld [vmem:[%s1 + $0x178] sm:$0xff]
      %v458 = vld [vmem:[%s1 + $0x180] sm:$0xff]
      %v459 = vld [vmem:[%s1 + $0x188] sm:$0xff]
      %v460 = vld [vmem:[%s1 + $0x190] sm:$0xff]
      %v461 = vld [vmem:[%s1 + $0x198] sm:$0xff]
      %v462 = vld [vmem:[%s1 + $0x1a0] sm:$0xff]
      %v463 = vld [vmem:[%s1 + $0x1a8] sm:$0xff]
      %v464 = vld [vmem:[%s1 + $0x1b0] sm:$0xff]
      %v465 = vld [vmem:[%s1 + $0x1b8] sm:$0xff]
      %v466 = vld [vmem:[%s1 + $0x1c0] sm:$0xff]
      %v467 = vld [vmem:[%s1 + $0x1c8] sm:$0xff]
      %v468 = vld [vmem:[%s1 + $0x1d0] sm:$0xff]
      %v469 = vld [vmem:[%s1 + $0x1d8] sm:$0xff]
      %v470 = vld [vmem:[%s1 + $0x1e0] sm:$0xff]
      %v471 = vld [vmem:[%s1 + $0x1e8] sm:$0xff]
      %v472 = vld [vmem:[%s1 + $0x1f0] sm:$0xff]
      %v473 = vld [vmem:[%s1 + $0x1f8] sm:$0xff]
      %v474 = vld [vmem:[%s1 + $0x200] sm:$0xff]
      %v475 = vld [vmem:[%s1 + $0x208] sm:$0xff]
      %v476 = vld [vmem:[%s1 + $0x210] sm:$0xff]
      %v477 = vld [vmem:[%s1 + $0x218] sm:$0xff]
      %v478 = vld [vmem:[%s1 + $0x220] sm:$0xff]
      %v479 = vld [vmem:[%s1 + $0x228] sm:$0xff]
      %v480 = vld [vmem:[%s1 + $0x230] sm:$0xff]
      %v481 = vld [vmem:[%s1 + $0x238] sm:$0xff]
      %v482 = vld [vmem:[%s1 + $0x240] sm:$0xff]
      %v483 = vld [vmem:[%s1 + $0x248] sm:$0xff]
      %v484 = vld [vmem:[%s1 + $0x250] sm:$0xff]
      %v485 = vld [vmem:[%s1 + $0x258] sm:$0xff]
      %v486 = vld [vmem:[%s1 + $0x260] sm:$0xff]
      %v487 = vld [vmem:[%s1 + $0x268] sm:$0xff]
      %v488 = vld [vmem:[%s1 + $0x270] sm:$0xff]
      %v489 = vld [vmem:[%s1 + $0x278] sm:$0xff]
      %v490 = vld [vmem:[%s1 + $0x280] sm:$0xff]
      %v491 = vld [vmem:[%s1 + $0x288] sm:$0xff]
      %v492 = vld [vmem:[%s1 + $0x290] sm:$0xff]
      %v493 = vld [vmem:[%s1 + $0x298] sm:$0xff]
      %v494 = vld [vmem:[%s1 + $0x2a0] sm:$0xff]
      %v495 = vld [vmem:[%s1 + $0x2a8] sm:$0xff]
      %v496 = vld [vmem:[%s1 + $0x2b0] sm:$0xff]
      %v497 = vld [vmem:[%s1 + $0x2b8] sm:$0xff]
      %v498 = vld [vmem:[%s1 + $0x2c0] sm:$0xff]
      %v499 = vld [vmem:[%s1 + $0x2c8] sm:$0xff]
      %v500 = vld [vmem:[%s1 + $0x2d0] sm:$0xff]
      %v501 = vld [vmem:[%s1 + $0x2d8] sm:$0xff]
      %v502 = vld [vmem:[%s1 + $0x2e0] sm:$0xff]
      %v503 = vld [vmem:[%s1 + $0x2e8] sm:$0xff]
      %v504 = vld [vmem:[%s1 + $0x2f0] sm:$0xff]
      %v505 = vld [vmem:[%s1 + $0x2f8] sm:$0xff]
      %v506 = vld [vmem:[%s1 + $0x300] sm:$0xff]
      %v507 = vld [vmem:[%s1 + $0x308] sm:$0xff]
      %v508 = vld [vmem:[%s1 + $0x310] sm:$0xff]
      %v509 = vld [vmem:[%s1 + $0x318] sm:$0xff]
      %v510 = vld [vmem:[%s1 + $0x320] sm:$0xff]
      %v511 = vld [vmem:[%s1 + $0x328] sm:$0xff]
      %v512 = vld [vmem:[%s1 + $0x330] sm:$0xff]
      %v513 = vld [vmem:[%s1 + $0x338] sm:$0xff]
      %v514 = vld [vmem:[%s1 + $0x340] sm:$0xff]
      %v515 = vld [vmem:[%s1 + $0x348] sm:$0xff]
      %v516 = vld [vmem:[%s1 + $0x350] sm:$0xff]
      %v517 = vld [vmem:[%s1 + $0x358] sm:$0xff]
      %v518 = vld [vmem:[%s1 + $0x360] sm:$0xff]
      %v519 = vld [vmem:[%s1 + $0x368] sm:$0xff]
      %v520 = vld [vmem:[%s1 + $0x370] sm:$0xff]
      %v521 = vld [vmem:[%s1 + $0x378] sm:$0xff]
      %v522 = vld [vmem:[%s1 + $0x380] sm:$0xff]
      %v523 = vld [vmem:[%s1 + $0x388] sm:$0xff]
      %v524 = vld [vmem:[%s1 + $0x390] sm:$0xff]
      %v525 = vld [vmem:[%s1 + $0x398] sm:$0xff]
      %v526 = vld [vmem:[%s1 + $0x3a0] sm:$0xff]
      %v527 = vld [vmem:[%s1 + $0x3a8] sm:$0xff]
      %v528 = vld [vmem:[%s1 + $0x3b0] sm:$0xff]
      %v529 = vld [vmem:[%s1 + $0x3b8] sm:$0xff]
      %v530 = vld [vmem:[%s1 + $0x3c0] sm:$0xff]
      %v531 = vld [vmem:[%s1 + $0x3c8] sm:$0xff]
      %v532 = vld [vmem:[%s1 + $0x3d0] sm:$0xff]
      %v533 = vld [vmem:[%s1 + $0x3d8] sm:$0xff]
      %v534 = vld [vmem:[%s1 + $0x3e0] sm:$0xff]
      %v535 = vld [vmem:[%s1 + $0x3e8] sm:$0xff]
      %v536 = vld [vmem:[%s1 + $0x3f0] sm:$0xff]
      %v537 = vld [vmem:[%s1 + $0x3f8] sm:$0xff]
      %v538 = vld [vmem:[%s1 + $0x400] sm:$0xff]
      %v539 = vld [vmem:[%s1 + $0x408] sm:$0xff]
      %v540 = vld [vmem:[%s1 + $0x410] sm:$0xff]
      %v541 = vld [vmem:[%s1 + $0x418] sm:$0xff]
      %v542 = vld [vmem:[%s1 + $0x420] sm:$0xff]
      %v543 = vld [vmem:[%s1 + $0x428] sm:$0xff]
      %v544 = vld [vmem:[%s1 + $0x430] sm:$0xff]
      %v545 = vld [vmem:[%s1 + $0x438] sm:$0xff]
      %v546 = vld [vmem:[%s1 + $0x440] sm:$0xff]
      %v547 = vld [vmem:[%s1 + $0x448] sm:$0xff]
      %v548 = vld [vmem:[%s1 + $0x450] sm:$0xff]
      %v549 = vld [vmem:[%s1 + $0x458] sm:$0xff]
      %v550 = vld [vmem:[%s1 + $0x460] sm:$0xff]
      %v551 = vld [vmem:[%s1 + $0x468] sm:$0xff]
      %v552 = vld [vmem:[%s1 + $0x470] sm:$0xff]
      %v553 = vld [vmem:[%s1 + $0x478] sm:$0xff]
      %v554 = vld [vmem:[%s1 + $0x480] sm:$0xff]
      %v555 = vld [vmem:[%s1 + $0x488] sm:$0xff]
      %v556 = vld [vmem:[%s1 + $0x490] sm:$0xff]
      %v557 = vld [vmem:[%s1 + $0x498] sm:$0xff]
      %v558 = vld [vmem:[%s1 + $0x4a0] sm:$0xff]
      %v559 = vld [vmem:[%s1 + $0x4a8] sm:$0xff]
      %v560 = vld [vmem:[%s1 + $0x4b0] sm:$0xff]
      %v561 = vld [vmem:[%s1 + $0x4b8] sm:$0xff]
      %v562 = vld [vmem:[%s1 + $0x4c0] sm:$0xff]
      %v563 = vld [vmem:[%s1 + $0x4c8] sm:$0xff]
      %v564 = vld [vmem:[%s1 + $0x4d0] sm:$0xff]
      %v565 = vld [vmem:[%s1 + $0x4d8] sm:$0xff]
      %v566 = vld [vmem:[%s1 + $0x4e0] sm:$0xff]
      %v567 = vld [vmem:[%s1 + $0x4e8] sm:$0xff]
      %v568 = vld [vmem:[%s1 + $0x4f0] sm:$0xff]
      %v569 = vld [vmem:[%s1 + $0x4f8] sm:$0xff]
      %v570 = vld [vmem:[%s1 + $0x500] sm:$0xff]
      %v571 = vld [vmem:[%s1 + $0x508] sm:$0xff]
      %v572 = vld [vmem:[%s1 + $0x510] sm:$0xff]
      %v573 = vld [vmem:[%s1 + $0x518] sm:$0xff]
      %v574 = vld [vmem:[%s1 + $0x520] sm:$0xff]
      %v575 = vld [vmem:[%s1 + $0x528] sm:$0xff]
      %v576 = vld [vmem:[%s1 + $0x530] sm:$0xff]
      %v577 = vld [vmem:[%s1 + $0x538] sm:$0xff]
      %v578 = vld [vmem:[%s1 + $0x540] sm:$0xff]
      %v579 = vld [vmem:[%s1 + $0x548] sm:$0xff]
      %v580 = vld [vmem:[%s1 + $0x550] sm:$0xff]
      %v581 = vld [vmem:[%s1 + $0x558] sm:$0xff]
      %v582 = vld [vmem:[%s1 + $0x560] sm:$0xff]
      %v583 = vld [vmem:[%s1 + $0x568] sm:$0xff]
      %v584 = vld [vmem:[%s1 + $0x570] sm:$0xff]
      %v585 = vld [vmem:[%s1 + $0x578] sm:$0xff]
      %v586 = vld [vmem:[%s1 + $0x580] sm:$0xff]
      %v587 = vld [vmem:[%s1 + $0x588] sm:$0xff]
      %v588 = vld [vmem:[%s1 + $0x590] sm:$0xff]
      %v589 = vld [vmem:[%s1 + $0x598] sm:$0xff]
      %v590 = vld [vmem:[%s1 + $0x5a0] sm:$0xff]
      %v591 = vld [vmem:[%s1 + $0x5a8] sm:$0xff]
      %v592 = vld [vmem:[%s1 + $0x5b0] sm:$0xff]
      %v593 = vld [vmem:[%s1 + $0x5b8] sm:$0xff]
      %v594 = vld [vmem:[%s1 + $0x5c0] sm:$0xff]
      %v595 = vld [vmem:[%s1 + $0x5c8] sm:$0xff]
      %v596 = vld [vmem:[%s1 + $0x5d0] sm:$0xff]
      %v597 = vld [vmem:[%s1 + $0x5d8] sm:$0xff]
      %v598 = vld [vmem:[%s1 + $0x5e0] sm:$0xff]
      %v599 = vld [vmem:[%s1 + $0x5e8] sm:$0xff]
      %v600 = vld [vmem:[%s1 + $0x5f0] sm:$0xff]
      %v601 = vld [vmem:[%s1 + $0x5f8] sm:$0xff]
      %v602 = vld [vmem:[%s1 + $0x600] sm:$0xff]
      %v603 = vld [vmem:[%s1 + $0x608] sm:$0xff]
      %v604 = vld [vmem:[%s1 + $0x610] sm:$0xff]
      %v605 = vld [vmem:[%s1 + $0x618] sm:$0xff]
      %v606 = vld [vmem:[%s1 + $0x620] sm:$0xff]
      %v607 = vld [vmem:[%s1 + $0x628] sm:$0xff]
      %v608 = vld [vmem:[%s1 + $0x630] sm:$0xff]
      %v609 = vld [vmem:[%s1 + $0x638] sm:$0xff]
      %v610 = vld [vmem:[%s1 + $0x640] sm:$0xff]
      %v611 = vld [vmem:[%s1 + $0x648] sm:$0xff]
      %v612 = vld [vmem:[%s1 + $0x650] sm:$0xff]
      %v613 = vld [vmem:[%s1 + $0x658] sm:$0xff]
      %v614 = vld [vmem:[%s1 + $0x660] sm:$0xff]
      %v615 = vld [vmem:[%s1 + $0x668] sm:$0xff]
      %v616 = vld [vmem:[%s1 + $0x670] sm:$0xff]
      %v617 = vld [vmem:[%s1 + $0x678] sm:$0xff]
      %v618 = vld [vmem:[%s1 + $0x680] sm:$0xff]
      %v619 = vld [vmem:[%s1 + $0x688] sm:$0xff]
      %v620 = vld [vmem:[%s1 + $0x690] sm:$0xff]
      %v621 = vld [vmem:[%s1 + $0x698] sm:$0xff]
      %v622 = vld [vmem:[%s1 + $0x6a0] sm:$0xff]
      %v623 = vld [vmem:[%s1 + $0x6a8] sm:$0xff]
      %v624 = vld [vmem:[%s1 + $0x6b0] sm:$0xff]
      %v625 = vld [vmem:[%s1 + $0x6b8] sm:$0xff]
      %v626 = vld [vmem:[%s1 + $0x6c0] sm:$0xff]
      %v627 = vld [vmem:[%s1 + $0x6c8] sm:$0xff]
      %v628 = vld [vmem:[%s1 + $0x6d0] sm:$0xff]
      %v629 = vld [vmem:[%s1 + $0x6d8] sm:$0xff]
      %v630 = vld [vmem:[%s1 + $0x6e0] sm:$0xff]
      %v631 = vld [vmem:[%s1 + $0x6e8] sm:$0xff]
      %v632 = vld [vmem:[%s1 + $0x6f0] sm:$0xff]
      %v633 = vld [vmem:[%s1 + $0x6f8] sm:$0xff]
      %v634 = vld [vmem:[%s1 + $0x700] sm:$0xff]
      %v635 = vld [vmem:[%s1 + $0x708] sm:$0xff]
      %v636 = vld [vmem:[%s1 + $0x710] sm:$0xff]
      %v637 = vld [vmem:[%s1 + $0x718] sm:$0xff]
      %v638 = vld [vmem:[%s1 + $0x720] sm:$0xff]
      %v639 = vld [vmem:[%s1 + $0x728] sm:$0xff]
      %v640 = vld [vmem:[%s1 + $0x730] sm:$0xff]
      %v641 = vld [vmem:[%s1 + $0x738] sm:$0xff]
      %v642 = vld [vmem:[%s1 + $0x740] sm:$0xff]
      %v643 = vld [vmem:[%s1 + $0x748] sm:$0xff]
      %v644 = vld [vmem:[%s1 + $0x750] sm:$0xff]
      %v645 = vld [vmem:[%s1 + $0x758] sm:$0xff]
      %v646 = vld [vmem:[%s1 + $0x760] sm:$0xff]
      %v647 = vld [vmem:[%s1 + $0x768] sm:$0xff]
      %v648 = vld [vmem:[%s1 + $0x770] sm:$0xff]
      %v649 = vld [vmem:[%s1 + $0x778] sm:$0xff]
      %v650 = vld [vmem:[%s1 + $0x780] sm:$0xff]
      %v651 = vld [vmem:[%s1 + $0x788] sm:$0xff]
      %v652 = vld [vmem:[%s1 + $0x790] sm:$0xff]
      %v653 = vld [vmem:[%s1 + $0x798] sm:$0xff]
      %v654 = vld [vmem:[%s1 + $0x7a0] sm:$0xff]
      %v655 = vld [vmem:[%s1 + $0x7a8] sm:$0xff]
      %v656 = vld [vmem:[%s1 + $0x7b0] sm:$0xff]
      %v657 = vld [vmem:[%s1 + $0x7b8] sm:$0xff]
      %v658 = vld [vmem:[%s1 + $0x7c0] sm:$0xff]
      %v659 = vld [vmem:[%s1 + $0x7c8] sm:$0xff]
      %v660 = vld [vmem:[%s1 + $0x7d0] sm:$0xff]
      %v661 = vld [vmem:[%s1 + $0x7d8] sm:$0xff]
      %v662 = vld [vmem:[%s1 + $0x7e0] sm:$0xff]
      %v663 = vld [vmem:[%s1 + $0x7e8] sm:$0xff]
      %v664 = vld [vmem:[%s1 + $0x7f0] sm:$0xff]
      %v665 = vld [vmem:[%s1 + $0x7f8] sm:$0xff]
      %v666 = vld [vmem:[%s1 + $0x800] sm:$0xff]
      %v667 = vld [vmem:[%s1 + $0x808] sm:$0xff]
      %v668 = vld [vmem:[%s1 + $0x810] sm:$0xff]
      %v669 = vld [vmem:[%s1 + $0x818] sm:$0xff]
      %v670 = vld [vmem:[%s1 + $0x820] sm:$0xff]
      %v671 = vld [vmem:[%s1 + $0x828] sm:$0xff]
      %v672 = vld [vmem:[%s1 + $0x830] sm:$0xff]
      %v673 = vld [vmem:[%s1 + $0x838] sm:$0xff]
      %v674 = vld [vmem:[%s1 + $0x840] sm:$0xff]
      %v675 = vld [vmem:[%s1 + $0x848] sm:$0xff]
      %v676 = vld [vmem:[%s1 + $0x850] sm:$0xff]
      %v677 = vld [vmem:[%s1 + $0x858] sm:$0xff]
      %v678 = vld [vmem:[%s1 + $0x860] sm:$0xff]
      %v679 = vld [vmem:[%s1 + $0x868] sm:$0xff]
      %v680 = vld [vmem:[%s1 + $0x870] sm:$0xff]
      %v681 = vld [vmem:[%s1 + $0x878] sm:$0xff]
      %v682 = vld [vmem:[%s1 + $0x880] sm:$0xff]
      %v683 = vld [vmem:[%s1 + $0x888] sm:$0xff]
      %v684 = vld [vmem:[%s1 + $0x890] sm:$0xff]
      %v685 = vld [vmem:[%s1 + $0x898] sm:$0xff]
      %v686 = vld [vmem:[%s1 + $0x8a0] sm:$0xff]
      %v687 = vld [vmem:[%s1 + $0x8a8] sm:$0xff]
      %v688 = vld [vmem:[%s1 + $0x8b0] sm:$0xff]
      %v689 = vld [vmem:[%s1 + $0x8b8] sm:$0xff]
      %v690 = vld [vmem:[%s1 + $0x8c0] sm:$0xff]
      %v691 = vld [vmem:[%s1 + $0x8c8] sm:$0xff]
      %v692 = vld [vmem:[%s1 + $0x8d0] sm:$0xff]
      %v693 = vld [vmem:[%s1 + $0x8d8] sm:$0xff]
      %v694 = vld [vmem:[%s1 + $0x8e0] sm:$0xff]
      %v695 = vld [vmem:[%s1 + $0x8e8] sm:$0xff]
      %v696 = vld [vmem:[%s1 + $0x8f0] sm:$0xff]
      %v697 = vld [vmem:[%s1 + $0x8f8] sm:$0xff]
      %v698 = vld [vmem:[%s1 + $0x900] sm:$0xff]
      %v699 = vld [vmem:[%s1 + $0x908] sm:$0xff]
      %v700 = vld [vmem:[%s1 + $0x910] sm:$0xff]
      %v701 = vld [vmem:[%s1 + $0x918] sm:$0xff]
      %v702 = vld [vmem:[%s1 + $0x920] sm:$0xff]
      %v703 = vld [vmem:[%s1 + $0x928] sm:$0xff]
      %v704 = vld [vmem:[%s1 + $0x930] sm:$0xff]
      %v705 = vld [vmem:[%s1 + $0x938] sm:$0xff]
      %v706 = vld [vmem:[%s1 + $0x940] sm:$0xff]
      %v707 = vld [vmem:[%s1 + $0x948] sm:$0xff]
      %v708 = vld [vmem:[%s1 + $0x950] sm:$0xff]
      %v709 = vld [vmem:[%s1 + $0x958] sm:$0xff]
      %v710 = vld [vmem:[%s1 + $0x960] sm:$0xff]
      %v711 = vld [vmem:[%s1 + $0x968] sm:$0xff]
      %v712 = vld [vmem:[%s1 + $0x970] sm:$0xff]
      %v713 = vld [vmem:[%s1 + $0x978] sm:$0xff]
      %v714 = vld [vmem:[%s1 + $0x980] sm:$0xff]
      %v715 = vld [vmem:[%s1 + $0x988] sm:$0xff]
      %v716 = vld [vmem:[%s1 + $0x990] sm:$0xff]
      %v717 = vld [vmem:[%s1 + $0x998] sm:$0xff]
      %v718 = vld [vmem:[%s1 + $0x9a0] sm:$0xff]
      %v719 = vld [vmem:[%s1 + $0x9a8] sm:$0xff]
      %v720 = vld [vmem:[%s1 + $0x9b0] sm:$0xff]
      %v721 = vld [vmem:[%s1 + $0x9b8] sm:$0xff]
      %v722 = vld [vmem:[%s1 + $0x9c0] sm:$0xff]
      %v723 = vld [vmem:[%s1 + $0x9c8] sm:$0xff]
      %v724 = vld [vmem:[%s1 + $0x9d0] sm:$0xff]
      %v725 = vld [vmem:[%s1 + $0x9d8] sm:$0xff]
      %v726 = vld [vmem:[%s1 + $0x9e0] sm:$0xff]
      %v727 = vld [vmem:[%s1 + $0x9e8] sm:$0xff]
      %v728 = vld [vmem:[%s1 + $0x9f0] sm:$0xff]
      %v729 = vld [vmem:[%s1 + $0x9f8] sm:$0xff]
      %v730 = vld [vmem:[%s1 + $0xa00] sm:$0xff]
      %v731 = vld [vmem:[%s1 + $0xa08] sm:$0xff]
      %v732 = vld [vmem:[%s1 + $0xa10] sm:$0xff]
      %v733 = vld [vmem:[%s1 + $0xa18] sm:$0xff]
      %v734 = vld [vmem:[%s1 + $0xa20] sm:$0xff]
      %v735 = vld [vmem:[%s1 + $0xa28] sm:$0xff]
      %v736 = vld [vmem:[%s1 + $0xa30] sm:$0xff]
      %v737 = vld [vmem:[%s1 + $0xa38] sm:$0xff]
      %v738 = vld [vmem:[%s1 + $0xa40] sm:$0xff]
      %v739 = vld [vmem:[%s1 + $0xa48] sm:$0xff]
      %v740 = vld [vmem:[%s1 + $0xa50] sm:$0xff]
      %v741 = vld [vmem:[%s1 + $0xa58] sm:$0xff]
      %v742 = vld [vmem:[%s1 + $0xa60] sm:$0xff]
      %v743 = vld [vmem:[%s1 + $0xa68] sm:$0xff]
      %v744 = vld [vmem:[%s1 + $0xa70] sm:$0xff]
      %v745 = vld [vmem:[%s1 + $0xa78] sm:$0xff]
      %v746 = vld [vmem:[%s1 + $0xa80] sm:$0xff]
      %v747 = vld [vmem:[%s1 + $0xa88] sm:$0xff]
      %v748 = vld [vmem:[%s1 + $0xa90] sm:$0xff]
      %v749 = vld [vmem:[%s1 + $0xa98] sm:$0xff]
      %v750 = vld [vmem:[%s1 + $0xaa0] sm:$0xff]
      %v751 = vld [vmem:[%s1 + $0xaa8] sm:$0xff]
      %v752 = vld [vmem:[%s1 + $0xab0] sm:$0xff]
      %v753 = vld [vmem:[%s1 + $0xab8] sm:$0xff]
      %v754 = vld [vmem:[%s1 + $0xac0] sm:$0xff]
      %v755 = vld [vmem:[%s1 + $0xac8] sm:$0xff]
      %v756 = vld [vmem:[%s1 + $0xad0] sm:$0xff]
      %v757 = vld [vmem:[%s1 + $0xad8] sm:$0xff]
      %v758 = vld [vmem:[%s1 + $0xae0] sm:$0xff]
      %v759 = vld [vmem:[%s1 + $0xae8] sm:$0xff]
      %v760 = vld [vmem:[%s1 + $0xaf0] sm:$0xff]
      %v761 = vld [vmem:[%s1 + $0xaf8] sm:$0xff]
      %v762 = vld [vmem:[%s1 + $0xb00] sm:$0xff]
      %v763 = vld [vmem:[%s1 + $0xb08] sm:$0xff]
      %v764 = vld [vmem:[%s1 + $0xb10] sm:$0xff]
      %v765 = vld [vmem:[%s1 + $0xb18] sm:$0xff]
      %v766 = vld [vmem:[%s1 + $0xb20] sm:$0xff]
      %v767 = vld [vmem:[%s1 + $0xb28] sm:$0xff]
      %v768 = vld [vmem:[%s1 + $0xb30] sm:$0xff]
      %v769 = vld [vmem:[%s1 + $0xb38] sm:$0xff]
      %v770 = vld [vmem:[%s1 + $0xb40] sm:$0xff]
      %v771 = vld [vmem:[%s1 + $0xb48] sm:$0xff]
      %v772 = vld [vmem:[%s1 + $0xb50] sm:$0xff]
      %v773 = vld [vmem:[%s1 + $0xb58] sm:$0xff]
      %v774 = vld [vmem:[%s1 + $0xb60] sm:$0xff]
      %v775 = vld [vmem:[%s1 + $0xb68] sm:$0xff]
      %v776 = vld [vmem:[%s1 + $0xb70] sm:$0xff]
      %v777 = vld [vmem:[%s1 + $0xb78] sm:$0xff]
      %v778 = vld [vmem:[%s1 + $0xb80] sm:$0xff]
      %v779 = vld [vmem:[%s1 + $0xb88] sm:$0xff]
      %v780 = vld [vmem:[%s1 + $0xb90] sm:$0xff]
      %v781 = vld [vmem:[%s1 + $0xb98] sm:$0xff]
      %v782 = vld [vmem:[%s1 + $0xba0] sm:$0xff]
      %v783 = vld [vmem:[%s1 + $0xba8] sm:$0xff]
      %v784 = vld [vmem:[%s1 + $0xbb0] sm:$0xff]
      %v785 = vld [vmem:[%s1 + $0xbb8] sm:$0xff]
      %v786 = vld [vmem:[%s1 + $0xbc0] sm:$0xff]
      %v787 = vld [vmem:[%s1 + $0xbc8] sm:$0xff]
      %v788 = vld [vmem:[%s1 + $0xbd0] sm:$0xff]
      %v789 = vld [vmem:[%s1 + $0xbd8] sm:$0xff]
      %v790 = vld [vmem:[%s1 + $0xbe0] sm:$0xff]
      %v791 = vld [vmem:[%s1 + $0xbe8] sm:$0xff]
      %v792 = vld [vmem:[%s1 + $0xbf0] sm:$0xff]
      %v793 = vld [vmem:[%s1 + $0xbf8] sm:$0xff]
      %v794 = vld [vmem:[%s1 + $0xc00] sm:$0xff]
      %v795 = vld [vmem:[%s1 + $0xc08] sm:$0xff]
      %v796 = vld [vmem:[%s1 + $0xc10] sm:$0xff]
      %v797 = vld [vmem:[%s1 + $0xc18] sm:$0xff]
      %v798 = vld [vmem:[%s1 + $0xc20] sm:$0xff]
      %v799 = vld [vmem:[%s1 + $0xc28] sm:$0xff]
      %v800 = vld [vmem:[%s1 + $0xc30] sm:$0xff]
      %v801 = vld [vmem:[%s1 + $0xc38] sm:$0xff]
      %v802 = vld [vmem:[%s1 + $0xc40] sm:$0xff]
      %v803 = vld [vmem:[%s1 + $0xc48] sm:$0xff]
      %v804 = vld [vmem:[%s1 + $0xc50] sm:$0xff]
      %v805 = vld [vmem:[%s1 + $0xc58] sm:$0xff]
      %v806 = vld [vmem:[%s1 + $0xc60] sm:$0xff]
      %v807 = vld [vmem:[%s1 + $0xc68] sm:$0xff]
      %v808 = vld [vmem:[%s1 + $0xc70] sm:$0xff]
      %v809 = vld [vmem:[%s1 + $0xc78] sm:$0xff]
      %v810 = vld [vmem:[%s1 + $0xc80] sm:$0xff]
      %v811 = vld [vmem:[%s1 + $0xc88] sm:$0xff]
      %v812 = vld [vmem:[%s1 + $0xc90] sm:$0xff]
      %v813 = vld [vmem:[%s1 + $0xc98] sm:$0xff]
      %v814 = vld [vmem:[%s1 + $0xca0] sm:$0xff]
      %v815 = vld [vmem:[%s1 + $0xca8] sm:$0xff]
      %v816 = vld [vmem:[%s1 + $0xcb0] sm:$0xff]
      %v817 = vld [vmem:[%s1 + $0xcb8] sm:$0xff]
      %v818 = vld [vmem:[%s1 + $0xcc0] sm:$0xff]
      %v819 = vld [vmem:[%s1 + $0xcc8] sm:$0xff]
      %v820 = vld [vmem:[%s1 + $0xcd0] sm:$0xff]
      %v821 = vld [vmem:[%s1 + $0xcd8] sm:$0xff]
      %v822 = vld [vmem:[%s1 + $0xce0] sm:$0xff]
      %v823 = vld [vmem:[%s1 + $0xce8] sm:$0xff]
      %v824 = vld [vmem:[%s1 + $0xcf0] sm:$0xff]
      %v825 = vld [vmem:[%s1 + $0xcf8] sm:$0xff]
      %v826 = vld [vmem:[%s1 + $0xd00] sm:$0xff]
      %v827 = vld [vmem:[%s1 + $0xd08] sm:$0xff]
      %v828 = vld [vmem:[%s1 + $0xd10] sm:$0xff]
      %v829 = vld [vmem:[%s1 + $0xd18] sm:$0xff]
      %v830 = vld [vmem:[%s1 + $0xd20] sm:$0xff]
      %v831 = vld [vmem:[%s1 + $0xd28] sm:$0xff]
      %v832 = vld [vmem:[%s1 + $0xd30] sm:$0xff]
      %v833 = vld [vmem:[%s1 + $0xd38] sm:$0xff]
      %v834 = vld [vmem:[%s1 + $0xd40] sm:$0xff]
      %v835 = vld [vmem:[%s1 + $0xd48] sm:$0xff]
      %v836 = vld [vmem:[%s1 + $0xd50] sm:$0xff]
      %v837 = vld [vmem:[%s1 + $0xd58] sm:$0xff]
      %v838 = vld [vmem:[%s1 + $0xd60] sm:$0xff]
      %v839 = vld [vmem:[%s1 + $0xd68] sm:$0xff]
      %v840 = vld [vmem:[%s1 + $0xd70] sm:$0xff]
      %v841 = vld [vmem:[%s1 + $0xd78] sm:$0xff]
      %v842 = vld [vmem:[%s1 + $0xd80] sm:$0xff]
      %v843 = vld [vmem:[%s1 + $0xd88] sm:$0xff]
      %v844 = vld [vmem:[%s1 + $0xd90] sm:$0xff]
      %v845 = vld [vmem:[%s1 + $0xd98] sm:$0xff]
      %v846 = vld [vmem:[%s1 + $0xda0] sm:$0xff]
      %v847 = vld [vmem:[%s1 + $0xda8] sm:$0xff]
      %v848 = vld [vmem:[%s1 + $0xdb0] sm:$0xff]
      %v849 = vld [vmem:[%s1 + $0xdb8] sm:$0xff]
      %v850 = vld [vmem:[%s1 + $0xdc0] sm:$0xff]
      %v851 = vld [vmem:[%s1 + $0xdc8] sm:$0xff]
      %v852 = vld [vmem:[%s1 + $0xdd0] sm:$0xff]
      %v853 = vld [vmem:[%s1 + $0xdd8] sm:$0xff]
      %v854 = vld [vmem:[%s1 + $0xde0] sm:$0xff]
      %v855 = vld [vmem:[%s1 + $0xde8] sm:$0xff]
      %v856 = vld [vmem:[%s1 + $0xdf0] sm:$0xff]
      %v857 = vld [vmem:[%s1 + $0xdf8] sm:$0xff]
      %v858 = vld [vmem:[%s1 + $0xe00] sm:$0xff]
      %v859 = vld [vmem:[%s1 + $0xe08] sm:$0xff]
      %v860 = vld [vmem:[%s1 + $0xe10] sm:$0xff]
      %v861 = vld [vmem:[%s1 + $0xe18] sm:$0xff]
      %v862 = vld [vmem:[%s1 + $0xe20] sm:$0xff]
      %v863 = vld [vmem:[%s1 + $0xe28] sm:$0xff]
      %v864 = vld [vmem:[%s1 + $0xe30] sm:$0xff]
      %v865 = vld [vmem:[%s1 + $0xe38] sm:$0xff]
      %v866 = vld [vmem:[%s1 + $0xe40] sm:$0xff]
      %v867 = vld [vmem:[%s1 + $0xe48] sm:$0xff]
      %v868 = vld [vmem:[%s1 + $0xe50] sm:$0xff]
      %v869 = vld [vmem:[%s1 + $0xe58] sm:$0xff]
      %v870 = vld [vmem:[%s1 + $0xe60] sm:$0xff]
      %v871 = vld [vmem:[%s1 + $0xe68] sm:$0xff]
      %v872 = vld [vmem:[%s1 + $0xe70] sm:$0xff]
      %v873 = vld [vmem:[%s1 + $0xe78] sm:$0xff]
      %v874 = vld [vmem:[%s1 + $0xe80] sm:$0xff]
      %v875 = vld [vmem:[%s1 + $0xe88] sm:$0xff]
      %v876 = vld [vmem:[%s1 + $0xe90] sm:$0xff]
      %v877 = vld [vmem:[%s1 + $0xe98] sm:$0xff]
      %v878 = vld [vmem:[%s1 + $0xea0] sm:$0xff]
      %v879 = vld [vmem:[%s1 + $0xea8] sm:$0xff]
      %v880 = vld [vmem:[%s1 + $0xeb0] sm:$0xff]
      %v881 = vld [vmem:[%s1 + $0xeb8] sm:$0xff]
      %v882 = vld [vmem:[%s1 + $0xec0] sm:$0xff]
      %v883 = vld [vmem:[%s1 + $0xec8] sm:$0xff]
      %v884 = vld [vmem:[%s1 + $0xed0] sm:$0xff]
      %v885 = vld [vmem:[%s1 + $0xed8] sm:$0xff]
      %v886 = vld [vmem:[%s1 + $0xee0] sm:$0xff]
      %v887 = vld [vmem:[%s1 + $0xee8] sm:$0xff]
      %v888 = vld [vmem:[%s1 + $0xef0] sm:$0xff]
      %v889 = vld [vmem:[%s1 + $0xef8] sm:$0xff]
      %v890 = vld [vmem:[%s1 + $0xf00] sm:$0xff]
      %v891 = vld [vmem:[%s1 + $0xf08] sm:$0xff]
      %v892 = vld [vmem:[%s1 + $0xf10] sm:$0xff]
      %v893 = vld [vmem:[%s1 + $0xf18] sm:$0xff]
      %v894 = vld [vmem:[%s1 + $0xf20] sm:$0xff]
      %v895 = vld [vmem:[%s1 + $0xf28] sm:$0xff]
      %v896 = vld [vmem:[%s1 + $0xf30] sm:$0xff]
      %v897 = vld [vmem:[%s1 + $0xf38] sm:$0xff]
      %v898 = vld [vmem:[%s1 + $0xf40] sm:$0xff]
      %v899 = vld [vmem:[%s1 + $0xf48] sm:$0xff]
      %v900 = vld [vmem:[%s2] sm:$0xff]
      %v901 = vld [vmem:[%s2 + $0x8] sm:$0x3]
      %v904 = vlaneseq
      %v905 = vshrl.u32 %v904, 7
      %v906 = vsub.s32 0, %v905
      %v907 = vrot.slane %v900, %v906
      %v908 = vlaneseq
      %v909 = vshrl.u32 %v908, 7
      %v910 = vsub.s32 1, %v909
      %v911 = vrot.slane %v900, %v910
      %v912 = vlaneseq
      %v913 = vshrl.u32 %v912, 7
      %v914 = vsub.s32 2, %v913
      %v915 = vrot.slane %v900, %v914
      %v916 = vlaneseq
      %v917 = vshrl.u32 %v916, 7
      %v918 = vsub.s32 3, %v917
      %v919 = vrot.slane %v900, %v918
      %v920 = vlaneseq
      %v921 = vshrl.u32 %v920, 7
      %v922 = vsub.s32 4, %v921
      %v923 = vrot.slane %v900, %v922
      %v924 = vlaneseq
      %v925 = vshrl.u32 %v924, 7
      %v926 = vsub.s32 5, %v925
      %v927 = vrot.slane %v900, %v926
      %v928 = vlaneseq
      %v929 = vshrl.u32 %v928, 7
      %v930 = vsub.s32 6, %v929
      %v931 = vrot.slane %v900, %v930
      %v932 = vlaneseq
      %v933 = vshrl.u32 %v932, 7
      %v934 = vsub.s32 7, %v933
      %v935 = vrot.slane %v900, %v934
      %v936 = vlaneseq
      %v937 = vshrl.u32 %v936, 7
      %v938 = vsub.s32 0, %v937
      %v939 = vrot.slane %v901, %v938
      %v940 = vlaneseq
      %v941 = vshrl.u32 %v940, 7
      %v942 = vsub.s32 1, %v941
      %v943 = vrot.slane %v901, %v942
      %v970 = vunpack.c.l.b16 %v394
      %v971 = vunpack.c.h.b16 %v394
      %v972 = vunpack.c.l.b16 %v395
      %v973 = vunpack.c.h.b16 %v395
      %v974 = vunpack.c.l.b16 %v396
      %v975 = vunpack.c.h.b16 %v396
      %v976 = vunpack.c.l.b16 %v397
      %v977 = vunpack.c.l.b16 %v398
      %v978 = vunpack.c.h.b16 %v398
      %v979 = vunpack.c.l.b16 %v399
      %v980 = vunpack.c.h.b16 %v399
      %v981 = vunpack.c.l.b16 %v400
      %v982 = vunpack.c.h.b16 %v400
      %v983 = vunpack.c.l.b16 %v401
      %v984 = vunpack.c.l.b16 %v402
      %v985 = vunpack.c.h.b16 %v402
      %v986 = vunpack.c.l.b16 %v403
      %v987 = vunpack.c.h.b16 %v403
      %v988 = vunpack.c.l.b16 %v404
      %v989 = vunpack.c.h.b16 %v404
      %v990 = vunpack.c.l.b16 %v405
      %v991 = vunpack.c.l.b16 %v406
      %v992 = vunpack.c.h.b16 %v406
      %v993 = vunpack.c.l.b16 %v407
      %v994 = vunpack.c.h.b16 %v407
      %v995 = vunpack.c.l.b16 %v408
      %v996 = vunpack.c.h.b16 %v408
      %v997 = vunpack.c.l.b16 %v409
      %v998 = vpack.c.b16 %v977, %v970
      %v999 = vpack.c.b16 %v978, %v971
      %v1000 = vpack.c.b16 %v979, %v972
      %v1001 = vpack.c.b16 %v980, %v973
      %v1002 = vpack.c.b16 %v981, %v974
      %v1003 = vpack.c.b16 %v982, %v975
      %v1004 = vpack.c.b16 %v983, %v976
      %v1005 = vpack.c.b16 %v991, %v984
      %v1006 = vpack.c.b16 %v992, %v985
      %v1007 = vpack.c.b16 %v993, %v986
      %v1008 = vpack.c.b16 %v994, %v987
      %v1009 = vpack.c.b16 %v995, %v988
      %v1010 = vpack.c.b16 %v996, %v989
      %v1011 = vpack.c.b16 %v997, %v990
      %v1514 = vunpack.c.l.b16 %v410
      %v1515 = vunpack.c.h.b16 %v410
      %v1516 = vunpack.c.l.b16 %v411
      %v1517 = vunpack.c.h.b16 %v411
      %v1518 = vunpack.c.l.b16 %v412
      %v1519 = vunpack.c.h.b16 %v412
      %v1520 = vunpack.c.l.b16 %v413
      %v1521 = vunpack.c.h.b16 %v413
      %v1522 = vunpack.c.l.b16 %v414
      %v1523 = vunpack.c.h.b16 %v414
      %v1524 = vunpack.c.l.b16 %v415
      %v1525 = vunpack.c.h.b16 %v415
      %v1526 = vunpack.c.l.b16 %v416
      %v1527 = vunpack.c.h.b16 %v416
      %v1528 = vunpack.c.l.b16 %v417
      %v1529 = vunpack.c.h.b16 %v417
      %v1530 = vunpack.c.l.b16 %v418
      %v1531 = vunpack.c.h.b16 %v418
      %v1532 = vunpack.c.l.b16 %v419
      %v1533 = vunpack.c.h.b16 %v419
      %v1534 = vunpack.c.l.b16 %v420
      %v1535 = vunpack.c.h.b16 %v420
      %v1536 = vunpack.c.l.b16 %v421
      %v1537 = vunpack.c.h.b16 %v421
      %v1538 = vunpack.c.l.b16 %v422
      %v1539 = vunpack.c.h.b16 %v422
      %v1540 = vunpack.c.l.b16 %v423
      %v1541 = vunpack.c.h.b16 %v423
      %v1542 = vunpack.c.l.b16 %v424
      %v1543 = vunpack.c.h.b16 %v424
      %v1544 = vunpack.c.l.b16 %v425
      %v1545 = vunpack.c.h.b16 %v425
      %v1546 = vunpack.c.l.b16 %v426
      %v1547 = vunpack.c.h.b16 %v426
      %v1548 = vunpack.c.l.b16 %v427
      %v1549 = vunpack.c.h.b16 %v427
      %v1550 = vunpack.c.l.b16 %v428
      %v1551 = vunpack.c.h.b16 %v428
      %v1552 = vunpack.c.l.b16 %v429
      %v1553 = vunpack.c.h.b16 %v429
      %v1554 = vunpack.c.l.b16 %v430
      %v1555 = vunpack.c.h.b16 %v430
      %v1556 = vunpack.c.l.b16 %v431
      %v1557 = vunpack.c.h.b16 %v431
      %v1558 = vunpack.c.l.b16 %v432
      %v1559 = vunpack.c.h.b16 %v432
      %v1560 = vunpack.c.l.b16 %v433
      %v1561 = vunpack.c.h.b16 %v433
      %v1562 = vunpack.c.l.b16 %v434
      %v1563 = vunpack.c.h.b16 %v434
      %v1564 = vunpack.c.l.b16 %v435
      %v1565 = vunpack.c.h.b16 %v435
      %v1566 = vunpack.c.l.b16 %v436
      %v1567 = vunpack.c.h.b16 %v436
      %v1568 = vunpack.c.l.b16 %v437
      %v1569 = vunpack.c.h.b16 %v437
      %v1570 = vunpack.c.l.b16 %v438
      %v1571 = vunpack.c.h.b16 %v438
      %v1572 = vunpack.c.l.b16 %v439
      %v1573 = vunpack.c.h.b16 %v439
      %v1574 = vunpack.c.l.b16 %v440
      %v1575 = vunpack.c.h.b16 %v440
      %v1576 = vunpack.c.l.b16 %v441
      %v1577 = vunpack.c.h.b16 %v441
      %v1578 = vunpack.c.l.b16 %v442
      %v1579 = vunpack.c.h.b16 %v442
      %v1580 = vunpack.c.l.b16 %v443
      %v1581 = vunpack.c.h.b16 %v443
      %v1582 = vunpack.c.l.b16 %v444
      %v1583 = vunpack.c.h.b16 %v444
      %v1584 = vunpack.c.l.b16 %v445
      %v1585 = vunpack.c.h.b16 %v445
      %v1586 = vunpack.c.l.b16 %v446
      %v1587 = vunpack.c.h.b16 %v446
      %v1588 = vunpack.c.l.b16 %v447
      %v1589 = vunpack.c.h.b16 %v447
      %v1590 = vunpack.c.l.b16 %v448
      %v1591 = vunpack.c.h.b16 %v448
      %v1592 = vunpack.c.l.b16 %v449
      %v1593 = vunpack.c.h.b16 %v449
      %v1594 = vunpack.c.l.b16 %v450
      %v1595 = vunpack.c.h.b16 %v450
      %v1596 = vunpack.c.l.b16 %v451
      %v1597 = vunpack.c.h.b16 %v451
      %v1598 = vunpack.c.l.b16 %v452
      %v1599 = vunpack.c.h.b16 %v452
      %v1600 = vunpack.c.l.b16 %v453
      %v1601 = vunpack.c.h.b16 %v453
      %v1602 = vunpack.c.l.b16 %v454
      %v1603 = vunpack.c.h.b16 %v454
      %v1604 = vunpack.c.l.b16 %v455
      %v1605 = vunpack.c.h.b16 %v455
      %v1606 = vunpack.c.l.b16 %v456
      %v1607 = vunpack.c.h.b16 %v456
      %v1608 = vunpack.c.l.b16 %v457
      %v1609 = vunpack.c.h.b16 %v457
      %v1610 = vunpack.c.l.b16 %v458
      %v1611 = vunpack.c.h.b16 %v458
      %v1612 = vunpack.c.l.b16 %v459
      %v1613 = vunpack.c.h.b16 %v459
      %v1614 = vunpack.c.l.b16 %v460
      %v1615 = vunpack.c.h.b16 %v460
      %v1616 = vunpack.c.l.b16 %v461
      %v1617 = vunpack.c.h.b16 %v461
      %v1618 = vunpack.c.l.b16 %v462
      %v1619 = vunpack.c.h.b16 %v462
      %v1620 = vunpack.c.l.b16 %v463
      %v1621 = vunpack.c.h.b16 %v463
      %v1622 = vunpack.c.l.b16 %v464
      %v1623 = vunpack.c.h.b16 %v464
      %v1624 = vunpack.c.l.b16 %v465
      %v1625 = vunpack.c.h.b16 %v465
      %v1626 = vunpack.c.l.b16 %v466
      %v1627 = vunpack.c.h.b16 %v466
      %v1628 = vunpack.c.l.b16 %v467
      %v1629 = vunpack.c.h.b16 %v467
      %v1630 = vunpack.c.l.b16 %v468
      %v1631 = vunpack.c.h.b16 %v468
      %v1632 = vunpack.c.l.b16 %v469
      %v1633 = vunpack.c.h.b16 %v469
      %v1634 = vunpack.c.l.b16 %v470
      %v1635 = vunpack.c.h.b16 %v470
      %v1636 = vunpack.c.l.b16 %v471
      %v1637 = vunpack.c.h.b16 %v471
      %v1638 = vunpack.c.l.b16 %v472
      %v1639 = vunpack.c.h.b16 %v472
      %v1640 = vunpack.c.l.b16 %v473
      %v1641 = vunpack.c.h.b16 %v473
      %v1642 = vunpack.c.l.b16 %v474
      %v1643 = vunpack.c.h.b16 %v474
      %v1644 = vunpack.c.l.b16 %v475
      %v1645 = vunpack.c.h.b16 %v475
      %v1646 = vunpack.c.l.b16 %v476
      %v1647 = vunpack.c.h.b16 %v476
      %v1648 = vunpack.c.l.b16 %v477
      %v1649 = vunpack.c.h.b16 %v477
      %v1650 = vunpack.c.l.b16 %v478
      %v1651 = vunpack.c.h.b16 %v478
      %v1652 = vunpack.c.l.b16 %v479
      %v1653 = vunpack.c.h.b16 %v479
      %v1654 = vunpack.c.l.b16 %v480
      %v1655 = vunpack.c.h.b16 %v480
      %v1656 = vunpack.c.l.b16 %v481
      %v1657 = vunpack.c.h.b16 %v481
      %v1658 = vunpack.c.l.b16 %v482
      %v1659 = vunpack.c.h.b16 %v482
      %v1660 = vunpack.c.l.b16 %v483
      %v1661 = vunpack.c.h.b16 %v483
      %v1662 = vunpack.c.l.b16 %v484
      %v1663 = vunpack.c.h.b16 %v484
      %v1664 = vunpack.c.l.b16 %v485
      %v1665 = vunpack.c.h.b16 %v485
      %v1666 = vunpack.c.l.b16 %v486
      %v1667 = vunpack.c.h.b16 %v486
      %v1668 = vunpack.c.l.b16 %v487
      %v1669 = vunpack.c.h.b16 %v487
      %v1670 = vunpack.c.l.b16 %v488
      %v1671 = vunpack.c.h.b16 %v488
      %v1672 = vunpack.c.l.b16 %v489
      %v1673 = vunpack.c.h.b16 %v489
      %v1674 = vunpack.c.l.b16 %v490
      %v1675 = vunpack.c.h.b16 %v490
      %v1676 = vunpack.c.l.b16 %v491
      %v1677 = vunpack.c.h.b16 %v491
      %v1678 = vunpack.c.l.b16 %v492
      %v1679 = vunpack.c.h.b16 %v492
      %v1680 = vunpack.c.l.b16 %v493
      %v1681 = vunpack.c.h.b16 %v493
      %v1682 = vunpack.c.l.b16 %v494
      %v1683 = vunpack.c.h.b16 %v494
      %v1684 = vunpack.c.l.b16 %v495
      %v1685 = vunpack.c.h.b16 %v495
      %v1686 = vunpack.c.l.b16 %v496
      %v1687 = vunpack.c.h.b16 %v496
      %v1688 = vunpack.c.l.b16 %v497
      %v1689 = vunpack.c.h.b16 %v497
      %v1690 = vunpack.c.l.b16 %v498
      %v1691 = vunpack.c.h.b16 %v498
      %v1692 = vunpack.c.l.b16 %v499
      %v1693 = vunpack.c.h.b16 %v499
      %v1694 = vunpack.c.l.b16 %v500
      %v1695 = vunpack.c.h.b16 %v500
      %v1696 = vunpack.c.l.b16 %v501
      %v1697 = vunpack.c.h.b16 %v501
      %v1698 = vunpack.c.l.b16 %v502
      %v1699 = vunpack.c.h.b16 %v502
      %v1700 = vunpack.c.l.b16 %v503
      %v1701 = vunpack.c.h.b16 %v503
      %v1702 = vunpack.c.l.b16 %v504
      %v1703 = vunpack.c.h.b16 %v504
      %v1704 = vunpack.c.l.b16 %v505
      %v1705 = vunpack.c.h.b16 %v505
      %v1706 = vunpack.c.l.b16 %v506
      %v1707 = vunpack.c.h.b16 %v506
      %v1708 = vunpack.c.l.b16 %v507
      %v1709 = vunpack.c.h.b16 %v507
      %v1710 = vunpack.c.l.b16 %v508
      %v1711 = vunpack.c.h.b16 %v508
      %v1712 = vunpack.c.l.b16 %v509
      %v1713 = vunpack.c.h.b16 %v509
      %v1714 = vunpack.c.l.b16 %v510
      %v1715 = vunpack.c.h.b16 %v510
      %v1716 = vunpack.c.l.b16 %v511
      %v1717 = vunpack.c.h.b16 %v511
      %v1718 = vunpack.c.l.b16 %v512
      %v1719 = vunpack.c.h.b16 %v512
      %v1720 = vunpack.c.l.b16 %v513
      %v1721 = vunpack.c.h.b16 %v513
      %v1722 = vunpack.c.l.b16 %v514
      %v1723 = vunpack.c.h.b16 %v514
      %v1724 = vunpack.c.l.b16 %v515
      %v1725 = vunpack.c.h.b16 %v515
      %v1726 = vunpack.c.l.b16 %v516
      %v1727 = vunpack.c.h.b16 %v516
      %v1728 = vunpack.c.l.b16 %v517
      %v1729 = vunpack.c.h.b16 %v517
      %v1730 = vunpack.c.l.b16 %v518
      %v1731 = vunpack.c.h.b16 %v518
      %v1732 = vunpack.c.l.b16 %v519
      %v1733 = vunpack.c.h.b16 %v519
      %v1734 = vunpack.c.l.b16 %v520
      %v1735 = vunpack.c.h.b16 %v520
      %v1736 = vunpack.c.l.b16 %v521
      %v1737 = vunpack.c.h.b16 %v521
      %v1738 = vunpack.c.l.b16 %v522
      %v1739 = vunpack.c.h.b16 %v522
      %v1740 = vunpack.c.l.b16 %v523
      %v1741 = vunpack.c.h.b16 %v523
      %v1742 = vunpack.c.l.b16 %v524
      %v1743 = vunpack.c.h.b16 %v524
      %v1744 = vunpack.c.l.b16 %v525
      %v1745 = vunpack.c.h.b16 %v525
      %v1746 = vunpack.c.l.b16 %v526
      %v1747 = vunpack.c.h.b16 %v526
      %v1748 = vunpack.c.l.b16 %v527
      %v1749 = vunpack.c.h.b16 %v527
      %v1750 = vunpack.c.l.b16 %v528
      %v1751 = vunpack.c.h.b16 %v528
      %v1752 = vunpack.c.l.b16 %v529
      %v1753 = vunpack.c.h.b16 %v529
      %v1754 = vunpack.c.l.b16 %v530
      %v1755 = vunpack.c.h.b16 %v530
      %v1756 = vunpack.c.l.b16 %v531
      %v1757 = vunpack.c.h.b16 %v531
      %v1758 = vunpack.c.l.b16 %v532
      %v1759 = vunpack.c.h.b16 %v532
      %v1760 = vunpack.c.l.b16 %v533
      %v1761 = vunpack.c.h.b16 %v533
      %v1762 = vunpack.c.l.b16 %v534
      %v1763 = vunpack.c.h.b16 %v534
      %v1764 = vunpack.c.l.b16 %v535
      %v1765 = vunpack.c.h.b16 %v535
      %v1766 = vunpack.c.l.b16 %v536
      %v1767 = vunpack.c.h.b16 %v536
      %v1768 = vunpack.c.l.b16 %v537
      %v1769 = vunpack.c.h.b16 %v537
      %v1770 = vunpack.c.l.b16 %v538
      %v1771 = vunpack.c.h.b16 %v538
      %v1772 = vunpack.c.l.b16 %v539
      %v1773 = vunpack.c.h.b16 %v539
      %v1774 = vunpack.c.l.b16 %v540
      %v1775 = vunpack.c.h.b16 %v540
      %v1776 = vunpack.c.l.b16 %v541
      %v1777 = vunpack.c.h.b16 %v541
      %v1778 = vunpack.c.l.b16 %v542
      %v1779 = vunpack.c.h.b16 %v542
      %v1780 = vunpack.c.l.b16 %v543
      %v1781 = vunpack.c.h.b16 %v543
      %v1782 = vunpack.c.l.b16 %v544
      %v1783 = vunpack.c.h.b16 %v544
      %v1784 = vunpack.c.l.b16 %v545
      %v1785 = vunpack.c.h.b16 %v545
      %v1786 = vunpack.c.l.b16 %v546
      %v1787 = vunpack.c.h.b16 %v546
      %v1788 = vunpack.c.l.b16 %v547
      %v1789 = vunpack.c.h.b16 %v547
      %v1790 = vunpack.c.l.b16 %v548
      %v1791 = vunpack.c.h.b16 %v548
      %v1792 = vunpack.c.l.b16 %v549
      %v1793 = vunpack.c.h.b16 %v549
      %v1794 = vunpack.c.l.b16 %v550
      %v1795 = vunpack.c.h.b16 %v550
      %v1796 = vunpack.c.l.b16 %v551
      %v1797 = vunpack.c.h.b16 %v551
      %v1798 = vunpack.c.l.b16 %v552
      %v1799 = vunpack.c.h.b16 %v552
      %v1800 = vunpack.c.l.b16 %v553
      %v1801 = vunpack.c.h.b16 %v553
      %v1802 = vunpack.c.l.b16 %v554
      %v1803 = vunpack.c.h.b16 %v554
      %v1804 = vunpack.c.l.b16 %v555
      %v1805 = vunpack.c.h.b16 %v555
      %v1806 = vunpack.c.l.b16 %v556
      %v1807 = vunpack.c.h.b16 %v556
      %v1808 = vunpack.c.l.b16 %v557
      %v1809 = vunpack.c.h.b16 %v557
      %v1810 = vunpack.c.l.b16 %v558
      %v1811 = vunpack.c.h.b16 %v558
      %v1812 = vunpack.c.l.b16 %v559
      %v1813 = vunpack.c.h.b16 %v559
      %v1814 = vunpack.c.l.b16 %v560
      %v1815 = vunpack.c.h.b16 %v560
      %v1816 = vunpack.c.l.b16 %v561
      %v1817 = vunpack.c.h.b16 %v561
      %v1818 = vunpack.c.l.b16 %v562
      %v1819 = vunpack.c.h.b16 %v562
      %v1820 = vunpack.c.l.b16 %v563
      %v1821 = vunpack.c.h.b16 %v563
      %v1822 = vunpack.c.l.b16 %v564
      %v1823 = vunpack.c.h.b16 %v564
      %v1824 = vunpack.c.l.b16 %v565
      %v1825 = vunpack.c.h.b16 %v565
      %v1826 = vunpack.c.l.b16 %v566
      %v1827 = vunpack.c.h.b16 %v566
      %v1828 = vunpack.c.l.b16 %v567
      %v1829 = vunpack.c.h.b16 %v567
      %v1830 = vunpack.c.l.b16 %v568
      %v1831 = vunpack.c.h.b16 %v568
      %v1832 = vunpack.c.l.b16 %v569
      %v1833 = vunpack.c.h.b16 %v569
      %v1834 = vunpack.c.l.b16 %v570
      %v1835 = vunpack.c.h.b16 %v570
      %v1836 = vunpack.c.l.b16 %v571
      %v1837 = vunpack.c.h.b16 %v571
      %v1838 = vunpack.c.l.b16 %v572
      %v1839 = vunpack.c.h.b16 %v572
      %v1840 = vunpack.c.l.b16 %v573
      %v1841 = vunpack.c.h.b16 %v573
      %v1842 = vunpack.c.l.b16 %v574
      %v1843 = vunpack.c.h.b16 %v574
      %v1844 = vunpack.c.l.b16 %v575
      %v1845 = vunpack.c.h.b16 %v575
      %v1846 = vunpack.c.l.b16 %v576
      %v1847 = vunpack.c.h.b16 %v576
      %v1848 = vunpack.c.l.b16 %v577
      %v1849 = vunpack.c.h.b16 %v577
      %v1850 = vunpack.c.l.b16 %v578
      %v1851 = vunpack.c.h.b16 %v578
      %v1852 = vunpack.c.l.b16 %v579
      %v1853 = vunpack.c.h.b16 %v579
      %v1854 = vunpack.c.l.b16 %v580
      %v1855 = vunpack.c.h.b16 %v580
      %v1856 = vunpack.c.l.b16 %v581
      %v1857 = vunpack.c.h.b16 %v581
      %v1858 = vunpack.c.l.b16 %v582
      %v1859 = vunpack.c.h.b16 %v582
      %v1860 = vunpack.c.l.b16 %v583
      %v1861 = vunpack.c.h.b16 %v583
      %v1862 = vunpack.c.l.b16 %v584
      %v1863 = vunpack.c.h.b16 %v584
      %v1864 = vunpack.c.l.b16 %v585
      %v1865 = vunpack.c.h.b16 %v585
      %v1866 = vunpack.c.l.b16 %v586
      %v1867 = vunpack.c.h.b16 %v586
      %v1868 = vunpack.c.l.b16 %v587
      %v1869 = vunpack.c.h.b16 %v587
      %v1870 = vunpack.c.l.b16 %v588
      %v1871 = vunpack.c.h.b16 %v588
      %v1872 = vunpack.c.l.b16 %v589
      %v1873 = vunpack.c.h.b16 %v589
      %v1874 = vunpack.c.l.b16 %v590
      %v1875 = vunpack.c.h.b16 %v590
      %v1876 = vunpack.c.l.b16 %v591
      %v1877 = vunpack.c.h.b16 %v591
      %v1878 = vunpack.c.l.b16 %v592
      %v1879 = vunpack.c.h.b16 %v592
      %v1880 = vunpack.c.l.b16 %v593
      %v1881 = vunpack.c.h.b16 %v593
      %v1882 = vunpack.c.l.b16 %v594
      %v1883 = vunpack.c.h.b16 %v594
      %v1884 = vunpack.c.l.b16 %v595
      %v1885 = vunpack.c.h.b16 %v595
      %v1886 = vunpack.c.l.b16 %v596
      %v1887 = vunpack.c.h.b16 %v596
      %v1888 = vunpack.c.l.b16 %v597
      %v1889 = vunpack.c.h.b16 %v597
      %v1890 = vunpack.c.l.b16 %v598
      %v1891 = vunpack.c.h.b16 %v598
      %v1892 = vunpack.c.l.b16 %v599
      %v1893 = vunpack.c.h.b16 %v599
      %v1894 = vunpack.c.l.b16 %v600
      %v1895 = vunpack.c.h.b16 %v600
      %v1896 = vunpack.c.l.b16 %v601
      %v1897 = vunpack.c.h.b16 %v601
      %v1898 = vunpack.c.l.b16 %v602
      %v1899 = vunpack.c.h.b16 %v602
      %v1900 = vunpack.c.l.b16 %v603
      %v1901 = vunpack.c.h.b16 %v603
      %v1902 = vunpack.c.l.b16 %v604
      %v1903 = vunpack.c.h.b16 %v604
      %v1904 = vunpack.c.l.b16 %v605
      %v1905 = vunpack.c.h.b16 %v605
      %v1906 = vunpack.c.l.b16 %v606
      %v1907 = vunpack.c.h.b16 %v606
      %v1908 = vunpack.c.l.b16 %v607
      %v1909 = vunpack.c.h.b16 %v607
      %v1910 = vunpack.c.l.b16 %v608
      %v1911 = vunpack.c.h.b16 %v608
      %v1912 = vunpack.c.l.b16 %v609
      %v1913 = vunpack.c.h.b16 %v609
      %v1914 = vunpack.c.l.b16 %v610
      %v1915 = vunpack.c.h.b16 %v610
      %v1916 = vunpack.c.l.b16 %v611
      %v1917 = vunpack.c.h.b16 %v611
      %v1918 = vunpack.c.l.b16 %v612
      %v1919 = vunpack.c.h.b16 %v612
      %v1920 = vunpack.c.l.b16 %v613
      %v1921 = vunpack.c.h.b16 %v613
      %v1922 = vunpack.c.l.b16 %v614
      %v1923 = vunpack.c.h.b16 %v614
      %v1924 = vunpack.c.l.b16 %v615
      %v1925 = vunpack.c.h.b16 %v615
      %v1926 = vunpack.c.l.b16 %v616
      %v1927 = vunpack.c.h.b16 %v616
      %v1928 = vunpack.c.l.b16 %v617
      %v1929 = vunpack.c.h.b16 %v617
      %v1930 = vunpack.c.l.b16 %v618
      %v1931 = vunpack.c.h.b16 %v618
      %v1932 = vunpack.c.l.b16 %v619
      %v1933 = vunpack.c.h.b16 %v619
      %v1934 = vunpack.c.l.b16 %v620
      %v1935 = vunpack.c.h.b16 %v620
      %v1936 = vunpack.c.l.b16 %v621
      %v1937 = vunpack.c.h.b16 %v621
      %v1938 = vunpack.c.l.b16 %v622
      %v1939 = vunpack.c.h.b16 %v622
      %v1940 = vunpack.c.l.b16 %v623
      %v1941 = vunpack.c.h.b16 %v623
      %v1942 = vunpack.c.l.b16 %v624
      %v1943 = vunpack.c.h.b16 %v624
      %v1944 = vunpack.c.l.b16 %v625
      %v1945 = vunpack.c.h.b16 %v625
      %v1946 = vunpack.c.l.b16 %v626
      %v1947 = vunpack.c.h.b16 %v626
      %v1948 = vunpack.c.l.b16 %v627
      %v1949 = vunpack.c.h.b16 %v627
      %v1950 = vunpack.c.l.b16 %v628
      %v1951 = vunpack.c.h.b16 %v628
      %v1952 = vunpack.c.l.b16 %v629
      %v1953 = vunpack.c.h.b16 %v629
      %v1954 = vunpack.c.l.b16 %v630
      %v1955 = vunpack.c.h.b16 %v630
      %v1956 = vunpack.c.l.b16 %v631
      %v1957 = vunpack.c.h.b16 %v631
      %v1958 = vunpack.c.l.b16 %v632
      %v1959 = vunpack.c.h.b16 %v632
      %v1960 = vunpack.c.l.b16 %v633
      %v1961 = vunpack.c.h.b16 %v633
      %v1962 = vunpack.c.l.b16 %v634
      %v1963 = vunpack.c.h.b16 %v634
      %v1964 = vunpack.c.l.b16 %v635
      %v1965 = vunpack.c.h.b16 %v635
      %v1966 = vunpack.c.l.b16 %v636
      %v1967 = vunpack.c.h.b16 %v636
      %v1968 = vunpack.c.l.b16 %v637
      %v1969 = vunpack.c.h.b16 %v637
      %v1970 = vunpack.c.l.b16 %v638
      %v1971 = vunpack.c.h.b16 %v638
      %v1972 = vunpack.c.l.b16 %v639
      %v1973 = vunpack.c.h.b16 %v639
      %v1974 = vunpack.c.l.b16 %v640
      %v1975 = vunpack.c.h.b16 %v640
      %v1976 = vunpack.c.l.b16 %v641
      %v1977 = vunpack.c.h.b16 %v641
      %v1978 = vunpack.c.l.b16 %v642
      %v1979 = vunpack.c.h.b16 %v642
      %v1980 = vunpack.c.l.b16 %v643
      %v1981 = vunpack.c.h.b16 %v643
      %v1982 = vunpack.c.l.b16 %v644
      %v1983 = vunpack.c.h.b16 %v644
      %v1984 = vunpack.c.l.b16 %v645
      %v1985 = vunpack.c.h.b16 %v645
      %v1986 = vunpack.c.l.b16 %v646
      %v1987 = vunpack.c.h.b16 %v646
      %v1988 = vunpack.c.l.b16 %v647
      %v1989 = vunpack.c.h.b16 %v647
      %v1990 = vunpack.c.l.b16 %v648
      %v1991 = vunpack.c.h.b16 %v648
      %v1992 = vunpack.c.l.b16 %v649
      %v1993 = vunpack.c.h.b16 %v649
      %v1994 = vunpack.c.l.b16 %v650
      %v1995 = vunpack.c.h.b16 %v650
      %v1996 = vunpack.c.l.b16 %v651
      %v1997 = vunpack.c.h.b16 %v651
      %v1998 = vunpack.c.l.b16 %v652
      %v1999 = vunpack.c.h.b16 %v652
      %v2000 = vunpack.c.l.b16 %v653
      %v2001 = vunpack.c.h.b16 %v653
      %v2002 = vunpack.c.l.b16 %v654
      %v2003 = vunpack.c.h.b16 %v654
      %v2004 = vunpack.c.l.b16 %v655
      %v2005 = vunpack.c.h.b16 %v655
      %v2006 = vunpack.c.l.b16 %v656
      %v2007 = vunpack.c.h.b16 %v656
      %v2008 = vunpack.c.l.b16 %v657
      %v2009 = vunpack.c.h.b16 %v657
      %v2010 = vunpack.c.l.b16 %v658
      %v2011 = vunpack.c.h.b16 %v658
      %v2012 = vunpack.c.l.b16 %v659
      %v2013 = vunpack.c.h.b16 %v659
      %v2014 = vunpack.c.l.b16 %v660
      %v2015 = vunpack.c.h.b16 %v660
      %v2016 = vunpack.c.l.b16 %v661
      %v2017 = vunpack.c.h.b16 %v661
      %v2018 = vunpack.c.l.b16 %v662
      %v2019 = vunpack.c.h.b16 %v662
      %v2020 = vunpack.c.l.b16 %v663
      %v2021 = vunpack.c.h.b16 %v663
      %v2022 = vunpack.c.l.b16 %v664
      %v2023 = vunpack.c.h.b16 %v664
      %v2024 = vunpack.c.l.b16 %v665
      %v2025 = vunpack.c.h.b16 %v665
      %v2026 = vunpack.c.l.b16 %v666
      %v2027 = vunpack.c.h.b16 %v666
      %v2028 = vunpack.c.l.b16 %v667
      %v2029 = vunpack.c.h.b16 %v667
      %v2030 = vunpack.c.l.b16 %v668
      %v2031 = vunpack.c.h.b16 %v668
      %v2032 = vunpack.c.l.b16 %v669
      %v2033 = vunpack.c.h.b16 %v669
      %v2034 = vunpack.c.l.b16 %v670
      %v2035 = vunpack.c.h.b16 %v670
      %v2036 = vunpack.c.l.b16 %v671
      %v2037 = vunpack.c.h.b16 %v671
      %v2038 = vunpack.c.l.b16 %v672
      %v2039 = vunpack.c.h.b16 %v672
      %v2040 = vunpack.c.l.b16 %v673
      %v2041 = vunpack.c.h.b16 %v673
      %v2042 = vunpack.c.l.b16 %v674
      %v2043 = vunpack.c.h.b16 %v674
      %v2044 = vunpack.c.l.b16 %v675
      %v2045 = vunpack.c.h.b16 %v675
      %v2046 = vunpack.c.l.b16 %v676
      %v2047 = vunpack.c.h.b16 %v676
      %v2048 = vunpack.c.l.b16 %v677
      %v2049 = vunpack.c.h.b16 %v677
      %v2050 = vunpack.c.l.b16 %v678
      %v2051 = vunpack.c.h.b16 %v678
      %v2052 = vunpack.c.l.b16 %v679
      %v2053 = vunpack.c.h.b16 %v679
      %v2054 = vunpack.c.l.b16 %v680
      %v2055 = vunpack.c.h.b16 %v680
      %v2056 = vunpack.c.l.b16 %v681
      %v2057 = vunpack.c.h.b16 %v681
      %v2058 = vunpack.c.l.b16 %v682
      %v2059 = vunpack.c.h.b16 %v682
      %v2060 = vunpack.c.l.b16 %v683
      %v2061 = vunpack.c.h.b16 %v683
      %v2062 = vunpack.c.l.b16 %v684
      %v2063 = vunpack.c.h.b16 %v684
      %v2064 = vunpack.c.l.b16 %v685
      %v2065 = vunpack.c.h.b16 %v685
      %v2066 = vunpack.c.l.b16 %v686
      %v2067 = vunpack.c.h.b16 %v686
      %v2068 = vunpack.c.l.b16 %v687
      %v2069 = vunpack.c.h.b16 %v687
      %v2070 = vunpack.c.l.b16 %v688
      %v2071 = vunpack.c.h.b16 %v688
      %v2072 = vunpack.c.l.b16 %v689
      %v2073 = vunpack.c.h.b16 %v689
      %v2074 = vunpack.c.l.b16 %v690
      %v2075 = vunpack.c.h.b16 %v690
      %v2076 = vunpack.c.l.b16 %v691
      %v2077 = vunpack.c.h.b16 %v691
      %v2078 = vunpack.c.l.b16 %v692
      %v2079 = vunpack.c.h.b16 %v692
      %v2080 = vunpack.c.l.b16 %v693
      %v2081 = vunpack.c.h.b16 %v693
      %v2082 = vunpack.c.l.b16 %v694
      %v2083 = vunpack.c.h.b16 %v694
      %v2084 = vunpack.c.l.b16 %v695
      %v2085 = vunpack.c.h.b16 %v695
      %v2086 = vunpack.c.l.b16 %v696
      %v2087 = vunpack.c.h.b16 %v696
      %v2088 = vunpack.c.l.b16 %v697
      %v2089 = vunpack.c.h.b16 %v697
      %v2090 = vunpack.c.l.b16 %v698
      %v2091 = vunpack.c.h.b16 %v698
      %v2092 = vunpack.c.l.b16 %v699
      %v2093 = vunpack.c.h.b16 %v699
      %v2094 = vunpack.c.l.b16 %v700
      %v2095 = vunpack.c.h.b16 %v700
      %v2096 = vunpack.c.l.b16 %v701
      %v2097 = vunpack.c.h.b16 %v701
      %v2098 = vunpack.c.l.b16 %v702
      %v2099 = vunpack.c.h.b16 %v702
      %v2100 = vunpack.c.l.b16 %v703
      %v2101 = vunpack.c.h.b16 %v703
      %v2102 = vunpack.c.l.b16 %v704
      %v2103 = vunpack.c.h.b16 %v704
      %v2104 = vunpack.c.l.b16 %v705
      %v2105 = vunpack.c.h.b16 %v705
      %v2106 = vunpack.c.l.b16 %v706
      %v2107 = vunpack.c.h.b16 %v706
      %v2108 = vunpack.c.l.b16 %v707
      %v2109 = vunpack.c.h.b16 %v707
      %v2110 = vunpack.c.l.b16 %v708
      %v2111 = vunpack.c.h.b16 %v708
      %v2112 = vunpack.c.l.b16 %v709
      %v2113 = vunpack.c.h.b16 %v709
      %v2114 = vunpack.c.l.b16 %v710
      %v2115 = vunpack.c.h.b16 %v710
      %v2116 = vunpack.c.l.b16 %v711
      %v2117 = vunpack.c.h.b16 %v711
      %v2118 = vunpack.c.l.b16 %v712
      %v2119 = vunpack.c.h.b16 %v712
      %v2120 = vunpack.c.l.b16 %v713
      %v2121 = vunpack.c.h.b16 %v713
      %v2122 = vunpack.c.l.b16 %v714
      %v2123 = vunpack.c.h.b16 %v714
      %v2124 = vunpack.c.l.b16 %v715
      %v2125 = vunpack.c.h.b16 %v715
      %v2126 = vunpack.c.l.b16 %v716
      %v2127 = vunpack.c.h.b16 %v716
      %v2128 = vunpack.c.l.b16 %v717
      %v2129 = vunpack.c.h.b16 %v717
      %v2130 = vunpack.c.l.b16 %v718
      %v2131 = vunpack.c.h.b16 %v718
      %v2132 = vunpack.c.l.b16 %v719
      %v2133 = vunpack.c.h.b16 %v719
      %v2134 = vunpack.c.l.b16 %v720
      %v2135 = vunpack.c.h.b16 %v720
      %v2136 = vunpack.c.l.b16 %v721
      %v2137 = vunpack.c.h.b16 %v721
      %v2138 = vunpack.c.l.b16 %v722
      %v2139 = vunpack.c.h.b16 %v722
      %v2140 = vunpack.c.l.b16 %v723
      %v2141 = vunpack.c.h.b16 %v723
      %v2142 = vunpack.c.l.b16 %v724
      %v2143 = vunpack.c.h.b16 %v724
      %v2144 = vunpack.c.l.b16 %v725
      %v2145 = vunpack.c.h.b16 %v725
      %v2146 = vunpack.c.l.b16 %v726
      %v2147 = vunpack.c.h.b16 %v726
      %v2148 = vunpack.c.l.b16 %v727
      %v2149 = vunpack.c.h.b16 %v727
      %v2150 = vunpack.c.l.b16 %v728
      %v2151 = vunpack.c.h.b16 %v728
      %v2152 = vunpack.c.l.b16 %v729
      %v2153 = vunpack.c.h.b16 %v729
      %v2154 = vunpack.c.l.b16 %v730
      %v2155 = vunpack.c.h.b16 %v730
      %v2156 = vunpack.c.l.b16 %v731
      %v2157 = vunpack.c.h.b16 %v731
      %v2158 = vunpack.c.l.b16 %v732
      %v2159 = vunpack.c.h.b16 %v732
      %v2160 = vunpack.c.l.b16 %v733
      %v2161 = vunpack.c.h.b16 %v733
      %v2162 = vunpack.c.l.b16 %v734
      %v2163 = vunpack.c.h.b16 %v734
      %v2164 = vunpack.c.l.b16 %v735
      %v2165 = vunpack.c.h.b16 %v735
      %v2166 = vunpack.c.l.b16 %v736
      %v2167 = vunpack.c.h.b16 %v736
      %v2168 = vunpack.c.l.b16 %v737
      %v2169 = vunpack.c.h.b16 %v737
      %v2170 = vunpack.c.l.b16 %v738
      %v2171 = vunpack.c.h.b16 %v738
      %v2172 = vunpack.c.l.b16 %v739
      %v2173 = vunpack.c.h.b16 %v739
      %v2174 = vunpack.c.l.b16 %v740
      %v2175 = vunpack.c.h.b16 %v740
      %v2176 = vunpack.c.l.b16 %v741
      %v2177 = vunpack.c.h.b16 %v741
      %v2178 = vunpack.c.l.b16 %v742
      %v2179 = vunpack.c.h.b16 %v742
      %v2180 = vunpack.c.l.b16 %v743
      %v2181 = vunpack.c.h.b16 %v743
      %v2182 = vunpack.c.l.b16 %v744
      %v2183 = vunpack.c.h.b16 %v744
      %v2184 = vunpack.c.l.b16 %v745
      %v2185 = vunpack.c.h.b16 %v745
      %v2186 = vunpack.c.l.b16 %v746
      %v2187 = vunpack.c.h.b16 %v746
      %v2188 = vunpack.c.l.b16 %v747
      %v2189 = vunpack.c.h.b16 %v747
      %v2190 = vunpack.c.l.b16 %v748
      %v2191 = vunpack.c.h.b16 %v748
      %v2192 = vunpack.c.l.b16 %v749
      %v2193 = vunpack.c.h.b16 %v749
      %v2194 = vunpack.c.l.b16 %v750
      %v2195 = vunpack.c.h.b16 %v750
      %v2196 = vunpack.c.l.b16 %v751
      %v2197 = vunpack.c.h.b16 %v751
      %v2198 = vunpack.c.l.b16 %v752
      %v2199 = vunpack.c.h.b16 %v752
      %v2200 = vunpack.c.l.b16 %v753
      %v2201 = vunpack.c.h.b16 %v753
      %v2202 = vunpack.c.l.b16 %v754
      %v2203 = vunpack.c.h.b16 %v754
      %v2204 = vunpack.c.l.b16 %v755
      %v2205 = vunpack.c.h.b16 %v755
      %v2206 = vunpack.c.l.b16 %v756
      %v2207 = vunpack.c.h.b16 %v756
      %v2208 = vunpack.c.l.b16 %v757
      %v2209 = vunpack.c.h.b16 %v757
      %v2210 = vunpack.c.l.b16 %v758
      %v2211 = vunpack.c.h.b16 %v758
      %v2212 = vunpack.c.l.b16 %v759
      %v2213 = vunpack.c.h.b16 %v759
      %v2214 = vunpack.c.l.b16 %v760
      %v2215 = vunpack.c.h.b16 %v760
      %v2216 = vunpack.c.l.b16 %v761
      %v2217 = vunpack.c.h.b16 %v761
      %v2218 = vunpack.c.l.b16 %v762
      %v2219 = vunpack.c.h.b16 %v762
      %v2220 = vunpack.c.l.b16 %v763
      %v2221 = vunpack.c.h.b16 %v763
      %v2222 = vunpack.c.l.b16 %v764
      %v2223 = vunpack.c.h.b16 %v764
      %v2224 = vunpack.c.l.b16 %v765
      %v2225 = vunpack.c.h.b16 %v765
      %v2226 = vunpack.c.l.b16 %v766
      %v2227 = vunpack.c.h.b16 %v766
      %v2228 = vunpack.c.l.b16 %v767
      %v2229 = vunpack.c.h.b16 %v767
      %v2230 = vunpack.c.l.b16 %v768
      %v2231 = vunpack.c.h.b16 %v768
      %v2232 = vunpack.c.l.b16 %v769
      %v2233 = vunpack.c.h.b16 %v769
      %v2234 = vunpack.c.l.b16 %v770
      %v2235 = vunpack.c.h.b16 %v770
      %v2236 = vunpack.c.l.b16 %v771
      %v2237 = vunpack.c.h.b16 %v771
      %v2238 = vunpack.c.l.b16 %v772
      %v2239 = vunpack.c.h.b16 %v772
      %v2240 = vunpack.c.l.b16 %v773
      %v2241 = vunpack.c.h.b16 %v773
      %v2242 = vunpack.c.l.b16 %v774
      %v2243 = vunpack.c.h.b16 %v774
      %v2244 = vunpack.c.l.b16 %v775
      %v2245 = vunpack.c.h.b16 %v775
      %v2246 = vunpack.c.l.b16 %v776
      %v2247 = vunpack.c.h.b16 %v776
      %v2248 = vunpack.c.l.b16 %v777
      %v2249 = vunpack.c.h.b16 %v777
      %v2250 = vunpack.c.l.b16 %v778
      %v2251 = vunpack.c.h.b16 %v778
      %v2252 = vunpack.c.l.b16 %v779
      %v2253 = vunpack.c.h.b16 %v779
      %v2254 = vunpack.c.l.b16 %v780
      %v2255 = vunpack.c.h.b16 %v780
      %v2256 = vunpack.c.l.b16 %v781
      %v2257 = vunpack.c.h.b16 %v781
      %v2258 = vunpack.c.l.b16 %v782
      %v2259 = vunpack.c.h.b16 %v782
      %v2260 = vunpack.c.l.b16 %v783
      %v2261 = vunpack.c.h.b16 %v783
      %v2262 = vunpack.c.l.b16 %v784
      %v2263 = vunpack.c.h.b16 %v784
      %v2264 = vunpack.c.l.b16 %v785
      %v2265 = vunpack.c.h.b16 %v785
      %v2266 = vunpack.c.l.b16 %v786
      %v2267 = vunpack.c.h.b16 %v786
      %v2268 = vunpack.c.l.b16 %v787
      %v2269 = vunpack.c.h.b16 %v787
      %v2270 = vunpack.c.l.b16 %v788
      %v2271 = vunpack.c.h.b16 %v788
      %v2272 = vunpack.c.l.b16 %v789
      %v2273 = vunpack.c.h.b16 %v789
      %v2274 = vunpack.c.l.b16 %v790
      %v2275 = vunpack.c.h.b16 %v790
      %v2276 = vunpack.c.l.b16 %v791
      %v2277 = vunpack.c.h.b16 %v791
      %v2278 = vunpack.c.l.b16 %v792
      %v2279 = vunpack.c.h.b16 %v792
      %v2280 = vunpack.c.l.b16 %v793
      %v2281 = vunpack.c.h.b16 %v793
      %v2282 = vunpack.c.l.b16 %v794
      %v2283 = vunpack.c.h.b16 %v794
      %v2284 = vunpack.c.l.b16 %v795
      %v2285 = vunpack.c.h.b16 %v795
      %v2286 = vunpack.c.l.b16 %v796
      %v2287 = vunpack.c.h.b16 %v796
      %v2288 = vunpack.c.l.b16 %v797
      %v2289 = vunpack.c.h.b16 %v797
      %v2290 = vunpack.c.l.b16 %v798
      %v2291 = vunpack.c.h.b16 %v798
      %v2292 = vunpack.c.l.b16 %v799
      %v2293 = vunpack.c.h.b16 %v799
      %v2294 = vunpack.c.l.b16 %v800
      %v2295 = vunpack.c.h.b16 %v800
      %v2296 = vunpack.c.l.b16 %v801
      %v2297 = vunpack.c.h.b16 %v801
      %v2298 = vunpack.c.l.b16 %v802
      %v2299 = vunpack.c.h.b16 %v802
      %v2300 = vunpack.c.l.b16 %v803
      %v2301 = vunpack.c.h.b16 %v803
      %v2302 = vunpack.c.l.b16 %v804
      %v2303 = vunpack.c.h.b16 %v804
      %v2304 = vunpack.c.l.b16 %v805
      %v2305 = vunpack.c.h.b16 %v805
      %v2306 = vunpack.c.l.b16 %v806
      %v2307 = vunpack.c.h.b16 %v806
      %v2308 = vunpack.c.l.b16 %v807
      %v2309 = vunpack.c.h.b16 %v807
      %v2310 = vunpack.c.l.b16 %v808
      %v2311 = vunpack.c.h.b16 %v808
      %v2312 = vunpack.c.l.b16 %v809
      %v2313 = vunpack.c.h.b16 %v809
      %v2314 = vunpack.c.l.b16 %v810
      %v2315 = vunpack.c.h.b16 %v810
      %v2316 = vunpack.c.l.b16 %v811
      %v2317 = vunpack.c.h.b16 %v811
      %v2318 = vunpack.c.l.b16 %v812
      %v2319 = vunpack.c.h.b16 %v812
      %v2320 = vunpack.c.l.b16 %v813
      %v2321 = vunpack.c.h.b16 %v813
      %v2322 = vunpack.c.l.b16 %v814
      %v2323 = vunpack.c.h.b16 %v814
      %v2324 = vunpack.c.l.b16 %v815
      %v2325 = vunpack.c.h.b16 %v815
      %v2326 = vunpack.c.l.b16 %v816
      %v2327 = vunpack.c.h.b16 %v816
      %v2328 = vunpack.c.l.b16 %v817
      %v2329 = vunpack.c.h.b16 %v817
      %v2330 = vunpack.c.l.b16 %v818
      %v2331 = vunpack.c.h.b16 %v818
      %v2332 = vunpack.c.l.b16 %v819
      %v2333 = vunpack.c.h.b16 %v819
      %v2334 = vunpack.c.l.b16 %v820
      %v2335 = vunpack.c.h.b16 %v820
      %v2336 = vunpack.c.l.b16 %v821
      %v2337 = vunpack.c.h.b16 %v821
      %v2338 = vunpack.c.l.b16 %v822
      %v2339 = vunpack.c.h.b16 %v822
      %v2340 = vunpack.c.l.b16 %v823
      %v2341 = vunpack.c.h.b16 %v823
      %v2342 = vunpack.c.l.b16 %v824
      %v2343 = vunpack.c.h.b16 %v824
      %v2344 = vunpack.c.l.b16 %v825
      %v2345 = vunpack.c.h.b16 %v825
      %v2346 = vunpack.c.l.b16 %v826
      %v2347 = vunpack.c.h.b16 %v826
      %v2348 = vunpack.c.l.b16 %v827
      %v2349 = vunpack.c.h.b16 %v827
      %v2350 = vunpack.c.l.b16 %v828
      %v2351 = vunpack.c.h.b16 %v828
      %v2352 = vunpack.c.l.b16 %v829
      %v2353 = vunpack.c.h.b16 %v829
      %v2354 = vunpack.c.l.b16 %v830
      %v2355 = vunpack.c.h.b16 %v830
      %v2356 = vunpack.c.l.b16 %v831
      %v2357 = vunpack.c.h.b16 %v831
      %v2358 = vunpack.c.l.b16 %v832
      %v2359 = vunpack.c.h.b16 %v832
      %v2360 = vunpack.c.l.b16 %v833
      %v2361 = vunpack.c.h.b16 %v833
      %v2362 = vunpack.c.l.b16 %v834
      %v2363 = vunpack.c.h.b16 %v834
      %v2364 = vunpack.c.l.b16 %v835
      %v2365 = vunpack.c.h.b16 %v835
      %v2366 = vunpack.c.l.b16 %v836
      %v2367 = vunpack.c.h.b16 %v836
      %v2368 = vunpack.c.l.b16 %v837
      %v2369 = vunpack.c.h.b16 %v837
      %v2370 = vunpack.c.l.b16 %v838
      %v2371 = vunpack.c.h.b16 %v838
      %v2372 = vunpack.c.l.b16 %v839
      %v2373 = vunpack.c.h.b16 %v839
      %v2374 = vunpack.c.l.b16 %v840
      %v2375 = vunpack.c.h.b16 %v840
      %v2376 = vunpack.c.l.b16 %v841
      %v2377 = vunpack.c.h.b16 %v841
      %v2378 = vunpack.c.l.b16 %v842
      %v2379 = vunpack.c.h.b16 %v842
      %v2380 = vunpack.c.l.b16 %v843
      %v2381 = vunpack.c.h.b16 %v843
      %v2382 = vunpack.c.l.b16 %v844
      %v2383 = vunpack.c.h.b16 %v844
      %v2384 = vunpack.c.l.b16 %v845
      %v2385 = vunpack.c.h.b16 %v845
      %v2386 = vunpack.c.l.b16 %v846
      %v2387 = vunpack.c.h.b16 %v846
      %v2388 = vunpack.c.l.b16 %v847
      %v2389 = vunpack.c.h.b16 %v847
      %v2390 = vunpack.c.l.b16 %v848
      %v2391 = vunpack.c.h.b16 %v848
      %v2392 = vunpack.c.l.b16 %v849
      %v2393 = vunpack.c.h.b16 %v849
      %v2394 = vunpack.c.l.b16 %v850
      %v2395 = vunpack.c.h.b16 %v850
      %v2396 = vunpack.c.l.b16 %v851
      %v2397 = vunpack.c.h.b16 %v851
      %v2398 = vunpack.c.l.b16 %v852
      %v2399 = vunpack.c.h.b16 %v852
      %v2400 = vunpack.c.l.b16 %v853
      %v2401 = vunpack.c.h.b16 %v853
      %v2402 = vunpack.c.l.b16 %v854
      %v2403 = vunpack.c.h.b16 %v854
      %v2404 = vunpack.c.l.b16 %v855
      %v2405 = vunpack.c.h.b16 %v855
      %v2406 = vunpack.c.l.b16 %v856
      %v2407 = vunpack.c.h.b16 %v856
      %v2408 = vunpack.c.l.b16 %v857
      %v2409 = vunpack.c.h.b16 %v857
      %v2410 = vunpack.c.l.b16 %v858
      %v2411 = vunpack.c.h.b16 %v858
      %v2412 = vunpack.c.l.b16 %v859
      %v2413 = vunpack.c.h.b16 %v859
      %v2414 = vunpack.c.l.b16 %v860
      %v2415 = vunpack.c.h.b16 %v860
      %v2416 = vunpack.c.l.b16 %v861
      %v2417 = vunpack.c.h.b16 %v861
      %v2418 = vunpack.c.l.b16 %v862
      %v2419 = vunpack.c.h.b16 %v862
      %v2420 = vunpack.c.l.b16 %v863
      %v2421 = vunpack.c.h.b16 %v863
      %v2422 = vunpack.c.l.b16 %v864
      %v2423 = vunpack.c.h.b16 %v864
      %v2424 = vunpack.c.l.b16 %v865
      %v2425 = vunpack.c.h.b16 %v865
      %v2426 = vunpack.c.l.b16 %v866
      %v2427 = vunpack.c.h.b16 %v866
      %v2428 = vunpack.c.l.b16 %v867
      %v2429 = vunpack.c.h.b16 %v867
      %v2430 = vunpack.c.l.b16 %v868
      %v2431 = vunpack.c.h.b16 %v868
      %v2432 = vunpack.c.l.b16 %v869
      %v2433 = vunpack.c.h.b16 %v869
      %v2434 = vunpack.c.l.b16 %v870
      %v2435 = vunpack.c.h.b16 %v870
      %v2436 = vunpack.c.l.b16 %v871
      %v2437 = vunpack.c.h.b16 %v871
      %v2438 = vunpack.c.l.b16 %v872
      %v2439 = vunpack.c.h.b16 %v872
      %v2440 = vunpack.c.l.b16 %v873
      %v2441 = vunpack.c.h.b16 %v873
      %v2442 = vunpack.c.l.b16 %v874
      %v2443 = vunpack.c.h.b16 %v874
      %v2444 = vunpack.c.l.b16 %v875
      %v2445 = vunpack.c.h.b16 %v875
      %v2446 = vunpack.c.l.b16 %v876
      %v2447 = vunpack.c.h.b16 %v876
      %v2448 = vunpack.c.l.b16 %v877
      %v2449 = vunpack.c.h.b16 %v877
      %v2450 = vunpack.c.l.b16 %v878
      %v2451 = vunpack.c.h.b16 %v878
      %v2452 = vunpack.c.l.b16 %v879
      %v2453 = vunpack.c.h.b16 %v879
      %v2454 = vunpack.c.l.b16 %v880
      %v2455 = vunpack.c.h.b16 %v880
      %v2456 = vunpack.c.l.b16 %v881
      %v2457 = vunpack.c.h.b16 %v881
      %v2458 = vunpack.c.l.b16 %v882
      %v2459 = vunpack.c.h.b16 %v882
      %v2460 = vunpack.c.l.b16 %v883
      %v2461 = vunpack.c.h.b16 %v883
      %v2462 = vunpack.c.l.b16 %v884
      %v2463 = vunpack.c.h.b16 %v884
      %v2464 = vunpack.c.l.b16 %v885
      %v2465 = vunpack.c.h.b16 %v885
      %v2466 = vunpack.c.l.b16 %v886
      %v2467 = vunpack.c.h.b16 %v886
      %v2468 = vunpack.c.l.b16 %v887
      %v2469 = vunpack.c.h.b16 %v887
      %v2470 = vunpack.c.l.b16 %v888
      %v2471 = vunpack.c.h.b16 %v888
      %v2472 = vunpack.c.l.b16 %v889
      %v2473 = vunpack.c.h.b16 %v889
      %v2474 = vunpack.c.l.b16 %v890
      %v2475 = vunpack.c.h.b16 %v890
      %v2476 = vunpack.c.l.b16 %v891
      %v2477 = vunpack.c.h.b16 %v891
      %v2478 = vunpack.c.l.b16 %v892
      %v2479 = vunpack.c.h.b16 %v892
      %v2480 = vunpack.c.l.b16 %v893
      %v2481 = vunpack.c.h.b16 %v893
      %v2482 = vunpack.c.l.b16 %v894
      %v2483 = vunpack.c.h.b16 %v894
      %v2484 = vunpack.c.l.b16 %v895
      %v2485 = vunpack.c.h.b16 %v895
      %v2486 = vunpack.c.l.b16 %v896
      %v2487 = vunpack.c.h.b16 %v896
      %v2488 = vunpack.c.l.b16 %v897
      %v2489 = vunpack.c.h.b16 %v897
      %v2490 = vunpack.c.l.b16 %v898
      %v2491 = vunpack.c.h.b16 %v898
      %v2492 = vunpack.c.l.b16 %v899
      %v2493 = vunpack.c.h.b16 %v899
      %v2494 = vpack.c.b16 %v1524, %v1514
      %v2495 = vpack.c.b16 %v1525, %v1515
      %v2496 = vpack.c.b16 %v1526, %v1516
      %v2497 = vpack.c.b16 %v1527, %v1517
      %v2498 = vpack.c.b16 %v1528, %v1518
      %v2499 = vpack.c.b16 %v1529, %v1519
      %v2500 = vpack.c.b16 %v1530, %v1520
      %v2501 = vpack.c.b16 %v1531, %v1521
      %v2502 = vpack.c.b16 %v1532, %v1522
      %v2503 = vpack.c.b16 %v1533, %v1523
      %v2504 = vpack.c.b16 %v1544, %v1534
      %v2505 = vpack.c.b16 %v1545, %v1535
      %v2506 = vpack.c.b16 %v1546, %v1536
      %v2507 = vpack.c.b16 %v1547, %v1537
      %v2508 = vpack.c.b16 %v1548, %v1538
      %v2509 = vpack.c.b16 %v1549, %v1539
      %v2510 = vpack.c.b16 %v1550, %v1540
      %v2511 = vpack.c.b16 %v1551, %v1541
      %v2512 = vpack.c.b16 %v1552, %v1542
      %v2513 = vpack.c.b16 %v1553, %v1543
      %v2514 = vpack.c.b16 %v1564, %v1554
      %v2515 = vpack.c.b16 %v1565, %v1555
      %v2516 = vpack.c.b16 %v1566, %v1556
      %v2517 = vpack.c.b16 %v1567, %v1557
      %v2518 = vpack.c.b16 %v1568, %v1558
      %v2519 = vpack.c.b16 %v1569, %v1559
      %v2520 = vpack.c.b16 %v1570, %v1560
      %v2521 = vpack.c.b16 %v1571, %v1561
      %v2522 = vpack.c.b16 %v1572, %v1562
      %v2523 = vpack.c.b16 %v1573, %v1563
      %v2524 = vpack.c.b16 %v1584, %v1574
      %v2525 = vpack.c.b16 %v1585, %v1575
      %v2526 = vpack.c.b16 %v1586, %v1576
      %v2527 = vpack.c.b16 %v1587, %v1577
      %v2528 = vpack.c.b16 %v1588, %v1578
      %v2529 = vpack.c.b16 %v1589, %v1579
      %v2530 = vpack.c.b16 %v1590, %v1580
      %v2531 = vpack.c.b16 %v1591, %v1581
      %v2532 = vpack.c.b16 %v1592, %v1582
      %v2533 = vpack.c.b16 %v1593, %v1583
      %v2534 = vpack.c.b16 %v1604, %v1594
      %v2535 = vpack.c.b16 %v1605, %v1595
      %v2536 = vpack.c.b16 %v1606, %v1596
      %v2537 = vpack.c.b16 %v1607, %v1597
      %v2538 = vpack.c.b16 %v1608, %v1598
      %v2539 = vpack.c.b16 %v1609, %v1599
      %v2540 = vpack.c.b16 %v1610, %v1600
      %v2541 = vpack.c.b16 %v1611, %v1601
      %v2542 = vpack.c.b16 %v1612, %v1602
      %v2543 = vpack.c.b16 %v1613, %v1603
      %v2544 = vpack.c.b16 %v1624, %v1614
      %v2545 = vpack.c.b16 %v1625, %v1615
      %v2546 = vpack.c.b16 %v1626, %v1616
      %v2547 = vpack.c.b16 %v1627, %v1617
      %v2548 = vpack.c.b16 %v1628, %v1618
      %v2549 = vpack.c.b16 %v1629, %v1619
      %v2550 = vpack.c.b16 %v1630, %v1620
      %v2551 = vpack.c.b16 %v1631, %v1621
      %v2552 = vpack.c.b16 %v1632, %v1622
      %v2553 = vpack.c.b16 %v1633, %v1623
      %v2554 = vpack.c.b16 %v1644, %v1634
      %v2555 = vpack.c.b16 %v1645, %v1635
      %v2556 = vpack.c.b16 %v1646, %v1636
      %v2557 = vpack.c.b16 %v1647, %v1637
      %v2558 = vpack.c.b16 %v1648, %v1638
      %v2559 = vpack.c.b16 %v1649, %v1639
      %v2560 = vpack.c.b16 %v1650, %v1640
      %v2561 = vpack.c.b16 %v1651, %v1641
      %v2562 = vpack.c.b16 %v1652, %v1642
      %v2563 = vpack.c.b16 %v1653, %v1643
      %v2564 = vpack.c.b16 %v1664, %v1654
      %v2565 = vpack.c.b16 %v1665, %v1655
      %v2566 = vpack.c.b16 %v1666, %v1656
      %v2567 = vpack.c.b16 %v1667, %v1657
      %v2568 = vpack.c.b16 %v1668, %v1658
      %v2569 = vpack.c.b16 %v1669, %v1659
      %v2570 = vpack.c.b16 %v1670, %v1660
      %v2571 = vpack.c.b16 %v1671, %v1661
      %v2572 = vpack.c.b16 %v1672, %v1662
      %v2573 = vpack.c.b16 %v1673, %v1663
      %v2574 = vpack.c.b16 %v1684, %v1674
      %v2575 = vpack.c.b16 %v1685, %v1675
      %v2576 = vpack.c.b16 %v1686, %v1676
      %v2577 = vpack.c.b16 %v1687, %v1677
      %v2578 = vpack.c.b16 %v1688, %v1678
      %v2579 = vpack.c.b16 %v1689, %v1679
      %v2580 = vpack.c.b16 %v1690, %v1680
      %v2581 = vpack.c.b16 %v1691, %v1681
      %v2582 = vpack.c.b16 %v1692, %v1682
      %v2583 = vpack.c.b16 %v1693, %v1683
      %v2584 = vpack.c.b16 %v1704, %v1694
      %v2585 = vpack.c.b16 %v1705, %v1695
      %v2586 = vpack.c.b16 %v1706, %v1696
      %v2587 = vpack.c.b16 %v1707, %v1697
      %v2588 = vpack.c.b16 %v1708, %v1698
      %v2589 = vpack.c.b16 %v1709, %v1699
      %v2590 = vpack.c.b16 %v1710, %v1700
      %v2591 = vpack.c.b16 %v1711, %v1701
      %v2592 = vpack.c.b16 %v1712, %v1702
      %v2593 = vpack.c.b16 %v1713, %v1703
      %v2594 = vpack.c.b16 %v1724, %v1714
      %v2595 = vpack.c.b16 %v1725, %v1715
      %v2596 = vpack.c.b16 %v1726, %v1716
      %v2597 = vpack.c.b16 %v1727, %v1717
      %v2598 = vpack.c.b16 %v1728, %v1718
      %v2599 = vpack.c.b16 %v1729, %v1719
      %v2600 = vpack.c.b16 %v1730, %v1720
      %v2601 = vpack.c.b16 %v1731, %v1721
      %v2602 = vpack.c.b16 %v1732, %v1722
      %v2603 = vpack.c.b16 %v1733, %v1723
      %v2604 = vpack.c.b16 %v1744, %v1734
      %v2605 = vpack.c.b16 %v1745, %v1735
      %v2606 = vpack.c.b16 %v1746, %v1736
      %v2607 = vpack.c.b16 %v1747, %v1737
      %v2608 = vpack.c.b16 %v1748, %v1738
      %v2609 = vpack.c.b16 %v1749, %v1739
      %v2610 = vpack.c.b16 %v1750, %v1740
      %v2611 = vpack.c.b16 %v1751, %v1741
      %v2612 = vpack.c.b16 %v1752, %v1742
      %v2613 = vpack.c.b16 %v1753, %v1743
      %v2614 = vpack.c.b16 %v1764, %v1754
      %v2615 = vpack.c.b16 %v1765, %v1755
      %v2616 = vpack.c.b16 %v1766, %v1756
      %v2617 = vpack.c.b16 %v1767, %v1757
      %v2618 = vpack.c.b16 %v1768, %v1758
      %v2619 = vpack.c.b16 %v1769, %v1759
      %v2620 = vpack.c.b16 %v1770, %v1760
      %v2621 = vpack.c.b16 %v1771, %v1761
      %v2622 = vpack.c.b16 %v1772, %v1762
      %v2623 = vpack.c.b16 %v1773, %v1763
      %v2624 = vpack.c.b16 %v1784, %v1774
      %v2625 = vpack.c.b16 %v1785, %v1775
      %v2626 = vpack.c.b16 %v1786, %v1776
      %v2627 = vpack.c.b16 %v1787, %v1777
      %v2628 = vpack.c.b16 %v1788, %v1778
      %v2629 = vpack.c.b16 %v1789, %v1779
      %v2630 = vpack.c.b16 %v1790, %v1780
      %v2631 = vpack.c.b16 %v1791, %v1781
      %v2632 = vpack.c.b16 %v1792, %v1782
      %v2633 = vpack.c.b16 %v1793, %v1783
      %v2634 = vpack.c.b16 %v1804, %v1794
      %v2635 = vpack.c.b16 %v1805, %v1795
      %v2636 = vpack.c.b16 %v1806, %v1796
      %v2637 = vpack.c.b16 %v1807, %v1797
      %v2638 = vpack.c.b16 %v1808, %v1798
      %v2639 = vpack.c.b16 %v1809, %v1799
      %v2640 = vpack.c.b16 %v1810, %v1800
      %v2641 = vpack.c.b16 %v1811, %v1801
      %v2642 = vpack.c.b16 %v1812, %v1802
      %v2643 = vpack.c.b16 %v1813, %v1803
      %v2644 = vpack.c.b16 %v1824, %v1814
      %v2645 = vpack.c.b16 %v1825, %v1815
      %v2646 = vpack.c.b16 %v1826, %v1816
      %v2647 = vpack.c.b16 %v1827, %v1817
      %v2648 = vpack.c.b16 %v1828, %v1818
      %v2649 = vpack.c.b16 %v1829, %v1819
      %v2650 = vpack.c.b16 %v1830, %v1820
      %v2651 = vpack.c.b16 %v1831, %v1821
      %v2652 = vpack.c.b16 %v1832, %v1822
      %v2653 = vpack.c.b16 %v1833, %v1823
      %v2654 = vpack.c.b16 %v1844, %v1834
      %v2655 = vpack.c.b16 %v1845, %v1835
      %v2656 = vpack.c.b16 %v1846, %v1836
      %v2657 = vpack.c.b16 %v1847, %v1837
      %v2658 = vpack.c.b16 %v1848, %v1838
      %v2659 = vpack.c.b16 %v1849, %v1839
      %v2660 = vpack.c.b16 %v1850, %v1840
      %v2661 = vpack.c.b16 %v1851, %v1841
      %v2662 = vpack.c.b16 %v1852, %v1842
      %v2663 = vpack.c.b16 %v1853, %v1843
      %v2664 = vpack.c.b16 %v1864, %v1854
      %v2665 = vpack.c.b16 %v1865, %v1855
      %v2666 = vpack.c.b16 %v1866, %v1856
      %v2667 = vpack.c.b16 %v1867, %v1857
      %v2668 = vpack.c.b16 %v1868, %v1858
      %v2669 = vpack.c.b16 %v1869, %v1859
      %v2670 = vpack.c.b16 %v1870, %v1860
      %v2671 = vpack.c.b16 %v1871, %v1861
      %v2672 = vpack.c.b16 %v1872, %v1862
      %v2673 = vpack.c.b16 %v1873, %v1863
      %v2674 = vpack.c.b16 %v1884, %v1874
      %v2675 = vpack.c.b16 %v1885, %v1875
      %v2676 = vpack.c.b16 %v1886, %v1876
      %v2677 = vpack.c.b16 %v1887, %v1877
      %v2678 = vpack.c.b16 %v1888, %v1878
      %v2679 = vpack.c.b16 %v1889, %v1879
      %v2680 = vpack.c.b16 %v1890, %v1880
      %v2681 = vpack.c.b16 %v1891, %v1881
      %v2682 = vpack.c.b16 %v1892, %v1882
      %v2683 = vpack.c.b16 %v1893, %v1883
      %v2684 = vpack.c.b16 %v1904, %v1894
      %v2685 = vpack.c.b16 %v1905, %v1895
      %v2686 = vpack.c.b16 %v1906, %v1896
      %v2687 = vpack.c.b16 %v1907, %v1897
      %v2688 = vpack.c.b16 %v1908, %v1898
      %v2689 = vpack.c.b16 %v1909, %v1899
      %v2690 = vpack.c.b16 %v1910, %v1900
      %v2691 = vpack.c.b16 %v1911, %v1901
      %v2692 = vpack.c.b16 %v1912, %v1902
      %v2693 = vpack.c.b16 %v1913, %v1903
      %v2694 = vpack.c.b16 %v1924, %v1914
      %v2695 = vpack.c.b16 %v1925, %v1915
      %v2696 = vpack.c.b16 %v1926, %v1916
      %v2697 = vpack.c.b16 %v1927, %v1917
      %v2698 = vpack.c.b16 %v1928, %v1918
      %v2699 = vpack.c.b16 %v1929, %v1919
      %v2700 = vpack.c.b16 %v1930, %v1920
      %v2701 = vpack.c.b16 %v1931, %v1921
      %v2702 = vpack.c.b16 %v1932, %v1922
      %v2703 = vpack.c.b16 %v1933, %v1923
      %v2704 = vpack.c.b16 %v1944, %v1934
      %v2705 = vpack.c.b16 %v1945, %v1935
      %v2706 = vpack.c.b16 %v1946, %v1936
      %v2707 = vpack.c.b16 %v1947, %v1937
      %v2708 = vpack.c.b16 %v1948, %v1938
      %v2709 = vpack.c.b16 %v1949, %v1939
      %v2710 = vpack.c.b16 %v1950, %v1940
      %v2711 = vpack.c.b16 %v1951, %v1941
      %v2712 = vpack.c.b16 %v1952, %v1942
      %v2713 = vpack.c.b16 %v1953, %v1943
      %v2714 = vpack.c.b16 %v1964, %v1954
      %v2715 = vpack.c.b16 %v1965, %v1955
      %v2716 = vpack.c.b16 %v1966, %v1956
      %v2717 = vpack.c.b16 %v1967, %v1957
      %v2718 = vpack.c.b16 %v1968, %v1958
      %v2719 = vpack.c.b16 %v1969, %v1959
      %v2720 = vpack.c.b16 %v1970, %v1960
      %v2721 = vpack.c.b16 %v1971, %v1961
      %v2722 = vpack.c.b16 %v1972, %v1962
      %v2723 = vpack.c.b16 %v1973, %v1963
      %v2724 = vpack.c.b16 %v1984, %v1974
      %v2725 = vpack.c.b16 %v1985, %v1975
      %v2726 = vpack.c.b16 %v1986, %v1976
      %v2727 = vpack.c.b16 %v1987, %v1977
      %v2728 = vpack.c.b16 %v1988, %v1978
      %v2729 = vpack.c.b16 %v1989, %v1979
      %v2730 = vpack.c.b16 %v1990, %v1980
      %v2731 = vpack.c.b16 %v1991, %v1981
      %v2732 = vpack.c.b16 %v1992, %v1982
      %v2733 = vpack.c.b16 %v1993, %v1983
      %v2734 = vpack.c.b16 %v2004, %v1994
      %v2735 = vpack.c.b16 %v2005, %v1995
      %v2736 = vpack.c.b16 %v2006, %v1996
      %v2737 = vpack.c.b16 %v2007, %v1997
      %v2738 = vpack.c.b16 %v2008, %v1998
      %v2739 = vpack.c.b16 %v2009, %v1999
      %v2740 = vpack.c.b16 %v2010, %v2000
      %v2741 = vpack.c.b16 %v2011, %v2001
      %v2742 = vpack.c.b16 %v2012, %v2002
      %v2743 = vpack.c.b16 %v2013, %v2003
      %v2744 = vpack.c.b16 %v2024, %v2014
      %v2745 = vpack.c.b16 %v2025, %v2015
      %v2746 = vpack.c.b16 %v2026, %v2016
      %v2747 = vpack.c.b16 %v2027, %v2017
      %v2748 = vpack.c.b16 %v2028, %v2018
      %v2749 = vpack.c.b16 %v2029, %v2019
      %v2750 = vpack.c.b16 %v2030, %v2020
      %v2751 = vpack.c.b16 %v2031, %v2021
      %v2752 = vpack.c.b16 %v2032, %v2022
      %v2753 = vpack.c.b16 %v2033, %v2023
      %v2754 = vpack.c.b16 %v2044, %v2034
      %v2755 = vpack.c.b16 %v2045, %v2035
      %v2756 = vpack.c.b16 %v2046, %v2036
      %v2757 = vpack.c.b16 %v2047, %v2037
      %v2758 = vpack.c.b16 %v2048, %v2038
      %v2759 = vpack.c.b16 %v2049, %v2039
      %v2760 = vpack.c.b16 %v2050, %v2040
      %v2761 = vpack.c.b16 %v2051, %v2041
      %v2762 = vpack.c.b16 %v2052, %v2042
      %v2763 = vpack.c.b16 %v2053, %v2043
      %v2764 = vpack.c.b16 %v2064, %v2054
      %v2765 = vpack.c.b16 %v2065, %v2055
      %v2766 = vpack.c.b16 %v2066, %v2056
      %v2767 = vpack.c.b16 %v2067, %v2057
      %v2768 = vpack.c.b16 %v2068, %v2058
      %v2769 = vpack.c.b16 %v2069, %v2059
      %v2770 = vpack.c.b16 %v2070, %v2060
      %v2771 = vpack.c.b16 %v2071, %v2061
      %v2772 = vpack.c.b16 %v2072, %v2062
      %v2773 = vpack.c.b16 %v2073, %v2063
      %v2774 = vpack.c.b16 %v2084, %v2074
      %v2775 = vpack.c.b16 %v2085, %v2075
      %v2776 = vpack.c.b16 %v2086, %v2076
      %v2777 = vpack.c.b16 %v2087, %v2077
      %v2778 = vpack.c.b16 %v2088, %v2078
      %v2779 = vpack.c.b16 %v2089, %v2079
      %v2780 = vpack.c.b16 %v2090, %v2080
      %v2781 = vpack.c.b16 %v2091, %v2081
      %v2782 = vpack.c.b16 %v2092, %v2082
      %v2783 = vpack.c.b16 %v2093, %v2083
      %v2784 = vpack.c.b16 %v2104, %v2094
      %v2785 = vpack.c.b16 %v2105, %v2095
      %v2786 = vpack.c.b16 %v2106, %v2096
      %v2787 = vpack.c.b16 %v2107, %v2097
      %v2788 = vpack.c.b16 %v2108, %v2098
      %v2789 = vpack.c.b16 %v2109, %v2099
      %v2790 = vpack.c.b16 %v2110, %v2100
      %v2791 = vpack.c.b16 %v2111, %v2101
      %v2792 = vpack.c.b16 %v2112, %v2102
      %v2793 = vpack.c.b16 %v2113, %v2103
      %v2794 = vpack.c.b16 %v2124, %v2114
      %v2795 = vpack.c.b16 %v2125, %v2115
      %v2796 = vpack.c.b16 %v2126, %v2116
      %v2797 = vpack.c.b16 %v2127, %v2117
      %v2798 = vpack.c.b16 %v2128, %v2118
      %v2799 = vpack.c.b16 %v2129, %v2119
      %v2800 = vpack.c.b16 %v2130, %v2120
      %v2801 = vpack.c.b16 %v2131, %v2121
      %v2802 = vpack.c.b16 %v2132, %v2122
      %v2803 = vpack.c.b16 %v2133, %v2123
      %v2804 = vpack.c.b16 %v2144, %v2134
      %v2805 = vpack.c.b16 %v2145, %v2135
      %v2806 = vpack.c.b16 %v2146, %v2136
      %v2807 = vpack.c.b16 %v2147, %v2137
      %v2808 = vpack.c.b16 %v2148, %v2138
      %v2809 = vpack.c.b16 %v2149, %v2139
      %v2810 = vpack.c.b16 %v2150, %v2140
      %v2811 = vpack.c.b16 %v2151, %v2141
      %v2812 = vpack.c.b16 %v2152, %v2142
      %v2813 = vpack.c.b16 %v2153, %v2143
      %v2814 = vpack.c.b16 %v2164, %v2154
      %v2815 = vpack.c.b16 %v2165, %v2155
      %v2816 = vpack.c.b16 %v2166, %v2156
      %v2817 = vpack.c.b16 %v2167, %v2157
      %v2818 = vpack.c.b16 %v2168, %v2158
      %v2819 = vpack.c.b16 %v2169, %v2159
      %v2820 = vpack.c.b16 %v2170, %v2160
      %v2821 = vpack.c.b16 %v2171, %v2161
      %v2822 = vpack.c.b16 %v2172, %v2162
      %v2823 = vpack.c.b16 %v2173, %v2163
      %v2824 = vpack.c.b16 %v2184, %v2174
      %v2825 = vpack.c.b16 %v2185, %v2175
      %v2826 = vpack.c.b16 %v2186, %v2176
      %v2827 = vpack.c.b16 %v2187, %v2177
      %v2828 = vpack.c.b16 %v2188, %v2178
      %v2829 = vpack.c.b16 %v2189, %v2179
      %v2830 = vpack.c.b16 %v2190, %v2180
      %v2831 = vpack.c.b16 %v2191, %v2181
      %v2832 = vpack.c.b16 %v2192, %v2182
      %v2833 = vpack.c.b16 %v2193, %v2183
      %v2834 = vpack.c.b16 %v2204, %v2194
      %v2835 = vpack.c.b16 %v2205, %v2195
      %v2836 = vpack.c.b16 %v2206, %v2196
      %v2837 = vpack.c.b16 %v2207, %v2197
      %v2838 = vpack.c.b16 %v2208, %v2198
      %v2839 = vpack.c.b16 %v2209, %v2199
      %v2840 = vpack.c.b16 %v2210, %v2200
      %v2841 = vpack.c.b16 %v2211, %v2201
      %v2842 = vpack.c.b16 %v2212, %v2202
      %v2843 = vpack.c.b16 %v2213, %v2203
      %v2844 = vpack.c.b16 %v2224, %v2214
      %v2845 = vpack.c.b16 %v2225, %v2215
      %v2846 = vpack.c.b16 %v2226, %v2216
      %v2847 = vpack.c.b16 %v2227, %v2217
      %v2848 = vpack.c.b16 %v2228, %v2218
      %v2849 = vpack.c.b16 %v2229, %v2219
      %v2850 = vpack.c.b16 %v2230, %v2220
      %v2851 = vpack.c.b16 %v2231, %v2221
      %v2852 = vpack.c.b16 %v2232, %v2222
      %v2853 = vpack.c.b16 %v2233, %v2223
      %v2854 = vpack.c.b16 %v2244, %v2234
      %v2855 = vpack.c.b16 %v2245, %v2235
      %v2856 = vpack.c.b16 %v2246, %v2236
      %v2857 = vpack.c.b16 %v2247, %v2237
      %v2858 = vpack.c.b16 %v2248, %v2238
      %v2859 = vpack.c.b16 %v2249, %v2239
      %v2860 = vpack.c.b16 %v2250, %v2240
      %v2861 = vpack.c.b16 %v2251, %v2241
      %v2862 = vpack.c.b16 %v2252, %v2242
      %v2863 = vpack.c.b16 %v2253, %v2243
      %v2864 = vpack.c.b16 %v2264, %v2254
      %v2865 = vpack.c.b16 %v2265, %v2255
      %v2866 = vpack.c.b16 %v2266, %v2256
      %v2867 = vpack.c.b16 %v2267, %v2257
      %v2868 = vpack.c.b16 %v2268, %v2258
      %v2869 = vpack.c.b16 %v2269, %v2259
      %v2870 = vpack.c.b16 %v2270, %v2260
      %v2871 = vpack.c.b16 %v2271, %v2261
      %v2872 = vpack.c.b16 %v2272, %v2262
      %v2873 = vpack.c.b16 %v2273, %v2263
      %v2874 = vpack.c.b16 %v2284, %v2274
      %v2875 = vpack.c.b16 %v2285, %v2275
      %v2876 = vpack.c.b16 %v2286, %v2276
      %v2877 = vpack.c.b16 %v2287, %v2277
      %v2878 = vpack.c.b16 %v2288, %v2278
      %v2879 = vpack.c.b16 %v2289, %v2279
      %v2880 = vpack.c.b16 %v2290, %v2280
      %v2881 = vpack.c.b16 %v2291, %v2281
      %v2882 = vpack.c.b16 %v2292, %v2282
      %v2883 = vpack.c.b16 %v2293, %v2283
      %v2884 = vpack.c.b16 %v2304, %v2294
      %v2885 = vpack.c.b16 %v2305, %v2295
      %v2886 = vpack.c.b16 %v2306, %v2296
      %v2887 = vpack.c.b16 %v2307, %v2297
      %v2888 = vpack.c.b16 %v2308, %v2298
      %v2889 = vpack.c.b16 %v2309, %v2299
      %v2890 = vpack.c.b16 %v2310, %v2300
      %v2891 = vpack.c.b16 %v2311, %v2301
      %v2892 = vpack.c.b16 %v2312, %v2302
      %v2893 = vpack.c.b16 %v2313, %v2303
      %v2894 = vpack.c.b16 %v2324, %v2314
      %v2895 = vpack.c.b16 %v2325, %v2315
      %v2896 = vpack.c.b16 %v2326, %v2316
      %v2897 = vpack.c.b16 %v2327, %v2317
      %v2898 = vpack.c.b16 %v2328, %v2318
      %v2899 = vpack.c.b16 %v2329, %v2319
      %v2900 = vpack.c.b16 %v2330, %v2320
      %v2901 = vpack.c.b16 %v2331, %v2321
      %v2902 = vpack.c.b16 %v2332, %v2322
      %v2903 = vpack.c.b16 %v2333, %v2323
      %v2904 = vpack.c.b16 %v2344, %v2334
      %v2905 = vpack.c.b16 %v2345, %v2335
      %v2906 = vpack.c.b16 %v2346, %v2336
      %v2907 = vpack.c.b16 %v2347, %v2337
      %v2908 = vpack.c.b16 %v2348, %v2338
      %v2909 = vpack.c.b16 %v2349, %v2339
      %v2910 = vpack.c.b16 %v2350, %v2340
      %v2911 = vpack.c.b16 %v2351, %v2341
      %v2912 = vpack.c.b16 %v2352, %v2342
      %v2913 = vpack.c.b16 %v2353, %v2343
      %v2914 = vpack.c.b16 %v2364, %v2354
      %v2915 = vpack.c.b16 %v2365, %v2355
      %v2916 = vpack.c.b16 %v2366, %v2356
      %v2917 = vpack.c.b16 %v2367, %v2357
      %v2918 = vpack.c.b16 %v2368, %v2358
      %v2919 = vpack.c.b16 %v2369, %v2359
      %v2920 = vpack.c.b16 %v2370, %v2360
      %v2921 = vpack.c.b16 %v2371, %v2361
      %v2922 = vpack.c.b16 %v2372, %v2362
      %v2923 = vpack.c.b16 %v2373, %v2363
      %v2924 = vpack.c.b16 %v2384, %v2374
      %v2925 = vpack.c.b16 %v2385, %v2375
      %v2926 = vpack.c.b16 %v2386, %v2376
      %v2927 = vpack.c.b16 %v2387, %v2377
      %v2928 = vpack.c.b16 %v2388, %v2378
      %v2929 = vpack.c.b16 %v2389, %v2379
      %v2930 = vpack.c.b16 %v2390, %v2380
      %v2931 = vpack.c.b16 %v2391, %v2381
      %v2932 = vpack.c.b16 %v2392, %v2382
      %v2933 = vpack.c.b16 %v2393, %v2383
      %v2934 = vpack.c.b16 %v2404, %v2394
      %v2935 = vpack.c.b16 %v2405, %v2395
      %v2936 = vpack.c.b16 %v2406, %v2396
      %v2937 = vpack.c.b16 %v2407, %v2397
      %v2938 = vpack.c.b16 %v2408, %v2398
      %v2939 = vpack.c.b16 %v2409, %v2399
      %v2940 = vpack.c.b16 %v2410, %v2400
      %v2941 = vpack.c.b16 %v2411, %v2401
      %v2942 = vpack.c.b16 %v2412, %v2402
      %v2943 = vpack.c.b16 %v2413, %v2403
      %v2944 = vpack.c.b16 %v2424, %v2414
      %v2945 = vpack.c.b16 %v2425, %v2415
      %v2946 = vpack.c.b16 %v2426, %v2416
      %v2947 = vpack.c.b16 %v2427, %v2417
      %v2948 = vpack.c.b16 %v2428, %v2418
      %v2949 = vpack.c.b16 %v2429, %v2419
      %v2950 = vpack.c.b16 %v2430, %v2420
      %v2951 = vpack.c.b16 %v2431, %v2421
      %v2952 = vpack.c.b16 %v2432, %v2422
      %v2953 = vpack.c.b16 %v2433, %v2423
      %v2954 = vpack.c.b16 %v2444, %v2434
      %v2955 = vpack.c.b16 %v2445, %v2435
      %v2956 = vpack.c.b16 %v2446, %v2436
      %v2957 = vpack.c.b16 %v2447, %v2437
      %v2958 = vpack.c.b16 %v2448, %v2438
      %v2959 = vpack.c.b16 %v2449, %v2439
      %v2960 = vpack.c.b16 %v2450, %v2440
      %v2961 = vpack.c.b16 %v2451, %v2441
      %v2962 = vpack.c.b16 %v2452, %v2442
      %v2963 = vpack.c.b16 %v2453, %v2443
      %v2964 = vpack.c.b16 %v2464, %v2454
      %v2965 = vpack.c.b16 %v2465, %v2455
      %v2966 = vpack.c.b16 %v2466, %v2456
      %v2967 = vpack.c.b16 %v2467, %v2457
      %v2968 = vpack.c.b16 %v2468, %v2458
      %v2969 = vpack.c.b16 %v2469, %v2459
      %v2970 = vpack.c.b16 %v2470, %v2460
      %v2971 = vpack.c.b16 %v2471, %v2461
      %v2972 = vpack.c.b16 %v2472, %v2462
      %v2973 = vpack.c.b16 %v2473, %v2463
      %v2974 = vpack.c.b16 %v2484, %v2474
      %v2975 = vpack.c.b16 %v2485, %v2475
      %v2976 = vpack.c.b16 %v2486, %v2476
      %v2977 = vpack.c.b16 %v2487, %v2477
      %v2978 = vpack.c.b16 %v2488, %v2478
      %v2979 = vpack.c.b16 %v2489, %v2479
      %v2980 = vpack.c.b16 %v2490, %v2480
      %v2981 = vpack.c.b16 %v2491, %v2481
      %v2982 = vpack.c.b16 %v2492, %v2482
      %v2983 = vpack.c.b16 %v2493, %v2483
      %vm3474 = vcmask 130048
      %v3476 = vsel %vm3474, %v1004, 0
      %v3479 = vsel %vm3474, %v1011, 0
      %3481 = vmatprep.subr.bf16.mxu0 %v2565
      %3482 = vmatpush1.bf16.msra.mxu0 %v2564
      %3483 = vmatprep.subr.bf16.mxu0 %v2555
      %3484 = vmatpush1.bf16.msra.mxu0 %v2554
      %3485 = vmatprep.subr.bf16.mxu0 %v2545
      %3486 = vmatpush1.bf16.msra.mxu0 %v2544
      %3487 = vmatprep.subr.bf16.mxu0 %v2535
      %3488 = vmatpush1.bf16.msra.mxu0 %v2534
      %3489 = vmatprep.subr.bf16.mxu0 %v2525
      %3490 = vmatpush1.bf16.msra.mxu0 %v2524
      %3491 = vmatprep.subr.bf16.mxu0 %v2515
      %3492 = vmatpush1.bf16.msra.mxu0 %v2514
      %3493 = vmatprep.subr.bf16.mxu0 %v2505
      %3494 = vmatpush1.bf16.msra.mxu0 %v2504
      %3495 = vmatprep.subr.bf16.mxu0 %v2495
      %3496 = vmatpush1.bf16.msra.mxu0 %v2494
      %3497 = vmatprep.subr.bf16.mxu0 %v2645
      %3498 = vmatpush2.bf16.msra.mxu0 %v2644
      %3499 = vmatprep.subr.bf16.mxu0 %v2635
      %3500 = vmatpush2.bf16.msra.mxu0 %v2634
      %3501 = vmatprep.subr.bf16.mxu0 %v2625
      %3502 = vmatpush2.bf16.msra.mxu0 %v2624
      %3503 = vmatprep.subr.bf16.mxu0 %v2615
      %3504 = vmatpush2.bf16.msra.mxu0 %v2614
      %3505 = vmatprep.subr.bf16.mxu0 %v2605
      %3506 = vmatpush2.bf16.msra.mxu0 %v2604
      %3507 = vmatprep.subr.bf16.mxu0 %v2595
      %3508 = vmatpush2.bf16.msra.mxu0 %v2594
      %3509 = vmatprep.subr.bf16.mxu0 %v2585
      %3510 = vmatpush2.bf16.msra.mxu0 %v2584
      %3511 = vmatprep.subr.bf16.mxu0 %v2575
      %3512 = vmatpush2.bf16.msra.mxu0 %v2574
      %3513 = vmatprep.mubr.bf16.mxu0 %v999
      %3514 = vmatmul.mubr.bf16.gmra.mxu0 %v998
      %v3515 = vpop.f32.mrf.mxu0
      %v3516 = vadd.f32 %v907, %v3515
      %v3517 = vpop.f32.mrf.mxu0
      %v3518 = vadd.f32 %v911, %v3517
      %v3519 = vpop.f32.mrf.mxu0
      %v3520 = vadd.f32 %v907, %v3519
      %v3521 = vpop.f32.mrf.mxu0
      %v3522 = vadd.f32 %v911, %v3521
      %3523 = vmatprep.mubr.bf16.mxu0 %v1006
      %3524 = vmatmul.mubr.bf16.gmra.mxu0 %v1005
      %v3525 = vpop.f32.mrf.mxu0
      %v3526 = vadd.f32 %v907, %v3525
      %v3527 = vpop.f32.mrf.mxu0
      %v3528 = vadd.f32 %v911, %v3527
      %v3529 = vpop.f32.mrf.mxu0
      %v3530 = vadd.f32 %v907, %v3529
      %v3531 = vpop.f32.mrf.mxu0
      %v3532 = vadd.f32 %v911, %v3531
      %3533 = vdwg.mxu0
      %3534 = vmatprep.subr.bf16.mxu0 %v2725
      %3535 = vmatpush1.bf16.msra.mxu0 %v2724
      %3536 = vmatprep.subr.bf16.mxu0 %v2715
      %3537 = vmatpush1.bf16.msra.mxu0 %v2714
      %3538 = vmatprep.subr.bf16.mxu0 %v2705
      %3539 = vmatpush1.bf16.msra.mxu0 %v2704
      %3540 = vmatprep.subr.bf16.mxu0 %v2695
      %3541 = vmatpush1.bf16.msra.mxu0 %v2694
      %3542 = vmatprep.subr.bf16.mxu0 %v2685
      %3543 = vmatpush1.bf16.msra.mxu0 %v2684
      %3544 = vmatprep.subr.bf16.mxu0 %v2675
      %3545 = vmatpush1.bf16.msra.mxu0 %v2674
      %3546 = vmatprep.subr.bf16.mxu0 %v2665
      %3547 = vmatpush1.bf16.msra.mxu0 %v2664
      %3548 = vmatprep.subr.bf16.mxu0 %v2655
      %3549 = vmatpush1.bf16.msra.mxu0 %v2654
      %3550 = vmatprep.subr.bf16.mxu0 %v2805
      %3551 = vmatpush2.bf16.msra.mxu0 %v2804
      %3552 = vmatprep.subr.bf16.mxu0 %v2795
      %3553 = vmatpush2.bf16.msra.mxu0 %v2794
      %3554 = vmatprep.subr.bf16.mxu0 %v2785
      %3555 = vmatpush2.bf16.msra.mxu0 %v2784
      %3556 = vmatprep.subr.bf16.mxu0 %v2775
      %3557 = vmatpush2.bf16.msra.mxu0 %v2774
      %3558 = vmatprep.subr.bf16.mxu0 %v2765
      %3559 = vmatpush2.bf16.msra.mxu0 %v2764
      %3560 = vmatprep.subr.bf16.mxu0 %v2755
      %3561 = vmatpush2.bf16.msra.mxu0 %v2754
      %3562 = vmatprep.subr.bf16.mxu0 %v2745
      %3563 = vmatpush2.bf16.msra.mxu0 %v2744
      %3564 = vmatprep.subr.bf16.mxu0 %v2735
      %3565 = vmatpush2.bf16.msra.mxu0 %v2734
      %3566 = vmatprep.mubr.bf16.mxu0 %v1001
      %3567 = vmatmul.mubr.bf16.gmra.mxu0 %v1000
      %v3568 = vpop.f32.mrf.mxu0
      %v3569 = vadd.f32 %v3516, %v3568
      %v3570 = vpop.f32.mrf.mxu0
      %v3571 = vadd.f32 %v3518, %v3570
      %v3572 = vpop.f32.mrf.mxu0
      %v3573 = vadd.f32 %v3520, %v3572
      %v3574 = vpop.f32.mrf.mxu0
      %v3575 = vadd.f32 %v3522, %v3574
      %3576 = vmatprep.mubr.bf16.mxu0 %v1008
      %3577 = vmatmul.mubr.bf16.gmra.mxu0 %v1007
      %v3578 = vpop.f32.mrf.mxu0
      %v3579 = vadd.f32 %v3526, %v3578
      %v3580 = vpop.f32.mrf.mxu0
      %v3581 = vadd.f32 %v3528, %v3580
      %v3582 = vpop.f32.mrf.mxu0
      %v3583 = vadd.f32 %v3530, %v3582
      %v3584 = vpop.f32.mrf.mxu0
      %v3585 = vadd.f32 %v3532, %v3584
      %3586 = vdwg.mxu0
      %3587 = vmatprep.subr.bf16.mxu0 %v2885
      %3588 = vmatpush1.bf16.msra.mxu0 %v2884
      %3589 = vmatprep.subr.bf16.mxu0 %v2875
      %3590 = vmatpush1.bf16.msra.mxu0 %v2874
      %3591 = vmatprep.subr.bf16.mxu0 %v2865
      %3592 = vmatpush1.bf16.msra.mxu0 %v2864
      %3593 = vmatprep.subr.bf16.mxu0 %v2855
      %3594 = vmatpush1.bf16.msra.mxu0 %v2854
      %3595 = vmatprep.subr.bf16.mxu0 %v2845
      %3596 = vmatpush1.bf16.msra.mxu0 %v2844
      %3597 = vmatprep.subr.bf16.mxu0 %v2835
      %3598 = vmatpush1.bf16.msra.mxu0 %v2834
      %3599 = vmatprep.subr.bf16.mxu0 %v2825
      %3600 = vmatpush1.bf16.msra.mxu0 %v2824
      %3601 = vmatprep.subr.bf16.mxu0 %v2815
      %3602 = vmatpush1.bf16.msra.mxu0 %v2814
      %3603 = vmatprep.subr.bf16.mxu0 %v2965
      %3604 = vmatpush2.bf16.msra.mxu0 %v2964
      %3605 = vmatprep.subr.bf16.mxu0 %v2955
      %3606 = vmatpush2.bf16.msra.mxu0 %v2954
      %3607 = vmatprep.subr.bf16.mxu0 %v2945
      %3608 = vmatpush2.bf16.msra.mxu0 %v2944
      %3609 = vmatprep.subr.bf16.mxu0 %v2935
      %3610 = vmatpush2.bf16.msra.mxu0 %v2934
      %3611 = vmatprep.subr.bf16.mxu0 %v2925
      %3612 = vmatpush2.bf16.msra.mxu0 %v2924
      %3613 = vmatprep.subr.bf16.mxu0 %v2915
      %3614 = vmatpush2.bf16.msra.mxu0 %v2914
      %3615 = vmatprep.subr.bf16.mxu0 %v2905
      %3616 = vmatpush2.bf16.msra.mxu0 %v2904
      %3617 = vmatprep.subr.bf16.mxu0 %v2895
      %3618 = vmatpush2.bf16.msra.mxu0 %v2894
      %3619 = vmatprep.mubr.bf16.mxu0 %v1003
      %3620 = vmatmul.mubr.bf16.gmra.mxu0 %v1002
      %v3621 = vpop.f32.mrf.mxu0
      %v3622 = vadd.f32 %v3569, %v3621
      %v3623 = vpop.f32.mrf.mxu0
      %v3624 = vadd.f32 %v3571, %v3623
      %v3625 = vpop.f32.mrf.mxu0
      %v3626 = vadd.f32 %v3573, %v3625
      %v3627 = vpop.f32.mrf.mxu0
      %v3628 = vadd.f32 %v3575, %v3627
      %3629 = vmatprep.mubr.bf16.mxu0 %v1010
      %3630 = vmatmul.mubr.bf16.gmra.mxu0 %v1009
      %v3631 = vpop.f32.mrf.mxu0
      %v3632 = vadd.f32 %v3579, %v3631
      %v3633 = vpop.f32.mrf.mxu0
      %v3634 = vadd.f32 %v3581, %v3633
      %v3635 = vpop.f32.mrf.mxu0
      %v3636 = vadd.f32 %v3583, %v3635
      %v3637 = vpop.f32.mrf.mxu0
      %v3638 = vadd.f32 %v3585, %v3637
      %3639 = vdwg.mxu0
      %3640 = vmatprep.subr.bf16.mxu0 0
      %3641 = vmatpush1.bf16.msra.mxu0 0
      %3642 = vmatprep.subr.bf16.mxu0 0
      %3643 = vmatpush1.bf16.msra.mxu0 0
      %3644 = vmatprep.subr.bf16.mxu0 0
      %3645 = vmatpush1.bf16.msra.mxu0 0
      %3646 = vmatprep.subr.bf16.mxu0 0
      %3647 = vmatpush1.bf16.msra.mxu0 0
      %3648 = vmatprep.subr.bf16.mxu0 0
      %3649 = vmatpush1.bf16.msra.mxu0 0
      %3650 = vmatprep.subr.bf16.mxu0 0
      %3651 = vmatpush1.bf16.msra.mxu0 0
      %3652 = vmatprep.subr.bf16.mxu0 0
      %3653 = vmatpush1.bf16.msra.mxu0 0
      %3654 = vmatprep.subr.bf16.mxu0 %v2975
      %3655 = vmatpush1.bf16.msra.mxu0 %v2974
      %3656 = vmatprep.subr.bf16.mxu0 0
      %3657 = vmatpush2.bf16.msra.mxu0 0
      %3658 = vmatprep.subr.bf16.mxu0 0
      %3659 = vmatpush2.bf16.msra.mxu0 0
      %3660 = vmatprep.subr.bf16.mxu0 0
      %3661 = vmatpush2.bf16.msra.mxu0 0
      %3662 = vmatprep.subr.bf16.mxu0 0
      %3663 = vmatpush2.bf16.msra.mxu0 0
      %3664 = vmatprep.subr.bf16.mxu0 0
      %3665 = vmatpush2.bf16.msra.mxu0 0
      %3666 = vmatprep.subr.bf16.mxu0 0
      %3667 = vmatpush2.bf16.msra.mxu0 0
      %3668 = vmatprep.subr.bf16.mxu0 0
      %3669 = vmatpush2.bf16.msra.mxu0 0
      %3670 = vmatprep.subr.bf16.mxu0 0
      %3671 = vmatpush2.bf16.msra.mxu0 0
      %3672 = vmatprep.mubr.bf16.mxu0 0
      %3673 = vmatmul.mubr.bf16.gmra.mxu0 %v3476
      %v3674 = vpop.f32.mrf.mxu0
      %v3675 = vadd.f32 %v3622, %v3674
      %v3676 = vpop.f32.mrf.mxu0
      %v3677 = vadd.f32 %v3624, %v3676
      %v3678 = vpop.f32.mrf.mxu0
      %v3679 = vadd.f32 %v3626, %v3678
      %v3680 = vpop.f32.mrf.mxu0
      %v3681 = vadd.f32 %v3628, %v3680
      %3682 = vmatprep.mubr.bf16.mxu0 0
      %3683 = vmatmul.mubr.bf16.gmra.mxu0 %v3479
      %v3684 = vpop.f32.mrf.mxu0
      %v3685 = vadd.f32 %v3632, %v3684
      %v3686 = vpop.f32.mrf.mxu0
      %v3687 = vadd.f32 %v3634, %v3686
      %v3688 = vpop.f32.mrf.mxu0
      %v3689 = vadd.f32 %v3636, %v3688
      %v3690 = vpop.f32.mrf.mxu0
      %v3691 = vadd.f32 %v3638, %v3690
      %3692 = vdwg.mxu0
      %3693 = vmatprep.subr.bf16.mxu0 %v2567
      %3694 = vmatpush1.bf16.msra.mxu0 %v2566
      %3695 = vmatprep.subr.bf16.mxu0 %v2557
      %3696 = vmatpush1.bf16.msra.mxu0 %v2556
      %3697 = vmatprep.subr.bf16.mxu0 %v2547
      %3698 = vmatpush1.bf16.msra.mxu0 %v2546
      %3699 = vmatprep.subr.bf16.mxu0 %v2537
      %3700 = vmatpush1.bf16.msra.mxu0 %v2536
      %3701 = vmatprep.subr.bf16.mxu0 %v2527
      %3702 = vmatpush1.bf16.msra.mxu0 %v2526
      %3703 = vmatprep.subr.bf16.mxu0 %v2517
      %3704 = vmatpush1.bf16.msra.mxu0 %v2516
      %3705 = vmatprep.subr.bf16.mxu0 %v2507
      %3706 = vmatpush1.bf16.msra.mxu0 %v2506
      %3707 = vmatprep.subr.bf16.mxu0 %v2497
      %3708 = vmatpush1.bf16.msra.mxu0 %v2496
      %3709 = vmatprep.subr.bf16.mxu0 %v2647
      %3710 = vmatpush2.bf16.msra.mxu0 %v2646
      %3711 = vmatprep.subr.bf16.mxu0 %v2637
      %3712 = vmatpush2.bf16.msra.mxu0 %v2636
      %3713 = vmatprep.subr.bf16.mxu0 %v2627
      %3714 = vmatpush2.bf16.msra.mxu0 %v2626
      %3715 = vmatprep.subr.bf16.mxu0 %v2617
      %3716 = vmatpush2.bf16.msra.mxu0 %v2616
      %3717 = vmatprep.subr.bf16.mxu0 %v2607
      %3718 = vmatpush2.bf16.msra.mxu0 %v2606
      %3719 = vmatprep.subr.bf16.mxu0 %v2597
      %3720 = vmatpush2.bf16.msra.mxu0 %v2596
      %3721 = vmatprep.subr.bf16.mxu0 %v2587
      %3722 = vmatpush2.bf16.msra.mxu0 %v2586
      %3723 = vmatprep.subr.bf16.mxu0 %v2577
      %3724 = vmatpush2.bf16.msra.mxu0 %v2576
      %3725 = vmatprep.mubr.bf16.mxu0 %v999
      %3726 = vmatmul.mubr.bf16.gmra.mxu0 %v998
      %v3727 = vpop.f32.mrf.mxu0
      %v3728 = vadd.f32 %v915, %v3727
      %v3729 = vpop.f32.mrf.mxu0
      %v3730 = vadd.f32 %v919, %v3729
      %v3731 = vpop.f32.mrf.mxu0
      %v3732 = vadd.f32 %v915, %v3731
      %v3733 = vpop.f32.mrf.mxu0
      %v3734 = vadd.f32 %v919, %v3733
      %3735 = vmatprep.mubr.bf16.mxu0 %v1006
      %3736 = vmatmul.mubr.bf16.gmra.mxu0 %v1005
      %v3737 = vpop.f32.mrf.mxu0
      %v3738 = vadd.f32 %v915, %v3737
      %v3739 = vpop.f32.mrf.mxu0
      %v3740 = vadd.f32 %v919, %v3739
      %v3741 = vpop.f32.mrf.mxu0
      %v3742 = vadd.f32 %v915, %v3741
      %v3743 = vpop.f32.mrf.mxu0
      %v3744 = vadd.f32 %v919, %v3743
      %3745 = vdwg.mxu0
      %3746 = vmatprep.subr.bf16.mxu0 %v2727
      %3747 = vmatpush1.bf16.msra.mxu0 %v2726
      %3748 = vmatprep.subr.bf16.mxu0 %v2717
      %3749 = vmatpush1.bf16.msra.mxu0 %v2716
      %3750 = vmatprep.subr.bf16.mxu0 %v2707
      %3751 = vmatpush1.bf16.msra.mxu0 %v2706
      %3752 = vmatprep.subr.bf16.mxu0 %v2697
      %3753 = vmatpush1.bf16.msra.mxu0 %v2696
      %3754 = vmatprep.subr.bf16.mxu0 %v2687
      %3755 = vmatpush1.bf16.msra.mxu0 %v2686
      %3756 = vmatprep.subr.bf16.mxu0 %v2677
      %3757 = vmatpush1.bf16.msra.mxu0 %v2676
      %3758 = vmatprep.subr.bf16.mxu0 %v2667
      %3759 = vmatpush1.bf16.msra.mxu0 %v2666
      %3760 = vmatprep.subr.bf16.mxu0 %v2657
      %3761 = vmatpush1.bf16.msra.mxu0 %v2656
      %3762 = vmatprep.subr.bf16.mxu0 %v2807
      %3763 = vmatpush2.bf16.msra.mxu0 %v2806
      %3764 = vmatprep.subr.bf16.mxu0 %v2797
      %3765 = vmatpush2.bf16.msra.mxu0 %v2796
      %3766 = vmatprep.subr.bf16.mxu0 %v2787
      %3767 = vmatpush2.bf16.msra.mxu0 %v2786
      %3768 = vmatprep.subr.bf16.mxu0 %v2777
      %3769 = vmatpush2.bf16.msra.mxu0 %v2776
      %3770 = vmatprep.subr.bf16.mxu0 %v2767
      %3771 = vmatpush2.bf16.msra.mxu0 %v2766
      %3772 = vmatprep.subr.bf16.mxu0 %v2757
      %3773 = vmatpush2.bf16.msra.mxu0 %v2756
      %3774 = vmatprep.subr.bf16.mxu0 %v2747
      %3775 = vmatpush2.bf16.msra.mxu0 %v2746
      %3776 = vmatprep.subr.bf16.mxu0 %v2737
      %3777 = vmatpush2.bf16.msra.mxu0 %v2736
      %3778 = vmatprep.mubr.bf16.mxu0 %v1001
      %3779 = vmatmul.mubr.bf16.gmra.mxu0 %v1000
      %v3780 = vpop.f32.mrf.mxu0
      %v3781 = vadd.f32 %v3728, %v3780
      %v3782 = vpop.f32.mrf.mxu0
      %v3783 = vadd.f32 %v3730, %v3782
      %v3784 = vpop.f32.mrf.mxu0
      %v3785 = vadd.f32 %v3732, %v3784
      %v3786 = vpop.f32.mrf.mxu0
      %v3787 = vadd.f32 %v3734, %v3786
      %3788 = vmatprep.mubr.bf16.mxu0 %v1008
      %3789 = vmatmul.mubr.bf16.gmra.mxu0 %v1007
      %v3790 = vpop.f32.mrf.mxu0
      %v3791 = vadd.f32 %v3738, %v3790
      %v3792 = vpop.f32.mrf.mxu0
      %v3793 = vadd.f32 %v3740, %v3792
      %v3794 = vpop.f32.mrf.mxu0
      %v3795 = vadd.f32 %v3742, %v3794
      %v3796 = vpop.f32.mrf.mxu0
      %v3797 = vadd.f32 %v3744, %v3796
      %3798 = vdwg.mxu0
      %3799 = vmatprep.subr.bf16.mxu0 %v2887
      %3800 = vmatpush1.bf16.msra.mxu0 %v2886
      %3801 = vmatprep.subr.bf16.mxu0 %v2877
      %3802 = vmatpush1.bf16.msra.mxu0 %v2876
      %3803 = vmatprep.subr.bf16.mxu0 %v2867
      %3804 = vmatpush1.bf16.msra.mxu0 %v2866
      %3805 = vmatprep.subr.bf16.mxu0 %v2857
      %3806 = vmatpush1.bf16.msra.mxu0 %v2856
      %3807 = vmatprep.subr.bf16.mxu0 %v2847
      %3808 = vmatpush1.bf16.msra.mxu0 %v2846
      %3809 = vmatprep.subr.bf16.mxu0 %v2837
      %3810 = vmatpush1.bf16.msra.mxu0 %v2836
      %3811 = vmatprep.subr.bf16.mxu0 %v2827
      %3812 = vmatpush1.bf16.msra.mxu0 %v2826
      %3813 = vmatprep.subr.bf16.mxu0 %v2817
      %3814 = vmatpush1.bf16.msra.mxu0 %v2816
      %3815 = vmatprep.subr.bf16.mxu0 %v2967
      %3816 = vmatpush2.bf16.msra.mxu0 %v2966
      %3817 = vmatprep.subr.bf16.mxu0 %v2957
      %3818 = vmatpush2.bf16.msra.mxu0 %v2956
      %3819 = vmatprep.subr.bf16.mxu0 %v2947
      %3820 = vmatpush2.bf16.msra.mxu0 %v2946
      %3821 = vmatprep.subr.bf16.mxu0 %v2937
      %3822 = vmatpush2.bf16.msra.mxu0 %v2936
      %3823 = vmatprep.subr.bf16.mxu0 %v2927
      %3824 = vmatpush2.bf16.msra.mxu0 %v2926
      %3825 = vmatprep.subr.bf16.mxu0 %v2917
      %3826 = vmatpush2.bf16.msra.mxu0 %v2916
      %3827 = vmatprep.subr.bf16.mxu0 %v2907
      %3828 = vmatpush2.bf16.msra.mxu0 %v2906
      %3829 = vmatprep.subr.bf16.mxu0 %v2897
      %3830 = vmatpush2.bf16.msra.mxu0 %v2896
      %3831 = vmatprep.mubr.bf16.mxu0 %v1003
      %3832 = vmatmul.mubr.bf16.gmra.mxu0 %v1002
      %v3833 = vpop.f32.mrf.mxu0
      %v3834 = vadd.f32 %v3781, %v3833
      %v3835 = vpop.f32.mrf.mxu0
      %v3836 = vadd.f32 %v3783, %v3835
      %v3837 = vpop.f32.mrf.mxu0
      %v3838 = vadd.f32 %v3785, %v3837
      %v3839 = vpop.f32.mrf.mxu0
      %v3840 = vadd.f32 %v3787, %v3839
      %3841 = vmatprep.mubr.bf16.mxu0 %v1010
      %3842 = vmatmul.mubr.bf16.gmra.mxu0 %v1009
      %v3843 = vpop.f32.mrf.mxu0
      %v3844 = vadd.f32 %v3791, %v3843
      %v3845 = vpop.f32.mrf.mxu0
      %v3846 = vadd.f32 %v3793, %v3845
      %v3847 = vpop.f32.mrf.mxu0
      %v3848 = vadd.f32 %v3795, %v3847
      %v3849 = vpop.f32.mrf.mxu0
      %v3850 = vadd.f32 %v3797, %v3849
      %3851 = vdwg.mxu0
      %3852 = vmatprep.subr.bf16.mxu0 0
      %3853 = vmatpush1.bf16.msra.mxu0 0
      %3854 = vmatprep.subr.bf16.mxu0 0
      %3855 = vmatpush1.bf16.msra.mxu0 0
      %3856 = vmatprep.subr.bf16.mxu0 0
      %3857 = vmatpush1.bf16.msra.mxu0 0
      %3858 = vmatprep.subr.bf16.mxu0 0
      %3859 = vmatpush1.bf16.msra.mxu0 0
      %3860 = vmatprep.subr.bf16.mxu0 0
      %3861 = vmatpush1.bf16.msra.mxu0 0
      %3862 = vmatprep.subr.bf16.mxu0 0
      %3863 = vmatpush1.bf16.msra.mxu0 0
      %3864 = vmatprep.subr.bf16.mxu0 0
      %3865 = vmatpush1.bf16.msra.mxu0 0
      %3866 = vmatprep.subr.bf16.mxu0 %v2977
      %3867 = vmatpush1.bf16.msra.mxu0 %v2976
      %3868 = vmatprep.subr.bf16.mxu0 0
      %3869 = vmatpush2.bf16.msra.mxu0 0
      %3870 = vmatprep.subr.bf16.mxu0 0
      %3871 = vmatpush2.bf16.msra.mxu0 0
      %3872 = vmatprep.subr.bf16.mxu0 0
      %3873 = vmatpush2.bf16.msra.mxu0 0
      %3874 = vmatprep.subr.bf16.mxu0 0
      %3875 = vmatpush2.bf16.msra.mxu0 0
      %3876 = vmatprep.subr.bf16.mxu0 0
      %3877 = vmatpush2.bf16.msra.mxu0 0
      %3878 = vmatprep.subr.bf16.mxu0 0
      %3879 = vmatpush2.bf16.msra.mxu0 0
      %3880 = vmatprep.subr.bf16.mxu0 0
      %3881 = vmatpush2.bf16.msra.mxu0 0
      %3882 = vmatprep.subr.bf16.mxu0 0
      %3883 = vmatpush2.bf16.msra.mxu0 0
      %3884 = vmatprep.mubr.bf16.mxu0 0
      %3885 = vmatmul.mubr.bf16.gmra.mxu0 %v3476
      %v3886 = vpop.f32.mrf.mxu0
      %v3887 = vadd.f32 %v3834, %v3886
      %v3888 = vpop.f32.mrf.mxu0
      %v3889 = vadd.f32 %v3836, %v3888
      %v3890 = vpop.f32.mrf.mxu0
      %v3891 = vadd.f32 %v3838, %v3890
      %v3892 = vpop.f32.mrf.mxu0
      %v3893 = vadd.f32 %v3840, %v3892
      %3894 = vmatprep.mubr.bf16.mxu0 0
      %3895 = vmatmul.mubr.bf16.gmra.mxu0 %v3479
      %v3896 = vpop.f32.mrf.mxu0
      %v3897 = vadd.f32 %v3844, %v3896
      %v3898 = vpop.f32.mrf.mxu0
      %v3899 = vadd.f32 %v3846, %v3898
      %v3900 = vpop.f32.mrf.mxu0
      %v3901 = vadd.f32 %v3848, %v3900
      %v3902 = vpop.f32.mrf.mxu0
      %v3903 = vadd.f32 %v3850, %v3902
      %3904 = vdwg.mxu0
      %3905 = vmatprep.subr.bf16.mxu0 %v2569
      %3906 = vmatpush1.bf16.msra.mxu0 %v2568
      %3907 = vmatprep.subr.bf16.mxu0 %v2559
      %3908 = vmatpush1.bf16.msra.mxu0 %v2558
      %3909 = vmatprep.subr.bf16.mxu0 %v2549
      %3910 = vmatpush1.bf16.msra.mxu0 %v2548
      %3911 = vmatprep.subr.bf16.mxu0 %v2539
      %3912 = vmatpush1.bf16.msra.mxu0 %v2538
      %3913 = vmatprep.subr.bf16.mxu0 %v2529
      %3914 = vmatpush1.bf16.msra.mxu0 %v2528
      %3915 = vmatprep.subr.bf16.mxu0 %v2519
      %3916 = vmatpush1.bf16.msra.mxu0 %v2518
      %3917 = vmatprep.subr.bf16.mxu0 %v2509
      %3918 = vmatpush1.bf16.msra.mxu0 %v2508
      %3919 = vmatprep.subr.bf16.mxu0 %v2499
      %3920 = vmatpush1.bf16.msra.mxu0 %v2498
      %3921 = vmatprep.subr.bf16.mxu0 %v2649
      %3922 = vmatpush2.bf16.msra.mxu0 %v2648
      %3923 = vmatprep.subr.bf16.mxu0 %v2639
      %3924 = vmatpush2.bf16.msra.mxu0 %v2638
      %3925 = vmatprep.subr.bf16.mxu0 %v2629
      %3926 = vmatpush2.bf16.msra.mxu0 %v2628
      %3927 = vmatprep.subr.bf16.mxu0 %v2619
      %3928 = vmatpush2.bf16.msra.mxu0 %v2618
      %3929 = vmatprep.subr.bf16.mxu0 %v2609
      %3930 = vmatpush2.bf16.msra.mxu0 %v2608
      %3931 = vmatprep.subr.bf16.mxu0 %v2599
      %3932 = vmatpush2.bf16.msra.mxu0 %v2598
      %3933 = vmatprep.subr.bf16.mxu0 %v2589
      %3934 = vmatpush2.bf16.msra.mxu0 %v2588
      %3935 = vmatprep.subr.bf16.mxu0 %v2579
      %3936 = vmatpush2.bf16.msra.mxu0 %v2578
      %3937 = vmatprep.mubr.bf16.mxu0 %v999
      %3938 = vmatmul.mubr.bf16.gmra.mxu0 %v998
      %v3939 = vpop.f32.mrf.mxu0
      %v3940 = vadd.f32 %v923, %v3939
      %v3941 = vpop.f32.mrf.mxu0
      %v3942 = vadd.f32 %v927, %v3941
      %v3943 = vpop.f32.mrf.mxu0
      %v3944 = vadd.f32 %v923, %v3943
      %v3945 = vpop.f32.mrf.mxu0
      %v3946 = vadd.f32 %v927, %v3945
      %3947 = vmatprep.mubr.bf16.mxu0 %v1006
      %3948 = vmatmul.mubr.bf16.gmra.mxu0 %v1005
      %v3949 = vpop.f32.mrf.mxu0
      %v3950 = vadd.f32 %v923, %v3949
      %v3951 = vpop.f32.mrf.mxu0
      %v3952 = vadd.f32 %v927, %v3951
      %v3953 = vpop.f32.mrf.mxu0
      %v3954 = vadd.f32 %v923, %v3953
      %v3955 = vpop.f32.mrf.mxu0
      %v3956 = vadd.f32 %v927, %v3955
      %3957 = vdwg.mxu0
      %3958 = vmatprep.subr.bf16.mxu0 %v2729
      %3959 = vmatpush1.bf16.msra.mxu0 %v2728
      %3960 = vmatprep.subr.bf16.mxu0 %v2719
      %3961 = vmatpush1.bf16.msra.mxu0 %v2718
      %3962 = vmatprep.subr.bf16.mxu0 %v2709
      %3963 = vmatpush1.bf16.msra.mxu0 %v2708
      %3964 = vmatprep.subr.bf16.mxu0 %v2699
      %3965 = vmatpush1.bf16.msra.mxu0 %v2698
      %3966 = vmatprep.subr.bf16.mxu0 %v2689
      %3967 = vmatpush1.bf16.msra.mxu0 %v2688
      %3968 = vmatprep.subr.bf16.mxu0 %v2679
      %3969 = vmatpush1.bf16.msra.mxu0 %v2678
      %3970 = vmatprep.subr.bf16.mxu0 %v2669
      %3971 = vmatpush1.bf16.msra.mxu0 %v2668
      %3972 = vmatprep.subr.bf16.mxu0 %v2659
      %3973 = vmatpush1.bf16.msra.mxu0 %v2658
      %3974 = vmatprep.subr.bf16.mxu0 %v2809
      %3975 = vmatpush2.bf16.msra.mxu0 %v2808
      %3976 = vmatprep.subr.bf16.mxu0 %v2799
      %3977 = vmatpush2.bf16.msra.mxu0 %v2798
      %3978 = vmatprep.subr.bf16.mxu0 %v2789
      %3979 = vmatpush2.bf16.msra.mxu0 %v2788
      %3980 = vmatprep.subr.bf16.mxu0 %v2779
      %3981 = vmatpush2.bf16.msra.mxu0 %v2778
      %3982 = vmatprep.subr.bf16.mxu0 %v2769
      %3983 = vmatpush2.bf16.msra.mxu0 %v2768
      %3984 = vmatprep.subr.bf16.mxu0 %v2759
      %3985 = vmatpush2.bf16.msra.mxu0 %v2758
      %3986 = vmatprep.subr.bf16.mxu0 %v2749
      %3987 = vmatpush2.bf16.msra.mxu0 %v2748
      %3988 = vmatprep.subr.bf16.mxu0 %v2739
      %3989 = vmatpush2.bf16.msra.mxu0 %v2738
      %3990 = vmatprep.mubr.bf16.mxu0 %v1001
      %3991 = vmatmul.mubr.bf16.gmra.mxu0 %v1000
      %v3992 = vpop.f32.mrf.mxu0
      %v3993 = vadd.f32 %v3940, %v3992
      %v3994 = vpop.f32.mrf.mxu0
      %v3995 = vadd.f32 %v3942, %v3994
      %v3996 = vpop.f32.mrf.mxu0
      %v3997 = vadd.f32 %v3944, %v3996
      %v3998 = vpop.f32.mrf.mxu0
      %v3999 = vadd.f32 %v3946, %v3998
      %4000 = vmatprep.mubr.bf16.mxu0 %v1008
      %4001 = vmatmul.mubr.bf16.gmra.mxu0 %v1007
      %v4002 = vpop.f32.mrf.mxu0
      %v4003 = vadd.f32 %v3950, %v4002
      %v4004 = vpop.f32.mrf.mxu0
      %v4005 = vadd.f32 %v3952, %v4004
      %v4006 = vpop.f32.mrf.mxu0
      %v4007 = vadd.f32 %v3954, %v4006
      %v4008 = vpop.f32.mrf.mxu0
      %v4009 = vadd.f32 %v3956, %v4008
      %4010 = vdwg.mxu0
      %4011 = vmatprep.subr.bf16.mxu0 %v2889
      %4012 = vmatpush1.bf16.msra.mxu0 %v2888
      %4013 = vmatprep.subr.bf16.mxu0 %v2879
      %4014 = vmatpush1.bf16.msra.mxu0 %v2878
      %4015 = vmatprep.subr.bf16.mxu0 %v2869
      %4016 = vmatpush1.bf16.msra.mxu0 %v2868
      %4017 = vmatprep.subr.bf16.mxu0 %v2859
      %4018 = vmatpush1.bf16.msra.mxu0 %v2858
      %4019 = vmatprep.subr.bf16.mxu0 %v2849
      %4020 = vmatpush1.bf16.msra.mxu0 %v2848
      %4021 = vmatprep.subr.bf16.mxu0 %v2839
      %4022 = vmatpush1.bf16.msra.mxu0 %v2838
      %4023 = vmatprep.subr.bf16.mxu0 %v2829
      %4024 = vmatpush1.bf16.msra.mxu0 %v2828
      %4025 = vmatprep.subr.bf16.mxu0 %v2819
      %4026 = vmatpush1.bf16.msra.mxu0 %v2818
      %4027 = vmatprep.subr.bf16.mxu0 %v2969
      %4028 = vmatpush2.bf16.msra.mxu0 %v2968
      %4029 = vmatprep.subr.bf16.mxu0 %v2959
      %4030 = vmatpush2.bf16.msra.mxu0 %v2958
      %4031 = vmatprep.subr.bf16.mxu0 %v2949
      %4032 = vmatpush2.bf16.msra.mxu0 %v2948
      %4033 = vmatprep.subr.bf16.mxu0 %v2939
      %4034 = vmatpush2.bf16.msra.mxu0 %v2938
      %4035 = vmatprep.subr.bf16.mxu0 %v2929
      %4036 = vmatpush2.bf16.msra.mxu0 %v2928
      %4037 = vmatprep.subr.bf16.mxu0 %v2919
      %4038 = vmatpush2.bf16.msra.mxu0 %v2918
      %4039 = vmatprep.subr.bf16.mxu0 %v2909
      %4040 = vmatpush2.bf16.msra.mxu0 %v2908
      %4041 = vmatprep.subr.bf16.mxu0 %v2899
      %4042 = vmatpush2.bf16.msra.mxu0 %v2898
      %4043 = vmatprep.mubr.bf16.mxu0 %v1003
      %4044 = vmatmul.mubr.bf16.gmra.mxu0 %v1002
      %v4045 = vpop.f32.mrf.mxu0
      %v4046 = vadd.f32 %v3993, %v4045
      %v4047 = vpop.f32.mrf.mxu0
      %v4048 = vadd.f32 %v3995, %v4047
      %v4049 = vpop.f32.mrf.mxu0
      %v4050 = vadd.f32 %v3997, %v4049
      %v4051 = vpop.f32.mrf.mxu0
      %v4052 = vadd.f32 %v3999, %v4051
      %4053 = vmatprep.mubr.bf16.mxu0 %v1010
      %4054 = vmatmul.mubr.bf16.gmra.mxu0 %v1009
      %v4055 = vpop.f32.mrf.mxu0
      %v4056 = vadd.f32 %v4003, %v4055
      %v4057 = vpop.f32.mrf.mxu0
      %v4058 = vadd.f32 %v4005, %v4057
      %v4059 = vpop.f32.mrf.mxu0
      %v4060 = vadd.f32 %v4007, %v4059
      %v4061 = vpop.f32.mrf.mxu0
      %v4062 = vadd.f32 %v4009, %v4061
      %4063 = vdwg.mxu0
      %4064 = vmatprep.subr.bf16.mxu0 0
      %4065 = vmatpush1.bf16.msra.mxu0 0
      %4066 = vmatprep.subr.bf16.mxu0 0
      %4067 = vmatpush1.bf16.msra.mxu0 0
      %4068 = vmatprep.subr.bf16.mxu0 0
      %4069 = vmatpush1.bf16.msra.mxu0 0
      %4070 = vmatprep.subr.bf16.mxu0 0
      %4071 = vmatpush1.bf16.msra.mxu0 0
      %4072 = vmatprep.subr.bf16.mxu0 0
      %4073 = vmatpush1.bf16.msra.mxu0 0
      %4074 = vmatprep.subr.bf16.mxu0 0
      %4075 = vmatpush1.bf16.msra.mxu0 0
      %4076 = vmatprep.subr.bf16.mxu0 0
      %4077 = vmatpush1.bf16.msra.mxu0 0
      %4078 = vmatprep.subr.bf16.mxu0 %v2979
      %4079 = vmatpush1.bf16.msra.mxu0 %v2978
      %4080 = vmatprep.subr.bf16.mxu0 0
      %4081 = vmatpush2.bf16.msra.mxu0 0
      %4082 = vmatprep.subr.bf16.mxu0 0
      %4083 = vmatpush2.bf16.msra.mxu0 0
      %4084 = vmatprep.subr.bf16.mxu0 0
      %4085 = vmatpush2.bf16.msra.mxu0 0
      %4086 = vmatprep.subr.bf16.mxu0 0
      %4087 = vmatpush2.bf16.msra.mxu0 0
      %4088 = vmatprep.subr.bf16.mxu0 0
      %4089 = vmatpush2.bf16.msra.mxu0 0
      %4090 = vmatprep.subr.bf16.mxu0 0
      %4091 = vmatpush2.bf16.msra.mxu0 0
      %4092 = vmatprep.subr.bf16.mxu0 0
      %4093 = vmatpush2.bf16.msra.mxu0 0
      %4094 = vmatprep.subr.bf16.mxu0 0
      %4095 = vmatpush2.bf16.msra.mxu0 0
      %4096 = vmatprep.mubr.bf16.mxu0 0
      %4097 = vmatmul.mubr.bf16.gmra.mxu0 %v3476
      %v4098 = vpop.f32.mrf.mxu0
      %v4099 = vadd.f32 %v4046, %v4098
      %v4100 = vpop.f32.mrf.mxu0
      %v4101 = vadd.f32 %v4048, %v4100
      %v4102 = vpop.f32.mrf.mxu0
      %v4103 = vadd.f32 %v4050, %v4102
      %v4104 = vpop.f32.mrf.mxu0
      %v4105 = vadd.f32 %v4052, %v4104
      %4106 = vmatprep.mubr.bf16.mxu0 0
      %4107 = vmatmul.mubr.bf16.gmra.mxu0 %v3479
      %v4108 = vpop.f32.mrf.mxu0
      %v4109 = vadd.f32 %v4056, %v4108
      %v4110 = vpop.f32.mrf.mxu0
      %v4111 = vadd.f32 %v4058, %v4110
      %v4112 = vpop.f32.mrf.mxu0
      %v4113 = vadd.f32 %v4060, %v4112
      %v4114 = vpop.f32.mrf.mxu0
      %v4115 = vadd.f32 %v4062, %v4114
      %4116 = vdwg.mxu0
      %4117 = vmatprep.subr.bf16.mxu0 %v2571
      %4118 = vmatpush1.bf16.msra.mxu0 %v2570
      %4119 = vmatprep.subr.bf16.mxu0 %v2561
      %4120 = vmatpush1.bf16.msra.mxu0 %v2560
      %4121 = vmatprep.subr.bf16.mxu0 %v2551
      %4122 = vmatpush1.bf16.msra.mxu0 %v2550
      %4123 = vmatprep.subr.bf16.mxu0 %v2541
      %4124 = vmatpush1.bf16.msra.mxu0 %v2540
      %4125 = vmatprep.subr.bf16.mxu0 %v2531
      %4126 = vmatpush1.bf16.msra.mxu0 %v2530
      %4127 = vmatprep.subr.bf16.mxu0 %v2521
      %4128 = vmatpush1.bf16.msra.mxu0 %v2520
      %4129 = vmatprep.subr.bf16.mxu0 %v2511
      %4130 = vmatpush1.bf16.msra.mxu0 %v2510
      %4131 = vmatprep.subr.bf16.mxu0 %v2501
      %4132 = vmatpush1.bf16.msra.mxu0 %v2500
      %4133 = vmatprep.subr.bf16.mxu0 %v2651
      %4134 = vmatpush2.bf16.msra.mxu0 %v2650
      %4135 = vmatprep.subr.bf16.mxu0 %v2641
      %4136 = vmatpush2.bf16.msra.mxu0 %v2640
      %4137 = vmatprep.subr.bf16.mxu0 %v2631
      %4138 = vmatpush2.bf16.msra.mxu0 %v2630
      %4139 = vmatprep.subr.bf16.mxu0 %v2621
      %4140 = vmatpush2.bf16.msra.mxu0 %v2620
      %4141 = vmatprep.subr.bf16.mxu0 %v2611
      %4142 = vmatpush2.bf16.msra.mxu0 %v2610
      %4143 = vmatprep.subr.bf16.mxu0 %v2601
      %4144 = vmatpush2.bf16.msra.mxu0 %v2600
      %4145 = vmatprep.subr.bf16.mxu0 %v2591
      %4146 = vmatpush2.bf16.msra.mxu0 %v2590
      %4147 = vmatprep.subr.bf16.mxu0 %v2581
      %4148 = vmatpush2.bf16.msra.mxu0 %v2580
      %4149 = vmatprep.mubr.bf16.mxu0 %v999
      %4150 = vmatmul.mubr.bf16.gmra.mxu0 %v998
      %v4151 = vpop.f32.mrf.mxu0
      %v4152 = vadd.f32 %v931, %v4151
      %v4153 = vpop.f32.mrf.mxu0
      %v4154 = vadd.f32 %v935, %v4153
      %v4155 = vpop.f32.mrf.mxu0
      %v4156 = vadd.f32 %v931, %v4155
      %v4157 = vpop.f32.mrf.mxu0
      %v4158 = vadd.f32 %v935, %v4157
      %4159 = vmatprep.mubr.bf16.mxu0 %v1006
      %4160 = vmatmul.mubr.bf16.gmra.mxu0 %v1005
      %v4161 = vpop.f32.mrf.mxu0
      %v4162 = vadd.f32 %v931, %v4161
      %v4163 = vpop.f32.mrf.mxu0
      %v4164 = vadd.f32 %v935, %v4163
      %v4165 = vpop.f32.mrf.mxu0
      %v4166 = vadd.f32 %v931, %v4165
      %v4167 = vpop.f32.mrf.mxu0
      %v4168 = vadd.f32 %v935, %v4167
      %4169 = vdwg.mxu0
      %4170 = vmatprep.subr.bf16.mxu0 %v2731
      %4171 = vmatpush1.bf16.msra.mxu0 %v2730
      %4172 = vmatprep.subr.bf16.mxu0 %v2721
      %4173 = vmatpush1.bf16.msra.mxu0 %v2720
      %4174 = vmatprep.subr.bf16.mxu0 %v2711
      %4175 = vmatpush1.bf16.msra.mxu0 %v2710
      %4176 = vmatprep.subr.bf16.mxu0 %v2701
      %4177 = vmatpush1.bf16.msra.mxu0 %v2700
      %4178 = vmatprep.subr.bf16.mxu0 %v2691
      %4179 = vmatpush1.bf16.msra.mxu0 %v2690
      %4180 = vmatprep.subr.bf16.mxu0 %v2681
      %4181 = vmatpush1.bf16.msra.mxu0 %v2680
      %4182 = vmatprep.subr.bf16.mxu0 %v2671
      %4183 = vmatpush1.bf16.msra.mxu0 %v2670
      %4184 = vmatprep.subr.bf16.mxu0 %v2661
      %4185 = vmatpush1.bf16.msra.mxu0 %v2660
      %4186 = vmatprep.subr.bf16.mxu0 %v2811
      %4187 = vmatpush2.bf16.msra.mxu0 %v2810
      %4188 = vmatprep.subr.bf16.mxu0 %v2801
      %4189 = vmatpush2.bf16.msra.mxu0 %v2800
      %4190 = vmatprep.subr.bf16.mxu0 %v2791
      %4191 = vmatpush2.bf16.msra.mxu0 %v2790
      %4192 = vmatprep.subr.bf16.mxu0 %v2781
      %4193 = vmatpush2.bf16.msra.mxu0 %v2780
      %4194 = vmatprep.subr.bf16.mxu0 %v2771
      %4195 = vmatpush2.bf16.msra.mxu0 %v2770
      %4196 = vmatprep.subr.bf16.mxu0 %v2761
      %4197 = vmatpush2.bf16.msra.mxu0 %v2760
      %4198 = vmatprep.subr.bf16.mxu0 %v2751
      %4199 = vmatpush2.bf16.msra.mxu0 %v2750
      %4200 = vmatprep.subr.bf16.mxu0 %v2741
      %4201 = vmatpush2.bf16.msra.mxu0 %v2740
      %4202 = vmatprep.mubr.bf16.mxu0 %v1001
      %4203 = vmatmul.mubr.bf16.gmra.mxu0 %v1000
      %v4204 = vpop.f32.mrf.mxu0
      %v4205 = vadd.f32 %v4152, %v4204
      %v4206 = vpop.f32.mrf.mxu0
      %v4207 = vadd.f32 %v4154, %v4206
      %v4208 = vpop.f32.mrf.mxu0
      %v4209 = vadd.f32 %v4156, %v4208
      %v4210 = vpop.f32.mrf.mxu0
      %v4211 = vadd.f32 %v4158, %v4210
      %4212 = vmatprep.mubr.bf16.mxu0 %v1008
      %4213 = vmatmul.mubr.bf16.gmra.mxu0 %v1007
      %v4214 = vpop.f32.mrf.mxu0
      %v4215 = vadd.f32 %v4162, %v4214
      %v4216 = vpop.f32.mrf.mxu0
      %v4217 = vadd.f32 %v4164, %v4216
      %v4218 = vpop.f32.mrf.mxu0
      %v4219 = vadd.f32 %v4166, %v4218
      %v4220 = vpop.f32.mrf.mxu0
      %v4221 = vadd.f32 %v4168, %v4220
      %4222 = vdwg.mxu0
      %4223 = vmatprep.subr.bf16.mxu0 %v2891
      %4224 = vmatpush1.bf16.msra.mxu0 %v2890
      %4225 = vmatprep.subr.bf16.mxu0 %v2881
      %4226 = vmatpush1.bf16.msra.mxu0 %v2880
      %4227 = vmatprep.subr.bf16.mxu0 %v2871
      %4228 = vmatpush1.bf16.msra.mxu0 %v2870
      %4229 = vmatprep.subr.bf16.mxu0 %v2861
      %4230 = vmatpush1.bf16.msra.mxu0 %v2860
      %4231 = vmatprep.subr.bf16.mxu0 %v2851
      %4232 = vmatpush1.bf16.msra.mxu0 %v2850
      %4233 = vmatprep.subr.bf16.mxu0 %v2841
      %4234 = vmatpush1.bf16.msra.mxu0 %v2840
      %4235 = vmatprep.subr.bf16.mxu0 %v2831
      %4236 = vmatpush1.bf16.msra.mxu0 %v2830
      %4237 = vmatprep.subr.bf16.mxu0 %v2821
      %4238 = vmatpush1.bf16.msra.mxu0 %v2820
      %4239 = vmatprep.subr.bf16.mxu0 %v2971
      %4240 = vmatpush2.bf16.msra.mxu0 %v2970
      %4241 = vmatprep.subr.bf16.mxu0 %v2961
      %4242 = vmatpush2.bf16.msra.mxu0 %v2960
      %4243 = vmatprep.subr.bf16.mxu0 %v2951
      %4244 = vmatpush2.bf16.msra.mxu0 %v2950
      %4245 = vmatprep.subr.bf16.mxu0 %v2941
      %4246 = vmatpush2.bf16.msra.mxu0 %v2940
      %4247 = vmatprep.subr.bf16.mxu0 %v2931
      %4248 = vmatpush2.bf16.msra.mxu0 %v2930
      %4249 = vmatprep.subr.bf16.mxu0 %v2921
      %4250 = vmatpush2.bf16.msra.mxu0 %v2920
      %4251 = vmatprep.subr.bf16.mxu0 %v2911
      %4252 = vmatpush2.bf16.msra.mxu0 %v2910
      %4253 = vmatprep.subr.bf16.mxu0 %v2901
      %4254 = vmatpush2.bf16.msra.mxu0 %v2900
      %4255 = vmatprep.mubr.bf16.mxu0 %v1003
      %4256 = vmatmul.mubr.bf16.gmra.mxu0 %v1002
      %v4257 = vpop.f32.mrf.mxu0
      %v4258 = vadd.f32 %v4205, %v4257
      %v4259 = vpop.f32.mrf.mxu0
      %v4260 = vadd.f32 %v4207, %v4259
      %v4261 = vpop.f32.mrf.mxu0
      %v4262 = vadd.f32 %v4209, %v4261
      %v4263 = vpop.f32.mrf.mxu0
      %v4264 = vadd.f32 %v4211, %v4263
      %4265 = vmatprep.mubr.bf16.mxu0 %v1010
      %4266 = vmatmul.mubr.bf16.gmra.mxu0 %v1009
      %v4267 = vpop.f32.mrf.mxu0
      %v4268 = vadd.f32 %v4215, %v4267
      %v4269 = vpop.f32.mrf.mxu0
      %v4270 = vadd.f32 %v4217, %v4269
      %v4271 = vpop.f32.mrf.mxu0
      %v4272 = vadd.f32 %v4219, %v4271
      %v4273 = vpop.f32.mrf.mxu0
      %v4274 = vadd.f32 %v4221, %v4273
      %4275 = vdwg.mxu0
      %4276 = vmatprep.subr.bf16.mxu0 0
      %4277 = vmatpush1.bf16.msra.mxu0 0
      %4278 = vmatprep.subr.bf16.mxu0 0
      %4279 = vmatpush1.bf16.msra.mxu0 0
      %4280 = vmatprep.subr.bf16.mxu0 0
      %4281 = vmatpush1.bf16.msra.mxu0 0
      %4282 = vmatprep.subr.bf16.mxu0 0
      %4283 = vmatpush1.bf16.msra.mxu0 0
      %4284 = vmatprep.subr.bf16.mxu0 0
      %4285 = vmatpush1.bf16.msra.mxu0 0
      %4286 = vmatprep.subr.bf16.mxu0 0
      %4287 = vmatpush1.bf16.msra.mxu0 0
      %4288 = vmatprep.subr.bf16.mxu0 0
      %4289 = vmatpush1.bf16.msra.mxu0 0
      %4290 = vmatprep.subr.bf16.mxu0 %v2981
      %4291 = vmatpush1.bf16.msra.mxu0 %v2980
      %4292 = vmatprep.subr.bf16.mxu0 0
      %4293 = vmatpush2.bf16.msra.mxu0 0
      %4294 = vmatprep.subr.bf16.mxu0 0
      %4295 = vmatpush2.bf16.msra.mxu0 0
      %4296 = vmatprep.subr.bf16.mxu0 0
      %4297 = vmatpush2.bf16.msra.mxu0 0
      %4298 = vmatprep.subr.bf16.mxu0 0
      %4299 = vmatpush2.bf16.msra.mxu0 0
      %4300 = vmatprep.subr.bf16.mxu0 0
      %4301 = vmatpush2.bf16.msra.mxu0 0
      %4302 = vmatprep.subr.bf16.mxu0 0
      %4303 = vmatpush2.bf16.msra.mxu0 0
      %4304 = vmatprep.subr.bf16.mxu0 0
      %4305 = vmatpush2.bf16.msra.mxu0 0
      %4306 = vmatprep.subr.bf16.mxu0 0
      %4307 = vmatpush2.bf16.msra.mxu0 0
      %4308 = vmatprep.mubr.bf16.mxu0 0
      %4309 = vmatmul.mubr.bf16.gmra.mxu0 %v3476
      %v4310 = vpop.f32.mrf.mxu0
      %v4311 = vadd.f32 %v4258, %v4310
      %v4312 = vpop.f32.mrf.mxu0
      %v4313 = vadd.f32 %v4260, %v4312
      %v4314 = vpop.f32.mrf.mxu0
      %v4315 = vadd.f32 %v4262, %v4314
      %v4316 = vpop.f32.mrf.mxu0
      %v4317 = vadd.f32 %v4264, %v4316
      %4318 = vmatprep.mubr.bf16.mxu0 0
      %4319 = vmatmul.mubr.bf16.gmra.mxu0 %v3479
      %v4320 = vpop.f32.mrf.mxu0
      %v4321 = vadd.f32 %v4268, %v4320
      %v4322 = vpop.f32.mrf.mxu0
      %v4323 = vadd.f32 %v4270, %v4322
      %v4324 = vpop.f32.mrf.mxu0
      %v4325 = vadd.f32 %v4272, %v4324
      %v4326 = vpop.f32.mrf.mxu0
      %v4327 = vadd.f32 %v4274, %v4326
      %4328 = vdwg.mxu0
      %4329 = vmatprep.subr.bf16.mxu0 %v2573
      %4330 = vmatpush1.bf16.msra.mxu0 %v2572
      %4331 = vmatprep.subr.bf16.mxu0 %v2563
      %4332 = vmatpush1.bf16.msra.mxu0 %v2562
      %4333 = vmatprep.subr.bf16.mxu0 %v2553
      %4334 = vmatpush1.bf16.msra.mxu0 %v2552
      %4335 = vmatprep.subr.bf16.mxu0 %v2543
      %4336 = vmatpush1.bf16.msra.mxu0 %v2542
      %4337 = vmatprep.subr.bf16.mxu0 %v2533
      %4338 = vmatpush1.bf16.msra.mxu0 %v2532
      %4339 = vmatprep.subr.bf16.mxu0 %v2523
      %4340 = vmatpush1.bf16.msra.mxu0 %v2522
      %4341 = vmatprep.subr.bf16.mxu0 %v2513
      %4342 = vmatpush1.bf16.msra.mxu0 %v2512
      %4343 = vmatprep.subr.bf16.mxu0 %v2503
      %4344 = vmatpush1.bf16.msra.mxu0 %v2502
      %4345 = vmatprep.subr.bf16.mxu0 %v2653
      %4346 = vmatpush2.bf16.msra.mxu0 %v2652
      %4347 = vmatprep.subr.bf16.mxu0 %v2643
      %4348 = vmatpush2.bf16.msra.mxu0 %v2642
      %4349 = vmatprep.subr.bf16.mxu0 %v2633
      %4350 = vmatpush2.bf16.msra.mxu0 %v2632
      %4351 = vmatprep.subr.bf16.mxu0 %v2623
      %4352 = vmatpush2.bf16.msra.mxu0 %v2622
      %4353 = vmatprep.subr.bf16.mxu0 %v2613
      %4354 = vmatpush2.bf16.msra.mxu0 %v2612
      %4355 = vmatprep.subr.bf16.mxu0 %v2603
      %4356 = vmatpush2.bf16.msra.mxu0 %v2602
      %4357 = vmatprep.subr.bf16.mxu0 %v2593
      %4358 = vmatpush2.bf16.msra.mxu0 %v2592
      %4359 = vmatprep.subr.bf16.mxu0 %v2583
      %4360 = vmatpush2.bf16.msra.mxu0 %v2582
      %4361 = vmatprep.mubr.bf16.mxu0 %v999
      %4362 = vmatmul.mubr.bf16.gmra.mxu0 %v998
      %v4363 = vpop.f32.mrf.mxu0
      %v4364 = vadd.f32 %v939, %v4363
      %v4365 = vpop.f32.mrf.mxu0
      %v4366 = vadd.f32 %v943, %v4365
      %v4367 = vpop.f32.mrf.mxu0
      %v4368 = vadd.f32 %v939, %v4367
      %v4369 = vpop.f32.mrf.mxu0
      %v4370 = vadd.f32 %v943, %v4369
      %4371 = vmatprep.mubr.bf16.mxu0 %v1006
      %4372 = vmatmul.mubr.bf16.gmra.mxu0 %v1005
      %v4373 = vpop.f32.mrf.mxu0
      %v4374 = vadd.f32 %v939, %v4373
      %v4375 = vpop.f32.mrf.mxu0
      %v4376 = vadd.f32 %v943, %v4375
      %v4377 = vpop.f32.mrf.mxu0
      %v4378 = vadd.f32 %v939, %v4377
      %v4379 = vpop.f32.mrf.mxu0
      %v4380 = vadd.f32 %v943, %v4379
      %4381 = vdwg.mxu0
      %4382 = vmatprep.subr.bf16.mxu0 %v2733
      %4383 = vmatpush1.bf16.msra.mxu0 %v2732
      %4384 = vmatprep.subr.bf16.mxu0 %v2723
      %4385 = vmatpush1.bf16.msra.mxu0 %v2722
      %4386 = vmatprep.subr.bf16.mxu0 %v2713
      %4387 = vmatpush1.bf16.msra.mxu0 %v2712
      %4388 = vmatprep.subr.bf16.mxu0 %v2703
      %4389 = vmatpush1.bf16.msra.mxu0 %v2702
      %4390 = vmatprep.subr.bf16.mxu0 %v2693
      %4391 = vmatpush1.bf16.msra.mxu0 %v2692
      %4392 = vmatprep.subr.bf16.mxu0 %v2683
      %4393 = vmatpush1.bf16.msra.mxu0 %v2682
      %4394 = vmatprep.subr.bf16.mxu0 %v2673
      %4395 = vmatpush1.bf16.msra.mxu0 %v2672
      %4396 = vmatprep.subr.bf16.mxu0 %v2663
      %4397 = vmatpush1.bf16.msra.mxu0 %v2662
      %4398 = vmatprep.subr.bf16.mxu0 %v2813
      %4399 = vmatpush2.bf16.msra.mxu0 %v2812
      %4400 = vmatprep.subr.bf16.mxu0 %v2803
      %4401 = vmatpush2.bf16.msra.mxu0 %v2802
      %4402 = vmatprep.subr.bf16.mxu0 %v2793
      %4403 = vmatpush2.bf16.msra.mxu0 %v2792
      %4404 = vmatprep.subr.bf16.mxu0 %v2783
      %4405 = vmatpush2.bf16.msra.mxu0 %v2782
      %4406 = vmatprep.subr.bf16.mxu0 %v2773
      %4407 = vmatpush2.bf16.msra.mxu0 %v2772
      %4408 = vmatprep.subr.bf16.mxu0 %v2763
      %4409 = vmatpush2.bf16.msra.mxu0 %v2762
      %4410 = vmatprep.subr.bf16.mxu0 %v2753
      %4411 = vmatpush2.bf16.msra.mxu0 %v2752
      %4412 = vmatprep.subr.bf16.mxu0 %v2743
      %4413 = vmatpush2.bf16.msra.mxu0 %v2742
      %4414 = vmatprep.mubr.bf16.mxu0 %v1001
      %4415 = vmatmul.mubr.bf16.gmra.mxu0 %v1000
      %v4416 = vpop.f32.mrf.mxu0
      %v4417 = vadd.f32 %v4364, %v4416
      %v4418 = vpop.f32.mrf.mxu0
      %v4419 = vadd.f32 %v4366, %v4418
      %v4420 = vpop.f32.mrf.mxu0
      %v4421 = vadd.f32 %v4368, %v4420
      %v4422 = vpop.f32.mrf.mxu0
      %v4423 = vadd.f32 %v4370, %v4422
      %4424 = vmatprep.mubr.bf16.mxu0 %v1008
      %4425 = vmatmul.mubr.bf16.gmra.mxu0 %v1007
      %v4426 = vpop.f32.mrf.mxu0
      %v4427 = vadd.f32 %v4374, %v4426
      %v4428 = vpop.f32.mrf.mxu0
      %v4429 = vadd.f32 %v4376, %v4428
      %v4430 = vpop.f32.mrf.mxu0
      %v4431 = vadd.f32 %v4378, %v4430
      %v4432 = vpop.f32.mrf.mxu0
      %v4433 = vadd.f32 %v4380, %v4432
      %4434 = vdwg.mxu0
      %4435 = vmatprep.subr.bf16.mxu0 %v2893
      %4436 = vmatpush1.bf16.msra.mxu0 %v2892
      %4437 = vmatprep.subr.bf16.mxu0 %v2883
      %4438 = vmatpush1.bf16.msra.mxu0 %v2882
      %4439 = vmatprep.subr.bf16.mxu0 %v2873
      %4440 = vmatpush1.bf16.msra.mxu0 %v2872
      %4441 = vmatprep.subr.bf16.mxu0 %v2863
      %4442 = vmatpush1.bf16.msra.mxu0 %v2862
      %4443 = vmatprep.subr.bf16.mxu0 %v2853
      %4444 = vmatpush1.bf16.msra.mxu0 %v2852
      %4445 = vmatprep.subr.bf16.mxu0 %v2843
      %4446 = vmatpush1.bf16.msra.mxu0 %v2842
      %4447 = vmatprep.subr.bf16.mxu0 %v2833
      %4448 = vmatpush1.bf16.msra.mxu0 %v2832
      %4449 = vmatprep.subr.bf16.mxu0 %v2823
      %4450 = vmatpush1.bf16.msra.mxu0 %v2822
      %4451 = vmatprep.subr.bf16.mxu0 %v2973
      %4452 = vmatpush2.bf16.msra.mxu0 %v2972
      %4453 = vmatprep.subr.bf16.mxu0 %v2963
      %4454 = vmatpush2.bf16.msra.mxu0 %v2962
      %4455 = vmatprep.subr.bf16.mxu0 %v2953
      %4456 = vmatpush2.bf16.msra.mxu0 %v2952
      %4457 = vmatprep.subr.bf16.mxu0 %v2943
      %4458 = vmatpush2.bf16.msra.mxu0 %v2942
      %4459 = vmatprep.subr.bf16.mxu0 %v2933
      %4460 = vmatpush2.bf16.msra.mxu0 %v2932
      %4461 = vmatprep.subr.bf16.mxu0 %v2923
      %4462 = vmatpush2.bf16.msra.mxu0 %v2922
      %4463 = vmatprep.subr.bf16.mxu0 %v2913
      %4464 = vmatpush2.bf16.msra.mxu0 %v2912
      %4465 = vmatprep.subr.bf16.mxu0 %v2903
      %4466 = vmatpush2.bf16.msra.mxu0 %v2902
      %4467 = vmatprep.mubr.bf16.mxu0 %v1003
      %4468 = vmatmul.mubr.bf16.gmra.mxu0 %v1002
      %v4469 = vpop.f32.mrf.mxu0
      %v4470 = vadd.f32 %v4417, %v4469
      %v4471 = vpop.f32.mrf.mxu0
      %v4472 = vadd.f32 %v4419, %v4471
      %v4473 = vpop.f32.mrf.mxu0
      %v4474 = vadd.f32 %v4421, %v4473
      %v4475 = vpop.f32.mrf.mxu0
      %v4476 = vadd.f32 %v4423, %v4475
      %4477 = vmatprep.mubr.bf16.mxu0 %v1010
      %4478 = vmatmul.mubr.bf16.gmra.mxu0 %v1009
      %v4479 = vpop.f32.mrf.mxu0
      %v4480 = vadd.f32 %v4427, %v4479
      %v4481 = vpop.f32.mrf.mxu0
      %v4482 = vadd.f32 %v4429, %v4481
      %v4483 = vpop.f32.mrf.mxu0
      %v4484 = vadd.f32 %v4431, %v4483
      %v4485 = vpop.f32.mrf.mxu0
      %v4486 = vadd.f32 %v4433, %v4485
      %4487 = vdwg.mxu0
      %4488 = vmatprep.subr.bf16.mxu0 0
      %4489 = vmatpush1.bf16.msra.mxu0 0
      %4490 = vmatprep.subr.bf16.mxu0 0
      %4491 = vmatpush1.bf16.msra.mxu0 0
      %4492 = vmatprep.subr.bf16.mxu0 0
      %4493 = vmatpush1.bf16.msra.mxu0 0
      %4494 = vmatprep.subr.bf16.mxu0 0
      %4495 = vmatpush1.bf16.msra.mxu0 0
      %4496 = vmatprep.subr.bf16.mxu0 0
      %4497 = vmatpush1.bf16.msra.mxu0 0
      %4498 = vmatprep.subr.bf16.mxu0 0
      %4499 = vmatpush1.bf16.msra.mxu0 0
      %4500 = vmatprep.subr.bf16.mxu0 0
      %4501 = vmatpush1.bf16.msra.mxu0 0
      %4502 = vmatprep.subr.bf16.mxu0 %v2983
      %4503 = vmatpush1.bf16.msra.mxu0 %v2982
      %4504 = vmatprep.subr.bf16.mxu0 0
      %4505 = vmatpush2.bf16.msra.mxu0 0
      %4506 = vmatprep.subr.bf16.mxu0 0
      %4507 = vmatpush2.bf16.msra.mxu0 0
      %4508 = vmatprep.subr.bf16.mxu0 0
      %4509 = vmatpush2.bf16.msra.mxu0 0
      %4510 = vmatprep.subr.bf16.mxu0 0
      %4511 = vmatpush2.bf16.msra.mxu0 0
      %4512 = vmatprep.subr.bf16.mxu0 0
      %4513 = vmatpush2.bf16.msra.mxu0 0
      %4514 = vmatprep.subr.bf16.mxu0 0
      %4515 = vmatpush2.bf16.msra.mxu0 0
      %4516 = vmatprep.subr.bf16.mxu0 0
      %4517 = vmatpush2.bf16.msra.mxu0 0
      %4518 = vmatprep.subr.bf16.mxu0 0
      %4519 = vmatpush2.bf16.msra.mxu0 0
      %4520 = vmatprep.mubr.bf16.mxu0 0
      %4521 = vmatmul.mubr.bf16.gmra.mxu0 %v3476
      %v4522 = vpop.f32.mrf.mxu0
      %v4523 = vadd.f32 %v4470, %v4522
      %v4524 = vpop.f32.mrf.mxu0
      %v4525 = vadd.f32 %v4472, %v4524
      %v4526 = vpop.f32.mrf.mxu0
      %v4527 = vadd.f32 %v4474, %v4526
      %v4528 = vpop.f32.mrf.mxu0
      %v4529 = vadd.f32 %v4476, %v4528
      %4530 = vmatprep.mubr.bf16.mxu0 0
      %4531 = vmatmul.mubr.bf16.gmra.mxu0 %v3479
      %v4532 = vpop.f32.mrf.mxu0
      %v4533 = vadd.f32 %v4480, %v4532
      %v4534 = vpop.f32.mrf.mxu0
      %v4535 = vadd.f32 %v4482, %v4534
      %v4536 = vpop.f32.mrf.mxu0
      %v4537 = vadd.f32 %v4484, %v4536
      %v4538 = vpop.f32.mrf.mxu0
      %v4539 = vadd.f32 %v4486, %v4538
      %4540 = vdwg.mxu0
      %v4541 = vmax.f32 %v3675, 0.0
      %v4542 = vmax.f32 %v3677, 0.0
      %v4543 = vmax.f32 %v3887, 0.0
      %v4544 = vmax.f32 %v3889, 0.0
      %v4545 = vmax.f32 %v4099, 0.0
      %v4546 = vmax.f32 %v4101, 0.0
      %v4547 = vmax.f32 %v4311, 0.0
      %v4548 = vmax.f32 %v4313, 0.0
      %v4549 = vmax.f32 %v4523, 0.0
      %v4550 = vmax.f32 %v4525, 0.0
      %v4551 = vmax.f32 %v3679, 0.0
      %v4552 = vmax.f32 %v3681, 0.0
      %v4553 = vmax.f32 %v3891, 0.0
      %v4554 = vmax.f32 %v3893, 0.0
      %v4555 = vmax.f32 %v4103, 0.0
      %v4556 = vmax.f32 %v4105, 0.0
      %v4557 = vmax.f32 %v4315, 0.0
      %v4558 = vmax.f32 %v4317, 0.0
      %v4559 = vmax.f32 %v4527, 0.0
      %v4560 = vmax.f32 %v4529, 0.0
      %v4561 = vmax.f32 %v3685, 0.0
      %v4562 = vmax.f32 %v3687, 0.0
      %v4563 = vmax.f32 %v3897, 0.0
      %v4564 = vmax.f32 %v3899, 0.0
      %v4565 = vmax.f32 %v4109, 0.0
      %v4566 = vmax.f32 %v4111, 0.0
      %v4567 = vmax.f32 %v4321, 0.0
      %v4568 = vmax.f32 %v4323, 0.0
      %v4569 = vmax.f32 %v4533, 0.0
      %v4570 = vmax.f32 %v4535, 0.0
      %v4571 = vmax.f32 %v3689, 0.0
      %v4572 = vmax.f32 %v3691, 0.0
      %v4573 = vmax.f32 %v3901, 0.0
      %v4574 = vmax.f32 %v3903, 0.0
      %v4575 = vmax.f32 %v4113, 0.0
      %v4576 = vmax.f32 %v4115, 0.0
      %v4577 = vmax.f32 %v4325, 0.0
      %v4578 = vmax.f32 %v4327, 0.0
      %v4579 = vmax.f32 %v4537, 0.0
      %v4580 = vmax.f32 %v4539, 0.0
      %v4581 = vpack.c.bf16 %v4551, %v4541
      %v4582 = vpack.c.bf16 %v4552, %v4542
      %v4583 = vpack.c.bf16 %v4553, %v4543
      %v4584 = vpack.c.bf16 %v4554, %v4544
      %v4585 = vpack.c.bf16 %v4555, %v4545
      %v4586 = vpack.c.bf16 %v4556, %v4546
      %v4587 = vpack.c.bf16 %v4557, %v4547
      %v4588 = vpack.c.bf16 %v4558, %v4548
      %v4589 = vpack.c.bf16 %v4559, %v4549
      %v4590 = vpack.c.bf16 %v4560, %v4550
      %v4591 = vpack.c.bf16 %v4571, %v4561
      %v4592 = vpack.c.bf16 %v4572, %v4562
      %v4593 = vpack.c.bf16 %v4573, %v4563
      %v4594 = vpack.c.bf16 %v4574, %v4564
      %v4595 = vpack.c.bf16 %v4575, %v4565
      %v4596 = vpack.c.bf16 %v4576, %v4566
      %v4597 = vpack.c.bf16 %v4577, %v4567
      %v4598 = vpack.c.bf16 %v4578, %v4568
      %v4599 = vpack.c.bf16 %v4579, %v4569
      %v4600 = vpack.c.bf16 %v4580, %v4570
      %v4601 = vld [vmem:[%s3] sm:$0xff]
      %v4602 = vld [vmem:[%s3 + $0x8] sm:$0xff]
      %v4603 = vld [vmem:[%s3 + $0x10] sm:$0xff]
      %v4604 = vld [vmem:[%s3 + $0x18] sm:$0xff]
      %v4605 = vld [vmem:[%s3 + $0x20] sm:$0xff]
      %v4606 = vld [vmem:[%s3 + $0x28] sm:$0xff]
      %v4607 = vld [vmem:[%s3 + $0x30] sm:$0xff]
      %v4608 = vld [vmem:[%s3 + $0x38] sm:$0xff]
      %v4609 = vld [vmem:[%s3 + $0x40] sm:$0xff]
      %v4610 = vld [vmem:[%s3 + $0x48] sm:$0xff]
      %v4611 = vld [vmem:[%s3 + $0x50] sm:$0xff]
      %v4612 = vld [vmem:[%s3 + $0x58] sm:$0xff]
      %v4613 = vld [vmem:[%s3 + $0x60] sm:$0xff]
      %v4614 = vld [vmem:[%s3 + $0x68] sm:$0xff]
      %v4615 = vld [vmem:[%s3 + $0x70] sm:$0xff]
      %v4616 = vld [vmem:[%s3 + $0x78] sm:$0xff]
      %v4617 = vld [vmem:[%s3 + $0x80] sm:$0xff]
      %v4618 = vld [vmem:[%s3 + $0x88] sm:$0xff]
      %v4619 = vld [vmem:[%s3 + $0x90] sm:$0xff]
      %v4620 = vld [vmem:[%s3 + $0x98] sm:$0xff]
      %v4621 = vld [vmem:[%s3 + $0xa0] sm:$0xff]
      %v4622 = vld [vmem:[%s3 + $0xa8] sm:$0xff]
      %v4623 = vld [vmem:[%s3 + $0xb0] sm:$0xff]
      %v4624 = vld [vmem:[%s3 + $0xb8] sm:$0xff]
      %v4625 = vld [vmem:[%s3 + $0xc0] sm:$0xff]
      %v4626 = vld [vmem:[%s3 + $0xc8] sm:$0xff]
      %v4627 = vld [vmem:[%s3 + $0xd0] sm:$0xff]
      %v4628 = vld [vmem:[%s3 + $0xd8] sm:$0xff]
      %v4629 = vld [vmem:[%s3 + $0xe0] sm:$0xff]
      %v4630 = vld [vmem:[%s3 + $0xe8] sm:$0xff]
      %v4631 = vld [vmem:[%s3 + $0xf0] sm:$0xff]
      %v4632 = vld [vmem:[%s3 + $0xf8] sm:$0xff]
      %v4633 = vld [vmem:[%s3 + $0x100] sm:$0xff]
      %v4634 = vld [vmem:[%s3 + $0x108] sm:$0xff]
      %v4635 = vld [vmem:[%s3 + $0x110] sm:$0xff]
      %v4636 = vld [vmem:[%s3 + $0x118] sm:$0xff]
      %v4637 = vld [vmem:[%s3 + $0x120] sm:$0xff]
      %v4638 = vld [vmem:[%s3 + $0x128] sm:$0xff]
      %v4639 = vld [vmem:[%s3 + $0x130] sm:$0xff]
      %v4640 = vld [vmem:[%s3 + $0x138] sm:$0xff]
      %v4641 = vld [vmem:[%s3 + $0x140] sm:$0xff]
      %v4642 = vld [vmem:[%s3 + $0x148] sm:$0xff]
      %v4643 = vld [vmem:[%s3 + $0x150] sm:$0xff]
      %v4644 = vld [vmem:[%s3 + $0x158] sm:$0xff]
      %v4645 = vld [vmem:[%s3 + $0x160] sm:$0xff]
      %v4646 = vld [vmem:[%s3 + $0x168] sm:$0xff]
      %v4647 = vld [vmem:[%s3 + $0x170] sm:$0xff]
      %v4648 = vld [vmem:[%s3 + $0x178] sm:$0xff]
      %v4649 = vld [vmem:[%s3 + $0x180] sm:$0xff]
      %v4650 = vld [vmem:[%s3 + $0x188] sm:$0xff]
      %v4651 = vld [vmem:[%s3 + $0x190] sm:$0xff]
      %v4652 = vld [vmem:[%s3 + $0x198] sm:$0xff]
      %v4653 = vld [vmem:[%s3 + $0x1a0] sm:$0xff]
      %v4654 = vld [vmem:[%s3 + $0x1a8] sm:$0xff]
      %v4655 = vld [vmem:[%s3 + $0x1b0] sm:$0xff]
      %v4656 = vld [vmem:[%s3 + $0x1b8] sm:$0xff]
      %v4657 = vld [vmem:[%s3 + $0x1c0] sm:$0xff]
      %v4658 = vld [vmem:[%s3 + $0x1c8] sm:$0xff]
      %v4659 = vld [vmem:[%s3 + $0x1d0] sm:$0xff]
      %v4660 = vld [vmem:[%s3 + $0x1d8] sm:$0xff]
      %v4661 = vld [vmem:[%s3 + $0x1e0] sm:$0xff]
      %v4662 = vld [vmem:[%s3 + $0x1e8] sm:$0xff]
      %v4663 = vld [vmem:[%s3 + $0x1f0] sm:$0xff]
      %v4664 = vld [vmem:[%s3 + $0x1f8] sm:$0xff]
      %v4665 = vld [vmem:[%s3 + $0x200] sm:$0xff]
      %v4666 = vld [vmem:[%s3 + $0x208] sm:$0xff]
      %v4667 = vld [vmem:[%s3 + $0x210] sm:$0xff]
      %v4668 = vld [vmem:[%s3 + $0x218] sm:$0xff]
      %v4669 = vld [vmem:[%s3 + $0x220] sm:$0xff]
      %v4670 = vld [vmem:[%s3 + $0x228] sm:$0xff]
      %v4671 = vld [vmem:[%s3 + $0x230] sm:$0xff]
      %v4672 = vld [vmem:[%s3 + $0x238] sm:$0xff]
      %v4673 = vld [vmem:[%s3 + $0x240] sm:$0xff]
      %v4674 = vld [vmem:[%s3 + $0x248] sm:$0xff]
      %v4675 = vld [vmem:[%s3 + $0x250] sm:$0xff]
      %v4676 = vld [vmem:[%s3 + $0x258] sm:$0xff]
      %v4677 = vld [vmem:[%s3 + $0x260] sm:$0xff]
      %v4678 = vld [vmem:[%s3 + $0x268] sm:$0xff]
      %v4679 = vld [vmem:[%s3 + $0x270] sm:$0xff]
      %v4680 = vld [vmem:[%s3 + $0x278] sm:$0xff]
      %v4681 = vld [vmem:[%s3 + $0x280] sm:$0xff]
      %v4682 = vld [vmem:[%s3 + $0x288] sm:$0xff]
      %v4683 = vld [vmem:[%s3 + $0x290] sm:$0xff]
      %v4684 = vld [vmem:[%s3 + $0x298] sm:$0xff]
      %v4685 = vld [vmem:[%s3 + $0x2a0] sm:$0xff]
      %v4686 = vld [vmem:[%s3 + $0x2a8] sm:$0xff]
      %v4687 = vld [vmem:[%s3 + $0x2b0] sm:$0xff]
      %v4688 = vld [vmem:[%s3 + $0x2b8] sm:$0xff]
      %v4689 = vld [vmem:[%s3 + $0x2c0] sm:$0xff]
      %v4690 = vld [vmem:[%s3 + $0x2c8] sm:$0xff]
      %v4691 = vld [vmem:[%s3 + $0x2d0] sm:$0xff]
      %v4692 = vld [vmem:[%s3 + $0x2d8] sm:$0xff]
      %v4693 = vld [vmem:[%s3 + $0x2e0] sm:$0xff]
      %v4694 = vld [vmem:[%s3 + $0x2e8] sm:$0xff]
      %v4695 = vld [vmem:[%s3 + $0x2f0] sm:$0xff]
      %v4696 = vld [vmem:[%s3 + $0x2f8] sm:$0xff]
      %v4697 = vld [vmem:[%s3 + $0x300] sm:$0xff]
      %v4698 = vld [vmem:[%s3 + $0x308] sm:$0xff]
      %v4699 = vld [vmem:[%s3 + $0x310] sm:$0xff]
      %v4700 = vld [vmem:[%s3 + $0x318] sm:$0xff]
      %v4701 = vld [vmem:[%s3 + $0x320] sm:$0xff]
      %v4702 = vld [vmem:[%s3 + $0x328] sm:$0xff]
      %v4703 = vld [vmem:[%s3 + $0x330] sm:$0xff]
      %v4704 = vld [vmem:[%s3 + $0x338] sm:$0xff]
      %v4705 = vld [vmem:[%s3 + $0x340] sm:$0xff]
      %v4706 = vld [vmem:[%s3 + $0x348] sm:$0xff]
      %v4707 = vld [vmem:[%s3 + $0x350] sm:$0xff]
      %v4708 = vld [vmem:[%s3 + $0x358] sm:$0xff]
      %v4709 = vld [vmem:[%s3 + $0x360] sm:$0xff]
      %v4710 = vld [vmem:[%s3 + $0x368] sm:$0xff]
      %v4711 = vld [vmem:[%s3 + $0x370] sm:$0xff]
      %v4712 = vld [vmem:[%s3 + $0x378] sm:$0xff]
      %v4713 = vld [vmem:[%s3 + $0x380] sm:$0xff]
      %v4714 = vld [vmem:[%s3 + $0x388] sm:$0xff]
      %v4715 = vld [vmem:[%s3 + $0x390] sm:$0xff]
      %v4716 = vld [vmem:[%s3 + $0x398] sm:$0xff]
      %v4717 = vld [vmem:[%s3 + $0x3a0] sm:$0xff]
      %v4718 = vld [vmem:[%s3 + $0x3a8] sm:$0xff]
      %v4719 = vld [vmem:[%s3 + $0x3b0] sm:$0xff]
      %v4720 = vld [vmem:[%s3 + $0x3b8] sm:$0xff]
      %v4721 = vld [vmem:[%s3 + $0x3c0] sm:$0xff]
      %v4722 = vld [vmem:[%s3 + $0x3c8] sm:$0xff]
      %v4723 = vld [vmem:[%s3 + $0x3d0] sm:$0xff]
      %v4724 = vld [vmem:[%s3 + $0x3d8] sm:$0xff]
      %v4725 = vld [vmem:[%s3 + $0x3e0] sm:$0xff]
      %v4726 = vld [vmem:[%s3 + $0x3e8] sm:$0xff]
      %v4727 = vld [vmem:[%s3 + $0x3f0] sm:$0xff]
      %v4728 = vld [vmem:[%s3 + $0x3f8] sm:$0xff]
      %v4729 = vld [vmem:[%s3 + $0x400] sm:$0xff]
      %v4730 = vld [vmem:[%s3 + $0x408] sm:$0xff]
      %v4731 = vld [vmem:[%s3 + $0x410] sm:$0xff]
      %v4732 = vld [vmem:[%s3 + $0x418] sm:$0xff]
      %v4733 = vld [vmem:[%s3 + $0x420] sm:$0xff]
      %v4734 = vld [vmem:[%s3 + $0x428] sm:$0xff]
      %v4735 = vld [vmem:[%s3 + $0x430] sm:$0xff]
      %v4736 = vld [vmem:[%s3 + $0x438] sm:$0xff]
      %v4737 = vld [vmem:[%s3 + $0x440] sm:$0xff]
      %v4738 = vld [vmem:[%s3 + $0x448] sm:$0xff]
      %v4739 = vld [vmem:[%s3 + $0x450] sm:$0xff]
      %v4740 = vld [vmem:[%s3 + $0x458] sm:$0xff]
      %v4741 = vld [vmem:[%s3 + $0x460] sm:$0xff]
      %v4742 = vld [vmem:[%s3 + $0x468] sm:$0xff]
      %v4743 = vld [vmem:[%s3 + $0x470] sm:$0xff]
      %v4744 = vld [vmem:[%s3 + $0x478] sm:$0xff]
      %v4745 = vld [vmem:[%s3 + $0x480] sm:$0xff]
      %v4746 = vld [vmem:[%s3 + $0x488] sm:$0xff]
      %v4747 = vld [vmem:[%s3 + $0x490] sm:$0xff]
      %v4748 = vld [vmem:[%s3 + $0x498] sm:$0xff]
      %v4749 = vld [vmem:[%s3 + $0x4a0] sm:$0xff]
      %v4750 = vld [vmem:[%s3 + $0x4a8] sm:$0xff]
      %v4751 = vld [vmem:[%s3 + $0x4b0] sm:$0xff]
      %v4752 = vld [vmem:[%s3 + $0x4b8] sm:$0xff]
      %v4753 = vld [vmem:[%s3 + $0x4c0] sm:$0xff]
      %v4754 = vld [vmem:[%s3 + $0x4c8] sm:$0xff]
      %v4755 = vld [vmem:[%s3 + $0x4d0] sm:$0xff]
      %v4756 = vld [vmem:[%s3 + $0x4d8] sm:$0xff]
      %v4757 = vld [vmem:[%s3 + $0x4e0] sm:$0xff]
      %v4758 = vld [vmem:[%s3 + $0x4e8] sm:$0xff]
      %v4759 = vld [vmem:[%s3 + $0x4f0] sm:$0xff]
      %v4760 = vld [vmem:[%s3 + $0x4f8] sm:$0xff]
      %v4761 = vld [vmem:[%s3 + $0x500] sm:$0xff]
      %v4762 = vld [vmem:[%s3 + $0x508] sm:$0xff]
      %v4763 = vld [vmem:[%s3 + $0x510] sm:$0xff]
      %v4764 = vld [vmem:[%s3 + $0x518] sm:$0xff]
      %v4765 = vld [vmem:[%s3 + $0x520] sm:$0xff]
      %v4766 = vld [vmem:[%s3 + $0x528] sm:$0xff]
      %v4767 = vld [vmem:[%s3 + $0x530] sm:$0xff]
      %v4768 = vld [vmem:[%s3 + $0x538] sm:$0xff]
      %v4769 = vld [vmem:[%s3 + $0x540] sm:$0xff]
      %v4770 = vld [vmem:[%s3 + $0x548] sm:$0xff]
      %v4771 = vld [vmem:[%s3 + $0x550] sm:$0xff]
      %v4772 = vld [vmem:[%s3 + $0x558] sm:$0xff]
      %v4773 = vld [vmem:[%s3 + $0x560] sm:$0xff]
      %v4774 = vld [vmem:[%s3 + $0x568] sm:$0xff]
      %v4775 = vld [vmem:[%s3 + $0x570] sm:$0xff]
      %v4776 = vld [vmem:[%s3 + $0x578] sm:$0xff]
      %v4777 = vld [vmem:[%s3 + $0x580] sm:$0xff]
      %v4778 = vld [vmem:[%s3 + $0x588] sm:$0xff]
      %v4779 = vld [vmem:[%s3 + $0x590] sm:$0xff]
      %v4780 = vld [vmem:[%s3 + $0x598] sm:$0xff]
      %v4781 = vld [vmem:[%s3 + $0x5a0] sm:$0xff]
      %v4782 = vld [vmem:[%s3 + $0x5a8] sm:$0xff]
      %v4783 = vld [vmem:[%s3 + $0x5b0] sm:$0xff]
      %v4784 = vld [vmem:[%s3 + $0x5b8] sm:$0xff]
      %v4785 = vld [vmem:[%s3 + $0x5c0] sm:$0xff]
      %v4786 = vld [vmem:[%s3 + $0x5c8] sm:$0xff]
      %v4787 = vld [vmem:[%s3 + $0x5d0] sm:$0xff]
      %v4788 = vld [vmem:[%s3 + $0x5d8] sm:$0xff]
      %v4789 = vld [vmem:[%s3 + $0x5e0] sm:$0xff]
      %v4790 = vld [vmem:[%s3 + $0x5e8] sm:$0xff]
      %v4791 = vld [vmem:[%s3 + $0x5f0] sm:$0xff]
      %v4792 = vld [vmem:[%s3 + $0x5f8] sm:$0xff]
      %v4793 = vld [vmem:[%s3 + $0x600] sm:$0xff]
      %v4794 = vld [vmem:[%s3 + $0x608] sm:$0xff]
      %v4795 = vld [vmem:[%s3 + $0x610] sm:$0xff]
      %v4796 = vld [vmem:[%s3 + $0x618] sm:$0xff]
      %v4797 = vld [vmem:[%s3 + $0x620] sm:$0xff]
      %v4798 = vld [vmem:[%s3 + $0x628] sm:$0xff]
      %v4799 = vld [vmem:[%s3 + $0x630] sm:$0xff]
      %v4800 = vld [vmem:[%s3 + $0x638] sm:$0xff]
      %v4801 = vld [vmem:[%s3 + $0x640] sm:$0xff]
      %v4802 = vld [vmem:[%s3 + $0x648] sm:$0xff]
      %v4803 = vld [vmem:[%s3 + $0x650] sm:$0xff]
      %v4804 = vld [vmem:[%s3 + $0x658] sm:$0xff]
      %v4805 = vld [vmem:[%s3 + $0x660] sm:$0xff]
      %v4806 = vld [vmem:[%s3 + $0x668] sm:$0xff]
      %v4807 = vld [vmem:[%s3 + $0x670] sm:$0xff]
      %v4808 = vld [vmem:[%s3 + $0x678] sm:$0xff]
      %v4809 = vld [vmem:[%s3 + $0x680] sm:$0xff]
      %v4810 = vld [vmem:[%s3 + $0x688] sm:$0xff]
      %v4811 = vld [vmem:[%s3 + $0x690] sm:$0xff]
      %v4812 = vld [vmem:[%s3 + $0x698] sm:$0xff]
      %v4813 = vld [vmem:[%s3 + $0x6a0] sm:$0xff]
      %v4814 = vld [vmem:[%s3 + $0x6a8] sm:$0xff]
      %v4815 = vld [vmem:[%s3 + $0x6b0] sm:$0xff]
      %v4816 = vld [vmem:[%s3 + $0x6b8] sm:$0xff]
      %v4817 = vld [vmem:[%s3 + $0x6c0] sm:$0xff]
      %v4818 = vld [vmem:[%s3 + $0x6c8] sm:$0xff]
      %v4819 = vld [vmem:[%s3 + $0x6d0] sm:$0xff]
      %v4820 = vld [vmem:[%s3 + $0x6d8] sm:$0xff]
      %v4821 = vld [vmem:[%s3 + $0x6e0] sm:$0xff]
      %v4822 = vld [vmem:[%s3 + $0x6e8] sm:$0xff]
      %v4823 = vld [vmem:[%s3 + $0x6f0] sm:$0xff]
      %v4824 = vld [vmem:[%s3 + $0x6f8] sm:$0xff]
      %v4825 = vld [vmem:[%s3 + $0x700] sm:$0xff]
      %v4826 = vld [vmem:[%s3 + $0x708] sm:$0xff]
      %v4827 = vld [vmem:[%s3 + $0x710] sm:$0xff]
      %v4828 = vld [vmem:[%s3 + $0x718] sm:$0xff]
      %v4829 = vld [vmem:[%s3 + $0x720] sm:$0xff]
      %v4830 = vld [vmem:[%s3 + $0x728] sm:$0xff]
      %v4831 = vld [vmem:[%s3 + $0x730] sm:$0xff]
      %v4832 = vld [vmem:[%s3 + $0x738] sm:$0xff]
      %v4833 = vld [vmem:[%s3 + $0x740] sm:$0xff]
      %v4834 = vld [vmem:[%s3 + $0x748] sm:$0xff]
      %v4835 = vld [vmem:[%s3 + $0x750] sm:$0xff]
      %v4836 = vld [vmem:[%s3 + $0x758] sm:$0xff]
      %v4837 = vld [vmem:[%s3 + $0x760] sm:$0xff]
      %v4838 = vld [vmem:[%s3 + $0x768] sm:$0xff]
      %v4839 = vld [vmem:[%s3 + $0x770] sm:$0xff]
      %v4840 = vld [vmem:[%s3 + $0x778] sm:$0xff]
      %v4841 = vld [vmem:[%s3 + $0x780] sm:$0xff]
      %v4842 = vld [vmem:[%s3 + $0x788] sm:$0xff]
      %v4843 = vld [vmem:[%s3 + $0x790] sm:$0xff]
      %v4844 = vld [vmem:[%s3 + $0x798] sm:$0xff]
      %v4845 = vld [vmem:[%s3 + $0x7a0] sm:$0xff]
      %v4846 = vld [vmem:[%s3 + $0x7a8] sm:$0xff]
      %v4847 = vld [vmem:[%s3 + $0x7b0] sm:$0xff]
      %v4848 = vld [vmem:[%s3 + $0x7b8] sm:$0xff]
      %v4849 = vld [vmem:[%s3 + $0x7c0] sm:$0xff]
      %v4850 = vld [vmem:[%s3 + $0x7c8] sm:$0xff]
      %v4851 = vld [vmem:[%s3 + $0x7d0] sm:$0xff]
      %v4852 = vld [vmem:[%s3 + $0x7d8] sm:$0xff]
      %v4853 = vld [vmem:[%s3 + $0x7e0] sm:$0xff]
      %v4854 = vld [vmem:[%s3 + $0x7e8] sm:$0xff]
      %v4855 = vld [vmem:[%s3 + $0x7f0] sm:$0xff]
      %v4856 = vld [vmem:[%s3 + $0x7f8] sm:$0xff]
      %v4857 = vld [vmem:[%s3 + $0x800] sm:$0xff]
      %v4858 = vld [vmem:[%s3 + $0x808] sm:$0xff]
      %v4859 = vld [vmem:[%s3 + $0x810] sm:$0xff]
      %v4860 = vld [vmem:[%s3 + $0x818] sm:$0xff]
      %v4861 = vld [vmem:[%s3 + $0x820] sm:$0xff]
      %v4862 = vld [vmem:[%s3 + $0x828] sm:$0xff]
      %v4863 = vld [vmem:[%s3 + $0x830] sm:$0xff]
      %v4864 = vld [vmem:[%s3 + $0x838] sm:$0xff]
      %v4865 = vld [vmem:[%s3 + $0x840] sm:$0xff]
      %v4866 = vld [vmem:[%s3 + $0x848] sm:$0xff]
      %v4867 = vld [vmem:[%s3 + $0x850] sm:$0xff]
      %v4868 = vld [vmem:[%s3 + $0x858] sm:$0xff]
      %v4869 = vld [vmem:[%s3 + $0x860] sm:$0xff]
      %v4870 = vld [vmem:[%s3 + $0x868] sm:$0xff]
      %v4871 = vld [vmem:[%s3 + $0x870] sm:$0xff]
      %v4872 = vld [vmem:[%s3 + $0x878] sm:$0xff]
      %v4873 = vld [vmem:[%s3 + $0x880] sm:$0xff]
      %v4874 = vld [vmem:[%s3 + $0x888] sm:$0xff]
      %v4875 = vld [vmem:[%s3 + $0x890] sm:$0xff]
      %v4876 = vld [vmem:[%s3 + $0x898] sm:$0xff]
      %v4877 = vld [vmem:[%s3 + $0x8a0] sm:$0xff]
      %v4878 = vld [vmem:[%s3 + $0x8a8] sm:$0xff]
      %v4879 = vld [vmem:[%s3 + $0x8b0] sm:$0xff]
      %v4880 = vld [vmem:[%s3 + $0x8b8] sm:$0xff]
      %v4881 = vld [vmem:[%s3 + $0x8c0] sm:$0xff]
      %v4882 = vld [vmem:[%s3 + $0x8c8] sm:$0xff]
      %v4883 = vld [vmem:[%s3 + $0x8d0] sm:$0xff]
      %v4884 = vld [vmem:[%s3 + $0x8d8] sm:$0xff]
      %v4885 = vld [vmem:[%s3 + $0x8e0] sm:$0xff]
      %v4886 = vld [vmem:[%s3 + $0x8e8] sm:$0xff]
      %v4887 = vld [vmem:[%s3 + $0x8f0] sm:$0xff]
      %v4888 = vld [vmem:[%s3 + $0x8f8] sm:$0xff]
      %v4889 = vld [vmem:[%s3 + $0x900] sm:$0xff]
      %v4890 = vld [vmem:[%s3 + $0x908] sm:$0xff]
      %v4891 = vld [vmem:[%s3 + $0x910] sm:$0xff]
      %v4892 = vld [vmem:[%s3 + $0x918] sm:$0xff]
      %v4893 = vld [vmem:[%s3 + $0x920] sm:$0xff]
      %v4894 = vld [vmem:[%s3 + $0x928] sm:$0xff]
      %v4895 = vld [vmem:[%s4] sm:$0xf]
      %v4897 = vlaneseq
      %v4898 = vshrl.u32 %v4897, 7
      %v4899 = vsub.s32 0, %v4898
      %v4900 = vrot.slane %v4895, %v4899
      %v4901 = vlaneseq
      %v4902 = vshrl.u32 %v4901, 7
      %v4903 = vsub.s32 1, %v4902
      %v4904 = vrot.slane %v4895, %v4903
      %v4905 = vlaneseq
      %v4906 = vshrl.u32 %v4905, 7
      %v4907 = vsub.s32 2, %v4906
      %v4908 = vrot.slane %v4895, %v4907
      %v4909 = vlaneseq
      %v4910 = vshrl.u32 %v4909, 7
      %v4911 = vsub.s32 3, %v4910
      %v4912 = vrot.slane %v4895, %v4911
      %v5211 = vunpack.c.l.b16 %v4601
      %v5212 = vunpack.c.h.b16 %v4601
      %v5213 = vunpack.c.l.b16 %v4602
      %v5214 = vunpack.c.h.b16 %v4602
      %v5215 = vunpack.c.l.b16 %v4603
      %v5216 = vunpack.c.h.b16 %v4603
      %v5217 = vunpack.c.l.b16 %v4604
      %v5218 = vunpack.c.h.b16 %v4604
      %v5219 = vunpack.c.l.b16 %v4605
      %v5220 = vunpack.c.h.b16 %v4605
      %v5221 = vunpack.c.l.b16 %v4606
      %v5222 = vunpack.c.h.b16 %v4606
      %v5223 = vunpack.c.l.b16 %v4607
      %v5224 = vunpack.c.h.b16 %v4607
      %v5225 = vunpack.c.l.b16 %v4608
      %v5226 = vunpack.c.h.b16 %v4608
      %v5227 = vunpack.c.l.b16 %v4609
      %v5228 = vunpack.c.h.b16 %v4609
      %v5229 = vunpack.c.l.b16 %v4610
      %v5230 = vunpack.c.h.b16 %v4610
      %v5231 = vunpack.c.l.b16 %v4611
      %v5232 = vunpack.c.h.b16 %v4611
      %v5233 = vunpack.c.l.b16 %v4612
      %v5234 = vunpack.c.h.b16 %v4612
      %v5235 = vunpack.c.l.b16 %v4613
      %v5236 = vunpack.c.h.b16 %v4613
      %v5237 = vunpack.c.l.b16 %v4614
      %v5238 = vunpack.c.h.b16 %v4614
      %v5239 = vunpack.c.l.b16 %v4615
      %v5240 = vunpack.c.h.b16 %v4615
      %v5241 = vunpack.c.l.b16 %v4616
      %v5242 = vunpack.c.h.b16 %v4616
      %v5243 = vunpack.c.l.b16 %v4617
      %v5244 = vunpack.c.h.b16 %v4617
      %v5245 = vunpack.c.l.b16 %v4618
      %v5246 = vunpack.c.h.b16 %v4618
      %v5247 = vunpack.c.l.b16 %v4619
      %v5248 = vunpack.c.h.b16 %v4619
      %v5249 = vunpack.c.l.b16 %v4620
      %v5250 = vunpack.c.h.b16 %v4620
      %v5251 = vunpack.c.l.b16 %v4621
      %v5252 = vunpack.c.h.b16 %v4621
      %v5253 = vunpack.c.l.b16 %v4622
      %v5254 = vunpack.c.h.b16 %v4622
      %v5255 = vunpack.c.l.b16 %v4623
      %v5256 = vunpack.c.h.b16 %v4623
      %v5257 = vunpack.c.l.b16 %v4624
      %v5258 = vunpack.c.h.b16 %v4624
      %v5259 = vunpack.c.l.b16 %v4625
      %v5260 = vunpack.c.h.b16 %v4625
      %v5261 = vunpack.c.l.b16 %v4626
      %v5262 = vunpack.c.h.b16 %v4626
      %v5263 = vunpack.c.l.b16 %v4627
      %v5264 = vunpack.c.h.b16 %v4627
      %v5265 = vunpack.c.l.b16 %v4628
      %v5266 = vunpack.c.h.b16 %v4628
      %v5267 = vunpack.c.l.b16 %v4629
      %v5268 = vunpack.c.h.b16 %v4629
      %v5269 = vunpack.c.l.b16 %v4630
      %v5270 = vunpack.c.h.b16 %v4630
      %v5271 = vunpack.c.l.b16 %v4631
      %v5272 = vunpack.c.h.b16 %v4631
      %v5273 = vunpack.c.l.b16 %v4632
      %v5274 = vunpack.c.h.b16 %v4632
      %v5275 = vunpack.c.l.b16 %v4633
      %v5276 = vunpack.c.h.b16 %v4633
      %v5277 = vunpack.c.l.b16 %v4634
      %v5278 = vunpack.c.h.b16 %v4634
      %v5279 = vunpack.c.l.b16 %v4635
      %v5280 = vunpack.c.h.b16 %v4635
      %v5281 = vunpack.c.l.b16 %v4636
      %v5282 = vunpack.c.h.b16 %v4636
      %v5283 = vunpack.c.l.b16 %v4637
      %v5284 = vunpack.c.h.b16 %v4637
      %v5285 = vunpack.c.l.b16 %v4638
      %v5286 = vunpack.c.h.b16 %v4638
      %v5287 = vunpack.c.l.b16 %v4639
      %v5288 = vunpack.c.h.b16 %v4639
      %v5289 = vunpack.c.l.b16 %v4640
      %v5290 = vunpack.c.h.b16 %v4640
      %v5291 = vunpack.c.l.b16 %v4641
      %v5292 = vunpack.c.h.b16 %v4641
      %v5293 = vunpack.c.l.b16 %v4642
      %v5294 = vunpack.c.h.b16 %v4642
      %v5295 = vunpack.c.l.b16 %v4643
      %v5296 = vunpack.c.h.b16 %v4643
      %v5297 = vunpack.c.l.b16 %v4644
      %v5298 = vunpack.c.h.b16 %v4644
      %v5299 = vunpack.c.l.b16 %v4645
      %v5300 = vunpack.c.h.b16 %v4645
      %v5301 = vunpack.c.l.b16 %v4646
      %v5302 = vunpack.c.h.b16 %v4646
      %v5303 = vunpack.c.l.b16 %v4647
      %v5304 = vunpack.c.h.b16 %v4647
      %v5305 = vunpack.c.l.b16 %v4648
      %v5306 = vunpack.c.h.b16 %v4648
      %v5307 = vunpack.c.l.b16 %v4649
      %v5308 = vunpack.c.h.b16 %v4649
      %v5309 = vunpack.c.l.b16 %v4650
      %v5310 = vunpack.c.h.b16 %v4650
      %v5311 = vunpack.c.l.b16 %v4651
      %v5312 = vunpack.c.h.b16 %v4651
      %v5313 = vunpack.c.l.b16 %v4652
      %v5314 = vunpack.c.h.b16 %v4652
      %v5315 = vunpack.c.l.b16 %v4653
      %v5316 = vunpack.c.h.b16 %v4653
      %v5317 = vunpack.c.l.b16 %v4654
      %v5318 = vunpack.c.h.b16 %v4654
      %v5319 = vunpack.c.l.b16 %v4655
      %v5320 = vunpack.c.h.b16 %v4655
      %v5321 = vunpack.c.l.b16 %v4656
      %v5322 = vunpack.c.h.b16 %v4656
      %v5323 = vunpack.c.l.b16 %v4657
      %v5324 = vunpack.c.h.b16 %v4657
      %v5325 = vunpack.c.l.b16 %v4658
      %v5326 = vunpack.c.h.b16 %v4658
      %v5327 = vunpack.c.l.b16 %v4659
      %v5328 = vunpack.c.h.b16 %v4659
      %v5329 = vunpack.c.l.b16 %v4660
      %v5330 = vunpack.c.h.b16 %v4660
      %v5331 = vunpack.c.l.b16 %v4661
      %v5332 = vunpack.c.h.b16 %v4661
      %v5333 = vunpack.c.l.b16 %v4662
      %v5334 = vunpack.c.h.b16 %v4662
      %v5335 = vunpack.c.l.b16 %v4663
      %v5336 = vunpack.c.h.b16 %v4663
      %v5337 = vunpack.c.l.b16 %v4664
      %v5338 = vunpack.c.h.b16 %v4664
      %v5339 = vunpack.c.l.b16 %v4665
      %v5340 = vunpack.c.h.b16 %v4665
      %v5341 = vunpack.c.l.b16 %v4666
      %v5342 = vunpack.c.h.b16 %v4666
      %v5343 = vunpack.c.l.b16 %v4667
      %v5344 = vunpack.c.h.b16 %v4667
      %v5345 = vunpack.c.l.b16 %v4668
      %v5346 = vunpack.c.h.b16 %v4668
      %v5347 = vunpack.c.l.b16 %v4669
      %v5348 = vunpack.c.h.b16 %v4669
      %v5349 = vunpack.c.l.b16 %v4670
      %v5350 = vunpack.c.h.b16 %v4670
      %v5351 = vunpack.c.l.b16 %v4671
      %v5352 = vunpack.c.h.b16 %v4671
      %v5353 = vunpack.c.l.b16 %v4672
      %v5354 = vunpack.c.h.b16 %v4672
      %v5355 = vunpack.c.l.b16 %v4673
      %v5356 = vunpack.c.h.b16 %v4673
      %v5357 = vunpack.c.l.b16 %v4674
      %v5358 = vunpack.c.h.b16 %v4674
      %v5359 = vunpack.c.l.b16 %v4675
      %v5360 = vunpack.c.h.b16 %v4675
      %v5361 = vunpack.c.l.b16 %v4676
      %v5362 = vunpack.c.h.b16 %v4676
      %v5363 = vunpack.c.l.b16 %v4677
      %v5364 = vunpack.c.h.b16 %v4677
      %v5365 = vunpack.c.l.b16 %v4678
      %v5366 = vunpack.c.h.b16 %v4678
      %v5367 = vunpack.c.l.b16 %v4679
      %v5368 = vunpack.c.h.b16 %v4679
      %v5369 = vunpack.c.l.b16 %v4680
      %v5370 = vunpack.c.h.b16 %v4680
      %v5371 = vunpack.c.l.b16 %v4681
      %v5372 = vunpack.c.h.b16 %v4681
      %v5373 = vunpack.c.l.b16 %v4682
      %v5374 = vunpack.c.h.b16 %v4682
      %v5375 = vunpack.c.l.b16 %v4683
      %v5376 = vunpack.c.h.b16 %v4683
      %v5377 = vunpack.c.l.b16 %v4684
      %v5378 = vunpack.c.h.b16 %v4684
      %v5379 = vunpack.c.l.b16 %v4685
      %v5380 = vunpack.c.h.b16 %v4685
      %v5381 = vunpack.c.l.b16 %v4686
      %v5382 = vunpack.c.h.b16 %v4686
      %v5383 = vunpack.c.l.b16 %v4687
      %v5384 = vunpack.c.h.b16 %v4687
      %v5385 = vunpack.c.l.b16 %v4688
      %v5386 = vunpack.c.h.b16 %v4688
      %v5387 = vunpack.c.l.b16 %v4689
      %v5388 = vunpack.c.h.b16 %v4689
      %v5389 = vunpack.c.l.b16 %v4690
      %v5390 = vunpack.c.h.b16 %v4690
      %v5391 = vunpack.c.l.b16 %v4691
      %v5392 = vunpack.c.h.b16 %v4691
      %v5393 = vunpack.c.l.b16 %v4692
      %v5394 = vunpack.c.h.b16 %v4692
      %v5395 = vunpack.c.l.b16 %v4693
      %v5396 = vunpack.c.h.b16 %v4693
      %v5397 = vunpack.c.l.b16 %v4694
      %v5398 = vunpack.c.h.b16 %v4694
      %v5399 = vunpack.c.l.b16 %v4695
      %v5400 = vunpack.c.h.b16 %v4695
      %v5401 = vunpack.c.l.b16 %v4696
      %v5402 = vunpack.c.h.b16 %v4696
      %v5403 = vunpack.c.l.b16 %v4697
      %v5404 = vunpack.c.h.b16 %v4697
      %v5405 = vunpack.c.l.b16 %v4698
      %v5406 = vunpack.c.h.b16 %v4698
      %v5407 = vunpack.c.l.b16 %v4699
      %v5408 = vunpack.c.h.b16 %v4699
      %v5409 = vunpack.c.l.b16 %v4700
      %v5410 = vunpack.c.h.b16 %v4700
      %v5411 = vunpack.c.l.b16 %v4701
      %v5412 = vunpack.c.h.b16 %v4701
      %v5413 = vunpack.c.l.b16 %v4702
      %v5414 = vunpack.c.h.b16 %v4702
      %v5415 = vunpack.c.l.b16 %v4703
      %v5416 = vunpack.c.h.b16 %v4703
      %v5417 = vunpack.c.l.b16 %v4704
      %v5418 = vunpack.c.h.b16 %v4704
      %v5419 = vunpack.c.l.b16 %v4705
      %v5420 = vunpack.c.h.b16 %v4705
      %v5421 = vunpack.c.l.b16 %v4706
      %v5422 = vunpack.c.h.b16 %v4706
      %v5423 = vunpack.c.l.b16 %v4707
      %v5424 = vunpack.c.h.b16 %v4707
      %v5425 = vunpack.c.l.b16 %v4708
      %v5426 = vunpack.c.h.b16 %v4708
      %v5427 = vunpack.c.l.b16 %v4709
      %v5428 = vunpack.c.h.b16 %v4709
      %v5429 = vunpack.c.l.b16 %v4710
      %v5430 = vunpack.c.h.b16 %v4710
      %v5431 = vunpack.c.l.b16 %v4711
      %v5432 = vunpack.c.h.b16 %v4711
      %v5433 = vunpack.c.l.b16 %v4712
      %v5434 = vunpack.c.h.b16 %v4712
      %v5435 = vunpack.c.l.b16 %v4713
      %v5436 = vunpack.c.h.b16 %v4713
      %v5437 = vunpack.c.l.b16 %v4714
      %v5438 = vunpack.c.h.b16 %v4714
      %v5439 = vunpack.c.l.b16 %v4715
      %v5440 = vunpack.c.h.b16 %v4715
      %v5441 = vunpack.c.l.b16 %v4716
      %v5442 = vunpack.c.h.b16 %v4716
      %v5443 = vunpack.c.l.b16 %v4717
      %v5444 = vunpack.c.h.b16 %v4717
      %v5445 = vunpack.c.l.b16 %v4718
      %v5446 = vunpack.c.h.b16 %v4718
      %v5447 = vunpack.c.l.b16 %v4719
      %v5448 = vunpack.c.h.b16 %v4719
      %v5449 = vunpack.c.l.b16 %v4720
      %v5450 = vunpack.c.h.b16 %v4720
      %v5451 = vunpack.c.l.b16 %v4721
      %v5452 = vunpack.c.h.b16 %v4721
      %v5453 = vunpack.c.l.b16 %v4722
      %v5454 = vunpack.c.h.b16 %v4722
      %v5455 = vunpack.c.l.b16 %v4723
      %v5456 = vunpack.c.h.b16 %v4723
      %v5457 = vunpack.c.l.b16 %v4724
      %v5458 = vunpack.c.h.b16 %v4724
      %v5459 = vunpack.c.l.b16 %v4725
      %v5460 = vunpack.c.h.b16 %v4725
      %v5461 = vunpack.c.l.b16 %v4726
      %v5462 = vunpack.c.h.b16 %v4726
      %v5463 = vunpack.c.l.b16 %v4727
      %v5464 = vunpack.c.h.b16 %v4727
      %v5465 = vunpack.c.l.b16 %v4728
      %v5466 = vunpack.c.h.b16 %v4728
      %v5467 = vunpack.c.l.b16 %v4729
      %v5468 = vunpack.c.h.b16 %v4729
      %v5469 = vunpack.c.l.b16 %v4730
      %v5470 = vunpack.c.h.b16 %v4730
      %v5471 = vunpack.c.l.b16 %v4731
      %v5472 = vunpack.c.h.b16 %v4731
      %v5473 = vunpack.c.l.b16 %v4732
      %v5474 = vunpack.c.h.b16 %v4732
      %v5475 = vunpack.c.l.b16 %v4733
      %v5476 = vunpack.c.h.b16 %v4733
      %v5477 = vunpack.c.l.b16 %v4734
      %v5478 = vunpack.c.h.b16 %v4734
      %v5479 = vunpack.c.l.b16 %v4735
      %v5480 = vunpack.c.h.b16 %v4735
      %v5481 = vunpack.c.l.b16 %v4736
      %v5482 = vunpack.c.h.b16 %v4736
      %v5483 = vunpack.c.l.b16 %v4737
      %v5484 = vunpack.c.h.b16 %v4737
      %v5485 = vunpack.c.l.b16 %v4738
      %v5486 = vunpack.c.h.b16 %v4738
      %v5487 = vunpack.c.l.b16 %v4739
      %v5488 = vunpack.c.h.b16 %v4739
      %v5489 = vunpack.c.l.b16 %v4740
      %v5490 = vunpack.c.h.b16 %v4740
      %v5491 = vunpack.c.l.b16 %v4741
      %v5492 = vunpack.c.h.b16 %v4741
      %v5493 = vunpack.c.l.b16 %v4742
      %v5494 = vunpack.c.h.b16 %v4742
      %v5495 = vunpack.c.l.b16 %v4743
      %v5496 = vunpack.c.h.b16 %v4743
      %v5497 = vunpack.c.l.b16 %v4744
      %v5498 = vunpack.c.h.b16 %v4744
      %v5499 = vunpack.c.l.b16 %v4745
      %v5500 = vunpack.c.h.b16 %v4745
      %v5501 = vunpack.c.l.b16 %v4746
      %v5502 = vunpack.c.h.b16 %v4746
      %v5503 = vunpack.c.l.b16 %v4747
      %v5504 = vunpack.c.h.b16 %v4747
      %v5505 = vunpack.c.l.b16 %v4748
      %v5506 = vunpack.c.h.b16 %v4748
      %v5507 = vunpack.c.l.b16 %v4749
      %v5508 = vunpack.c.h.b16 %v4749
      %v5509 = vunpack.c.l.b16 %v4750
      %v5510 = vunpack.c.h.b16 %v4750
      %v5511 = vunpack.c.l.b16 %v4751
      %v5512 = vunpack.c.h.b16 %v4751
      %v5513 = vunpack.c.l.b16 %v4752
      %v5514 = vunpack.c.h.b16 %v4752
      %v5515 = vunpack.c.l.b16 %v4753
      %v5516 = vunpack.c.h.b16 %v4753
      %v5517 = vunpack.c.l.b16 %v4754
      %v5518 = vunpack.c.h.b16 %v4754
      %v5519 = vunpack.c.l.b16 %v4755
      %v5520 = vunpack.c.h.b16 %v4755
      %v5521 = vunpack.c.l.b16 %v4756
      %v5522 = vunpack.c.h.b16 %v4756
      %v5523 = vunpack.c.l.b16 %v4757
      %v5524 = vunpack.c.h.b16 %v4757
      %v5525 = vunpack.c.l.b16 %v4758
      %v5526 = vunpack.c.h.b16 %v4758
      %v5527 = vunpack.c.l.b16 %v4759
      %v5528 = vunpack.c.h.b16 %v4759
      %v5529 = vunpack.c.l.b16 %v4760
      %v5530 = vunpack.c.h.b16 %v4760
      %v5531 = vunpack.c.l.b16 %v4761
      %v5532 = vunpack.c.h.b16 %v4761
      %v5533 = vunpack.c.l.b16 %v4762
      %v5534 = vunpack.c.h.b16 %v4762
      %v5535 = vunpack.c.l.b16 %v4763
      %v5536 = vunpack.c.h.b16 %v4763
      %v5537 = vunpack.c.l.b16 %v4764
      %v5538 = vunpack.c.h.b16 %v4764
      %v5539 = vunpack.c.l.b16 %v4765
      %v5540 = vunpack.c.h.b16 %v4765
      %v5541 = vunpack.c.l.b16 %v4766
      %v5542 = vunpack.c.h.b16 %v4766
      %v5543 = vunpack.c.l.b16 %v4767
      %v5544 = vunpack.c.h.b16 %v4767
      %v5545 = vunpack.c.l.b16 %v4768
      %v5546 = vunpack.c.h.b16 %v4768
      %v5547 = vunpack.c.l.b16 %v4769
      %v5548 = vunpack.c.h.b16 %v4769
      %v5549 = vunpack.c.l.b16 %v4770
      %v5550 = vunpack.c.h.b16 %v4770
      %v5551 = vunpack.c.l.b16 %v4771
      %v5552 = vunpack.c.h.b16 %v4771
      %v5553 = vunpack.c.l.b16 %v4772
      %v5554 = vunpack.c.h.b16 %v4772
      %v5555 = vunpack.c.l.b16 %v4773
      %v5556 = vunpack.c.h.b16 %v4773
      %v5557 = vunpack.c.l.b16 %v4774
      %v5558 = vunpack.c.h.b16 %v4774
      %v5559 = vunpack.c.l.b16 %v4775
      %v5560 = vunpack.c.h.b16 %v4775
      %v5561 = vunpack.c.l.b16 %v4776
      %v5562 = vunpack.c.h.b16 %v4776
      %v5563 = vunpack.c.l.b16 %v4777
      %v5564 = vunpack.c.h.b16 %v4777
      %v5565 = vunpack.c.l.b16 %v4778
      %v5566 = vunpack.c.h.b16 %v4778
      %v5567 = vunpack.c.l.b16 %v4779
      %v5568 = vunpack.c.h.b16 %v4779
      %v5569 = vunpack.c.l.b16 %v4780
      %v5570 = vunpack.c.h.b16 %v4780
      %v5571 = vunpack.c.l.b16 %v4781
      %v5572 = vunpack.c.h.b16 %v4781
      %v5573 = vunpack.c.l.b16 %v4782
      %v5574 = vunpack.c.h.b16 %v4782
      %v5575 = vunpack.c.l.b16 %v4783
      %v5576 = vunpack.c.h.b16 %v4783
      %v5577 = vunpack.c.l.b16 %v4784
      %v5578 = vunpack.c.h.b16 %v4784
      %v5579 = vunpack.c.l.b16 %v4785
      %v5580 = vunpack.c.h.b16 %v4785
      %v5581 = vunpack.c.l.b16 %v4786
      %v5582 = vunpack.c.h.b16 %v4786
      %v5583 = vunpack.c.l.b16 %v4787
      %v5584 = vunpack.c.h.b16 %v4787
      %v5585 = vunpack.c.l.b16 %v4788
      %v5586 = vunpack.c.h.b16 %v4788
      %v5587 = vunpack.c.l.b16 %v4789
      %v5588 = vunpack.c.h.b16 %v4789
      %v5589 = vunpack.c.l.b16 %v4790
      %v5590 = vunpack.c.h.b16 %v4790
      %v5591 = vunpack.c.l.b16 %v4791
      %v5592 = vunpack.c.h.b16 %v4791
      %v5593 = vunpack.c.l.b16 %v4792
      %v5594 = vunpack.c.h.b16 %v4792
      %v5595 = vunpack.c.l.b16 %v4793
      %v5596 = vunpack.c.h.b16 %v4793
      %v5597 = vunpack.c.l.b16 %v4794
      %v5598 = vunpack.c.h.b16 %v4794
      %v5599 = vunpack.c.l.b16 %v4795
      %v5600 = vunpack.c.h.b16 %v4795
      %v5601 = vunpack.c.l.b16 %v4796
      %v5602 = vunpack.c.h.b16 %v4796
      %v5603 = vunpack.c.l.b16 %v4797
      %v5604 = vunpack.c.h.b16 %v4797
      %v5605 = vunpack.c.l.b16 %v4798
      %v5606 = vunpack.c.h.b16 %v4798
      %v5607 = vunpack.c.l.b16 %v4799
      %v5608 = vunpack.c.h.b16 %v4799
      %v5609 = vunpack.c.l.b16 %v4800
      %v5610 = vunpack.c.h.b16 %v4800
      %v5611 = vunpack.c.l.b16 %v4801
      %v5612 = vunpack.c.h.b16 %v4801
      %v5613 = vunpack.c.l.b16 %v4802
      %v5614 = vunpack.c.h.b16 %v4802
      %v5615 = vunpack.c.l.b16 %v4803
      %v5616 = vunpack.c.h.b16 %v4803
      %v5617 = vunpack.c.l.b16 %v4804
      %v5618 = vunpack.c.h.b16 %v4804
      %v5619 = vunpack.c.l.b16 %v4805
      %v5620 = vunpack.c.h.b16 %v4805
      %v5621 = vunpack.c.l.b16 %v4806
      %v5622 = vunpack.c.h.b16 %v4806
      %v5623 = vunpack.c.l.b16 %v4807
      %v5624 = vunpack.c.h.b16 %v4807
      %v5625 = vunpack.c.l.b16 %v4808
      %v5626 = vunpack.c.h.b16 %v4808
      %v5627 = vunpack.c.l.b16 %v4809
      %v5628 = vunpack.c.h.b16 %v4809
      %v5629 = vunpack.c.l.b16 %v4810
      %v5630 = vunpack.c.h.b16 %v4810
      %v5631 = vunpack.c.l.b16 %v4811
      %v5632 = vunpack.c.h.b16 %v4811
      %v5633 = vunpack.c.l.b16 %v4812
      %v5634 = vunpack.c.h.b16 %v4812
      %v5635 = vunpack.c.l.b16 %v4813
      %v5636 = vunpack.c.h.b16 %v4813
      %v5637 = vunpack.c.l.b16 %v4814
      %v5638 = vunpack.c.h.b16 %v4814
      %v5639 = vunpack.c.l.b16 %v4815
      %v5640 = vunpack.c.h.b16 %v4815
      %v5641 = vunpack.c.l.b16 %v4816
      %v5642 = vunpack.c.h.b16 %v4816
      %v5643 = vunpack.c.l.b16 %v4817
      %v5644 = vunpack.c.h.b16 %v4817
      %v5645 = vunpack.c.l.b16 %v4818
      %v5646 = vunpack.c.h.b16 %v4818
      %v5647 = vunpack.c.l.b16 %v4819
      %v5648 = vunpack.c.h.b16 %v4819
      %v5649 = vunpack.c.l.b16 %v4820
      %v5650 = vunpack.c.h.b16 %v4820
      %v5651 = vunpack.c.l.b16 %v4821
      %v5652 = vunpack.c.h.b16 %v4821
      %v5653 = vunpack.c.l.b16 %v4822
      %v5654 = vunpack.c.h.b16 %v4822
      %v5655 = vunpack.c.l.b16 %v4823
      %v5656 = vunpack.c.h.b16 %v4823
      %v5657 = vunpack.c.l.b16 %v4824
      %v5658 = vunpack.c.h.b16 %v4824
      %v5659 = vunpack.c.l.b16 %v4825
      %v5660 = vunpack.c.h.b16 %v4825
      %v5661 = vunpack.c.l.b16 %v4826
      %v5662 = vunpack.c.h.b16 %v4826
      %v5663 = vunpack.c.l.b16 %v4827
      %v5664 = vunpack.c.h.b16 %v4827
      %v5665 = vunpack.c.l.b16 %v4828
      %v5666 = vunpack.c.h.b16 %v4828
      %v5667 = vunpack.c.l.b16 %v4829
      %v5668 = vunpack.c.h.b16 %v4829
      %v5669 = vunpack.c.l.b16 %v4830
      %v5670 = vunpack.c.h.b16 %v4830
      %v5671 = vunpack.c.l.b16 %v4831
      %v5672 = vunpack.c.h.b16 %v4831
      %v5673 = vunpack.c.l.b16 %v4832
      %v5674 = vunpack.c.h.b16 %v4832
      %v5675 = vunpack.c.l.b16 %v4833
      %v5676 = vunpack.c.h.b16 %v4833
      %v5677 = vunpack.c.l.b16 %v4834
      %v5678 = vunpack.c.h.b16 %v4834
      %v5679 = vunpack.c.l.b16 %v4835
      %v5680 = vunpack.c.h.b16 %v4835
      %v5681 = vunpack.c.l.b16 %v4836
      %v5682 = vunpack.c.h.b16 %v4836
      %v5683 = vunpack.c.l.b16 %v4837
      %v5684 = vunpack.c.h.b16 %v4837
      %v5685 = vunpack.c.l.b16 %v4838
      %v5686 = vunpack.c.h.b16 %v4838
      %v5687 = vunpack.c.l.b16 %v4839
      %v5688 = vunpack.c.h.b16 %v4839
      %v5689 = vunpack.c.l.b16 %v4840
      %v5690 = vunpack.c.h.b16 %v4840
      %v5691 = vunpack.c.l.b16 %v4841
      %v5692 = vunpack.c.h.b16 %v4841
      %v5693 = vunpack.c.l.b16 %v4842
      %v5694 = vunpack.c.h.b16 %v4842
      %v5695 = vunpack.c.l.b16 %v4843
      %v5696 = vunpack.c.h.b16 %v4843
      %v5697 = vunpack.c.l.b16 %v4844
      %v5698 = vunpack.c.h.b16 %v4844
      %v5699 = vunpack.c.l.b16 %v4845
      %v5700 = vunpack.c.h.b16 %v4845
      %v5701 = vunpack.c.l.b16 %v4846
      %v5702 = vunpack.c.h.b16 %v4846
      %v5703 = vunpack.c.l.b16 %v4847
      %v5704 = vunpack.c.h.b16 %v4847
      %v5705 = vunpack.c.l.b16 %v4848
      %v5706 = vunpack.c.h.b16 %v4848
      %v5707 = vunpack.c.l.b16 %v4849
      %v5708 = vunpack.c.h.b16 %v4849
      %v5709 = vunpack.c.l.b16 %v4850
      %v5710 = vunpack.c.h.b16 %v4850
      %v5711 = vunpack.c.l.b16 %v4851
      %v5712 = vunpack.c.h.b16 %v4851
      %v5713 = vunpack.c.l.b16 %v4852
      %v5714 = vunpack.c.h.b16 %v4852
      %v5715 = vunpack.c.l.b16 %v4853
      %v5716 = vunpack.c.h.b16 %v4853
      %v5717 = vunpack.c.l.b16 %v4854
      %v5718 = vunpack.c.h.b16 %v4854
      %v5719 = vunpack.c.l.b16 %v4855
      %v5720 = vunpack.c.h.b16 %v4855
      %v5721 = vunpack.c.l.b16 %v4856
      %v5722 = vunpack.c.h.b16 %v4856
      %v5723 = vunpack.c.l.b16 %v4857
      %v5724 = vunpack.c.h.b16 %v4857
      %v5725 = vunpack.c.l.b16 %v4858
      %v5726 = vunpack.c.h.b16 %v4858
      %v5727 = vunpack.c.l.b16 %v4859
      %v5728 = vunpack.c.h.b16 %v4859
      %v5729 = vunpack.c.l.b16 %v4860
      %v5730 = vunpack.c.h.b16 %v4860
      %v5731 = vunpack.c.l.b16 %v4861
      %v5732 = vunpack.c.h.b16 %v4861
      %v5733 = vunpack.c.l.b16 %v4862
      %v5734 = vunpack.c.h.b16 %v4862
      %v5735 = vunpack.c.l.b16 %v4863
      %v5736 = vunpack.c.h.b16 %v4863
      %v5737 = vunpack.c.l.b16 %v4864
      %v5738 = vunpack.c.h.b16 %v4864
      %v5739 = vunpack.c.l.b16 %v4865
      %v5740 = vunpack.c.h.b16 %v4865
      %v5741 = vunpack.c.l.b16 %v4866
      %v5742 = vunpack.c.h.b16 %v4866
      %v5743 = vunpack.c.l.b16 %v4867
      %v5744 = vunpack.c.h.b16 %v4867
      %v5745 = vunpack.c.l.b16 %v4868
      %v5746 = vunpack.c.h.b16 %v4868
      %v5747 = vunpack.c.l.b16 %v4869
      %v5748 = vunpack.c.h.b16 %v4869
      %v5749 = vunpack.c.l.b16 %v4870
      %v5750 = vunpack.c.h.b16 %v4870
      %v5751 = vunpack.c.l.b16 %v4871
      %v5752 = vunpack.c.h.b16 %v4871
      %v5753 = vunpack.c.l.b16 %v4872
      %v5754 = vunpack.c.h.b16 %v4872
      %v5755 = vunpack.c.l.b16 %v4873
      %v5756 = vunpack.c.h.b16 %v4873
      %v5757 = vunpack.c.l.b16 %v4874
      %v5758 = vunpack.c.h.b16 %v4874
      %v5759 = vunpack.c.l.b16 %v4875
      %v5760 = vunpack.c.h.b16 %v4875
      %v5761 = vunpack.c.l.b16 %v4876
      %v5762 = vunpack.c.h.b16 %v4876
      %v5763 = vunpack.c.l.b16 %v4877
      %v5764 = vunpack.c.h.b16 %v4877
      %v5765 = vunpack.c.l.b16 %v4878
      %v5766 = vunpack.c.h.b16 %v4878
      %v5767 = vunpack.c.l.b16 %v4879
      %v5768 = vunpack.c.h.b16 %v4879
      %v5769 = vunpack.c.l.b16 %v4880
      %v5770 = vunpack.c.h.b16 %v4880
      %v5771 = vunpack.c.l.b16 %v4881
      %v5772 = vunpack.c.h.b16 %v4881
      %v5773 = vunpack.c.l.b16 %v4882
      %v5774 = vunpack.c.h.b16 %v4882
      %v5775 = vunpack.c.l.b16 %v4883
      %v5776 = vunpack.c.h.b16 %v4883
      %v5777 = vunpack.c.l.b16 %v4884
      %v5778 = vunpack.c.h.b16 %v4884
      %v5779 = vunpack.c.l.b16 %v4885
      %v5780 = vunpack.c.h.b16 %v4885
      %v5781 = vunpack.c.l.b16 %v4886
      %v5782 = vunpack.c.h.b16 %v4886
      %v5783 = vunpack.c.l.b16 %v4887
      %v5784 = vunpack.c.h.b16 %v4887
      %v5785 = vunpack.c.l.b16 %v4888
      %v5786 = vunpack.c.h.b16 %v4888
      %v5787 = vunpack.c.l.b16 %v4889
      %v5788 = vunpack.c.h.b16 %v4889
      %v5789 = vunpack.c.l.b16 %v4890
      %v5790 = vunpack.c.h.b16 %v4890
      %v5791 = vunpack.c.l.b16 %v4891
      %v5792 = vunpack.c.h.b16 %v4891
      %v5793 = vunpack.c.l.b16 %v4892
      %v5794 = vunpack.c.h.b16 %v4892
      %v5795 = vunpack.c.l.b16 %v4893
      %v5796 = vunpack.c.h.b16 %v4893
      %v5797 = vunpack.c.l.b16 %v4894
      %v5798 = vunpack.c.h.b16 %v4894
      %v5799 = vpack.c.b16 %v5215, %v5211
      %v5800 = vpack.c.b16 %v5216, %v5212
      %v5801 = vpack.c.b16 %v5217, %v5213
      %v5802 = vpack.c.b16 %v5218, %v5214
      %v5803 = vpack.c.b16 %v5223, %v5219
      %v5804 = vpack.c.b16 %v5224, %v5220
      %v5805 = vpack.c.b16 %v5225, %v5221
      %v5806 = vpack.c.b16 %v5226, %v5222
      %v5807 = vpack.c.b16 %v5231, %v5227
      %v5808 = vpack.c.b16 %v5232, %v5228
      %v5809 = vpack.c.b16 %v5233, %v5229
      %v5810 = vpack.c.b16 %v5234, %v5230
      %v5811 = vpack.c.b16 %v5239, %v5235
      %v5812 = vpack.c.b16 %v5240, %v5236
      %v5813 = vpack.c.b16 %v5241, %v5237
      %v5814 = vpack.c.b16 %v5242, %v5238
      %v5815 = vpack.c.b16 %v5247, %v5243
      %v5816 = vpack.c.b16 %v5248, %v5244
      %v5817 = vpack.c.b16 %v5249, %v5245
      %v5818 = vpack.c.b16 %v5250, %v5246
      %v5819 = vpack.c.b16 %v5255, %v5251
      %v5820 = vpack.c.b16 %v5256, %v5252
      %v5821 = vpack.c.b16 %v5257, %v5253
      %v5822 = vpack.c.b16 %v5258, %v5254
      %v5823 = vpack.c.b16 %v5263, %v5259
      %v5824 = vpack.c.b16 %v5264, %v5260
      %v5825 = vpack.c.b16 %v5265, %v5261
      %v5826 = vpack.c.b16 %v5266, %v5262
      %v5827 = vpack.c.b16 %v5271, %v5267
      %v5828 = vpack.c.b16 %v5272, %v5268
      %v5829 = vpack.c.b16 %v5273, %v5269
      %v5830 = vpack.c.b16 %v5274, %v5270
      %v5831 = vpack.c.b16 %v5279, %v5275
      %v5832 = vpack.c.b16 %v5280, %v5276
      %v5833 = vpack.c.b16 %v5281, %v5277
      %v5834 = vpack.c.b16 %v5282, %v5278
      %v5835 = vpack.c.b16 %v5287, %v5283
      %v5836 = vpack.c.b16 %v5288, %v5284
      %v5837 = vpack.c.b16 %v5289, %v5285
      %v5838 = vpack.c.b16 %v5290, %v5286
      %v5839 = vpack.c.b16 %v5295, %v5291
      %v5840 = vpack.c.b16 %v5296, %v5292
      %v5841 = vpack.c.b16 %v5297, %v5293
      %v5842 = vpack.c.b16 %v5298, %v5294
      %v5843 = vpack.c.b16 %v5303, %v5299
      %v5844 = vpack.c.b16 %v5304, %v5300
      %v5845 = vpack.c.b16 %v5305, %v5301
      %v5846 = vpack.c.b16 %v5306, %v5302
      %v5847 = vpack.c.b16 %v5311, %v5307
      %v5848 = vpack.c.b16 %v5312, %v5308
      %v5849 = vpack.c.b16 %v5313, %v5309
      %v5850 = vpack.c.b16 %v5314, %v5310
      %v5851 = vpack.c.b16 %v5319, %v5315
      %v5852 = vpack.c.b16 %v5320, %v5316
      %v5853 = vpack.c.b16 %v5321, %v5317
      %v5854 = vpack.c.b16 %v5322, %v5318
      %v5855 = vpack.c.b16 %v5327, %v5323
      %v5856 = vpack.c.b16 %v5328, %v5324
      %v5857 = vpack.c.b16 %v5329, %v5325
      %v5858 = vpack.c.b16 %v5330, %v5326
      %v5859 = vpack.c.b16 %v5335, %v5331
      %v5860 = vpack.c.b16 %v5336, %v5332
      %v5861 = vpack.c.b16 %v5337, %v5333
      %v5862 = vpack.c.b16 %v5338, %v5334
      %v5863 = vpack.c.b16 %v5343, %v5339
      %v5864 = vpack.c.b16 %v5344, %v5340
      %v5865 = vpack.c.b16 %v5345, %v5341
      %v5866 = vpack.c.b16 %v5346, %v5342
      %v5867 = vpack.c.b16 %v5351, %v5347
      %v5868 = vpack.c.b16 %v5352, %v5348
      %v5869 = vpack.c.b16 %v5353, %v5349
      %v5870 = vpack.c.b16 %v5354, %v5350
      %v5871 = vpack.c.b16 %v5359, %v5355
      %v5872 = vpack.c.b16 %v5360, %v5356
      %v5873 = vpack.c.b16 %v5361, %v5357
      %v5874 = vpack.c.b16 %v5362, %v5358
      %v5875 = vpack.c.b16 %v5367, %v5363
      %v5876 = vpack.c.b16 %v5368, %v5364
      %v5877 = vpack.c.b16 %v5369, %v5365
      %v5878 = vpack.c.b16 %v5370, %v5366
      %v5879 = vpack.c.b16 %v5375, %v5371
      %v5880 = vpack.c.b16 %v5376, %v5372
      %v5881 = vpack.c.b16 %v5377, %v5373
      %v5882 = vpack.c.b16 %v5378, %v5374
      %v5883 = vpack.c.b16 %v5383, %v5379
      %v5884 = vpack.c.b16 %v5384, %v5380
      %v5885 = vpack.c.b16 %v5385, %v5381
      %v5886 = vpack.c.b16 %v5386, %v5382
      %v5887 = vpack.c.b16 %v5391, %v5387
      %v5888 = vpack.c.b16 %v5392, %v5388
      %v5889 = vpack.c.b16 %v5393, %v5389
      %v5890 = vpack.c.b16 %v5394, %v5390
      %v5891 = vpack.c.b16 %v5399, %v5395
      %v5892 = vpack.c.b16 %v5400, %v5396
      %v5893 = vpack.c.b16 %v5401, %v5397
      %v5894 = vpack.c.b16 %v5402, %v5398
      %v5895 = vpack.c.b16 %v5407, %v5403
      %v5896 = vpack.c.b16 %v5408, %v5404
      %v5897 = vpack.c.b16 %v5409, %v5405
      %v5898 = vpack.c.b16 %v5410, %v5406
      %v5899 = vpack.c.b16 %v5415, %v5411
      %v5900 = vpack.c.b16 %v5416, %v5412
      %v5901 = vpack.c.b16 %v5417, %v5413
      %v5902 = vpack.c.b16 %v5418, %v5414
      %v5903 = vpack.c.b16 %v5423, %v5419
      %v5904 = vpack.c.b16 %v5424, %v5420
      %v5905 = vpack.c.b16 %v5425, %v5421
      %v5906 = vpack.c.b16 %v5426, %v5422
      %v5907 = vpack.c.b16 %v5431, %v5427
      %v5908 = vpack.c.b16 %v5432, %v5428
      %v5909 = vpack.c.b16 %v5433, %v5429
      %v5910 = vpack.c.b16 %v5434, %v5430
      %v5911 = vpack.c.b16 %v5439, %v5435
      %v5912 = vpack.c.b16 %v5440, %v5436
      %v5913 = vpack.c.b16 %v5441, %v5437
      %v5914 = vpack.c.b16 %v5442, %v5438
      %v5915 = vpack.c.b16 %v5447, %v5443
      %v5916 = vpack.c.b16 %v5448, %v5444
      %v5917 = vpack.c.b16 %v5449, %v5445
      %v5918 = vpack.c.b16 %v5450, %v5446
      %v5919 = vpack.c.b16 %v5455, %v5451
      %v5920 = vpack.c.b16 %v5456, %v5452
      %v5921 = vpack.c.b16 %v5457, %v5453
      %v5922 = vpack.c.b16 %v5458, %v5454
      %v5923 = vpack.c.b16 %v5463, %v5459
      %v5924 = vpack.c.b16 %v5464, %v5460
      %v5925 = vpack.c.b16 %v5465, %v5461
      %v5926 = vpack.c.b16 %v5466, %v5462
      %v5927 = vpack.c.b16 %v5471, %v5467
      %v5928 = vpack.c.b16 %v5472, %v5468
      %v5929 = vpack.c.b16 %v5473, %v5469
      %v5930 = vpack.c.b16 %v5474, %v5470
      %v5931 = vpack.c.b16 %v5479, %v5475
      %v5932 = vpack.c.b16 %v5480, %v5476
      %v5933 = vpack.c.b16 %v5481, %v5477
      %v5934 = vpack.c.b16 %v5482, %v5478
      %v5935 = vpack.c.b16 %v5487, %v5483
      %v5936 = vpack.c.b16 %v5488, %v5484
      %v5937 = vpack.c.b16 %v5489, %v5485
      %v5938 = vpack.c.b16 %v5490, %v5486
      %v5939 = vpack.c.b16 %v5495, %v5491
      %v5940 = vpack.c.b16 %v5496, %v5492
      %v5941 = vpack.c.b16 %v5497, %v5493
      %v5942 = vpack.c.b16 %v5498, %v5494
      %v5943 = vpack.c.b16 %v5503, %v5499
      %v5944 = vpack.c.b16 %v5504, %v5500
      %v5945 = vpack.c.b16 %v5505, %v5501
      %v5946 = vpack.c.b16 %v5506, %v5502
      %v5947 = vpack.c.b16 %v5511, %v5507
      %v5948 = vpack.c.b16 %v5512, %v5508
      %v5949 = vpack.c.b16 %v5513, %v5509
      %v5950 = vpack.c.b16 %v5514, %v5510
      %v5951 = vpack.c.b16 %v5519, %v5515
      %v5952 = vpack.c.b16 %v5520, %v5516
      %v5953 = vpack.c.b16 %v5521, %v5517
      %v5954 = vpack.c.b16 %v5522, %v5518
      %v5955 = vpack.c.b16 %v5527, %v5523
      %v5956 = vpack.c.b16 %v5528, %v5524
      %v5957 = vpack.c.b16 %v5529, %v5525
      %v5958 = vpack.c.b16 %v5530, %v5526
      %v5959 = vpack.c.b16 %v5535, %v5531
      %v5960 = vpack.c.b16 %v5536, %v5532
      %v5961 = vpack.c.b16 %v5537, %v5533
      %v5962 = vpack.c.b16 %v5538, %v5534
      %v5963 = vpack.c.b16 %v5543, %v5539
      %v5964 = vpack.c.b16 %v5544, %v5540
      %v5965 = vpack.c.b16 %v5545, %v5541
      %v5966 = vpack.c.b16 %v5546, %v5542
      %v5967 = vpack.c.b16 %v5551, %v5547
      %v5968 = vpack.c.b16 %v5552, %v5548
      %v5969 = vpack.c.b16 %v5553, %v5549
      %v5970 = vpack.c.b16 %v5554, %v5550
      %v5971 = vpack.c.b16 %v5559, %v5555
      %v5972 = vpack.c.b16 %v5560, %v5556
      %v5973 = vpack.c.b16 %v5561, %v5557
      %v5974 = vpack.c.b16 %v5562, %v5558
      %v5975 = vpack.c.b16 %v5567, %v5563
      %v5976 = vpack.c.b16 %v5568, %v5564
      %v5977 = vpack.c.b16 %v5569, %v5565
      %v5978 = vpack.c.b16 %v5570, %v5566
      %v5979 = vpack.c.b16 %v5575, %v5571
      %v5980 = vpack.c.b16 %v5576, %v5572
      %v5981 = vpack.c.b16 %v5577, %v5573
      %v5982 = vpack.c.b16 %v5578, %v5574
      %v5983 = vpack.c.b16 %v5583, %v5579
      %v5984 = vpack.c.b16 %v5584, %v5580
      %v5985 = vpack.c.b16 %v5585, %v5581
      %v5986 = vpack.c.b16 %v5586, %v5582
      %v5987 = vpack.c.b16 %v5591, %v5587
      %v5988 = vpack.c.b16 %v5592, %v5588
      %v5989 = vpack.c.b16 %v5593, %v5589
      %v5990 = vpack.c.b16 %v5594, %v5590
      %v5991 = vpack.c.b16 %v5599, %v5595
      %v5992 = vpack.c.b16 %v5600, %v5596
      %v5993 = vpack.c.b16 %v5601, %v5597
      %v5994 = vpack.c.b16 %v5602, %v5598
      %v5995 = vpack.c.b16 %v5607, %v5603
      %v5996 = vpack.c.b16 %v5608, %v5604
      %v5997 = vpack.c.b16 %v5609, %v5605
      %v5998 = vpack.c.b16 %v5610, %v5606
      %v5999 = vpack.c.b16 %v5615, %v5611
      %v6000 = vpack.c.b16 %v5616, %v5612
      %v6001 = vpack.c.b16 %v5617, %v5613
      %v6002 = vpack.c.b16 %v5618, %v5614
      %v6003 = vpack.c.b16 %v5623, %v5619
      %v6004 = vpack.c.b16 %v5624, %v5620
      %v6005 = vpack.c.b16 %v5625, %v5621
      %v6006 = vpack.c.b16 %v5626, %v5622
      %v6007 = vpack.c.b16 %v5631, %v5627
      %v6008 = vpack.c.b16 %v5632, %v5628
      %v6009 = vpack.c.b16 %v5633, %v5629
      %v6010 = vpack.c.b16 %v5634, %v5630
      %v6011 = vpack.c.b16 %v5639, %v5635
      %v6012 = vpack.c.b16 %v5640, %v5636
      %v6013 = vpack.c.b16 %v5641, %v5637
      %v6014 = vpack.c.b16 %v5642, %v5638
      %v6015 = vpack.c.b16 %v5647, %v5643
      %v6016 = vpack.c.b16 %v5648, %v5644
      %v6017 = vpack.c.b16 %v5649, %v5645
      %v6018 = vpack.c.b16 %v5650, %v5646
      %v6019 = vpack.c.b16 %v5655, %v5651
      %v6020 = vpack.c.b16 %v5656, %v5652
      %v6021 = vpack.c.b16 %v5657, %v5653
      %v6022 = vpack.c.b16 %v5658, %v5654
      %v6023 = vpack.c.b16 %v5663, %v5659
      %v6024 = vpack.c.b16 %v5664, %v5660
      %v6025 = vpack.c.b16 %v5665, %v5661
      %v6026 = vpack.c.b16 %v5666, %v5662
      %v6027 = vpack.c.b16 %v5671, %v5667
      %v6028 = vpack.c.b16 %v5672, %v5668
      %v6029 = vpack.c.b16 %v5673, %v5669
      %v6030 = vpack.c.b16 %v5674, %v5670
      %v6031 = vpack.c.b16 %v5679, %v5675
      %v6032 = vpack.c.b16 %v5680, %v5676
      %v6033 = vpack.c.b16 %v5681, %v5677
      %v6034 = vpack.c.b16 %v5682, %v5678
      %v6035 = vpack.c.b16 %v5687, %v5683
      %v6036 = vpack.c.b16 %v5688, %v5684
      %v6037 = vpack.c.b16 %v5689, %v5685
      %v6038 = vpack.c.b16 %v5690, %v5686
      %v6039 = vpack.c.b16 %v5695, %v5691
      %v6040 = vpack.c.b16 %v5696, %v5692
      %v6041 = vpack.c.b16 %v5697, %v5693
      %v6042 = vpack.c.b16 %v5698, %v5694
      %v6043 = vpack.c.b16 %v5703, %v5699
      %v6044 = vpack.c.b16 %v5704, %v5700
      %v6045 = vpack.c.b16 %v5705, %v5701
      %v6046 = vpack.c.b16 %v5706, %v5702
      %v6047 = vpack.c.b16 %v5711, %v5707
      %v6048 = vpack.c.b16 %v5712, %v5708
      %v6049 = vpack.c.b16 %v5713, %v5709
      %v6050 = vpack.c.b16 %v5714, %v5710
      %v6051 = vpack.c.b16 %v5719, %v5715
      %v6052 = vpack.c.b16 %v5720, %v5716
      %v6053 = vpack.c.b16 %v5721, %v5717
      %v6054 = vpack.c.b16 %v5722, %v5718
      %v6055 = vpack.c.b16 %v5727, %v5723
      %v6056 = vpack.c.b16 %v5728, %v5724
      %v6057 = vpack.c.b16 %v5729, %v5725
      %v6058 = vpack.c.b16 %v5730, %v5726
      %v6059 = vpack.c.b16 %v5735, %v5731
      %v6060 = vpack.c.b16 %v5736, %v5732
      %v6061 = vpack.c.b16 %v5737, %v5733
      %v6062 = vpack.c.b16 %v5738, %v5734
      %v6063 = vpack.c.b16 %v5743, %v5739
      %v6064 = vpack.c.b16 %v5744, %v5740
      %v6065 = vpack.c.b16 %v5745, %v5741
      %v6066 = vpack.c.b16 %v5746, %v5742
      %v6067 = vpack.c.b16 %v5751, %v5747
      %v6068 = vpack.c.b16 %v5752, %v5748
      %v6069 = vpack.c.b16 %v5753, %v5749
      %v6070 = vpack.c.b16 %v5754, %v5750
      %v6071 = vpack.c.b16 %v5759, %v5755
      %v6072 = vpack.c.b16 %v5760, %v5756
      %v6073 = vpack.c.b16 %v5761, %v5757
      %v6074 = vpack.c.b16 %v5762, %v5758
      %v6075 = vpack.c.b16 %v5767, %v5763
      %v6076 = vpack.c.b16 %v5768, %v5764
      %v6077 = vpack.c.b16 %v5769, %v5765
      %v6078 = vpack.c.b16 %v5770, %v5766
      %v6079 = vpack.c.b16 %v5775, %v5771
      %v6080 = vpack.c.b16 %v5776, %v5772
      %v6081 = vpack.c.b16 %v5777, %v5773
      %v6082 = vpack.c.b16 %v5778, %v5774
      %v6083 = vpack.c.b16 %v5783, %v5779
      %v6084 = vpack.c.b16 %v5784, %v5780
      %v6085 = vpack.c.b16 %v5785, %v5781
      %v6086 = vpack.c.b16 %v5786, %v5782
      %v6087 = vpack.c.b16 %v5791, %v5787
      %v6088 = vpack.c.b16 %v5792, %v5788
      %v6089 = vpack.c.b16 %v5793, %v5789
      %v6090 = vpack.c.b16 %v5794, %v5790
      %v6091 = vpack.c.b16 %v5795, %v5795
      %v6092 = vpack.c.b16 %v5796, %v5796
      %v6093 = vpack.c.b16 %v5797, %v5797
      %v6094 = vpack.c.b16 %v5798, %v5798
      %vm6387 = vcmask 195584
      %v6389 = vsel %vm6387, %v4590, 0
      %v6392 = vsel %vm6387, %v4600, 0
      %vm6394 = vcmask 1043456
      %v6396 = vsel %vm6394, %v6091, 0
      %v6399 = vsel %vm6394, %v6092, 0
      %v6402 = vsel %vm6394, %v6093, 0
      %v6405 = vsel %vm6394, %v6094, 0
      %6407 = vmatprep.subr.bf16.mxu0 %v5828
      %6408 = vmatpush1.bf16.msra.mxu0 %v5827
      %6409 = vmatprep.subr.bf16.mxu0 %v5824
      %6410 = vmatpush1.bf16.msra.mxu0 %v5823
      %6411 = vmatprep.subr.bf16.mxu0 %v5820
      %6412 = vmatpush1.bf16.msra.mxu0 %v5819
      %6413 = vmatprep.subr.bf16.mxu0 %v5816
      %6414 = vmatpush1.bf16.msra.mxu0 %v5815
      %6415 = vmatprep.subr.bf16.mxu0 %v5812
      %6416 = vmatpush1.bf16.msra.mxu0 %v5811
      %6417 = vmatprep.subr.bf16.mxu0 %v5808
      %6418 = vmatpush1.bf16.msra.mxu0 %v5807
      %6419 = vmatprep.subr.bf16.mxu0 %v5804
      %6420 = vmatpush1.bf16.msra.mxu0 %v5803
      %6421 = vmatprep.subr.bf16.mxu0 %v5800
      %6422 = vmatpush1.bf16.msra.mxu0 %v5799
      %6423 = vmatprep.subr.bf16.mxu0 %v5860
      %6424 = vmatpush2.bf16.msra.mxu0 %v5859
      %6425 = vmatprep.subr.bf16.mxu0 %v5856
      %6426 = vmatpush2.bf16.msra.mxu0 %v5855
      %6427 = vmatprep.subr.bf16.mxu0 %v5852
      %6428 = vmatpush2.bf16.msra.mxu0 %v5851
      %6429 = vmatprep.subr.bf16.mxu0 %v5848
      %6430 = vmatpush2.bf16.msra.mxu0 %v5847
      %6431 = vmatprep.subr.bf16.mxu0 %v5844
      %6432 = vmatpush2.bf16.msra.mxu0 %v5843
      %6433 = vmatprep.subr.bf16.mxu0 %v5840
      %6434 = vmatpush2.bf16.msra.mxu0 %v5839
      %6435 = vmatprep.subr.bf16.mxu0 %v5836
      %6436 = vmatpush2.bf16.msra.mxu0 %v5835
      %6437 = vmatprep.subr.bf16.mxu0 %v5832
      %6438 = vmatpush2.bf16.msra.mxu0 %v5831
      %6439 = vmatprep.mubr.bf16.mxu0 %v4582
      %6440 = vmatmul.mubr.bf16.gmra.mxu0 %v4581
      %v6441 = vpop.f32.mrf.mxu0
      %v6442 = vadd.f32 %v4900, %v6441
      %v6443 = vpop.f32.mrf.mxu0
      %v6444 = vadd.f32 %v4904, %v6443
      %v6445 = vpop.f32.mrf.mxu0
      %v6446 = vadd.f32 %v4900, %v6445
      %v6447 = vpop.f32.mrf.mxu0
      %v6448 = vadd.f32 %v4904, %v6447
      %6449 = vmatprep.mubr.bf16.mxu0 %v4592
      %6450 = vmatmul.mubr.bf16.gmra.mxu0 %v4591
      %v6451 = vpop.f32.mrf.mxu0
      %v6452 = vadd.f32 %v4900, %v6451
      %v6453 = vpop.f32.mrf.mxu0
      %v6454 = vadd.f32 %v4904, %v6453
      %v6455 = vpop.f32.mrf.mxu0
      %v6456 = vadd.f32 %v4900, %v6455
      %v6457 = vpop.f32.mrf.mxu0
      %v6458 = vadd.f32 %v4904, %v6457
      %6459 = vdwg.mxu0
      %6460 = vmatprep.subr.bf16.mxu0 %v5892
      %6461 = vmatpush1.bf16.msra.mxu0 %v5891
      %6462 = vmatprep.subr.bf16.mxu0 %v5888
      %6463 = vmatpush1.bf16.msra.mxu0 %v5887
      %6464 = vmatprep.subr.bf16.mxu0 %v5884
      %6465 = vmatpush1.bf16.msra.mxu0 %v5883
      %6466 = vmatprep.subr.bf16.mxu0 %v5880
      %6467 = vmatpush1.bf16.msra.mxu0 %v5879
      %6468 = vmatprep.subr.bf16.mxu0 %v5876
      %6469 = vmatpush1.bf16.msra.mxu0 %v5875
      %6470 = vmatprep.subr.bf16.mxu0 %v5872
      %6471 = vmatpush1.bf16.msra.mxu0 %v5871
      %6472 = vmatprep.subr.bf16.mxu0 %v5868
      %6473 = vmatpush1.bf16.msra.mxu0 %v5867
      %6474 = vmatprep.subr.bf16.mxu0 %v5864
      %6475 = vmatpush1.bf16.msra.mxu0 %v5863
      %6476 = vmatprep.subr.bf16.mxu0 %v5924
      %6477 = vmatpush2.bf16.msra.mxu0 %v5923
      %6478 = vmatprep.subr.bf16.mxu0 %v5920
      %6479 = vmatpush2.bf16.msra.mxu0 %v5919
      %6480 = vmatprep.subr.bf16.mxu0 %v5916
      %6481 = vmatpush2.bf16.msra.mxu0 %v5915
      %6482 = vmatprep.subr.bf16.mxu0 %v5912
      %6483 = vmatpush2.bf16.msra.mxu0 %v5911
      %6484 = vmatprep.subr.bf16.mxu0 %v5908
      %6485 = vmatpush2.bf16.msra.mxu0 %v5907
      %6486 = vmatprep.subr.bf16.mxu0 %v5904
      %6487 = vmatpush2.bf16.msra.mxu0 %v5903
      %6488 = vmatprep.subr.bf16.mxu0 %v5900
      %6489 = vmatpush2.bf16.msra.mxu0 %v5899
      %6490 = vmatprep.subr.bf16.mxu0 %v5896
      %6491 = vmatpush2.bf16.msra.mxu0 %v5895
      %6492 = vmatprep.mubr.bf16.mxu0 %v4584
      %6493 = vmatmul.mubr.bf16.gmra.mxu0 %v4583
      %v6494 = vpop.f32.mrf.mxu0
      %v6495 = vadd.f32 %v6442, %v6494
      %v6496 = vpop.f32.mrf.mxu0
      %v6497 = vadd.f32 %v6444, %v6496
      %v6498 = vpop.f32.mrf.mxu0
      %v6499 = vadd.f32 %v6446, %v6498
      %v6500 = vpop.f32.mrf.mxu0
      %v6501 = vadd.f32 %v6448, %v6500
      %6502 = vmatprep.mubr.bf16.mxu0 %v4594
      %6503 = vmatmul.mubr.bf16.gmra.mxu0 %v4593
      %v6504 = vpop.f32.mrf.mxu0
      %v6505 = vadd.f32 %v6452, %v6504
      %v6506 = vpop.f32.mrf.mxu0
      %v6507 = vadd.f32 %v6454, %v6506
      %v6508 = vpop.f32.mrf.mxu0
      %v6509 = vadd.f32 %v6456, %v6508
      %v6510 = vpop.f32.mrf.mxu0
      %v6511 = vadd.f32 %v6458, %v6510
      %6512 = vdwg.mxu0
      %6513 = vmatprep.subr.bf16.mxu0 %v5956
      %6514 = vmatpush1.bf16.msra.mxu0 %v5955
      %6515 = vmatprep.subr.bf16.mxu0 %v5952
      %6516 = vmatpush1.bf16.msra.mxu0 %v5951
      %6517 = vmatprep.subr.bf16.mxu0 %v5948
      %6518 = vmatpush1.bf16.msra.mxu0 %v5947
      %6519 = vmatprep.subr.bf16.mxu0 %v5944
      %6520 = vmatpush1.bf16.msra.mxu0 %v5943
      %6521 = vmatprep.subr.bf16.mxu0 %v5940
      %6522 = vmatpush1.bf16.msra.mxu0 %v5939
      %6523 = vmatprep.subr.bf16.mxu0 %v5936
      %6524 = vmatpush1.bf16.msra.mxu0 %v5935
      %6525 = vmatprep.subr.bf16.mxu0 %v5932
      %6526 = vmatpush1.bf16.msra.mxu0 %v5931
      %6527 = vmatprep.subr.bf16.mxu0 %v5928
      %6528 = vmatpush1.bf16.msra.mxu0 %v5927
      %6529 = vmatprep.subr.bf16.mxu0 %v5988
      %6530 = vmatpush2.bf16.msra.mxu0 %v5987
      %6531 = vmatprep.subr.bf16.mxu0 %v5984
      %6532 = vmatpush2.bf16.msra.mxu0 %v5983
      %6533 = vmatprep.subr.bf16.mxu0 %v5980
      %6534 = vmatpush2.bf16.msra.mxu0 %v5979
      %6535 = vmatprep.subr.bf16.mxu0 %v5976
      %6536 = vmatpush2.bf16.msra.mxu0 %v5975
      %6537 = vmatprep.subr.bf16.mxu0 %v5972
      %6538 = vmatpush2.bf16.msra.mxu0 %v5971
      %6539 = vmatprep.subr.bf16.mxu0 %v5968
      %6540 = vmatpush2.bf16.msra.mxu0 %v5967
      %6541 = vmatprep.subr.bf16.mxu0 %v5964
      %6542 = vmatpush2.bf16.msra.mxu0 %v5963
      %6543 = vmatprep.subr.bf16.mxu0 %v5960
      %6544 = vmatpush2.bf16.msra.mxu0 %v5959
      %6545 = vmatprep.mubr.bf16.mxu0 %v4586
      %6546 = vmatmul.mubr.bf16.gmra.mxu0 %v4585
      %v6547 = vpop.f32.mrf.mxu0
      %v6548 = vadd.f32 %v6495, %v6547
      %v6549 = vpop.f32.mrf.mxu0
      %v6550 = vadd.f32 %v6497, %v6549
      %v6551 = vpop.f32.mrf.mxu0
      %v6552 = vadd.f32 %v6499, %v6551
      %v6553 = vpop.f32.mrf.mxu0
      %v6554 = vadd.f32 %v6501, %v6553
      %6555 = vmatprep.mubr.bf16.mxu0 %v4596
      %6556 = vmatmul.mubr.bf16.gmra.mxu0 %v4595
      %v6557 = vpop.f32.mrf.mxu0
      %v6558 = vadd.f32 %v6505, %v6557
      %v6559 = vpop.f32.mrf.mxu0
      %v6560 = vadd.f32 %v6507, %v6559
      %v6561 = vpop.f32.mrf.mxu0
      %v6562 = vadd.f32 %v6509, %v6561
      %v6563 = vpop.f32.mrf.mxu0
      %v6564 = vadd.f32 %v6511, %v6563
      %6565 = vdwg.mxu0
      %6566 = vmatprep.subr.bf16.mxu0 %v6020
      %6567 = vmatpush1.bf16.msra.mxu0 %v6019
      %6568 = vmatprep.subr.bf16.mxu0 %v6016
      %6569 = vmatpush1.bf16.msra.mxu0 %v6015
      %6570 = vmatprep.subr.bf16.mxu0 %v6012
      %6571 = vmatpush1.bf16.msra.mxu0 %v6011
      %6572 = vmatprep.subr.bf16.mxu0 %v6008
      %6573 = vmatpush1.bf16.msra.mxu0 %v6007
      %6574 = vmatprep.subr.bf16.mxu0 %v6004
      %6575 = vmatpush1.bf16.msra.mxu0 %v6003
      %6576 = vmatprep.subr.bf16.mxu0 %v6000
      %6577 = vmatpush1.bf16.msra.mxu0 %v5999
      %6578 = vmatprep.subr.bf16.mxu0 %v5996
      %6579 = vmatpush1.bf16.msra.mxu0 %v5995
      %6580 = vmatprep.subr.bf16.mxu0 %v5992
      %6581 = vmatpush1.bf16.msra.mxu0 %v5991
      %6582 = vmatprep.subr.bf16.mxu0 %v6052
      %6583 = vmatpush2.bf16.msra.mxu0 %v6051
      %6584 = vmatprep.subr.bf16.mxu0 %v6048
      %6585 = vmatpush2.bf16.msra.mxu0 %v6047
      %6586 = vmatprep.subr.bf16.mxu0 %v6044
      %6587 = vmatpush2.bf16.msra.mxu0 %v6043
      %6588 = vmatprep.subr.bf16.mxu0 %v6040
      %6589 = vmatpush2.bf16.msra.mxu0 %v6039
      %6590 = vmatprep.subr.bf16.mxu0 %v6036
      %6591 = vmatpush2.bf16.msra.mxu0 %v6035
      %6592 = vmatprep.subr.bf16.mxu0 %v6032
      %6593 = vmatpush2.bf16.msra.mxu0 %v6031
      %6594 = vmatprep.subr.bf16.mxu0 %v6028
      %6595 = vmatpush2.bf16.msra.mxu0 %v6027
      %6596 = vmatprep.subr.bf16.mxu0 %v6024
      %6597 = vmatpush2.bf16.msra.mxu0 %v6023
      %6598 = vmatprep.mubr.bf16.mxu0 %v4588
      %6599 = vmatmul.mubr.bf16.gmra.mxu0 %v4587
      %v6600 = vpop.f32.mrf.mxu0
      %v6601 = vadd.f32 %v6548, %v6600
      %v6602 = vpop.f32.mrf.mxu0
      %v6603 = vadd.f32 %v6550, %v6602
      %v6604 = vpop.f32.mrf.mxu0
      %v6605 = vadd.f32 %v6552, %v6604
      %v6606 = vpop.f32.mrf.mxu0
      %v6607 = vadd.f32 %v6554, %v6606
      %6608 = vmatprep.mubr.bf16.mxu0 %v4598
      %6609 = vmatmul.mubr.bf16.gmra.mxu0 %v4597
      %v6610 = vpop.f32.mrf.mxu0
      %v6611 = vadd.f32 %v6558, %v6610
      %v6612 = vpop.f32.mrf.mxu0
      %v6613 = vadd.f32 %v6560, %v6612
      %v6614 = vpop.f32.mrf.mxu0
      %v6615 = vadd.f32 %v6562, %v6614
      %v6616 = vpop.f32.mrf.mxu0
      %v6617 = vadd.f32 %v6564, %v6616
      %6618 = vdwg.mxu0
      %6619 = vmatprep.subr.bf16.mxu0 %v6084
      %6620 = vmatpush1.bf16.msra.mxu0 %v6083
      %6621 = vmatprep.subr.bf16.mxu0 %v6080
      %6622 = vmatpush1.bf16.msra.mxu0 %v6079
      %6623 = vmatprep.subr.bf16.mxu0 %v6076
      %6624 = vmatpush1.bf16.msra.mxu0 %v6075
      %6625 = vmatprep.subr.bf16.mxu0 %v6072
      %6626 = vmatpush1.bf16.msra.mxu0 %v6071
      %6627 = vmatprep.subr.bf16.mxu0 %v6068
      %6628 = vmatpush1.bf16.msra.mxu0 %v6067
      %6629 = vmatprep.subr.bf16.mxu0 %v6064
      %6630 = vmatpush1.bf16.msra.mxu0 %v6063
      %6631 = vmatprep.subr.bf16.mxu0 %v6060
      %6632 = vmatpush1.bf16.msra.mxu0 %v6059
      %6633 = vmatprep.subr.bf16.mxu0 %v6056
      %6634 = vmatpush1.bf16.msra.mxu0 %v6055
      %6635 = vmatprep.subr.bf16.mxu0 0
      %6636 = vmatpush2.bf16.msra.mxu0 0
      %6637 = vmatprep.subr.bf16.mxu0 0
      %6638 = vmatpush2.bf16.msra.mxu0 0
      %6639 = vmatprep.subr.bf16.mxu0 0
      %6640 = vmatpush2.bf16.msra.mxu0 0
      %6641 = vmatprep.subr.bf16.mxu0 0
      %6642 = vmatpush2.bf16.msra.mxu0 0
      %6643 = vmatprep.subr.bf16.mxu0 0
      %6644 = vmatpush2.bf16.msra.mxu0 0
      %6645 = vmatprep.subr.bf16.mxu0 0
      %6646 = vmatpush2.bf16.msra.mxu0 0
      %6647 = vmatprep.subr.bf16.mxu0 %v6399
      %6648 = vmatpush2.bf16.msra.mxu0 %v6396
      %6649 = vmatprep.subr.bf16.mxu0 %v6088
      %6650 = vmatpush2.bf16.msra.mxu0 %v6087
      %6651 = vmatprep.mubr.bf16.mxu0 %v6389
      %6652 = vmatmul.mubr.bf16.gmra.mxu0 %v4589
      %v6653 = vpop.f32.mrf.mxu0
      %v6654 = vadd.f32 %v6601, %v6653
      %v6655 = vpop.f32.mrf.mxu0
      %v6656 = vadd.f32 %v6603, %v6655
      %v6657 = vpop.f32.mrf.mxu0
      %v6658 = vadd.f32 %v6605, %v6657
      %v6659 = vpop.f32.mrf.mxu0
      %v6660 = vadd.f32 %v6607, %v6659
      %6661 = vmatprep.mubr.bf16.mxu0 %v6392
      %6662 = vmatmul.mubr.bf16.gmra.mxu0 %v4599
      %v6663 = vpop.f32.mrf.mxu0
      %v6664 = vadd.f32 %v6611, %v6663
      %v6665 = vpop.f32.mrf.mxu0
      %v6666 = vadd.f32 %v6613, %v6665
      %v6667 = vpop.f32.mrf.mxu0
      %v6668 = vadd.f32 %v6615, %v6667
      %v6669 = vpop.f32.mrf.mxu0
      %v6670 = vadd.f32 %v6617, %v6669
      %6671 = vdwg.mxu0
      %6672 = vmatprep.subr.bf16.mxu0 %v5830
      %6673 = vmatpush1.bf16.msra.mxu0 %v5829
      %6674 = vmatprep.subr.bf16.mxu0 %v5826
      %6675 = vmatpush1.bf16.msra.mxu0 %v5825
      %6676 = vmatprep.subr.bf16.mxu0 %v5822
      %6677 = vmatpush1.bf16.msra.mxu0 %v5821
      %6678 = vmatprep.subr.bf16.mxu0 %v5818
      %6679 = vmatpush1.bf16.msra.mxu0 %v5817
      %6680 = vmatprep.subr.bf16.mxu0 %v5814
      %6681 = vmatpush1.bf16.msra.mxu0 %v5813
      %6682 = vmatprep.subr.bf16.mxu0 %v5810
      %6683 = vmatpush1.bf16.msra.mxu0 %v5809
      %6684 = vmatprep.subr.bf16.mxu0 %v5806
      %6685 = vmatpush1.bf16.msra.mxu0 %v5805
      %6686 = vmatprep.subr.bf16.mxu0 %v5802
      %6687 = vmatpush1.bf16.msra.mxu0 %v5801
      %6688 = vmatprep.subr.bf16.mxu0 %v5862
      %6689 = vmatpush2.bf16.msra.mxu0 %v5861
      %6690 = vmatprep.subr.bf16.mxu0 %v5858
      %6691 = vmatpush2.bf16.msra.mxu0 %v5857
      %6692 = vmatprep.subr.bf16.mxu0 %v5854
      %6693 = vmatpush2.bf16.msra.mxu0 %v5853
      %6694 = vmatprep.subr.bf16.mxu0 %v5850
      %6695 = vmatpush2.bf16.msra.mxu0 %v5849
      %6696 = vmatprep.subr.bf16.mxu0 %v5846
      %6697 = vmatpush2.bf16.msra.mxu0 %v5845
      %6698 = vmatprep.subr.bf16.mxu0 %v5842
      %6699 = vmatpush2.bf16.msra.mxu0 %v5841
      %6700 = vmatprep.subr.bf16.mxu0 %v5838
      %6701 = vmatpush2.bf16.msra.mxu0 %v5837
      %6702 = vmatprep.subr.bf16.mxu0 %v5834
      %6703 = vmatpush2.bf16.msra.mxu0 %v5833
      %6704 = vmatprep.mubr.bf16.mxu0 %v4582
      %6705 = vmatmul.mubr.bf16.gmra.mxu0 %v4581
      %v6706 = vpop.f32.mrf.mxu0
      %v6707 = vadd.f32 %v4908, %v6706
      %v6708 = vpop.f32.mrf.mxu0
      %v6709 = vadd.f32 %v4912, %v6708
      %v6710 = vpop.f32.mrf.mxu0
      %v6711 = vadd.f32 %v4908, %v6710
      %v6712 = vpop.f32.mrf.mxu0
      %v6713 = vadd.f32 %v4912, %v6712
      %6714 = vmatprep.mubr.bf16.mxu0 %v4592
      %6715 = vmatmul.mubr.bf16.gmra.mxu0 %v4591
      %v6716 = vpop.f32.mrf.mxu0
      %v6717 = vadd.f32 %v4908, %v6716
      %v6718 = vpop.f32.mrf.mxu0
      %v6719 = vadd.f32 %v4912, %v6718
      %v6720 = vpop.f32.mrf.mxu0
      %v6721 = vadd.f32 %v4908, %v6720
      %v6722 = vpop.f32.mrf.mxu0
      %v6723 = vadd.f32 %v4912, %v6722
      %6724 = vdwg.mxu0
      %6725 = vmatprep.subr.bf16.mxu0 %v5894
      %6726 = vmatpush1.bf16.msra.mxu0 %v5893
      %6727 = vmatprep.subr.bf16.mxu0 %v5890
      %6728 = vmatpush1.bf16.msra.mxu0 %v5889
      %6729 = vmatprep.subr.bf16.mxu0 %v5886
      %6730 = vmatpush1.bf16.msra.mxu0 %v5885
      %6731 = vmatprep.subr.bf16.mxu0 %v5882
      %6732 = vmatpush1.bf16.msra.mxu0 %v5881
      %6733 = vmatprep.subr.bf16.mxu0 %v5878
      %6734 = vmatpush1.bf16.msra.mxu0 %v5877
      %6735 = vmatprep.subr.bf16.mxu0 %v5874
      %6736 = vmatpush1.bf16.msra.mxu0 %v5873
      %6737 = vmatprep.subr.bf16.mxu0 %v5870
      %6738 = vmatpush1.bf16.msra.mxu0 %v5869
      %6739 = vmatprep.subr.bf16.mxu0 %v5866
      %6740 = vmatpush1.bf16.msra.mxu0 %v5865
      %6741 = vmatprep.subr.bf16.mxu0 %v5926
      %6742 = vmatpush2.bf16.msra.mxu0 %v5925
      %6743 = vmatprep.subr.bf16.mxu0 %v5922
      %6744 = vmatpush2.bf16.msra.mxu0 %v5921
      %6745 = vmatprep.subr.bf16.mxu0 %v5918
      %6746 = vmatpush2.bf16.msra.mxu0 %v5917
      %6747 = vmatprep.subr.bf16.mxu0 %v5914
      %6748 = vmatpush2.bf16.msra.mxu0 %v5913
      %6749 = vmatprep.subr.bf16.mxu0 %v5910
      %6750 = vmatpush2.bf16.msra.mxu0 %v5909
      %6751 = vmatprep.subr.bf16.mxu0 %v5906
      %6752 = vmatpush2.bf16.msra.mxu0 %v5905
      %6753 = vmatprep.subr.bf16.mxu0 %v5902
      %6754 = vmatpush2.bf16.msra.mxu0 %v5901
      %6755 = vmatprep.subr.bf16.mxu0 %v5898
      %6756 = vmatpush2.bf16.msra.mxu0 %v5897
      %6757 = vmatprep.mubr.bf16.mxu0 %v4584
      %6758 = vmatmul.mubr.bf16.gmra.mxu0 %v4583
      %v6759 = vpop.f32.mrf.mxu0
      %v6760 = vadd.f32 %v6707, %v6759
      %v6761 = vpop.f32.mrf.mxu0
      %v6762 = vadd.f32 %v6709, %v6761
      %v6763 = vpop.f32.mrf.mxu0
      %v6764 = vadd.f32 %v6711, %v6763
      %v6765 = vpop.f32.mrf.mxu0
      %v6766 = vadd.f32 %v6713, %v6765
      %6767 = vmatprep.mubr.bf16.mxu0 %v4594
      %6768 = vmatmul.mubr.bf16.gmra.mxu0 %v4593
      %v6769 = vpop.f32.mrf.mxu0
      %v6770 = vadd.f32 %v6717, %v6769
      %v6771 = vpop.f32.mrf.mxu0
      %v6772 = vadd.f32 %v6719, %v6771
      %v6773 = vpop.f32.mrf.mxu0
      %v6774 = vadd.f32 %v6721, %v6773
      %v6775 = vpop.f32.mrf.mxu0
      %v6776 = vadd.f32 %v6723, %v6775
      %6777 = vdwg.mxu0
      %6778 = vmatprep.subr.bf16.mxu0 %v5958
      %6779 = vmatpush1.bf16.msra.mxu0 %v5957
      %6780 = vmatprep.subr.bf16.mxu0 %v5954
      %6781 = vmatpush1.bf16.msra.mxu0 %v5953
      %6782 = vmatprep.subr.bf16.mxu0 %v5950
      %6783 = vmatpush1.bf16.msra.mxu0 %v5949
      %6784 = vmatprep.subr.bf16.mxu0 %v5946
      %6785 = vmatpush1.bf16.msra.mxu0 %v5945
      %6786 = vmatprep.subr.bf16.mxu0 %v5942
      %6787 = vmatpush1.bf16.msra.mxu0 %v5941
      %6788 = vmatprep.subr.bf16.mxu0 %v5938
      %6789 = vmatpush1.bf16.msra.mxu0 %v5937
      %6790 = vmatprep.subr.bf16.mxu0 %v5934
      %6791 = vmatpush1.bf16.msra.mxu0 %v5933
      %6792 = vmatprep.subr.bf16.mxu0 %v5930
      %6793 = vmatpush1.bf16.msra.mxu0 %v5929
      %6794 = vmatprep.subr.bf16.mxu0 %v5990
      %6795 = vmatpush2.bf16.msra.mxu0 %v5989
      %6796 = vmatprep.subr.bf16.mxu0 %v5986
      %6797 = vmatpush2.bf16.msra.mxu0 %v5985
      %6798 = vmatprep.subr.bf16.mxu0 %v5982
      %6799 = vmatpush2.bf16.msra.mxu0 %v5981
      %6800 = vmatprep.subr.bf16.mxu0 %v5978
      %6801 = vmatpush2.bf16.msra.mxu0 %v5977
      %6802 = vmatprep.subr.bf16.mxu0 %v5974
      %6803 = vmatpush2.bf16.msra.mxu0 %v5973
      %6804 = vmatprep.subr.bf16.mxu0 %v5970
      %6805 = vmatpush2.bf16.msra.mxu0 %v5969
      %6806 = vmatprep.subr.bf16.mxu0 %v5966
      %6807 = vmatpush2.bf16.msra.mxu0 %v5965
      %6808 = vmatprep.subr.bf16.mxu0 %v5962
      %6809 = vmatpush2.bf16.msra.mxu0 %v5961
      %6810 = vmatprep.mubr.bf16.mxu0 %v4586
      %6811 = vmatmul.mubr.bf16.gmra.mxu0 %v4585
      %v6812 = vpop.f32.mrf.mxu0
      %v6813 = vadd.f32 %v6760, %v6812
      %v6814 = vpop.f32.mrf.mxu0
      %v6815 = vadd.f32 %v6762, %v6814
      %v6816 = vpop.f32.mrf.mxu0
      %v6817 = vadd.f32 %v6764, %v6816
      %v6818 = vpop.f32.mrf.mxu0
      %v6819 = vadd.f32 %v6766, %v6818
      %6820 = vmatprep.mubr.bf16.mxu0 %v4596
      %6821 = vmatmul.mubr.bf16.gmra.mxu0 %v4595
      %v6822 = vpop.f32.mrf.mxu0
      %v6823 = vadd.f32 %v6770, %v6822
      %v6824 = vpop.f32.mrf.mxu0
      %v6825 = vadd.f32 %v6772, %v6824
      %v6826 = vpop.f32.mrf.mxu0
      %v6827 = vadd.f32 %v6774, %v6826
      %v6828 = vpop.f32.mrf.mxu0
      %v6829 = vadd.f32 %v6776, %v6828
      %6830 = vdwg.mxu0
      %6831 = vmatprep.subr.bf16.mxu0 %v6022
      %6832 = vmatpush1.bf16.msra.mxu0 %v6021
      %6833 = vmatprep.subr.bf16.mxu0 %v6018
      %6834 = vmatpush1.bf16.msra.mxu0 %v6017
      %6835 = vmatprep.subr.bf16.mxu0 %v6014
      %6836 = vmatpush1.bf16.msra.mxu0 %v6013
      %6837 = vmatprep.subr.bf16.mxu0 %v6010
      %6838 = vmatpush1.bf16.msra.mxu0 %v6009
      %6839 = vmatprep.subr.bf16.mxu0 %v6006
      %6840 = vmatpush1.bf16.msra.mxu0 %v6005
      %6841 = vmatprep.subr.bf16.mxu0 %v6002
      %6842 = vmatpush1.bf16.msra.mxu0 %v6001
      %6843 = vmatprep.subr.bf16.mxu0 %v5998
      %6844 = vmatpush1.bf16.msra.mxu0 %v5997
      %6845 = vmatprep.subr.bf16.mxu0 %v5994
      %6846 = vmatpush1.bf16.msra.mxu0 %v5993
      %6847 = vmatprep.subr.bf16.mxu0 %v6054
      %6848 = vmatpush2.bf16.msra.mxu0 %v6053
      %6849 = vmatprep.subr.bf16.mxu0 %v6050
      %6850 = vmatpush2.bf16.msra.mxu0 %v6049
      %6851 = vmatprep.subr.bf16.mxu0 %v6046
      %6852 = vmatpush2.bf16.msra.mxu0 %v6045
      %6853 = vmatprep.subr.bf16.mxu0 %v6042
      %6854 = vmatpush2.bf16.msra.mxu0 %v6041
      %6855 = vmatprep.subr.bf16.mxu0 %v6038
      %6856 = vmatpush2.bf16.msra.mxu0 %v6037
      %6857 = vmatprep.subr.bf16.mxu0 %v6034
      %6858 = vmatpush2.bf16.msra.mxu0 %v6033
      %6859 = vmatprep.subr.bf16.mxu0 %v6030
      %6860 = vmatpush2.bf16.msra.mxu0 %v6029
      %6861 = vmatprep.subr.bf16.mxu0 %v6026
      %6862 = vmatpush2.bf16.msra.mxu0 %v6025
      %6863 = vmatprep.mubr.bf16.mxu0 %v4588
      %6864 = vmatmul.mubr.bf16.gmra.mxu0 %v4587
      %v6865 = vpop.f32.mrf.mxu0
      %v6866 = vadd.f32 %v6813, %v6865
      %v6867 = vpop.f32.mrf.mxu0
      %v6868 = vadd.f32 %v6815, %v6867
      %v6869 = vpop.f32.mrf.mxu0
      %v6870 = vadd.f32 %v6817, %v6869
      %v6871 = vpop.f32.mrf.mxu0
      %v6872 = vadd.f32 %v6819, %v6871
      %6873 = vmatprep.mubr.bf16.mxu0 %v4598
      %6874 = vmatmul.mubr.bf16.gmra.mxu0 %v4597
      %v6875 = vpop.f32.mrf.mxu0
      %v6876 = vadd.f32 %v6823, %v6875
      %v6877 = vpop.f32.mrf.mxu0
      %v6878 = vadd.f32 %v6825, %v6877
      %v6879 = vpop.f32.mrf.mxu0
      %v6880 = vadd.f32 %v6827, %v6879
      %v6881 = vpop.f32.mrf.mxu0
      %v6882 = vadd.f32 %v6829, %v6881
      %6883 = vdwg.mxu0
      %6884 = vmatprep.subr.bf16.mxu0 %v6086
      %6885 = vmatpush1.bf16.msra.mxu0 %v6085
      %6886 = vmatprep.subr.bf16.mxu0 %v6082
      %6887 = vmatpush1.bf16.msra.mxu0 %v6081
      %6888 = vmatprep.subr.bf16.mxu0 %v6078
      %6889 = vmatpush1.bf16.msra.mxu0 %v6077
      %6890 = vmatprep.subr.bf16.mxu0 %v6074
      %6891 = vmatpush1.bf16.msra.mxu0 %v6073
      %6892 = vmatprep.subr.bf16.mxu0 %v6070
      %6893 = vmatpush1.bf16.msra.mxu0 %v6069
      %6894 = vmatprep.subr.bf16.mxu0 %v6066
      %6895 = vmatpush1.bf16.msra.mxu0 %v6065
      %6896 = vmatprep.subr.bf16.mxu0 %v6062
      %6897 = vmatpush1.bf16.msra.mxu0 %v6061
      %6898 = vmatprep.subr.bf16.mxu0 %v6058
      %6899 = vmatpush1.bf16.msra.mxu0 %v6057
      %6900 = vmatprep.subr.bf16.mxu0 0
      %6901 = vmatpush2.bf16.msra.mxu0 0
      %6902 = vmatprep.subr.bf16.mxu0 0
      %6903 = vmatpush2.bf16.msra.mxu0 0
      %6904 = vmatprep.subr.bf16.mxu0 0
      %6905 = vmatpush2.bf16.msra.mxu0 0
      %6906 = vmatprep.subr.bf16.mxu0 0
      %6907 = vmatpush2.bf16.msra.mxu0 0
      %6908 = vmatprep.subr.bf16.mxu0 0
      %6909 = vmatpush2.bf16.msra.mxu0 0
      %6910 = vmatprep.subr.bf16.mxu0 0
      %6911 = vmatpush2.bf16.msra.mxu0 0
      %6912 = vmatprep.subr.bf16.mxu0 %v6405
      %6913 = vmatpush2.bf16.msra.mxu0 %v6402
      %6914 = vmatprep.subr.bf16.mxu0 %v6090
      %6915 = vmatpush2.bf16.msra.mxu0 %v6089
      %6916 = vmatprep.mubr.bf16.mxu0 %v6389
      %6917 = vmatmul.mubr.bf16.gmra.mxu0 %v4589
      %v6918 = vpop.f32.mrf.mxu0
      %v6919 = vadd.f32 %v6866, %v6918
      %v6920 = vpop.f32.mrf.mxu0
      %v6921 = vadd.f32 %v6868, %v6920
      %v6922 = vpop.f32.mrf.mxu0
      %v6923 = vadd.f32 %v6870, %v6922
      %v6924 = vpop.f32.mrf.mxu0
      %v6925 = vadd.f32 %v6872, %v6924
      %6926 = vmatprep.mubr.bf16.mxu0 %v6392
      %6927 = vmatmul.mubr.bf16.gmra.mxu0 %v4599
      %v6928 = vpop.f32.mrf.mxu0
      %v6929 = vadd.f32 %v6876, %v6928
      %v6930 = vpop.f32.mrf.mxu0
      %v6931 = vadd.f32 %v6878, %v6930
      %v6932 = vpop.f32.mrf.mxu0
      %v6933 = vadd.f32 %v6880, %v6932
      %v6934 = vpop.f32.mrf.mxu0
      %v6935 = vadd.f32 %v6882, %v6934
      %6936 = vdwg.mxu0
      %v6937 = vmax.f32 %v6654, 0.0
      %v6938 = vmax.f32 %v6656, 0.0
      %v6939 = vmax.f32 %v6919, 0.0
      %v6940 = vmax.f32 %v6921, 0.0
      %v6941 = vmax.f32 %v6658, 0.0
      %v6942 = vmax.f32 %v6660, 0.0
      %v6943 = vmax.f32 %v6923, 0.0
      %v6944 = vmax.f32 %v6925, 0.0
      %v6945 = vmax.f32 %v6664, 0.0
      %v6946 = vmax.f32 %v6666, 0.0
      %v6947 = vmax.f32 %v6929, 0.0
      %v6948 = vmax.f32 %v6931, 0.0
      %v6949 = vmax.f32 %v6668, 0.0
      %v6950 = vmax.f32 %v6670, 0.0
      %v6951 = vmax.f32 %v6933, 0.0
      %v6952 = vmax.f32 %v6935, 0.0
      %v6953 = vpack.c.bf16 %v6941, %v6937
      %v6954 = vpack.c.bf16 %v6942, %v6938
      %v6955 = vpack.c.bf16 %v6943, %v6939
      %v6956 = vpack.c.bf16 %v6944, %v6940
      %v6957 = vpack.c.bf16 %v6949, %v6945
      %v6958 = vpack.c.bf16 %v6950, %v6946
      %v6959 = vpack.c.bf16 %v6951, %v6947
      %v6960 = vpack.c.bf16 %v6952, %v6948
      %v6961 = vld [vmem:[%s5] sm:$0xf]
      %v6962 = vld [vmem:[%s5 + $0x4] sm:$0xf]
      %v6963 = vld [vmem:[%s5 + $0x8] sm:$0xf]
      %v6964 = vld [vmem:[%s5 + $0xc] sm:$0xf]
      %v6965 = vld [vmem:[%s5 + $0x10] sm:$0xf]
      %v6966 = vld [vmem:[%s5 + $0x14] sm:$0xf]
      %v6967 = vld [vmem:[%s5 + $0x18] sm:$0xf]
      %v6968 = vld [vmem:[%s5 + $0x1c] sm:$0xf]
      %v6969 = vld [vmem:[%s5 + $0x20] sm:$0xf]
      %v6970 = vld [vmem:[%s5 + $0x24] sm:$0xf]
      %v6971 = vld [vmem:[%s5 + $0x28] sm:$0xf]
      %v6972 = vld [vmem:[%s5 + $0x2c] sm:$0xf]
      %v6973 = vld [vmem:[%s5 + $0x30] sm:$0xf]
      %v6974 = vld [vmem:[%s5 + $0x34] sm:$0xf]
      %v6975 = vld [vmem:[%s5 + $0x38] sm:$0xf]
      %v6976 = vld [vmem:[%s5 + $0x3c] sm:$0xf]
      %v6977 = vld [vmem:[%s5 + $0x40] sm:$0xf]
      %v6978 = vld [vmem:[%s5 + $0x44] sm:$0xf]
      %v6979 = vld [vmem:[%s5 + $0x48] sm:$0xf]
      %v6980 = vld [vmem:[%s5 + $0x4c] sm:$0xf]
      %v6981 = vld [vmem:[%s5 + $0x50] sm:$0xf]
      %v6982 = vld [vmem:[%s5 + $0x54] sm:$0xf]
      %v6983 = vld [vmem:[%s5 + $0x58] sm:$0xf]
      %v6984 = vld [vmem:[%s5 + $0x5c] sm:$0xf]
      %v6985 = vld [vmem:[%s5 + $0x60] sm:$0xf]
      %v6986 = vld [vmem:[%s5 + $0x64] sm:$0xf]
      %v6987 = vld [vmem:[%s5 + $0x68] sm:$0xf]
      %v6988 = vld [vmem:[%s5 + $0x6c] sm:$0xf]
      %v6989 = vld [vmem:[%s5 + $0x70] sm:$0xf]
      %v6990 = vld [vmem:[%s5 + $0x74] sm:$0xf]
      %v6991 = vld [vmem:[%s5 + $0x78] sm:$0xf]
      %v6992 = vld [vmem:[%s5 + $0x7c] sm:$0xf]
      %v6993 = vld [vmem:[%s5 + $0x80] sm:$0xf]
      %v6994 = vld [vmem:[%s5 + $0x84] sm:$0xf]
      %v6995 = vld [vmem:[%s5 + $0x88] sm:$0xf]
      %v6996 = vld [vmem:[%s5 + $0x8c] sm:$0xf]
      %v6997 = vld [vmem:[%s5 + $0x90] sm:$0xf]
      %v6998 = vld [vmem:[%s5 + $0x94] sm:$0xf]
      %v6999 = vld [vmem:[%s5 + $0x98] sm:$0xf]
      %v7000 = vld [vmem:[%s5 + $0x9c] sm:$0xf]
      %v7001 = vld [vmem:[%s5 + $0xa0] sm:$0xf]
      %v7002 = vld [vmem:[%s5 + $0xa4] sm:$0xf]
      %v7003 = vld [vmem:[%s5 + $0xa8] sm:$0xf]
      %v7004 = vld [vmem:[%s5 + $0xac] sm:$0xf]
      %v7005 = vld [vmem:[%s5 + $0xb0] sm:$0xf]
      %v7006 = vld [vmem:[%s5 + $0xb4] sm:$0xf]
      %v7007 = vld [vmem:[%s5 + $0xb8] sm:$0xf]
      %v7008 = vld [vmem:[%s5 + $0xbc] sm:$0xf]
      %v7009 = vld [vmem:[%s5 + $0xc0] sm:$0xf]
      %v7010 = vld [vmem:[%s5 + $0xc4] sm:$0xf]
      %v7011 = vld [vmem:[%s6] sm:$0x1]
      %v7013 = vlaneseq
      %v7014 = vshrl.u32 %v7013, 7
      %v7015 = vsub.s32 0, %v7014
      %v7016 = vrot.slane %v7011, %v7015
      %v7068 = vunpack.c.l.b16 %v6961
      %v7069 = vunpack.c.l.b16 %v6962
      %v7070 = vunpack.c.l.b16 %v6963
      %v7071 = vunpack.c.l.b16 %v6964
      %v7072 = vunpack.c.l.b16 %v6965
      %v7073 = vunpack.c.l.b16 %v6966
      %v7074 = vunpack.c.l.b16 %v6967
      %v7075 = vunpack.c.l.b16 %v6968
      %v7076 = vunpack.c.l.b16 %v6969
      %v7077 = vunpack.c.l.b16 %v6970
      %v7078 = vunpack.c.l.b16 %v6971
      %v7079 = vunpack.c.l.b16 %v6972
      %v7080 = vunpack.c.l.b16 %v6973
      %v7081 = vunpack.c.l.b16 %v6974
      %v7082 = vunpack.c.l.b16 %v6975
      %v7083 = vunpack.c.l.b16 %v6976
      %v7084 = vunpack.c.l.b16 %v6977
      %v7085 = vunpack.c.l.b16 %v6978
      %v7086 = vunpack.c.l.b16 %v6979
      %v7087 = vunpack.c.l.b16 %v6980
      %v7088 = vunpack.c.l.b16 %v6981
      %v7089 = vunpack.c.l.b16 %v6982
      %v7090 = vunpack.c.l.b16 %v6983
      %v7091 = vunpack.c.l.b16 %v6984
      %v7092 = vunpack.c.l.b16 %v6985
      %v7093 = vunpack.c.l.b16 %v6986
      %v7094 = vunpack.c.l.b16 %v6987
      %v7095 = vunpack.c.l.b16 %v6988
      %v7096 = vunpack.c.l.b16 %v6989
      %v7097 = vunpack.c.l.b16 %v6990
      %v7098 = vunpack.c.l.b16 %v6991
      %v7099 = vunpack.c.l.b16 %v6992
      %v7100 = vunpack.c.l.b16 %v6993
      %v7101 = vunpack.c.l.b16 %v6994
      %v7102 = vunpack.c.l.b16 %v6995
      %v7103 = vunpack.c.l.b16 %v6996
      %v7104 = vunpack.c.l.b16 %v6997
      %v7105 = vunpack.c.l.b16 %v6998
      %v7106 = vunpack.c.l.b16 %v6999
      %v7107 = vunpack.c.l.b16 %v7000
      %v7108 = vunpack.c.l.b16 %v7001
      %v7109 = vunpack.c.l.b16 %v7002
      %v7110 = vunpack.c.l.b16 %v7003
      %v7111 = vunpack.c.l.b16 %v7004
      %v7112 = vunpack.c.l.b16 %v7005
      %v7113 = vunpack.c.l.b16 %v7006
      %v7114 = vunpack.c.l.b16 %v7007
      %v7115 = vunpack.c.l.b16 %v7008
      %v7116 = vunpack.c.l.b16 %v7009
      %v7117 = vunpack.c.l.b16 %v7010
      %v7118 = vpack.c.b16 %v7069, %v7068
      %v7119 = vpack.c.b16 %v7071, %v7070
      %v7120 = vpack.c.b16 %v7073, %v7072
      %v7121 = vpack.c.b16 %v7075, %v7074
      %v7122 = vpack.c.b16 %v7077, %v7076
      %v7123 = vpack.c.b16 %v7079, %v7078
      %v7124 = vpack.c.b16 %v7081, %v7080
      %v7125 = vpack.c.b16 %v7083, %v7082
      %v7126 = vpack.c.b16 %v7085, %v7084
      %v7127 = vpack.c.b16 %v7087, %v7086
      %v7128 = vpack.c.b16 %v7089, %v7088
      %v7129 = vpack.c.b16 %v7091, %v7090
      %v7130 = vpack.c.b16 %v7093, %v7092
      %v7131 = vpack.c.b16 %v7095, %v7094
      %v7132 = vpack.c.b16 %v7097, %v7096
      %v7133 = vpack.c.b16 %v7099, %v7098
      %v7134 = vpack.c.b16 %v7101, %v7100
      %v7135 = vpack.c.b16 %v7103, %v7102
      %v7136 = vpack.c.b16 %v7105, %v7104
      %v7137 = vpack.c.b16 %v7107, %v7106
      %v7138 = vpack.c.b16 %v7109, %v7108
      %v7139 = vpack.c.b16 %v7111, %v7110
      %v7140 = vpack.c.b16 %v7113, %v7112
      %v7141 = vpack.c.b16 %v7115, %v7114
      %v7142 = vpack.c.b16 %v7117, %v7116
      %v7169 = vsel %vm3474, %v6956, 0
      %v7172 = vsel %vm3474, %v6960, 0
      %7174 = vmatprep.subr.bf16.mxu0 0
      %7175 = vmatpush1.bf16.msra.mxu0 %v7125
      %7176 = vmatprep.subr.bf16.mxu0 0
      %7177 = vmatpush1.bf16.msra.mxu0 %v7124
      %7178 = vmatprep.subr.bf16.mxu0 0
      %7179 = vmatpush1.bf16.msra.mxu0 %v7123
      %7180 = vmatprep.subr.bf16.mxu0 0
      %7181 = vmatpush1.bf16.msra.mxu0 %v7122
      %7182 = vmatprep.subr.bf16.mxu0 0
      %7183 = vmatpush1.bf16.msra.mxu0 %v7121
      %7184 = vmatprep.subr.bf16.mxu0 0
      %7185 = vmatpush1.bf16.msra.mxu0 %v7120
      %7186 = vmatprep.subr.bf16.mxu0 0
      %7187 = vmatpush1.bf16.msra.mxu0 %v7119
      %7188 = vmatprep.subr.bf16.mxu0 0
      %7189 = vmatpush1.bf16.msra.mxu0 %v7118
      %7190 = vmatprep.subr.bf16.mxu0 0
      %7191 = vmatpush2.bf16.msra.mxu0 %v7133
      %7192 = vmatprep.subr.bf16.mxu0 0
      %7193 = vmatpush2.bf16.msra.mxu0 %v7132
      %7194 = vmatprep.subr.bf16.mxu0 0
      %7195 = vmatpush2.bf16.msra.mxu0 %v7131
      %7196 = vmatprep.subr.bf16.mxu0 0
      %7197 = vmatpush2.bf16.msra.mxu0 %v7130
      %7198 = vmatprep.subr.bf16.mxu0 0
      %7199 = vmatpush2.bf16.msra.mxu0 %v7129
      %7200 = vmatprep.subr.bf16.mxu0 0
      %7201 = vmatpush2.bf16.msra.mxu0 %v7128
      %7202 = vmatprep.subr.bf16.mxu0 0
      %7203 = vmatpush2.bf16.msra.mxu0 %v7127
      %7204 = vmatprep.subr.bf16.mxu0 0
      %7205 = vmatpush2.bf16.msra.mxu0 %v7126
      %7206 = vmatprep.mubr.bf16.mxu0 %v6954
      %7207 = vmatmul.mubr.bf16.gmra.mxu0 %v6953
      %v7208 = vpop.f32.mrf.mxu0
      %v7209 = vadd.f32 %v7016, %v7208
      %v7210 = vpop.f32.mrf.mxu0
      %v7211 = vpop.f32.mrf.mxu0
      %v7212 = vadd.f32 %v7016, %v7211
      %v7213 = vpop.f32.mrf.mxu0
      %7214 = vmatprep.mubr.bf16.mxu0 %v6958
      %7215 = vmatmul.mubr.bf16.gmra.mxu0 %v6957
      %v7216 = vpop.f32.mrf.mxu0
      %v7217 = vadd.f32 %v7016, %v7216
      %v7218 = vpop.f32.mrf.mxu0
      %v7219 = vpop.f32.mrf.mxu0
      %v7220 = vadd.f32 %v7016, %v7219
      %v7221 = vpop.f32.mrf.mxu0
      %7222 = vdwg.mxu0
      %7223 = vmatprep.subr.bf16.mxu0 0
      %7224 = vmatpush1.bf16.msra.mxu0 %v7141
      %7225 = vmatprep.subr.bf16.mxu0 0
      %7226 = vmatpush1.bf16.msra.mxu0 %v7140
      %7227 = vmatprep.subr.bf16.mxu0 0
      %7228 = vmatpush1.bf16.msra.mxu0 %v7139
      %7229 = vmatprep.subr.bf16.mxu0 0
      %7230 = vmatpush1.bf16.msra.mxu0 %v7138
      %7231 = vmatprep.subr.bf16.mxu0 0
      %7232 = vmatpush1.bf16.msra.mxu0 %v7137
      %7233 = vmatprep.subr.bf16.mxu0 0
      %7234 = vmatpush1.bf16.msra.mxu0 %v7136
      %7235 = vmatprep.subr.bf16.mxu0 0
      %7236 = vmatpush1.bf16.msra.mxu0 %v7135
      %7237 = vmatprep.subr.bf16.mxu0 0
      %7238 = vmatpush1.bf16.msra.mxu0 %v7134
      %7239 = vmatprep.subr.bf16.mxu0 0
      %7240 = vmatpush2.bf16.msra.mxu0 0
      %7241 = vmatprep.subr.bf16.mxu0 0
      %7242 = vmatpush2.bf16.msra.mxu0 0
      %7243 = vmatprep.subr.bf16.mxu0 0
      %7244 = vmatpush2.bf16.msra.mxu0 0
      %7245 = vmatprep.subr.bf16.mxu0 0
      %7246 = vmatpush2.bf16.msra.mxu0 0
      %7247 = vmatprep.subr.bf16.mxu0 0
      %7248 = vmatpush2.bf16.msra.mxu0 0
      %7249 = vmatprep.subr.bf16.mxu0 0
      %7250 = vmatpush2.bf16.msra.mxu0 0
      %7251 = vmatprep.subr.bf16.mxu0 0
      %7252 = vmatpush2.bf16.msra.mxu0 0
      %7253 = vmatprep.subr.bf16.mxu0 0
      %7254 = vmatpush2.bf16.msra.mxu0 %v7142
      %7255 = vmatprep.mubr.bf16.mxu0 %v7169
      %7256 = vmatmul.mubr.bf16.gmra.mxu0 %v6955
      %v7257 = vpop.f32.mrf.mxu0
      %v7258 = vadd.f32 %v7209, %v7257
      %v7259 = vpop.f32.mrf.mxu0
      %v7260 = vpop.f32.mrf.mxu0
      %v7261 = vadd.f32 %v7212, %v7260
      %v7262 = vpop.f32.mrf.mxu0
      %7263 = vmatprep.mubr.bf16.mxu0 %v7172
      %7264 = vmatmul.mubr.bf16.gmra.mxu0 %v6959
      %v7265 = vpop.f32.mrf.mxu0
      %v7266 = vadd.f32 %v7217, %v7265
      %v7267 = vpop.f32.mrf.mxu0
      %v7268 = vpop.f32.mrf.mxu0
      %v7269 = vadd.f32 %v7220, %v7268
      %v7270 = vpop.f32.mrf.mxu0
      %7271 = vdwg.mxu0
      %v7272 = vmax.f32 %v7258, 0.0
      %v7273 = vmax.f32 %v7261, 0.0
      %v7274 = vmax.f32 %v7266, 0.0
      %v7275 = vmax.f32 %v7269, 0.0
      %v7276 = vpack.c.bf16 %v7273, %v7272
      %v7277 = vpack.c.bf16 %v7275, %v7274
      %v7278 = vld [vmem:[%s7] sm:$0xf]
      %v7279 = vld [vmem:[%s7 + $0x4] sm:$0xf]
      %v7280 = vld [vmem:[%s7 + $0x8] sm:$0xf]
      %v7281 = vld [vmem:[%s7 + $0xc] sm:$0xf]
      %v7282 = vld [vmem:[%s7 + $0x10] sm:$0xf]
      %v7283 = vld [vmem:[%s7 + $0x14] sm:$0xf]
      %v7284 = vld [vmem:[%s7 + $0x18] sm:$0xf]
      %v7285 = vld [vmem:[%s7 + $0x1c] sm:$0xf]
      %v7286 = vld [vmem:[%s7 + $0x20] sm:$0xf]
      %v7287 = vld [vmem:[%s7 + $0x24] sm:$0xf]
      %v7288 = vld [vmem:[%s7 + $0x28] sm:$0xf]
      %v7289 = vld [vmem:[%s7 + $0x2c] sm:$0xf]
      %v7290 = vld [vmem:[%s7 + $0x30] sm:$0xf]
      %v7291 = vld [vmem:[%s7 + $0x34] sm:$0xf]
      %v7292 = vld [vmem:[%s7 + $0x38] sm:$0xf]
      %v7293 = vld [vmem:[%s8] sm:$0x1]
      %v7295 = vlaneseq
      %v7296 = vshrl.u32 %v7295, 7
      %v7297 = vsub.s32 0, %v7296
      %v7298 = vrot.slane %v7293, %v7297
      %v7315 = vunpack.c.l.b16 %v7278
      %v7316 = vunpack.c.l.b16 %v7279
      %v7317 = vunpack.c.l.b16 %v7280
      %v7318 = vunpack.c.l.b16 %v7281
      %v7319 = vunpack.c.l.b16 %v7282
      %v7320 = vunpack.c.l.b16 %v7283
      %v7321 = vunpack.c.l.b16 %v7284
      %v7322 = vunpack.c.l.b16 %v7285
      %v7323 = vunpack.c.l.b16 %v7286
      %v7324 = vunpack.c.l.b16 %v7287
      %v7325 = vunpack.c.l.b16 %v7288
      %v7326 = vunpack.c.l.b16 %v7289
      %v7327 = vunpack.c.l.b16 %v7290
      %v7328 = vunpack.c.l.b16 %v7291
      %v7329 = vunpack.c.l.b16 %v7292
      %v7330 = vpack.c.b16 %v7316, %v7315
      %v7331 = vpack.c.b16 %v7318, %v7317
      %v7332 = vpack.c.b16 %v7320, %v7319
      %v7333 = vpack.c.b16 %v7322, %v7321
      %v7334 = vpack.c.b16 %v7324, %v7323
      %v7335 = vpack.c.b16 %v7326, %v7325
      %v7336 = vpack.c.b16 %v7328, %v7327
      %v7337 = vpack.c.b16 %v7329, %v7329
      %vm7345 = vcmask 982016
      %v7347 = vsel %vm7345, %v7276, 0
      %v7350 = vsel %vm7345, %v7277, 0
      %v7353 = vsel %vm6394, %v7337, 0
      %7355 = vmatprep.subr.bf16.mxu0 0
      %7356 = vmatpush1.bf16.msra.mxu0 %v7353
      %7357 = vmatprep.subr.bf16.mxu0 0
      %7358 = vmatpush1.bf16.msra.mxu0 %v7336
      %7359 = vmatprep.subr.bf16.mxu0 0
      %7360 = vmatpush1.bf16.msra.mxu0 %v7335
      %7361 = vmatprep.subr.bf16.mxu0 0
      %7362 = vmatpush1.bf16.msra.mxu0 %v7334
      %7363 = vmatprep.subr.bf16.mxu0 0
      %7364 = vmatpush1.bf16.msra.mxu0 %v7333
      %7365 = vmatprep.subr.bf16.mxu0 0
      %7366 = vmatpush1.bf16.msra.mxu0 %v7332
      %7367 = vmatprep.subr.bf16.mxu0 0
      %7368 = vmatpush1.bf16.msra.mxu0 %v7331
      %7369 = vmatprep.subr.bf16.mxu0 0
      %7370 = vmatpush1.bf16.msra.mxu0 %v7330
      %7371 = vmatprep.subr.bf16.mxu0 0
      %7372 = vmatpush2.bf16.msra.mxu0 0
      %7373 = vmatprep.subr.bf16.mxu0 0
      %7374 = vmatpush2.bf16.msra.mxu0 0
      %7375 = vmatprep.subr.bf16.mxu0 0
      %7376 = vmatpush2.bf16.msra.mxu0 0
      %7377 = vmatprep.subr.bf16.mxu0 0
      %7378 = vmatpush2.bf16.msra.mxu0 0
      %7379 = vmatprep.subr.bf16.mxu0 0
      %7380 = vmatpush2.bf16.msra.mxu0 0
      %7381 = vmatprep.subr.bf16.mxu0 0
      %7382 = vmatpush2.bf16.msra.mxu0 0
      %7383 = vmatprep.subr.bf16.mxu0 0
      %7384 = vmatpush2.bf16.msra.mxu0 0
      %7385 = vmatprep.subr.bf16.mxu0 0
      %7386 = vmatpush2.bf16.msra.mxu0 0
      %7387 = vmatprep.mubr.bf16.mxu0 0
      %7388 = vmatmul.mubr.bf16.gmra.mxu0 %v7347
      %v7389 = vpop.f32.mrf.mxu0
      %v7390 = vadd.f32 %v7298, %v7389
      %v7391 = vpop.f32.mrf.mxu0
      %v7392 = vpop.f32.mrf.mxu0
      %v7393 = vadd.f32 %v7298, %v7392
      %v7394 = vpop.f32.mrf.mxu0
      %7395 = vmatprep.mubr.bf16.mxu0 0
      %7396 = vmatmul.mubr.bf16.gmra.mxu0 %v7350
      %v7397 = vpop.f32.mrf.mxu0
      %v7398 = vadd.f32 %v7298, %v7397
      %v7399 = vpop.f32.mrf.mxu0
      %v7400 = vpop.f32.mrf.mxu0
      %v7401 = vadd.f32 %v7298, %v7400
      %v7402 = vpop.f32.mrf.mxu0
      %7403 = vdwg.mxu0
      %v7404 = vmax.f32 %v7390, 0.0
      %v7405 = vmax.f32 %v7393, 0.0
      %v7406 = vmax.f32 %v7398, 0.0
      %v7407 = vmax.f32 %v7401, 0.0
      %v7408 = vpack.c.bf16 %v7405, %v7404
      %v7409 = vpack.c.bf16 %v7407, %v7406
      %v7410 = vld [vmem:[%s9] sm:$0xf]
      %v7411 = vld [vmem:[%s9 + $0x4] sm:$0xf]
      %v7412 = vld [vmem:[%s9 + $0x8] sm:$0xf]
      %v7413 = vld [vmem:[%s9 + $0xc] sm:$0xf]
      %v7414 = vld [vmem:[%s9 + $0x10] sm:$0xf]
      %v7415 = vld [vmem:[%s9 + $0x14] sm:$0xf]
      %v7416 = vld [vmem:[%s9 + $0x18] sm:$0xf]
      %v7417 = vld [vmem:[%s9 + $0x1c] sm:$0xf]
      %v7418 = vld [vmem:[%s9 + $0x20] sm:$0xf]
      %v7419 = vld [vmem:[%s9 + $0x24] sm:$0xf]
      %v7420 = vld [vmem:[%s9 + $0x28] sm:$0x3]
      %v7421 = vld [vmem:[%s10] sm:$0x1]
      %v7423 = vlaneseq
      %v7424 = vshrl.u32 %v7423, 7
      %v7425 = vsub.s32 0, %v7424
      %v7426 = vrot.slane %v7421, %v7425
      %v7439 = vunpack.c.l.b16 %v7410
      %v7440 = vunpack.c.l.b16 %v7411
      %v7441 = vunpack.c.l.b16 %v7412
      %v7442 = vunpack.c.l.b16 %v7413
      %v7443 = vunpack.c.l.b16 %v7414
      %v7444 = vunpack.c.l.b16 %v7415
      %v7445 = vunpack.c.l.b16 %v7416
      %v7446 = vunpack.c.l.b16 %v7417
      %v7447 = vunpack.c.l.b16 %v7418
      %v7448 = vunpack.c.l.b16 %v7419
      %v7449 = vunpack.c.l.b16 %v7420
      %v7450 = vpack.c.b16 %v7440, %v7439
      %v7451 = vpack.c.b16 %v7442, %v7441
      %v7452 = vpack.c.b16 %v7444, %v7443
      %v7453 = vpack.c.b16 %v7446, %v7445
      %v7454 = vpack.c.b16 %v7448, %v7447
      %v7455 = vpack.c.b16 %v7449, %v7449
      %vm7461 = vcmask 687104
      %v7463 = vsel %vm7461, %v7408, 0
      %v7466 = vsel %vm7461, %v7409, 0
      %vm7468 = vcmask 1041408
      %v7470 = vsel %vm7468, %v7455, 0
      %7472 = vmatprep.subr.bf16.mxu0 0
      %7473 = vmatpush1.bf16.msra.mxu0 0
      %7474 = vmatprep.subr.bf16.mxu0 0
      %7475 = vmatpush1.bf16.msra.mxu0 0
      %7476 = vmatprep.subr.bf16.mxu0 0
      %7477 = vmatpush1.bf16.msra.mxu0 %v7470
      %7478 = vmatprep.subr.bf16.mxu0 0
      %7479 = vmatpush1.bf16.msra.mxu0 %v7454
      %7480 = vmatprep.subr.bf16.mxu0 0
      %7481 = vmatpush1.bf16.msra.mxu0 %v7453
      %7482 = vmatprep.subr.bf16.mxu0 0
      %7483 = vmatpush1.bf16.msra.mxu0 %v7452
      %7484 = vmatprep.subr.bf16.mxu0 0
      %7485 = vmatpush1.bf16.msra.mxu0 %v7451
      %7486 = vmatprep.subr.bf16.mxu0 0
      %7487 = vmatpush1.bf16.msra.mxu0 %v7450
      %7488 = vmatprep.subr.bf16.mxu0 0
      %7489 = vmatpush2.bf16.msra.mxu0 0
      %7490 = vmatprep.subr.bf16.mxu0 0
      %7491 = vmatpush2.bf16.msra.mxu0 0
      %7492 = vmatprep.subr.bf16.mxu0 0
      %7493 = vmatpush2.bf16.msra.mxu0 0
      %7494 = vmatprep.subr.bf16.mxu0 0
      %7495 = vmatpush2.bf16.msra.mxu0 0
      %7496 = vmatprep.subr.bf16.mxu0 0
      %7497 = vmatpush2.bf16.msra.mxu0 0
      %7498 = vmatprep.subr.bf16.mxu0 0
      %7499 = vmatpush2.bf16.msra.mxu0 0
      %7500 = vmatprep.subr.bf16.mxu0 0
      %7501 = vmatpush2.bf16.msra.mxu0 0
      %7502 = vmatprep.subr.bf16.mxu0 0
      %7503 = vmatpush2.bf16.msra.mxu0 0
      %7504 = vmatprep.mubr.bf16.mxu0 0
      %7505 = vmatmul.mubr.bf16.gmra.mxu0 %v7463
      %v7506 = vpop.f32.mrf.mxu0
      %v7507 = vadd.f32 %v7426, %v7506
      %v7508 = vpop.f32.mrf.mxu0
      %v7509 = vpop.f32.mrf.mxu0
      %v7510 = vadd.f32 %v7426, %v7509
      %v7511 = vpop.f32.mrf.mxu0
      %7512 = vmatprep.mubr.bf16.mxu0 0
      %7513 = vmatmul.mubr.bf16.gmra.mxu0 %v7466
      %v7514 = vpop.f32.mrf.mxu0
      %v7515 = vadd.f32 %v7426, %v7514
      %v7516 = vpop.f32.mrf.mxu0
      %v7517 = vpop.f32.mrf.mxu0
      %v7518 = vadd.f32 %v7426, %v7517
      %v7519 = vpop.f32.mrf.mxu0
      %7520 = vdwg.mxu0
      %7521 = vst [vmem:[%s391] sm:$0xff] %v7507
      %7522 = vst [vmem:[%s391 + $0x8] sm:$0xff] %v7510
      %7523 = vst [vmem:[%s391 + $0x10] sm:$0xff] %v7515
      %7524 = vst [vmem:[%s391 + $0x18] sm:$0xff] %v7518
      %s7525 = smul.u32 4, %s22
      %p7526 = scmp.lt.s32.totalorder %s7525, 7
      %s7527 = scalar_select %p7526, %s7525, 7
      %s7528 = smul.addr %s7527, 8
      %s7529 = scalar_lea.vmem %s11, %s7528
      // Predicated region
      $region65: #{_lambda_.1} parent=63 // pred_check
        %p7530 = pneg %p276
      $region66: #{_lambda_.1} parent=63 // pred_check_branch
        %7532 = sbr.rel (%p7530) target = $region68
      $region67: #{_lambda_.1} parent=63 // pred_region
        %s7533 = smul.u32 4, %s22
      $region68: #{_lambda_.1} parent=63 // pred_fallthru
        _
    $region64: #{_lambda_.1} parent=5 // pred_fallthru
      _
    %p7534 = scmp.le.s32.totalorder 2, %s17
    // Predicated region
    $region69: #{_lambda_.1} parent=5 // pred_check
      %p7535 = pneg %p7534
    $region70: #{_lambda_.1} parent=5 // pred_check_branch
      %7537 = sbr.rel (%p7535) target = $region72
    $region71: #{_lambda_.1} parent=5 // pred_region
      %s7538 = ssub.s32 %s17, 2
      // Predicated region
      $region73: #{_lambda_.1} parent=71 // pred_check
        %p7539 = pneg %p282
      $region74: #{_lambda_.1} parent=71 // pred_check_branch
        %7541 = sbr.rel (%p7539) target = $region76
      $region75: #{_lambda_.1} parent=71 // pred_region
        %s7542 = smul.u32 4, %s23
        %p7543 = scmp.lt.s32.totalorder %s7542, 7
        %s7544 = scalar_select %p7543, %s7542, 7
        %s7545 = smul.addr %s7544, 8
        %s7546 = scalar_lea.vmem %s11, %s7545
      $region76: #{_lambda_.1} parent=71 // pred_fallthru
        _
    $region72: #{_lambda_.1} parent=5 // pred_fallthru
      _
  $region6: #{_lambda_.1} parent=0 // loop_footer
    %s21 = sadd.s32 1, %s17
  $region7: #{_lambda_.1} parent=0 // loop_footer_branch
    %16 = sbr.rel target = $region3
  $region8: #{_lambda_.1} parent=0 // loop_exit
    _

</llo_original>
